<compile_context>
chip_gen: v7x
topology: tpu7x:2x2x1
jax: 0.10.0
libtpu: 0.0.40
codegen_flags: <defaults>
</compile_context>

<pallas_src>
import math
import functools

import jax
import jax.numpy as jnp
from jax.experimental import pallas as pl
from jax.experimental.pallas import tpu as pltpu


# ----------------------------------------------------------------------------
# Small numerics helpers (pure jnp; usable both in-kernel and in the reference).
# ----------------------------------------------------------------------------
def _layer_norm(x, gamma, beta, eps=1e-5):
    mu = jnp.mean(x, axis=-1, keepdims=True)
    xc = x - mu
    var = jnp.mean(xc * xc, axis=-1, keepdims=True)
    return xc * jax.lax.rsqrt(var + eps) * gamma + beta


def _mha(q3, k3, v3, num_heads, scale):
    """Multi-head attention. q3: (B, Q, D); k3, v3: (B, S, D) -> (B, Q, D).

    Heads are selected with a lane mask (no width-head_dim lane slicing, no
    concatenate), so all matmuls stay full-width and no XLU shuffles / masked
    narrow stores are generated.  Softmax uses the approximate EUP reciprocal.
    """
    D = q3.shape[-1]
    hd = D // num_heads
    lane = jax.lax.broadcasted_iota(jnp.int32, (1, 1, D), 2)
    ctx = jnp.zeros(q3.shape, jnp.float32)
    for h in range(num_heads):                      # static unroll (num_heads=4)
        m = ((lane >= h * hd) & (lane < (h + 1) * hd)).astype(jnp.float32)
        s = jnp.einsum('bqd,bkd->bqk', q3 * m, k3,
                       preferred_element_type=jnp.float32) * scale
        s = s - jnp.max(s, axis=-1, keepdims=True)
        p = jnp.exp(s)
        p = p * pl.reciprocal(jnp.sum(p, axis=-1, keepdims=True), approx=True)
        ctx = ctx + jnp.einsum('bqk,bkd->bqd', p, v3 * m,
                               preferred_element_type=jnp.float32)
    return ctx


# ----------------------------------------------------------------------------
# Fused kernel: input projection + concat + 2 post-norm encoder layers,
# last layer computes only the final token per batch element.
# ----------------------------------------------------------------------------
def _fused_encoder_kernel(x_ref, f_ref, w_in_ref, b_in_ref,
                          wq_ref, wk_ref, wv_ref, bq_ref, bk_ref, bv_ref,
                          wo_ref, bo_ref, w1_ref, b1_ref, w2_ref, b2_ref,
                          g1_ref, be1_ref, g2_ref, be2_ref,
                          o_ref, x_scr,
                          *, num_heads, num_layers):
    f32 = jnp.float32
    Bc, V, L = x_ref.shape
    _, Lf, D = f_ref.shape
    S = V + Lf
    N = Bc * S
    hd = D // num_heads
    scale = 1.0 / math.sqrt(hd)

    # ---- fused input projection + concat with fusion tokens (into VMEM scratch) ----
    w_in = w_in_ref[...]                              # (L, D)
    b_in = b_in_ref[...]                              # (1, D)
    for b in range(Bc):                               # static unroll, Bc is tiny
        emb_b = jnp.dot(x_ref[b], w_in, preferred_element_type=f32) + b_in   # (V, D)
        x_scr[b * S: b * S + V, :] = emb_b
        x_scr[b * S + V: (b + 1) * S, :] = f_ref[b]
    x = x_scr[...]                                    # (N, D) flattened, batch-major

    # ---- full encoder layers (all but the last) -----------------------------------
    def full_layer(x, l):
        q = jnp.dot(x, wq_ref[l], preferred_element_type=f32) + bq_ref[l]
        k = jnp.dot(x, wk_ref[l], preferred_element_type=f32) + bk_ref[l]
        v = jnp.dot(x, wv_ref[l], preferred_element_type=f32) + bv_ref[l]
        ctx = _mha(q.reshape(Bc, S, D), k.reshape(Bc, S, D), v.reshape(Bc, S, D),
                   num_heads, scale).reshape(N, D)
        attn = jnp.dot(ctx, wo_ref[l], preferred_element_type=f32) + bo_ref[l]
        x1 = _layer_norm(x + attn, g1_ref[l], be1_ref[l])
        h1 = jnp.maximum(
            jnp.dot(x1, w1_ref[l], preferred_element_type=f32) + b1_ref[l], 0.0)
        ff = jnp.dot(h1, w2_ref[l], preferred_element_type=f32) + b2_ref[l]
        return _layer_norm(x1 + ff, g2_ref[l], be2_ref[l])

    for l in range(num_layers - 1):
        x = full_layer(x, l)

    # ---- last layer: only the last token per batch element is consumed ------------
    l = num_layers - 1
    k = jnp.dot(x, wk_ref[l], preferred_element_type=f32) + bk_ref[l]        # (N, D)
    v = jnp.dot(x, wv_ref[l], preferred_element_type=f32) + bv_ref[l]        # (N, D)
    x_last = jnp.concatenate(
        [x[b * S + S - 1: b * S + S, :] for b in range(Bc)], axis=0)          # (Bc, D)
    q_last = jnp.dot(x_last, wq_ref[l], preferred_element_type=f32) + bq_ref[l]
    ctx = _mha(q_last.reshape(Bc, 1, D), k.reshape(Bc, S, D), v.reshape(Bc, S, D),
               num_heads, scale).reshape(Bc, D)
    attn = jnp.dot(ctx, wo_ref[l], preferred_element_type=f32) + bo_ref[l]
    y1 = _layer_norm(x_last + attn, g1_ref[l], be1_ref[l])
    h1 = jnp.maximum(
        jnp.dot(y1, w1_ref[l], preferred_element_type=f32) + b1_ref[l], 0.0)  # (Bc, F)
    ff = jnp.dot(h1, w2_ref[l], preferred_element_type=f32) + b2_ref[l]
    y = _layer_norm(y1 + ff, g2_ref[l], be2_ref[l])                           # (Bc, D)
    o_ref[...] = y.reshape(Bc, 1, D)


# ----------------------------------------------------------------------------
# Wrapper: single pallas_call over a 2-step "parallel" batch-chunk grid.
# ----------------------------------------------------------------------------
def inverted_endogenous_encoder_forward(inputs, fusion_emb, params, num_heads=4):
    """inputs: (B, input_len, num_vars); fusion_emb: (B, Lf, D) -> (B, D)."""
    x_perm = jnp.transpose(inputs, (0, 2, 1)).astype(jnp.float32)   # permute(0,2,1)
    B, V, L = x_perm.shape
    _, Lf, D = fusion_emb.shape
    NL = params["wq"].shape[0]
    F = params["w1"].shape[2]
    S = V + Lf
    assert D % num_heads == 0

    # 2-step parallel grid over batch chunks: shards across v7x's two TensorCores
    # while each step still batches its matmuls over Bc*S rows.
    num_chunks = 2 if (B >= 2 and B % 2 == 0) else 1
    Bc = B // num_chunks

    def const(shape):
        return pl.BlockSpec(shape, lambda c: (0,) * len(shape))

    kernel = functools.partial(_fused_encoder_kernel,
                               num_heads=num_heads, num_layers=NL)
    out = pl.pallas_call(
        kernel,
        out_shape=jax.ShapeDtypeStruct((B, 1, D), jnp.float32),
        grid=(num_chunks,),
        in_specs=[
            pl.BlockSpec((Bc, V, L), lambda c: (c, 0, 0)),
            pl.BlockSpec((Bc, Lf, D), lambda c: (c, 0, 0)),
            const((L, D)), const((1, D)),
            const((NL, D, D)), const((NL, D, D)), const((NL, D, D)),
            const((NL, 1, D)), const((NL, 1, D)), const((NL, 1, D)),
            const((NL, D, D)), const((NL, 1, D)),
            const((NL, D, F)), const((NL, 1, F)),
            const((NL, F, D)), const((NL, 1, D)),
            const((NL, 1, D)), const((NL, 1, D)), const((NL, 1, D)), const((NL, 1, D)),
        ],
        out_specs=pl.BlockSpec((Bc, 1, D), lambda c: (c, 0, 0)),
        scratch_shapes=[pltpu.VMEM((Bc * S, D), jnp.float32)],
        compiler_params=pltpu.CompilerParams(
            dimension_semantics=("parallel",)),
    )(x_perm, fusion_emb.astype(jnp.float32),
      params["w_in"], params["b_in"],
      params["wq"], params["wk"], params["wv"],
      params["bq"], params["bk"], params["bv"],
      params["wo"], params["bo"],
      params["w1"], params["b1"], params["w2"], params["b2"],
      params["g1"], params["be1"], params["g2"], params["be2"])
    return out[:, 0, :]                                              # (B, D)


# ----------------------------------------------------------------------------
# Pure-JAX reference (full sequence, exact softmax) for validation.
# ----------------------------------------------------------------------------
def _reference_forward(inputs, fusion_emb, params, num_heads=4):
    x = jnp.transpose(inputs, (0, 2, 1)) @ params["w_in"] + params["b_in"]
    x = jnp.concatenate([x, fusion_emb], axis=1)
    B, S, D = x.shape
    H, hd = num_heads, D // num_heads
    NL = params["wq"].shape[0]
    for l in range(NL):
        q = (x @ params["wq"][l] + params["bq"][l]).reshape(B, S, H, hd)
        k = (x @ params["wk"][l] + params["bk"][l]).reshape(B, S, H, hd)
        v = (x @ params["wv"][l] + params["bv"][l]).reshape(B, S, H, hd)
        s = jnp.einsum('bqhd,bkhd->bhqk', q, k) / math.sqrt(hd)
        p = jax.nn.softmax(s, axis=-1)
        ctx = jnp.einsum('bhqk,bkhd->bqhd', p, v).reshape(B, S, D)
        attn = ctx @ params["wo"][l] + params["bo"][l]
        x1 = _layer_norm(x + attn, params["g1"][l], params["be1"][l])
        ff = (jax.nn.relu(x1 @ params["w1"][l] + params["b1"][l])
              @ params["w2"][l] + params["b2"][l])
        x = _layer_norm(x1 + ff, params["g2"][l], params["be2"][l])
    return x[:, -1, :]


# ----------------------------------------------------------------------------
# Deterministic parameter init (stacked over the 2 encoder layers).
# ----------------------------------------------------------------------------
def make_params(key, input_len, d_model, num_layers=2, d_ff=2048):
    n = lambda k, shape, s=0.02: (s * jax.random.normal(k, shape)).astype(jnp.float32)
    zeros = lambda shape: jnp.zeros(shape, jnp.float32)
    ones = lambda shape: jnp.ones(shape, jnp.float32)
    k_in, k_layers = jax.random.split(key)

    def one_layer(k):
        ks = jax.random.split(k, 6)
        return {
            "wq": n(ks[0], (d_model, d_model)),
            "wk": n(ks[1], (d_model, d_model)),
            "wv": n(ks[2], (d_model, d_model)),
            "bq": zeros((1, d_model)), "bk": zeros((1, d_model)), "bv": zeros((1, d_model)),
            "wo": n(ks[3], (d_model, d_model)), "bo": zeros((1, d_model)),
            "w1": n(ks[4], (d_model, d_ff)), "b1": zeros((1, d_ff)),
            "w2": n(ks[5], (d_ff, d_model)), "b2": zeros((1, d_model)),
            "g1": ones((1, d_model)), "be1": zeros((1, d_model)),
            "g2": ones((1, d_model)), "be2": zeros((1, d_model)),
        }

    layers = [one_layer(k) for k in jax.random.split(k_layers, num_layers)]
    params = {name: jnp.stack([lyr[name] for lyr in layers], axis=0)
              for name in layers[0]}
    params["w_in"] = n(k_in, (input_len, d_model))
    params["b_in"] = zeros((1, d_model))
    return params


if __name__ == "__main__":
    B, L, V, D = 2, 8, 4, 32       # batch, input_len (time), num_vars, embedding_dim
    LF = 4                         # number of fusion tokens

    key = jax.random.PRNGKey(0)
    k_x, k_f, k_p = jax.random.split(key, 3)
    inputs = jax.random.normal(k_x, (B, L, V), jnp.float32)
    fusion_emb = jax.random.normal(k_f, (B, LF, D), jnp.float32)
    params = make_params(k_p, input_len=L, d_model=D, num_layers=2, d_ff=2048)

    fwd = jax.jit(inverted_endogenous_encoder_forward)
    out = jax.block_until_ready(fwd(inputs, fusion_emb, params))

    assert out.shape == (B, D), out.shape
    assert bool(jnp.all(jnp.isfinite(out)))
    ref = _reference_forward(inputs, fusion_emb, params)
    assert bool(jnp.allclose(out, ref, atol=2e-2, rtol=2e-2)), \
        float(jnp.max(jnp.abs(out - ref)))
    print("KERNEL_OK")
</pallas_src>

<mosaic_0001>
module attributes {stable_mosaic.version = 11 : i64} {
  func.func @_fused_encoder_kernel(%arg0: i32, %arg1: memref<1x4x8xf32, #tpu.memory_space<vmem>>, %arg2: memref<1x4x32xf32, #tpu.memory_space<vmem>>, %arg3: memref<8x32xf32, #tpu.memory_space<vmem>>, %arg4: memref<1x32xf32, #tpu.memory_space<vmem>>, %arg5: memref<2x32x32xf32, #tpu.memory_space<vmem>>, %arg6: memref<2x32x32xf32, #tpu.memory_space<vmem>>, %arg7: memref<2x32x32xf32, #tpu.memory_space<vmem>>, %arg8: memref<2x1x32xf32, #tpu.memory_space<vmem>>, %arg9: memref<2x1x32xf32, #tpu.memory_space<vmem>>, %arg10: memref<2x1x32xf32, #tpu.memory_space<vmem>>, %arg11: memref<2x32x32xf32, #tpu.memory_space<vmem>>, %arg12: memref<2x1x32xf32, #tpu.memory_space<vmem>>, %arg13: memref<2x32x2048xf32, #tpu.memory_space<vmem>>, %arg14: memref<2x1x2048xf32, #tpu.memory_space<vmem>>, %arg15: memref<2x2048x32xf32, #tpu.memory_space<vmem>>, %arg16: memref<2x1x32xf32, #tpu.memory_space<vmem>>, %arg17: memref<2x1x32xf32, #tpu.memory_space<vmem>>, %arg18: memref<2x1x32xf32, #tpu.memory_space<vmem>>, %arg19: memref<2x1x32xf32, #tpu.memory_space<vmem>>, %arg20: memref<2x1x32xf32, #tpu.memory_space<vmem>>, %arg21: memref<1x1x32xf32, #tpu.memory_space<vmem>>, %arg22: memref<8x32xf32, #tpu.memory_space<vmem>>) attributes {dimension_semantics = [#tpu.dimension_semantics<parallel>], iteration_bounds = array<i64: 2>, scalar_prefetch = 0 : i64, scratch_operands = 1 : i64, tpu.core_type = #tpu.core_type<tc>, window_params = [{transform_indices = @transform_0, window_bounds = array<i64: 1, 4, 8>}, {transform_indices = @transform_1, window_bounds = array<i64: 1, 4, 32>}, {pipeline_mode = #tpu.pipeline_mode<synchronous>, transform_indices = @transform_2, window_bounds = array<i64: 8, 32>}, {pipeline_mode = #tpu.pipeline_mode<synchronous>, transform_indices = @transform_3, window_bounds = array<i64: 1, 32>}, {pipeline_mode = #tpu.pipeline_mode<synchronous>, transform_indices = @transform_4, window_bounds = array<i64: 2, 32, 32>}, {pipeline_mode = #tpu.pipeline_mode<synchronous>, transform_indices = @transform_5, window_bounds = array<i64: 2, 32, 32>}, {pipeline_mode = #tpu.pipeline_mode<synchronous>, transform_indices = @transform_6, window_bounds = array<i64: 2, 32, 32>}, {pipeline_mode = #tpu.pipeline_mode<synchronous>, transform_indices = @transform_7, window_bounds = array<i64: 2, 1, 32>}, {pipeline_mode = #tpu.pipeline_mode<synchronous>, transform_indices = @transform_8, window_bounds = array<i64: 2, 1, 32>}, {pipeline_mode = #tpu.pipeline_mode<synchronous>, transform_indices = @transform_9, window_bounds = array<i64: 2, 1, 32>}, {pipeline_mode = #tpu.pipeline_mode<synchronous>, transform_indices = @transform_10, window_bounds = array<i64: 2, 32, 32>}, {pipeline_mode = #tpu.pipeline_mode<synchronous>, transform_indices = @transform_11, window_bounds = array<i64: 2, 1, 32>}, {pipeline_mode = #tpu.pipeline_mode<synchronous>, transform_indices = @transform_12, window_bounds = array<i64: 2, 32, 2048>}, {pipeline_mode = #tpu.pipeline_mode<synchronous>, transform_indices = @transform_13, window_bounds = array<i64: 2, 1, 2048>}, {pipeline_mode = #tpu.pipeline_mode<synchronous>, transform_indices = @transform_14, window_bounds = array<i64: 2, 2048, 32>}, {pipeline_mode = #tpu.pipeline_mode<synchronous>, transform_indices = @transform_15, window_bounds = array<i64: 2, 1, 32>}, {pipeline_mode = #tpu.pipeline_mode<synchronous>, transform_indices = @transform_16, window_bounds = array<i64: 2, 1, 32>}, {pipeline_mode = #tpu.pipeline_mode<synchronous>, transform_indices = @transform_17, window_bounds = array<i64: 2, 1, 32>}, {pipeline_mode = #tpu.pipeline_mode<synchronous>, transform_indices = @transform_18, window_bounds = array<i64: 2, 1, 32>}, {pipeline_mode = #tpu.pipeline_mode<synchronous>, transform_indices = @transform_19, window_bounds = array<i64: 2, 1, 32>}, {transform_indices = @transform_20, window_bounds = array<i64: 1, 1, 32>}]} {
    %c0 = arith.constant 0 : index
    %c0_0 = arith.constant 0 : index
    %0 = vector.load %arg3[%c0, %c0_0] : memref<8x32xf32, #tpu.memory_space<vmem>>, vector<8x32xf32>
    %c0_1 = arith.constant 0 : index
    %c0_2 = arith.constant 0 : index
    %1 = vector.load %arg4[%c0_1, %c0_2] : memref<1x32xf32, #tpu.memory_space<vmem>>, vector<1x32xf32>
    %c0_3 = arith.constant 0 : index
    %c0_4 = arith.constant 0 : index
    %c0_5 = arith.constant 0 : index
    %2 = vector.load %arg1[%c0_3, %c0_4, %c0_5] : memref<1x4x8xf32, #tpu.memory_space<vmem>>, vector<1x4x8xf32>
    %3 = vector.shape_cast %2 : vector<1x4x8xf32> to vector<4x8xf32>
    %cst = arith.constant dense<0.000000e+00> : vector<4x32xf32>
    %4 = tpu.matmul %3, %0, %cst {dimension_numbers = #tpu.dot_dimension_numbers<[1], [0], [0], [1], [0, 0, 1, 1], [], []>} : vector<4x8xf32>, vector<8x32xf32>, vector<4x32xf32> -> vector<4x32xf32>
    %5 = vector.broadcast %1 : vector<1x32xf32> to vector<4x32xf32>
    %6 = arith.addf %4, %5 : vector<4x32xf32>
    %c0_6 = arith.constant 0 : index
    %c0_7 = arith.constant 0 : index
    %7 = vector.load %arg22[%c0_6, %c0_7] : memref<8x32xf32, #tpu.memory_space<vmem>>, vector<4x32xf32>
    tpu.vector_store %arg22[%c0_6, %c0_7], %6 {strides = array<i32>} : memref<8x32xf32, #tpu.memory_space<vmem>>, vector<4x32xf32>,
    %c0_8 = arith.constant 0 : index
    %c0_9 = arith.constant 0 : index
    %c0_10 = arith.constant 0 : index
    %8 = vector.load %arg2[%c0_8, %c0_9, %c0_10] : memref<1x4x32xf32, #tpu.memory_space<vmem>>, vector<1x4x32xf32>
    %9 = vector.shape_cast %8 : vector<1x4x32xf32> to vector<4x32xf32>
    %c4 = arith.constant 4 : index
    %c0_11 = arith.constant 0 : index
    %10 = vector.load %arg22[%c4, %c0_11] : memref<8x32xf32, #tpu.memory_space<vmem>>, vector<4x32xf32>
    tpu.vector_store %arg22[%c4, %c0_11], %9 {strides = array<i32>} : memref<8x32xf32, #tpu.memory_space<vmem>>, vector<4x32xf32>,
    %c0_12 = arith.constant 0 : index
    %c0_13 = arith.constant 0 : index
    %11 = vector.load %arg22[%c0_12, %c0_13] : memref<8x32xf32, #tpu.memory_space<vmem>>, vector<8x32xf32>
    %c0_14 = arith.constant 0 : index
    %c0_15 = arith.constant 0 : index
    %c0_16 = arith.constant 0 : index
    %12 = vector.load %arg5[%c0_14, %c0_15, %c0_16] : memref<2x32x32xf32, #tpu.memory_space<vmem>>, vector<1x32x32xf32>
    %13 = vector.shape_cast %12 : vector<1x32x32xf32> to vector<32x32xf32>
    %cst_17 = arith.constant dense<0.000000e+00> : vector<8x32xf32>
    %14 = tpu.matmul %11, %13, %cst_17 {dimension_numbers = #tpu.dot_dimension_numbers<[1], [0], [0], [1], [0, 0, 1, 1], [], []>} : vector<8x32xf32>, vector<32x32xf32>, vector<8x32xf32> -> vector<8x32xf32>
    %c0_18 = arith.constant 0 : index
    %c0_19 = arith.constant 0 : index
    %c0_20 = arith.constant 0 : index
    %15 = vector.load %arg8[%c0_18, %c0_19, %c0_20] : memref<2x1x32xf32, #tpu.memory_space<vmem>>, vector<1x1x32xf32>
    %16 = vector.shape_cast %15 : vector<1x1x32xf32> to vector<1x32xf32>
    %17 = vector.broadcast %16 : vector<1x32xf32> to vector<8x32xf32>
    %18 = arith.addf %14, %17 : vector<8x32xf32>
    %c0_21 = arith.constant 0 : index
    %c0_22 = arith.constant 0 : index
    %c0_23 = arith.constant 0 : index
    %19 = vector.load %arg6[%c0_21, %c0_22, %c0_23] : memref<2x32x32xf32, #tpu.memory_space<vmem>>, vector<1x32x32xf32>
    %20 = vector.shape_cast %19 : vector<1x32x32xf32> to vector<32x32xf32>
    %cst_24 = arith.constant dense<0.000000e+00> : vector<8x32xf32>
    %21 = tpu.matmul %11, %20, %cst_24 {dimension_numbers = #tpu.dot_dimension_numbers<[1], [0], [0], [1], [0, 0, 1, 1], [], []>} : vector<8x32xf32>, vector<32x32xf32>, vector<8x32xf32> -> vector<8x32xf32>
    %c0_25 = arith.constant 0 : index
    %c0_26 = arith.constant 0 : index
    %c0_27 = arith.constant 0 : index
    %22 = vector.load %arg9[%c0_25, %c0_26, %c0_27] : memref<2x1x32xf32, #tpu.memory_space<vmem>>, vector<1x1x32xf32>
    %23 = vector.shape_cast %22 : vector<1x1x32xf32> to vector<1x32xf32>
    %24 = vector.broadcast %23 : vector<1x32xf32> to vector<8x32xf32>
    %25 = arith.addf %21, %24 : vector<8x32xf32>
    %c0_28 = arith.constant 0 : index
    %c0_29 = arith.constant 0 : index
    %c0_30 = arith.constant 0 : index
    %26 = vector.load %arg7[%c0_28, %c0_29, %c0_30] : memref<2x32x32xf32, #tpu.memory_space<vmem>>, vector<1x32x32xf32>
    %27 = vector.shape_cast %26 : vector<1x32x32xf32> to vector<32x32xf32>
    %cst_31 = arith.constant dense<0.000000e+00> : vector<8x32xf32>
    %28 = tpu.matmul %11, %27, %cst_31 {dimension_numbers = #tpu.dot_dimension_numbers<[1], [0], [0], [1], [0, 0, 1, 1], [], []>} : vector<8x32xf32>, vector<32x32xf32>, vector<8x32xf32> -> vector<8x32xf32>
    %c0_32 = arith.constant 0 : index
    %c0_33 = arith.constant 0 : index
    %c0_34 = arith.constant 0 : index
    %29 = vector.load %arg10[%c0_32, %c0_33, %c0_34] : memref<2x1x32xf32, #tpu.memory_space<vmem>>, vector<1x1x32xf32>
    %30 = vector.shape_cast %29 : vector<1x1x32xf32> to vector<1x32xf32>
    %31 = vector.broadcast %30 : vector<1x32xf32> to vector<8x32xf32>
    %32 = arith.addf %28, %31 : vector<8x32xf32>
    %33 = vector.shape_cast %18 : vector<8x32xf32> to vector<1x8x32xf32>
    %34 = vector.shape_cast %25 : vector<8x32xf32> to vector<1x8x32xf32>
    %35 = vector.shape_cast %32 : vector<8x32xf32> to vector<1x8x32xf32>
    %36 = tpu.iota {dimensions = array<i32: 2>} : vector<1x1x32xi32>
    %cst_35 = arith.constant 0.000000e+00 : f32
    %37 = vector.broadcast %cst_35 : f32 to vector<1x8x32xf32>
    %c0_i32 = arith.constant 0 : i32
    %38 = vector.broadcast %c0_i32 : i32 to vector<1x1x32xi32>
    %39 = arith.cmpi sge, %36, %38 : vector<1x1x32xi32>
    %c8_i32 = arith.constant 8 : i32
    %40 = vector.broadcast %c8_i32 : i32 to vector<1x1x32xi32>
    %41 = arith.cmpi slt, %36, %40 : vector<1x1x32xi32>
    %42 = arith.andi %39, %41 : vector<1x1x32xi1>
    %43 = arith.extui %42 : vector<1x1x32xi1> to vector<1x1x32xi32>
    %44 = arith.sitofp %43 : vector<1x1x32xi32> to vector<1x1x32xf32>
    %45 = vector.broadcast %44 : vector<1x1x32xf32> to vector<1x8x32xf32>
    %46 = arith.mulf %33, %45 : vector<1x8x32xf32>
    "tpu.trace_start"() <{level = 10 : i32, message = "bqd,bkd->bqk"}> : () -> ()
    %cst_36 = arith.constant dense<0.000000e+00> : vector<1x8x8xf32>
    %47 = tpu.matmul %46, %34, %cst_36 {dimension_numbers = #tpu.dot_dimension_numbers<[2], [2], [1], [1], [0, 0, 0, 1, 1, 1], [0], [0]>} : vector<1x8x32xf32>, vector<1x8x32xf32>, vector<1x8x8xf32> -> vector<1x8x8xf32>
    "tpu.trace_stop"() : () -> ()
    %cst_37 = arith.constant 0.353553385 : f32
    %48 = vector.broadcast %cst_37 : f32 to vector<1x8x8xf32>
    %49 = arith.mulf %47, %48 : vector<1x8x8xf32>
    %cst_38 = arith.constant dense<0xFF800000> : vector<1x8xf32>
    %50 = vector.multi_reduction <maximumf>, %49, %cst_38 [2] : vector<1x8x8xf32> to vector<1x8xf32>
    %51 = vector.shape_cast %50 : vector<1x8xf32> to vector<1x8x1xf32>
    %52 = vector.broadcast %51 : vector<1x8x1xf32> to vector<1x8x8xf32>
    %53 = arith.subf %49, %52 : vector<1x8x8xf32>
    %54 = math.exp %53 : vector<1x8x8xf32>
    %cst_39 = arith.constant dense<0.000000e+00> : vector<1x8xf32>
    %55 = vector.multi_reduction <add>, %54, %cst_39 [2] : vector<1x8x8xf32> to vector<1x8xf32>
    %56 = vector.shape_cast %55 : vector<1x8xf32> to vector<1x8x1xf32>
    %57 = tpu.reciprocal %56 {approx = true} : vector<1x8x1xf32> -> vector<1x8x1xf32>
    %58 = vector.broadcast %57 : vector<1x8x1xf32> to vector<1x8x8xf32>
    %59 = arith.mulf %54, %58 : vector<1x8x8xf32>
    %60 = vector.broadcast %44 : vector<1x1x32xf32> to vector<1x8x32xf32>
    %61 = arith.mulf %35, %60 : vector<1x8x32xf32>
    "tpu.trace_start"() <{level = 10 : i32, message = "bqk,bkd->bqd"}> : () -> ()
    %cst_40 = arith.constant dense<0.000000e+00> : vector<1x8x32xf32>
    %62 = tpu.matmul %59, %61, %cst_40 {dimension_numbers = #tpu.dot_dimension_numbers<[2], [1], [1], [2], [0, 0, 0, 1, 1, 2], [0], [0]>} : vector<1x8x8xf32>, vector<1x8x32xf32>, vector<1x8x32xf32> -> vector<1x8x32xf32>
    "tpu.trace_stop"() : () -> ()
    %63 = arith.addf %37, %62 : vector<1x8x32xf32>
    %c8_i32_41 = arith.constant 8 : i32
    %64 = vector.broadcast %c8_i32_41 : i32 to vector<1x1x32xi32>
    %65 = arith.cmpi sge, %36, %64 : vector<1x1x32xi32>
    %c16_i32 = arith.constant 16 : i32
    %66 = vector.broadcast %c16_i32 : i32 to vector<1x1x32xi32>
    %67 = arith.cmpi slt, %36, %66 : vector<1x1x32xi32>
    %68 = arith.andi %65, %67 : vector<1x1x32xi1>
    %69 = arith.extui %68 : vector<1x1x32xi1> to vector<1x1x32xi32>
    %70 = arith.sitofp %69 : vector<1x1x32xi32> to vector<1x1x32xf32>
    %71 = vector.broadcast %70 : vector<1x1x32xf32> to vector<1x8x32xf32>
    %72 = arith.mulf %33, %71 : vector<1x8x32xf32>
    "tpu.trace_start"() <{level = 10 : i32, message = "bqd,bkd->bqk"}> : () -> ()
    %cst_42 = arith.constant dense<0.000000e+00> : vector<1x8x8xf32>
    %73 = tpu.matmul %72, %34, %cst_42 {dimension_numbers = #tpu.dot_dimension_numbers<[2], [2], [1], [1], [0, 0, 0, 1, 1, 1], [0], [0]>} : vector<1x8x32xf32>, vector<1x8x32xf32>, vector<1x8x8xf32> -> vector<1x8x8xf32>
    "tpu.trace_stop"() : () -> ()
    %cst_43 = arith.constant 0.353553385 : f32
    %74 = vector.broadcast %cst_43 : f32 to vector<1x8x8xf32>
    %75 = arith.mulf %73, %74 : vector<1x8x8xf32>
    %cst_44 = arith.constant dense<0xFF800000> : vector<1x8xf32>
    %76 = vector.multi_reduction <maximumf>, %75, %cst_44 [2] : vector<1x8x8xf32> to vector<1x8xf32>
    %77 = vector.shape_cast %76 : vector<1x8xf32> to vector<1x8x1xf32>
    %78 = vector.broadcast %77 : vector<1x8x1xf32> to vector<1x8x8xf32>
    %79 = arith.subf %75, %78 : vector<1x8x8xf32>
    %80 = math.exp %79 : vector<1x8x8xf32>
    %cst_45 = arith.constant dense<0.000000e+00> : vector<1x8xf32>
    %81 = vector.multi_reduction <add>, %80, %cst_45 [2] : vector<1x8x8xf32> to vector<1x8xf32>
    %82 = vector.shape_cast %81 : vector<1x8xf32> to vector<1x8x1xf32>
    %83 = tpu.reciprocal %82 {approx = true} : vector<1x8x1xf32> -> vector<1x8x1xf32>
    %84 = vector.broadcast %83 : vector<1x8x1xf32> to vector<1x8x8xf32>
    %85 = arith.mulf %80, %84 : vector<1x8x8xf32>
    %86 = vector.broadcast %70 : vector<1x1x32xf32> to vector<1x8x32xf32>
    %87 = arith.mulf %35, %86 : vector<1x8x32xf32>
    "tpu.trace_start"() <{level = 10 : i32, message = "bqk,bkd->bqd"}> : () -> ()
    %cst_46 = arith.constant dense<0.000000e+00> : vector<1x8x32xf32>
    %88 = tpu.matmul %85, %87, %cst_46 {dimension_numbers = #tpu.dot_dimension_numbers<[2], [1], [1], [2], [0, 0, 0, 1, 1, 2], [0], [0]>} : vector<1x8x8xf32>, vector<1x8x32xf32>, vector<1x8x32xf32> -> vector<1x8x32xf32>
    "tpu.trace_stop"() : () -> ()
    %89 = arith.addf %63, %88 : vector<1x8x32xf32>
    %c16_i32_47 = arith.constant 16 : i32
    %90 = vector.broadcast %c16_i32_47 : i32 to vector<1x1x32xi32>
    %91 = arith.cmpi sge, %36, %90 : vector<1x1x32xi32>
    %c24_i32 = arith.constant 24 : i32
    %92 = vector.broadcast %c24_i32 : i32 to vector<1x1x32xi32>
    %93 = arith.cmpi slt, %36, %92 : vector<1x1x32xi32>
    %94 = arith.andi %91, %93 : vector<1x1x32xi1>
    %95 = arith.extui %94 : vector<1x1x32xi1> to vector<1x1x32xi32>
    %96 = arith.sitofp %95 : vector<1x1x32xi32> to vector<1x1x32xf32>
    %97 = vector.broadcast %96 : vector<1x1x32xf32> to vector<1x8x32xf32>
    %98 = arith.mulf %33, %97 : vector<1x8x32xf32>
    "tpu.trace_start"() <{level = 10 : i32, message = "bqd,bkd->bqk"}> : () -> ()
    %cst_48 = arith.constant dense<0.000000e+00> : vector<1x8x8xf32>
    %99 = tpu.matmul %98, %34, %cst_48 {dimension_numbers = #tpu.dot_dimension_numbers<[2], [2], [1], [1], [0, 0, 0, 1, 1, 1], [0], [0]>} : vector<1x8x32xf32>, vector<1x8x32xf32>, vector<1x8x8xf32> -> vector<1x8x8xf32>
    "tpu.trace_stop"() : () -> ()
    %cst_49 = arith.constant 0.353553385 : f32
    %100 = vector.broadcast %cst_49 : f32 to vector<1x8x8xf32>
    %101 = arith.mulf %99, %100 : vector<1x8x8xf32>
    %cst_50 = arith.constant dense<0xFF800000> : vector<1x8xf32>
    %102 = vector.multi_reduction <maximumf>, %101, %cst_50 [2] : vector<1x8x8xf32> to vector<1x8xf32>
    %103 = vector.shape_cast %102 : vector<1x8xf32> to vector<1x8x1xf32>
    %104 = vector.broadcast %103 : vector<1x8x1xf32> to vector<1x8x8xf32>
    %105 = arith.subf %101, %104 : vector<1x8x8xf32>
    %106 = math.exp %105 : vector<1x8x8xf32>
    %cst_51 = arith.constant dense<0.000000e+00> : vector<1x8xf32>
    %107 = vector.multi_reduction <add>, %106, %cst_51 [2] : vector<1x8x8xf32> to vector<1x8xf32>
    %108 = vector.shape_cast %107 : vector<1x8xf32> to vector<1x8x1xf32>
    %109 = tpu.reciprocal %108 {approx = true} : vector<1x8x1xf32> -> vector<1x8x1xf32>
    %110 = vector.broadcast %109 : vector<1x8x1xf32> to vector<1x8x8xf32>
    %111 = arith.mulf %106, %110 : vector<1x8x8xf32>
    %112 = vector.broadcast %96 : vector<1x1x32xf32> to vector<1x8x32xf32>
    %113 = arith.mulf %35, %112 : vector<1x8x32xf32>
    "tpu.trace_start"() <{level = 10 : i32, message = "bqk,bkd->bqd"}> : () -> ()
    %cst_52 = arith.constant dense<0.000000e+00> : vector<1x8x32xf32>
    %114 = tpu.matmul %111, %113, %cst_52 {dimension_numbers = #tpu.dot_dimension_numbers<[2], [1], [1], [2], [0, 0, 0, 1, 1, 2], [0], [0]>} : vector<1x8x8xf32>, vector<1x8x32xf32>, vector<1x8x32xf32> -> vector<1x8x32xf32>
    "tpu.trace_stop"() : () -> ()
    %115 = arith.addf %89, %114 : vector<1x8x32xf32>
    %c24_i32_53 = arith.constant 24 : i32
    %116 = vector.broadcast %c24_i32_53 : i32 to vector<1x1x32xi32>
    %117 = arith.cmpi sge, %36, %116 : vector<1x1x32xi32>
    %c32_i32 = arith.constant 32 : i32
    %118 = vector.broadcast %c32_i32 : i32 to vector<1x1x32xi32>
    %119 = arith.cmpi slt, %36, %118 : vector<1x1x32xi32>
    %120 = arith.andi %117, %119 : vector<1x1x32xi1>
    %121 = arith.extui %120 : vector<1x1x32xi1> to vector<1x1x32xi32>
    %122 = arith.sitofp %121 : vector<1x1x32xi32> to vector<1x1x32xf32>
    %123 = vector.broadcast %122 : vector<1x1x32xf32> to vector<1x8x32xf32>
    %124 = arith.mulf %33, %123 : vector<1x8x32xf32>
    "tpu.trace_start"() <{level = 10 : i32, message = "bqd,bkd->bqk"}> : () -> ()
    %cst_54 = arith.constant dense<0.000000e+00> : vector<1x8x8xf32>
    %125 = tpu.matmul %124, %34, %cst_54 {dimension_numbers = #tpu.dot_dimension_numbers<[2], [2], [1], [1], [0, 0, 0, 1, 1, 1], [0], [0]>} : vector<1x8x32xf32>, vector<1x8x32xf32>, vector<1x8x8xf32> -> vector<1x8x8xf32>
    "tpu.trace_stop"() : () -> ()
    %cst_55 = arith.constant 0.353553385 : f32
    %126 = vector.broadcast %cst_55 : f32 to vector<1x8x8xf32>
    %127 = arith.mulf %125, %126 : vector<1x8x8xf32>
    %cst_56 = arith.constant dense<0xFF800000> : vector<1x8xf32>
    %128 = vector.multi_reduction <maximumf>, %127, %cst_56 [2] : vector<1x8x8xf32> to vector<1x8xf32>
    %129 = vector.shape_cast %128 : vector<1x8xf32> to vector<1x8x1xf32>
    %130 = vector.broadcast %129 : vector<1x8x1xf32> to vector<1x8x8xf32>
    %131 = arith.subf %127, %130 : vector<1x8x8xf32>
    %132 = math.exp %131 : vector<1x8x8xf32>
    %cst_57 = arith.constant dense<0.000000e+00> : vector<1x8xf32>
    %133 = vector.multi_reduction <add>, %132, %cst_57 [2] : vector<1x8x8xf32> to vector<1x8xf32>
    %134 = vector.shape_cast %133 : vector<1x8xf32> to vector<1x8x1xf32>
    %135 = tpu.reciprocal %134 {approx = true} : vector<1x8x1xf32> -> vector<1x8x1xf32>
    %136 = vector.broadcast %135 : vector<1x8x1xf32> to vector<1x8x8xf32>
    %137 = arith.mulf %132, %136 : vector<1x8x8xf32>
    %138 = vector.broadcast %122 : vector<1x1x32xf32> to vector<1x8x32xf32>
    %139 = arith.mulf %35, %138 : vector<1x8x32xf32>
    "tpu.trace_start"() <{level = 10 : i32, message = "bqk,bkd->bqd"}> : () -> ()
    %cst_58 = arith.constant dense<0.000000e+00> : vector<1x8x32xf32>
    %140 = tpu.matmul %137, %139, %cst_58 {dimension_numbers = #tpu.dot_dimension_numbers<[2], [1], [1], [2], [0, 0, 0, 1, 1, 2], [0], [0]>} : vector<1x8x8xf32>, vector<1x8x32xf32>, vector<1x8x32xf32> -> vector<1x8x32xf32>
    "tpu.trace_stop"() : () -> ()
    %141 = arith.addf %115, %140 : vector<1x8x32xf32>
    %142 = vector.shape_cast %141 : vector<1x8x32xf32> to vector<8x32xf32>
    %c0_59 = arith.constant 0 : index
    %c0_60 = arith.constant 0 : index
    %c0_61 = arith.constant 0 : index
    %143 = vector.load %arg11[%c0_59, %c0_60, %c0_61] : memref<2x32x32xf32, #tpu.memory_space<vmem>>, vector<1x32x32xf32>
    %144 = vector.shape_cast %143 : vector<1x32x32xf32> to vector<32x32xf32>
    %cst_62 = arith.constant dense<0.000000e+00> : vector<8x32xf32>
    %145 = tpu.matmul %142, %144, %cst_62 {dimension_numbers = #tpu.dot_dimension_numbers<[1], [0], [0], [1], [0, 0, 1, 1], [], []>} : vector<8x32xf32>, vector<32x32xf32>, vector<8x32xf32> -> vector<8x32xf32>
    %c0_63 = arith.constant 0 : index
    %c0_64 = arith.constant 0 : index
    %c0_65 = arith.constant 0 : index
    %146 = vector.load %arg12[%c0_63, %c0_64, %c0_65] : memref<2x1x32xf32, #tpu.memory_space<vmem>>, vector<1x1x32xf32>
    %147 = vector.shape_cast %146 : vector<1x1x32xf32> to vector<1x32xf32>
    %148 = vector.broadcast %147 : vector<1x32xf32> to vector<8x32xf32>
    %149 = arith.addf %145, %148 : vector<8x32xf32>
    %150 = arith.addf %11, %149 : vector<8x32xf32>
    %c0_66 = arith.constant 0 : index
    %c0_67 = arith.constant 0 : index
    %c0_68 = arith.constant 0 : index
    %151 = vector.load %arg17[%c0_66, %c0_67, %c0_68] : memref<2x1x32xf32, #tpu.memory_space<vmem>>, vector<1x1x32xf32>
    %152 = vector.shape_cast %151 : vector<1x1x32xf32> to vector<1x32xf32>
    %c0_69 = arith.constant 0 : index
    %c0_70 = arith.constant 0 : index
    %c0_71 = arith.constant 0 : index
    %153 = vector.load %arg18[%c0_69, %c0_70, %c0_71] : memref<2x1x32xf32, #tpu.memory_space<vmem>>, vector<1x1x32xf32>
    %154 = vector.shape_cast %153 : vector<1x1x32xf32> to vector<1x32xf32>
    %cst_72 = arith.constant dense<0.000000e+00> : vector<8xf32>
    %155 = vector.multi_reduction <add>, %150, %cst_72 [1] : vector<8x32xf32> to vector<8xf32>
    %156 = vector.shape_cast %155 : vector<8xf32> to vector<8x1xf32>
    %cst_73 = arith.constant 3.200000e+01 : f32
    %157 = vector.broadcast %cst_73 : f32 to vector<8x1xf32>
    %158 = arith.divf %156, %157 : vector<8x1xf32>
    %159 = vector.broadcast %158 : vector<8x1xf32> to vector<8x32xf32>
    %160 = arith.subf %150, %159 : vector<8x32xf32>
    %161 = arith.mulf %160, %160 : vector<8x32xf32>
    %cst_74 = arith.constant dense<0.000000e+00> : vector<8xf32>
    %162 = vector.multi_reduction <add>, %161, %cst_74 [1] : vector<8x32xf32> to vector<8xf32>
    %163 = vector.shape_cast %162 : vector<8xf32> to vector<8x1xf32>
    %cst_75 = arith.constant 3.200000e+01 : f32
    %164 = vector.broadcast %cst_75 : f32 to vector<8x1xf32>
    %165 = arith.divf %163, %164 : vector<8x1xf32>
    %cst_76 = arith.constant 9.99999974E-6 : f32
    %166 = vector.broadcast %cst_76 : f32 to vector<8x1xf32>
    %167 = arith.addf %165, %166 : vector<8x1xf32>
    %168 = math.rsqrt %167 : vector<8x1xf32>
    %169 = vector.broadcast %168 : vector<8x1xf32> to vector<8x32xf32>
    %170 = arith.mulf %160, %169 : vector<8x32xf32>
    %171 = vector.broadcast %152 : vector<1x32xf32> to vector<8x32xf32>
    %172 = arith.mulf %170, %171 : vector<8x32xf32>
    %173 = vector.broadcast %154 : vector<1x32xf32> to vector<8x32xf32>
    %174 = arith.addf %172, %173 : vector<8x32xf32>
    %c0_77 = arith.constant 0 : index
    %c0_78 = arith.constant 0 : index
    %c0_79 = arith.constant 0 : index
    %175 = vector.load %arg13[%c0_77, %c0_78, %c0_79] : memref<2x32x2048xf32, #tpu.memory_space<vmem>>, vector<1x32x2048xf32>
    %176 = vector.shape_cast %175 : vector<1x32x2048xf32> to vector<32x2048xf32>
    %cst_80 = arith.constant dense<0.000000e+00> : vector<8x2048xf32>
    %177 = tpu.matmul %174, %176, %cst_80 {dimension_numbers = #tpu.dot_dimension_numbers<[1], [0], [0], [1], [0, 0, 1, 1], [], []>} : vector<8x32xf32>, vector<32x2048xf32>, vector<8x2048xf32> -> vector<8x2048xf32>
    %c0_81 = arith.constant 0 : index
    %c0_82 = arith.constant 0 : index
    %c0_83 = arith.constant 0 : index
    %178 = vector.load %arg14[%c0_81, %c0_82, %c0_83] : memref<2x1x2048xf32, #tpu.memory_space<vmem>>, vector<1x1x2048xf32>
    %179 = vector.shape_cast %178 : vector<1x1x2048xf32> to vector<1x2048xf32>
    %180 = vector.broadcast %179 : vector<1x2048xf32> to vector<8x2048xf32>
    %181 = arith.addf %177, %180 : vector<8x2048xf32>
    %cst_84 = arith.constant 0.000000e+00 : f32
    %182 = vector.broadcast %cst_84 : f32 to vector<8x2048xf32>
    %183 = arith.maximumf %181, %182 : vector<8x2048xf32>
    %c0_85 = arith.constant 0 : index
    %c0_86 = arith.constant 0 : index
    %c0_87 = arith.constant 0 : index
    %184 = vector.load %arg15[%c0_85, %c0_86, %c0_87] : memref<2x2048x32xf32, #tpu.memory_space<vmem>>, vector<1x2048x32xf32>
    %185 = vector.shape_cast %184 : vector<1x2048x32xf32> to vector<2048x32xf32>
    %cst_88 = arith.constant dense<0.000000e+00> : vector<8x32xf32>
    %186 = tpu.matmul %183, %185, %cst_88 {dimension_numbers = #tpu.dot_dimension_numbers<[1], [0], [0], [1], [0, 0, 1, 1], [], []>} : vector<8x2048xf32>, vector<2048x32xf32>, vector<8x32xf32> -> vector<8x32xf32>
    %c0_89 = arith.constant 0 : index
    %c0_90 = arith.constant 0 : index
    %c0_91 = arith.constant 0 : index
    %187 = vector.load %arg16[%c0_89, %c0_90, %c0_91] : memref<2x1x32xf32, #tpu.memory_space<vmem>>, vector<1x1x32xf32>
    %188 = vector.shape_cast %187 : vector<1x1x32xf32> to vector<1x32xf32>
    %189 = vector.broadcast %188 : vector<1x32xf32> to vector<8x32xf32>
    %190 = arith.addf %186, %189 : vector<8x32xf32>
    %191 = arith.addf %174, %190 : vector<8x32xf32>
    %c0_92 = arith.constant 0 : index
    %c0_93 = arith.constant 0 : index
    %c0_94 = arith.constant 0 : index
    %192 = vector.load %arg19[%c0_92, %c0_93, %c0_94] : memref<2x1x32xf32, #tpu.memory_space<vmem>>, vector<1x1x32xf32>
    %193 = vector.shape_cast %192 : vector<1x1x32xf32> to vector<1x32xf32>
    %c0_95 = arith.constant 0 : index
    %c0_96 = arith.constant 0 : index
    %c0_97 = arith.constant 0 : index
    %194 = vector.load %arg20[%c0_95, %c0_96, %c0_97] : memref<2x1x32xf32, #tpu.memory_space<vmem>>, vector<1x1x32xf32>
    %195 = vector.shape_cast %194 : vector<1x1x32xf32> to vector<1x32xf32>
    %cst_98 = arith.constant dense<0.000000e+00> : vector<8xf32>
    %196 = vector.multi_reduction <add>, %191, %cst_98 [1] : vector<8x32xf32> to vector<8xf32>
    %197 = vector.shape_cast %196 : vector<8xf32> to vector<8x1xf32>
    %cst_99 = arith.constant 3.200000e+01 : f32
    %198 = vector.broadcast %cst_99 : f32 to vector<8x1xf32>
    %199 = arith.divf %197, %198 : vector<8x1xf32>
    %200 = vector.broadcast %199 : vector<8x1xf32> to vector<8x32xf32>
    %201 = arith.subf %191, %200 : vector<8x32xf32>
    %202 = arith.mulf %201, %201 : vector<8x32xf32>
    %cst_100 = arith.constant dense<0.000000e+00> : vector<8xf32>
    %203 = vector.multi_reduction <add>, %202, %cst_100 [1] : vector<8x32xf32> to vector<8xf32>
    %204 = vector.shape_cast %203 : vector<8xf32> to vector<8x1xf32>
    %cst_101 = arith.constant 3.200000e+01 : f32
    %205 = vector.broadcast %cst_101 : f32 to vector<8x1xf32>
    %206 = arith.divf %204, %205 : vector<8x1xf32>
    %cst_102 = arith.constant 9.99999974E-6 : f32
    %207 = vector.broadcast %cst_102 : f32 to vector<8x1xf32>
    %208 = arith.addf %206, %207 : vector<8x1xf32>
    %209 = math.rsqrt %208 : vector<8x1xf32>
    %210 = vector.broadcast %209 : vector<8x1xf32> to vector<8x32xf32>
    %211 = arith.mulf %201, %210 : vector<8x32xf32>
    %212 = vector.broadcast %193 : vector<1x32xf32> to vector<8x32xf32>
    %213 = arith.mulf %211, %212 : vector<8x32xf32>
    %214 = vector.broadcast %195 : vector<1x32xf32> to vector<8x32xf32>
    %215 = arith.addf %213, %214 : vector<8x32xf32>
    %c1 = arith.constant 1 : index
    %c0_103 = arith.constant 0 : index
    %c0_104 = arith.constant 0 : index
    %216 = vector.load %arg6[%c1, %c0_103, %c0_104] : memref<2x32x32xf32, #tpu.memory_space<vmem>>, vector<1x32x32xf32>
    %217 = vector.shape_cast %216 : vector<1x32x32xf32> to vector<32x32xf32>
    %cst_105 = arith.constant dense<0.000000e+00> : vector<8x32xf32>
    %218 = tpu.matmul %215, %217, %cst_105 {dimension_numbers = #tpu.dot_dimension_numbers<[1], [0], [0], [1], [0, 0, 1, 1], [], []>} : vector<8x32xf32>, vector<32x32xf32>, vector<8x32xf32> -> vector<8x32xf32>
    %c1_106 = arith.constant 1 : index
    %c0_107 = arith.constant 0 : index
    %c0_108 = arith.constant 0 : index
    %219 = vector.load %arg9[%c1_106, %c0_107, %c0_108] : memref<2x1x32xf32, #tpu.memory_space<vmem>>, vector<1x1x32xf32>
    %220 = vector.shape_cast %219 : vector<1x1x32xf32> to vector<1x32xf32>
    %221 = vector.broadcast %220 : vector<1x32xf32> to vector<8x32xf32>
    %222 = arith.addf %218, %221 : vector<8x32xf32>
    %c1_109 = arith.constant 1 : index
    %c0_110 = arith.constant 0 : index
    %c0_111 = arith.constant 0 : index
    %223 = vector.load %arg7[%c1_109, %c0_110, %c0_111] : memref<2x32x32xf32, #tpu.memory_space<vmem>>, vector<1x32x32xf32>
    %224 = vector.shape_cast %223 : vector<1x32x32xf32> to vector<32x32xf32>
    %cst_112 = arith.constant dense<0.000000e+00> : vector<8x32xf32>
    %225 = tpu.matmul %215, %224, %cst_112 {dimension_numbers = #tpu.dot_dimension_numbers<[1], [0], [0], [1], [0, 0, 1, 1], [], []>} : vector<8x32xf32>, vector<32x32xf32>, vector<8x32xf32> -> vector<8x32xf32>
    %c1_113 = arith.constant 1 : index
    %c0_114 = arith.constant 0 : index
    %c0_115 = arith.constant 0 : index
    %226 = vector.load %arg10[%c1_113, %c0_114, %c0_115] : memref<2x1x32xf32, #tpu.memory_space<vmem>>, vector<1x1x32xf32>
    %227 = vector.shape_cast %226 : vector<1x1x32xf32> to vector<1x32xf32>
    %228 = vector.broadcast %227 : vector<1x32xf32> to vector<8x32xf32>
    %229 = arith.addf %225, %228 : vector<8x32xf32>
    %230 = vector.extract_strided_slice %215 {offsets = [7, 0], sizes = [1, 32], strides = [1, 1]} : vector<8x32xf32> to vector<1x32xf32>
    %c1_116 = arith.constant 1 : index
    %c0_117 = arith.constant 0 : index
    %c0_118 = arith.constant 0 : index
    %231 = vector.load %arg5[%c1_116, %c0_117, %c0_118] : memref<2x32x32xf32, #tpu.memory_space<vmem>>, vector<1x32x32xf32>
    %232 = vector.shape_cast %231 : vector<1x32x32xf32> to vector<32x32xf32>
    %cst_119 = arith.constant dense<0.000000e+00> : vector<1x32xf32>
    %233 = tpu.matmul %230, %232, %cst_119 {dimension_numbers = #tpu.dot_dimension_numbers<[1], [0], [0], [1], [0, 0, 1, 1], [], []>} : vector<1x32xf32>, vector<32x32xf32>, vector<1x32xf32> -> vector<1x32xf32>
    %c1_120 = arith.constant 1 : index
    %c0_121 = arith.constant 0 : index
    %c0_122 = arith.constant 0 : index
    %234 = vector.load %arg8[%c1_120, %c0_121, %c0_122] : memref<2x1x32xf32, #tpu.memory_space<vmem>>, vector<1x1x32xf32>
    %235 = vector.shape_cast %234 : vector<1x1x32xf32> to vector<1x32xf32>
    %236 = arith.addf %233, %235 : vector<1x32xf32>
    %237 = vector.shape_cast %236 : vector<1x32xf32> to vector<1x1x32xf32>
    %238 = vector.shape_cast %222 : vector<8x32xf32> to vector<1x8x32xf32>
    %239 = vector.shape_cast %229 : vector<8x32xf32> to vector<1x8x32xf32>
    %240 = tpu.iota {dimensions = array<i32: 2>} : vector<1x1x32xi32>
    %cst_123 = arith.constant 0.000000e+00 : f32
    %241 = vector.broadcast %cst_123 : f32 to vector<1x1x32xf32>
    %c0_i32_124 = arith.constant 0 : i32
    %242 = vector.broadcast %c0_i32_124 : i32 to vector<1x1x32xi32>
    %243 = arith.cmpi sge, %240, %242 : vector<1x1x32xi32>
    %c8_i32_125 = arith.constant 8 : i32
    %244 = vector.broadcast %c8_i32_125 : i32 to vector<1x1x32xi32>
    %245 = arith.cmpi slt, %240, %244 : vector<1x1x32xi32>
    %246 = arith.andi %243, %245 : vector<1x1x32xi1>
    %247 = arith.extui %246 : vector<1x1x32xi1> to vector<1x1x32xi32>
    %248 = arith.sitofp %247 : vector<1x1x32xi32> to vector<1x1x32xf32>
    %249 = arith.mulf %237, %248 : vector<1x1x32xf32>
    "tpu.trace_start"() <{level = 10 : i32, message = "bqd,bkd->bqk"}> : () -> ()
    %cst_126 = arith.constant dense<0.000000e+00> : vector<1x1x8xf32>
    %250 = tpu.matmul %249, %238, %cst_126 {dimension_numbers = #tpu.dot_dimension_numbers<[2], [2], [1], [1], [0, 0, 0, 1, 1, 1], [0], [0]>} : vector<1x1x32xf32>, vector<1x8x32xf32>, vector<1x1x8xf32> -> vector<1x1x8xf32>
    "tpu.trace_stop"() : () -> ()
    %cst_127 = arith.constant 0.353553385 : f32
    %251 = vector.broadcast %cst_127 : f32 to vector<1x1x8xf32>
    %252 = arith.mulf %250, %251 : vector<1x1x8xf32>
    %cst_128 = arith.constant dense<0xFF800000> : vector<1x1xf32>
    %253 = vector.multi_reduction <maximumf>, %252, %cst_128 [2] : vector<1x1x8xf32> to vector<1x1xf32>
    %254 = vector.shape_cast %253 : vector<1x1xf32> to vector<1x1x1xf32>
    %255 = vector.broadcast %254 : vector<1x1x1xf32> to vector<1x1x8xf32>
    %256 = arith.subf %252, %255 : vector<1x1x8xf32>
    %257 = math.exp %256 : vector<1x1x8xf32>
    %cst_129 = arith.constant dense<0.000000e+00> : vector<1x1xf32>
    %258 = vector.multi_reduction <add>, %257, %cst_129 [2] : vector<1x1x8xf32> to vector<1x1xf32>
    %259 = vector.shape_cast %258 : vector<1x1xf32> to vector<1x1x1xf32>
    %260 = tpu.reciprocal %259 {approx = true} : vector<1x1x1xf32> -> vector<1x1x1xf32>
    %261 = vector.broadcast %260 : vector<1x1x1xf32> to vector<1x1x8xf32>
    %262 = arith.mulf %257, %261 : vector<1x1x8xf32>
    %263 = vector.broadcast %248 : vector<1x1x32xf32> to vector<1x8x32xf32>
    %264 = arith.mulf %239, %263 : vector<1x8x32xf32>
    "tpu.trace_start"() <{level = 10 : i32, message = "bqk,bkd->bqd"}> : () -> ()
    %cst_130 = arith.constant dense<0.000000e+00> : vector<1x1x32xf32>
    %265 = tpu.matmul %262, %264, %cst_130 {dimension_numbers = #tpu.dot_dimension_numbers<[2], [1], [1], [2], [0, 0, 0, 1, 1, 2], [0], [0]>} : vector<1x1x8xf32>, vector<1x8x32xf32>, vector<1x1x32xf32> -> vector<1x1x32xf32>
    "tpu.trace_stop"() : () -> ()
    %266 = arith.addf %241, %265 : vector<1x1x32xf32>
    %c8_i32_131 = arith.constant 8 : i32
    %267 = vector.broadcast %c8_i32_131 : i32 to vector<1x1x32xi32>
    %268 = arith.cmpi sge, %240, %267 : vector<1x1x32xi32>
    %c16_i32_132 = arith.constant 16 : i32
    %269 = vector.broadcast %c16_i32_132 : i32 to vector<1x1x32xi32>
    %270 = arith.cmpi slt, %240, %269 : vector<1x1x32xi32>
    %271 = arith.andi %268, %270 : vector<1x1x32xi1>
    %272 = arith.extui %271 : vector<1x1x32xi1> to vector<1x1x32xi32>
    %273 = arith.sitofp %272 : vector<1x1x32xi32> to vector<1x1x32xf32>
    %274 = arith.mulf %237, %273 : vector<1x1x32xf32>
    "tpu.trace_start"() <{level = 10 : i32, message = "bqd,bkd->bqk"}> : () -> ()
    %cst_133 = arith.constant dense<0.000000e+00> : vector<1x1x8xf32>
    %275 = tpu.matmul %274, %238, %cst_133 {dimension_numbers = #tpu.dot_dimension_numbers<[2], [2], [1], [1], [0, 0, 0, 1, 1, 1], [0], [0]>} : vector<1x1x32xf32>, vector<1x8x32xf32>, vector<1x1x8xf32> -> vector<1x1x8xf32>
    "tpu.trace_stop"() : () -> ()
    %cst_134 = arith.constant 0.353553385 : f32
    %276 = vector.broadcast %cst_134 : f32 to vector<1x1x8xf32>
    %277 = arith.mulf %275, %276 : vector<1x1x8xf32>
    %cst_135 = arith.constant dense<0xFF800000> : vector<1x1xf32>
    %278 = vector.multi_reduction <maximumf>, %277, %cst_135 [2] : vector<1x1x8xf32> to vector<1x1xf32>
    %279 = vector.shape_cast %278 : vector<1x1xf32> to vector<1x1x1xf32>
    %280 = vector.broadcast %279 : vector<1x1x1xf32> to vector<1x1x8xf32>
    %281 = arith.subf %277, %280 : vector<1x1x8xf32>
    %282 = math.exp %281 : vector<1x1x8xf32>
    %cst_136 = arith.constant dense<0.000000e+00> : vector<1x1xf32>
    %283 = vector.multi_reduction <add>, %282, %cst_136 [2] : vector<1x1x8xf32> to vector<1x1xf32>
    %284 = vector.shape_cast %283 : vector<1x1xf32> to vector<1x1x1xf32>
    %285 = tpu.reciprocal %284 {approx = true} : vector<1x1x1xf32> -> vector<1x1x1xf32>
    %286 = vector.broadcast %285 : vector<1x1x1xf32> to vector<1x1x8xf32>
    %287 = arith.mulf %282, %286 : vector<1x1x8xf32>
    %288 = vector.broadcast %273 : vector<1x1x32xf32> to vector<1x8x32xf32>
    %289 = arith.mulf %239, %288 : vector<1x8x32xf32>
    "tpu.trace_start"() <{level = 10 : i32, message = "bqk,bkd->bqd"}> : () -> ()
    %cst_137 = arith.constant dense<0.000000e+00> : vector<1x1x32xf32>
    %290 = tpu.matmul %287, %289, %cst_137 {dimension_numbers = #tpu.dot_dimension_numbers<[2], [1], [1], [2], [0, 0, 0, 1, 1, 2], [0], [0]>} : vector<1x1x8xf32>, vector<1x8x32xf32>, vector<1x1x32xf32> -> vector<1x1x32xf32>
    "tpu.trace_stop"() : () -> ()
    %291 = arith.addf %266, %290 : vector<1x1x32xf32>
    %c16_i32_138 = arith.constant 16 : i32
    %292 = vector.broadcast %c16_i32_138 : i32 to vector<1x1x32xi32>
    %293 = arith.cmpi sge, %240, %292 : vector<1x1x32xi32>
    %c24_i32_139 = arith.constant 24 : i32
    %294 = vector.broadcast %c24_i32_139 : i32 to vector<1x1x32xi32>
    %295 = arith.cmpi slt, %240, %294 : vector<1x1x32xi32>
    %296 = arith.andi %293, %295 : vector<1x1x32xi1>
    %297 = arith.extui %296 : vector<1x1x32xi1> to vector<1x1x32xi32>
    %298 = arith.sitofp %297 : vector<1x1x32xi32> to vector<1x1x32xf32>
    %299 = arith.mulf %237, %298 : vector<1x1x32xf32>
    "tpu.trace_start"() <{level = 10 : i32, message = "bqd,bkd->bqk"}> : () -> ()
    %cst_140 = arith.constant dense<0.000000e+00> : vector<1x1x8xf32>
    %300 = tpu.matmul %299, %238, %cst_140 {dimension_numbers = #tpu.dot_dimension_numbers<[2], [2], [1], [1], [0, 0, 0, 1, 1, 1], [0], [0]>} : vector<1x1x32xf32>, vector<1x8x32xf32>, vector<1x1x8xf32> -> vector<1x1x8xf32>
    "tpu.trace_stop"() : () -> ()
    %cst_141 = arith.constant 0.353553385 : f32
    %301 = vector.broadcast %cst_141 : f32 to vector<1x1x8xf32>
    %302 = arith.mulf %300, %301 : vector<1x1x8xf32>
    %cst_142 = arith.constant dense<0xFF800000> : vector<1x1xf32>
    %303 = vector.multi_reduction <maximumf>, %302, %cst_142 [2] : vector<1x1x8xf32> to vector<1x1xf32>
    %304 = vector.shape_cast %303 : vector<1x1xf32> to vector<1x1x1xf32>
    %305 = vector.broadcast %304 : vector<1x1x1xf32> to vector<1x1x8xf32>
    %306 = arith.subf %302, %305 : vector<1x1x8xf32>
    %307 = math.exp %306 : vector<1x1x8xf32>
    %cst_143 = arith.constant dense<0.000000e+00> : vector<1x1xf32>
    %308 = vector.multi_reduction <add>, %307, %cst_143 [2] : vector<1x1x8xf32> to vector<1x1xf32>
    %309 = vector.shape_cast %308 : vector<1x1xf32> to vector<1x1x1xf32>
    %310 = tpu.reciprocal %309 {approx = true} : vector<1x1x1xf32> -> vector<1x1x1xf32>
    %311 = vector.broadcast %310 : vector<1x1x1xf32> to vector<1x1x8xf32>
    %312 = arith.mulf %307, %311 : vector<1x1x8xf32>
    %313 = vector.broadcast %298 : vector<1x1x32xf32> to vector<1x8x32xf32>
    %314 = arith.mulf %239, %313 : vector<1x8x32xf32>
    "tpu.trace_start"() <{level = 10 : i32, message = "bqk,bkd->bqd"}> : () -> ()
    %cst_144 = arith.constant dense<0.000000e+00> : vector<1x1x32xf32>
    %315 = tpu.matmul %312, %314, %cst_144 {dimension_numbers = #tpu.dot_dimension_numbers<[2], [1], [1], [2], [0, 0, 0, 1, 1, 2], [0], [0]>} : vector<1x1x8xf32>, vector<1x8x32xf32>, vector<1x1x32xf32> -> vector<1x1x32xf32>
    "tpu.trace_stop"() : () -> ()
    %316 = arith.addf %291, %315 : vector<1x1x32xf32>
    %c24_i32_145 = arith.constant 24 : i32
    %317 = vector.broadcast %c24_i32_145 : i32 to vector<1x1x32xi32>
    %318 = arith.cmpi sge, %240, %317 : vector<1x1x32xi32>
    %c32_i32_146 = arith.constant 32 : i32
    %319 = vector.broadcast %c32_i32_146 : i32 to vector<1x1x32xi32>
    %320 = arith.cmpi slt, %240, %319 : vector<1x1x32xi32>
    %321 = arith.andi %318, %320 : vector<1x1x32xi1>
    %322 = arith.extui %321 : vector<1x1x32xi1> to vector<1x1x32xi32>
    %323 = arith.sitofp %322 : vector<1x1x32xi32> to vector<1x1x32xf32>
    %324 = arith.mulf %237, %323 : vector<1x1x32xf32>
    "tpu.trace_start"() <{level = 10 : i32, message = "bqd,bkd->bqk"}> : () -> ()
    %cst_147 = arith.constant dense<0.000000e+00> : vector<1x1x8xf32>
    %325 = tpu.matmul %324, %238, %cst_147 {dimension_numbers = #tpu.dot_dimension_numbers<[2], [2], [1], [1], [0, 0, 0, 1, 1, 1], [0], [0]>} : vector<1x1x32xf32>, vector<1x8x32xf32>, vector<1x1x8xf32> -> vector<1x1x8xf32>
    "tpu.trace_stop"() : () -> ()
    %cst_148 = arith.constant 0.353553385 : f32
    %326 = vector.broadcast %cst_148 : f32 to vector<1x1x8xf32>
    %327 = arith.mulf %325, %326 : vector<1x1x8xf32>
    %cst_149 = arith.constant dense<0xFF800000> : vector<1x1xf32>
    %328 = vector.multi_reduction <maximumf>, %327, %cst_149 [2] : vector<1x1x8xf32> to vector<1x1xf32>
    %329 = vector.shape_cast %328 : vector<1x1xf32> to vector<1x1x1xf32>
    %330 = vector.broadcast %329 : vector<1x1x1xf32> to vector<1x1x8xf32>
    %331 = arith.subf %327, %330 : vector<1x1x8xf32>
    %332 = math.exp %331 : vector<1x1x8xf32>
    %cst_150 = arith.constant dense<0.000000e+00> : vector<1x1xf32>
    %333 = vector.multi_reduction <add>, %332, %cst_150 [2] : vector<1x1x8xf32> to vector<1x1xf32>
    %334 = vector.shape_cast %333 : vector<1x1xf32> to vector<1x1x1xf32>
    %335 = tpu.reciprocal %334 {approx = true} : vector<1x1x1xf32> -> vector<1x1x1xf32>
    %336 = vector.broadcast %335 : vector<1x1x1xf32> to vector<1x1x8xf32>
    %337 = arith.mulf %332, %336 : vector<1x1x8xf32>
    %338 = vector.broadcast %323 : vector<1x1x32xf32> to vector<1x8x32xf32>
    %339 = arith.mulf %239, %338 : vector<1x8x32xf32>
    "tpu.trace_start"() <{level = 10 : i32, message = "bqk,bkd->bqd"}> : () -> ()
    %cst_151 = arith.constant dense<0.000000e+00> : vector<1x1x32xf32>
    %340 = tpu.matmul %337, %339, %cst_151 {dimension_numbers = #tpu.dot_dimension_numbers<[2], [1], [1], [2], [0, 0, 0, 1, 1, 2], [0], [0]>} : vector<1x1x8xf32>, vector<1x8x32xf32>, vector<1x1x32xf32> -> vector<1x1x32xf32>
    "tpu.trace_stop"() : () -> ()
    %341 = arith.addf %316, %340 : vector<1x1x32xf32>
    %342 = vector.shape_cast %341 : vector<1x1x32xf32> to vector<1x32xf32>
    %c1_152 = arith.constant 1 : index
    %c0_153 = arith.constant 0 : index
    %c0_154 = arith.constant 0 : index
    %343 = vector.load %arg11[%c1_152, %c0_153, %c0_154] : memref<2x32x32xf32, #tpu.memory_space<vmem>>, vector<1x32x32xf32>
    %344 = vector.shape_cast %343 : vector<1x32x32xf32> to vector<32x32xf32>
    %cst_155 = arith.constant dense<0.000000e+00> : vector<1x32xf32>
    %345 = tpu.matmul %342, %344, %cst_155 {dimension_numbers = #tpu.dot_dimension_numbers<[1], [0], [0], [1], [0, 0, 1, 1], [], []>} : vector<1x32xf32>, vector<32x32xf32>, vector<1x32xf32> -> vector<1x32xf32>
    %c1_156 = arith.constant 1 : index
    %c0_157 = arith.constant 0 : index
    %c0_158 = arith.constant 0 : index
    %346 = vector.load %arg12[%c1_156, %c0_157, %c0_158] : memref<2x1x32xf32, #tpu.memory_space<vmem>>, vector<1x1x32xf32>
    %347 = vector.shape_cast %346 : vector<1x1x32xf32> to vector<1x32xf32>
    %348 = arith.addf %345, %347 : vector<1x32xf32>
    %349 = arith.addf %230, %348 : vector<1x32xf32>
    %c1_159 = arith.constant 1 : index
    %c0_160 = arith.constant 0 : index
    %c0_161 = arith.constant 0 : index
    %350 = vector.load %arg17[%c1_159, %c0_160, %c0_161] : memref<2x1x32xf32, #tpu.memory_space<vmem>>, vector<1x1x32xf32>
    %351 = vector.shape_cast %350 : vector<1x1x32xf32> to vector<1x32xf32>
    %c1_162 = arith.constant 1 : index
    %c0_163 = arith.constant 0 : index
    %c0_164 = arith.constant 0 : index
    %352 = vector.load %arg18[%c1_162, %c0_163, %c0_164] : memref<2x1x32xf32, #tpu.memory_space<vmem>>, vector<1x1x32xf32>
    %353 = vector.shape_cast %352 : vector<1x1x32xf32> to vector<1x32xf32>
    %cst_165 = arith.constant dense<0.000000e+00> : vector<1xf32>
    %354 = vector.multi_reduction <add>, %349, %cst_165 [1] : vector<1x32xf32> to vector<1xf32>
    %355 = vector.shape_cast %354 : vector<1xf32> to vector<1x1xf32>
    %cst_166 = arith.constant 3.200000e+01 : f32
    %356 = vector.broadcast %cst_166 : f32 to vector<1x1xf32>
    %357 = arith.divf %355, %356 : vector<1x1xf32>
    %358 = vector.broadcast %357 : vector<1x1xf32> to vector<1x32xf32>
    %359 = arith.subf %349, %358 : vector<1x32xf32>
    %360 = arith.mulf %359, %359 : vector<1x32xf32>
    %cst_167 = arith.constant dense<0.000000e+00> : vector<1xf32>
    %361 = vector.multi_reduction <add>, %360, %cst_167 [1] : vector<1x32xf32> to vector<1xf32>
    %362 = vector.shape_cast %361 : vector<1xf32> to vector<1x1xf32>
    %cst_168 = arith.constant 3.200000e+01 : f32
    %363 = vector.broadcast %cst_168 : f32 to vector<1x1xf32>
    %364 = arith.divf %362, %363 : vector<1x1xf32>
    %cst_169 = arith.constant 9.99999974E-6 : f32
    %365 = vector.broadcast %cst_169 : f32 to vector<1x1xf32>
    %366 = arith.addf %364, %365 : vector<1x1xf32>
    %367 = math.rsqrt %366 : vector<1x1xf32>
    %368 = vector.broadcast %367 : vector<1x1xf32> to vector<1x32xf32>
    %369 = arith.mulf %359, %368 : vector<1x32xf32>
    %370 = arith.mulf %369, %351 : vector<1x32xf32>
    %371 = arith.addf %370, %353 : vector<1x32xf32>
    %c1_170 = arith.constant 1 : index
    %c0_171 = arith.constant 0 : index
    %c0_172 = arith.constant 0 : index
    %372 = vector.load %arg13[%c1_170, %c0_171, %c0_172] : memref<2x32x2048xf32, #tpu.memory_space<vmem>>, vector<1x32x2048xf32>
    %373 = vector.shape_cast %372 : vector<1x32x2048xf32> to vector<32x2048xf32>
    %cst_173 = arith.constant dense<0.000000e+00> : vector<1x2048xf32>
    %374 = tpu.matmul %371, %373, %cst_173 {dimension_numbers = #tpu.dot_dimension_numbers<[1], [0], [0], [1], [0, 0, 1, 1], [], []>} : vector<1x32xf32>, vector<32x2048xf32>, vector<1x2048xf32> -> vector<1x2048xf32>
    %c1_174 = arith.constant 1 : index
    %c0_175 = arith.constant 0 : index
    %c0_176 = arith.constant 0 : index
    %375 = vector.load %arg14[%c1_174, %c0_175, %c0_176] : memref<2x1x2048xf32, #tpu.memory_space<vmem>>, vector<1x1x2048xf32>
    %376 = vector.shape_cast %375 : vector<1x1x2048xf32> to vector<1x2048xf32>
    %377 = arith.addf %374, %376 : vector<1x2048xf32>
    %cst_177 = arith.constant 0.000000e+00 : f32
    %378 = vector.broadcast %cst_177 : f32 to vector<1x2048xf32>
    %379 = arith.maximumf %377, %378 : vector<1x2048xf32>
    %c1_178 = arith.constant 1 : index
    %c0_179 = arith.constant 0 : index
    %c0_180 = arith.constant 0 : index
    %380 = vector.load %arg15[%c1_178, %c0_179, %c0_180] : memref<2x2048x32xf32, #tpu.memory_space<vmem>>, vector<1x2048x32xf32>
    %381 = vector.shape_cast %380 : vector<1x2048x32xf32> to vector<2048x32xf32>
    %cst_181 = arith.constant dense<0.000000e+00> : vector<1x32xf32>
    %382 = tpu.matmul %379, %381, %cst_181 {dimension_numbers = #tpu.dot_dimension_numbers<[1], [0], [0], [1], [0, 0, 1, 1], [], []>} : vector<1x2048xf32>, vector<2048x32xf32>, vector<1x32xf32> -> vector<1x32xf32>
    %c1_182 = arith.constant 1 : index
    %c0_183 = arith.constant 0 : index
    %c0_184 = arith.constant 0 : index
    %383 = vector.load %arg16[%c1_182, %c0_183, %c0_184] : memref<2x1x32xf32, #tpu.memory_space<vmem>>, vector<1x1x32xf32>
    %384 = vector.shape_cast %383 : vector<1x1x32xf32> to vector<1x32xf32>
    %385 = arith.addf %382, %384 : vector<1x32xf32>
    %386 = arith.addf %371, %385 : vector<1x32xf32>
    %c1_185 = arith.constant 1 : index
    %c0_186 = arith.constant 0 : index
    %c0_187 = arith.constant 0 : index
    %387 = vector.load %arg19[%c1_185, %c0_186, %c0_187] : memref<2x1x32xf32, #tpu.memory_space<vmem>>, vector<1x1x32xf32>
    %388 = vector.shape_cast %387 : vector<1x1x32xf32> to vector<1x32xf32>
    %c1_188 = arith.constant 1 : index
    %c0_189 = arith.constant 0 : index
    %c0_190 = arith.constant 0 : index
    %389 = vector.load %arg20[%c1_188, %c0_189, %c0_190] : memref<2x1x32xf32, #tpu.memory_space<vmem>>, vector<1x1x32xf32>
    %390 = vector.shape_cast %389 : vector<1x1x32xf32> to vector<1x32xf32>
    %cst_191 = arith.constant dense<0.000000e+00> : vector<1xf32>
    %391 = vector.multi_reduction <add>, %386, %cst_191 [1] : vector<1x32xf32> to vector<1xf32>
    %392 = vector.shape_cast %391 : vector<1xf32> to vector<1x1xf32>
    %cst_192 = arith.constant 3.200000e+01 : f32
    %393 = vector.broadcast %cst_192 : f32 to vector<1x1xf32>
    %394 = arith.divf %392, %393 : vector<1x1xf32>
    %395 = vector.broadcast %394 : vector<1x1xf32> to vector<1x32xf32>
    %396 = arith.subf %386, %395 : vector<1x32xf32>
    %397 = arith.mulf %396, %396 : vector<1x32xf32>
    %cst_193 = arith.constant dense<0.000000e+00> : vector<1xf32>
    %398 = vector.multi_reduction <add>, %397, %cst_193 [1] : vector<1x32xf32> to vector<1xf32>
    %399 = vector.shape_cast %398 : vector<1xf32> to vector<1x1xf32>
    %cst_194 = arith.constant 3.200000e+01 : f32
    %400 = vector.broadcast %cst_194 : f32 to vector<1x1xf32>
    %401 = arith.divf %399, %400 : vector<1x1xf32>
    %cst_195 = arith.constant 9.99999974E-6 : f32
    %402 = vector.broadcast %cst_195 : f32 to vector<1x1xf32>
    %403 = arith.addf %401, %402 : vector<1x1xf32>
    %404 = math.rsqrt %403 : vector<1x1xf32>
    %405 = vector.broadcast %404 : vector<1x1xf32> to vector<1x32xf32>
    %406 = arith.mulf %396, %405 : vector<1x32xf32>
    %407 = arith.mulf %406, %388 : vector<1x32xf32>
    %408 = arith.addf %407, %390 : vector<1x32xf32>
    %409 = vector.shape_cast %408 : vector<1x32xf32> to vector<1x1x32xf32>
    %c0_196 = arith.constant 0 : index
    %c0_197 = arith.constant 0 : index
    %c0_198 = arith.constant 0 : index
    %410 = vector.load %arg21[%c0_196, %c0_197, %c0_198] : memref<1x1x32xf32, #tpu.memory_space<vmem>>, vector<1x1x32xf32>
    tpu.vector_store %arg21[%c0_196, %c0_197, %c0_198], %409 {strides = array<i32>} : memref<1x1x32xf32, #tpu.memory_space<vmem>>, vector<1x1x32xf32>,
    return
  }
  func.func @transform_0(%arg0: i32) -> (i32, i32, i32) {
    %c0_i32 = arith.constant 0 : i32
    %c0_i32_0 = arith.constant 0 : i32
    %c0_i32_1 = arith.constant 0 : i32
    return %arg0, %c0_i32, %c0_i32_0 : i32, i32, i32
  }
  func.func @transform_1(%arg0: i32) -> (i32, i32, i32) {
    %c0_i32 = arith.constant 0 : i32
    %c0_i32_0 = arith.constant 0 : i32
    %c0_i32_1 = arith.constant 0 : i32
    return %arg0, %c0_i32, %c0_i32_0 : i32, i32, i32
  }
  func.func @transform_2(%arg0: i32) -> (i32, i32) {
    %c0_i32 = arith.constant 0 : i32
    %c0_i32_0 = arith.constant 0 : i32
    %c0_i32_1 = arith.constant 0 : i32
    return %c0_i32, %c0_i32_0 : i32, i32
  }
  func.func @transform_3(%arg0: i32) -> (i32, i32) {
    %c0_i32 = arith.constant 0 : i32
    %c0_i32_0 = arith.constant 0 : i32
    %c0_i32_1 = arith.constant 0 : i32
    return %c0_i32, %c0_i32_0 : i32, i32
  }
  func.func @transform_4(%arg0: i32) -> (i32, i32, i32) {
    %c0_i32 = arith.constant 0 : i32
    %c0_i32_0 = arith.constant 0 : i32
    %c0_i32_1 = arith.constant 0 : i32
    %c0_i32_2 = arith.constant 0 : i32
    return %c0_i32, %c0_i32_0, %c0_i32_1 : i32, i32, i32
  }
  func.func @transform_5(%arg0: i32) -> (i32, i32, i32) {
    %c0_i32 = arith.constant 0 : i32
    %c0_i32_0 = arith.constant 0 : i32
    %c0_i32_1 = arith.constant 0 : i32
    %c0_i32_2 = arith.constant 0 : i32
    return %c0_i32, %c0_i32_0, %c0_i32_1 : i32, i32, i32
  }
  func.func @transform_6(%arg0: i32) -> (i32, i32, i32) {
    %c0_i32 = arith.constant 0 : i32
    %c0_i32_0 = arith.constant 0 : i32
    %c0_i32_1 = arith.constant 0 : i32
    %c0_i32_2 = arith.constant 0 : i32
    return %c0_i32, %c0_i32_0, %c0_i32_1 : i32, i32, i32
  }
  func.func @transform_7(%arg0: i32) -> (i32, i32, i32) {
    %c0_i32 = arith.constant 0 : i32
    %c0_i32_0 = arith.constant 0 : i32
    %c0_i32_1 = arith.constant 0 : i32
    %c0_i32_2 = arith.constant 0 : i32
    return %c0_i32, %c0_i32_0, %c0_i32_1 : i32, i32, i32
  }
  func.func @transform_8(%arg0: i32) -> (i32, i32, i32) {
    %c0_i32 = arith.constant 0 : i32
    %c0_i32_0 = arith.constant 0 : i32
    %c0_i32_1 = arith.constant 0 : i32
    %c0_i32_2 = arith.constant 0 : i32
    return %c0_i32, %c0_i32_0, %c0_i32_1 : i32, i32, i32
  }
  func.func @transform_9(%arg0: i32) -> (i32, i32, i32) {
    %c0_i32 = arith.constant 0 : i32
    %c0_i32_0 = arith.constant 0 : i32
    %c0_i32_1 = arith.constant 0 : i32
    %c0_i32_2 = arith.constant 0 : i32
    return %c0_i32, %c0_i32_0, %c0_i32_1 : i32, i32, i32
  }
  func.func @transform_10(%arg0: i32) -> (i32, i32, i32) {
    %c0_i32 = arith.constant 0 : i32
    %c0_i32_0 = arith.constant 0 : i32
    %c0_i32_1 = arith.constant 0 : i32
    %c0_i32_2 = arith.constant 0 : i32
    return %c0_i32, %c0_i32_0, %c0_i32_1 : i32, i32, i32
  }
  func.func @transform_11(%arg0: i32) -> (i32, i32, i32) {
    %c0_i32 = arith.constant 0 : i32
    %c0_i32_0 = arith.constant 0 : i32
    %c0_i32_1 = arith.constant 0 : i32
    %c0_i32_2 = arith.constant 0 : i32
    return %c0_i32, %c0_i32_0, %c0_i32_1 : i32, i32, i32
  }
  func.func @transform_12(%arg0: i32) -> (i32, i32, i32) {
    %c0_i32 = arith.constant 0 : i32
    %c0_i32_0 = arith.constant 0 : i32
    %c0_i32_1 = arith.constant 0 : i32
    %c0_i32_2 = arith.constant 0 : i32
    return %c0_i32, %c0_i32_0, %c0_i32_1 : i32, i32, i32
  }
  func.func @transform_13(%arg0: i32) -> (i32, i32, i32) {
    %c0_i32 = arith.constant 0 : i32
    %c0_i32_0 = arith.constant 0 : i32
    %c0_i32_1 = arith.constant 0 : i32
    %c0_i32_2 = arith.constant 0 : i32
    return %c0_i32, %c0_i32_0, %c0_i32_1 : i32, i32, i32
  }
  func.func @transform_14(%arg0: i32) -> (i32, i32, i32) {
    %c0_i32 = arith.constant 0 : i32
    %c0_i32_0 = arith.constant 0 : i32
    %c0_i32_1 = arith.constant 0 : i32
    %c0_i32_2 = arith.constant 0 : i32
    return %c0_i32, %c0_i32_0, %c0_i32_1 : i32, i32, i32
  }
  func.func @transform_15(%arg0: i32) -> (i32, i32, i32) {
    %c0_i32 = arith.constant 0 : i32
    %c0_i32_0 = arith.constant 0 : i32
    %c0_i32_1 = arith.constant 0 : i32
    %c0_i32_2 = arith.constant 0 : i32
    return %c0_i32, %c0_i32_0, %c0_i32_1 : i32, i32, i32
  }
  func.func @transform_16(%arg0: i32) -> (i32, i32, i32) {
    %c0_i32 = arith.constant 0 : i32
    %c0_i32_0 = arith.constant 0 : i32
    %c0_i32_1 = arith.constant 0 : i32
    %c0_i32_2 = arith.constant 0 : i32
    return %c0_i32, %c0_i32_0, %c0_i32_1 : i32, i32, i32
  }
  func.func @transform_17(%arg0: i32) -> (i32, i32, i32) {
    %c0_i32 = arith.constant 0 : i32
    %c0_i32_0 = arith.constant 0 : i32
    %c0_i32_1 = arith.constant 0 : i32
    %c0_i32_2 = arith.constant 0 : i32
    return %c0_i32, %c0_i32_0, %c0_i32_1 : i32, i32, i32
  }
  func.func @transform_18(%arg0: i32) -> (i32, i32, i32) {
    %c0_i32 = arith.constant 0 : i32
    %c0_i32_0 = arith.constant 0 : i32
    %c0_i32_1 = arith.constant 0 : i32
    %c0_i32_2 = arith.constant 0 : i32
    return %c0_i32, %c0_i32_0, %c0_i32_1 : i32, i32, i32
  }
  func.func @transform_19(%arg0: i32) -> (i32, i32, i32) {
    %c0_i32 = arith.constant 0 : i32
    %c0_i32_0 = arith.constant 0 : i32
    %c0_i32_1 = arith.constant 0 : i32
    %c0_i32_2 = arith.constant 0 : i32
    return %c0_i32, %c0_i32_0, %c0_i32_1 : i32, i32, i32
  }
  func.func @transform_20(%arg0: i32) -> (i32, i32, i32) {
    %c0_i32 = arith.constant 0 : i32
    %c0_i32_0 = arith.constant 0 : i32
    %c0_i32_1 = arith.constant 0 : i32
    return %arg0, %c0_i32, %c0_i32_0 : i32, i32, i32
  }
}

</mosaic_0001>

<llo_original>
// kernel: inverted_endogenous_encoder_forward.1
$region0: #{inverted_endogenous_encoder_forward.1}
  #allocation0 [shape = 'u32[]', space=smem, size = 0x4, offset = 0x4, fixed_abs, tag = 'smem constant byte address 0x4 - core index']
  #allocation1 [shape = 'u32[144,128]{1,0:T(1,128)}', space=vmem, size = 0x12000, scoped, tag = 'internal scratch']
  #allocation2 [shape = 'f32[8,32]{1,0:T(8,128)}', space=vmem, size = 0x1000, scoped, tag = 'scratch operand']
  %s0 = inlined_call_operand.vmem [shape: f32[2,4,8], index: 0, kind: input, shape index: {}]
  %s1 = inlined_call_operand.vmem [shape: f32[2,4,32], index: 1, kind: input, shape index: {}]
  %s2 = inlined_call_operand.vmem [shape: f32[8,32], index: 2, kind: input, shape index: {}]
  %s3 = inlined_call_operand.vmem [shape: f32[1,32], index: 3, kind: input, shape index: {}]
  %s4 = inlined_call_operand.vmem [shape: f32[2,32,32], index: 4, kind: input, shape index: {}]
  %s5 = inlined_call_operand.vmem [shape: f32[2,32,32], index: 5, kind: input, shape index: {}]
  %s6 = inlined_call_operand.vmem [shape: f32[2,32,32], index: 6, kind: input, shape index: {}]
  %s7 = inlined_call_operand.vmem [shape: f32[2,1,32], index: 7, kind: input, shape index: {}]
  %s8 = inlined_call_operand.vmem [shape: f32[2,1,32], index: 8, kind: input, shape index: {}]
  %s9 = inlined_call_operand.vmem [shape: f32[2,1,32], index: 9, kind: input, shape index: {}]
  %s10 = inlined_call_operand.vmem [shape: f32[2,32,32], index: 10, kind: input, shape index: {}]
  %s11 = inlined_call_operand.vmem [shape: f32[2,1,32], index: 11, kind: input, shape index: {}]
  %s12 = inlined_call_operand.vmem [shape: f32[2,32,2048], index: 12, kind: input, shape index: {}]
  %s13 = inlined_call_operand.vmem [shape: f32[2,1,2048], index: 13, kind: input, shape index: {}]
  %s14 = inlined_call_operand.vmem [shape: f32[2,2048,32], index: 14, kind: input, shape index: {}]
  %s15 = inlined_call_operand.vmem [shape: f32[2,1,32], index: 15, kind: input, shape index: {}]
  %s16 = inlined_call_operand.vmem [shape: f32[2,1,32], index: 16, kind: input, shape index: {}]
  %s17 = inlined_call_operand.vmem [shape: f32[2,1,32], index: 17, kind: input, shape index: {}]
  %s18 = inlined_call_operand.vmem [shape: f32[2,1,32], index: 18, kind: input, shape index: {}]
  %s19 = inlined_call_operand.vmem [shape: f32[2,1,32], index: 19, kind: input, shape index: {}]
  %s20 = inlined_call_operand.hbm [shape: f32[2,1,32], index: 20, kind: output, shape index: {}]
  %s21 = sld [smem:[#allocation0]]
  $region113: #{inverted_endogenous_encoder_forward.1} parent=0
    _
  %s23 = ssub.s32 1, %s21
  %s24 = scalar_select 0, %s23, %s21
  $region1: #{inverted_endogenous_encoder_forward.1} parent=0
    #allocation3 [shape = 'u8[1024]{0}', space=vmem, size = 0x400, scoped, tag = 'output window, operand 0']
    #allocation4 [shape = 's32[2]{0}', space=sflag, size = 0x8, scoped, tag = 'scoped memory for inverted_endogenous_encoder_forward.1']
    %25 = vsyncpa [#allocation4], 0
    %s26 = scalar_lea.sflag [#allocation4], 1
    %27 = vsyncpa %s26, 0
    loop: start=0, step=1, limit=4
    $region2: #{inverted_endogenous_encoder_forward.1} parent=1 // loop_pre_header
      _
    $region3: #{inverted_endogenous_encoder_forward.1} parent=1 // loop_header
      %s29 = sphi 0, %s33
      %p30 = scmp.ge.s32.totalorder %s29, 4
      %s39 = sphi 0, %s41
      %s42 = sphi 0, %s39
      %s43 = sphi 0, %s42
      %s59 = sphi 0, %s43
      %s65 = sphi 0, %s67
      %s68 = sphi 0, %s65
      %s69 = sphi 0, %s68
      %s85 = sphi 0, %s69
      %s89 = sphi 0, %s89
      %s91 = sphi 0, %s89
      %s92 = sphi 0, %s91
      %s106 = sphi 0, %s92
      %s110 = sphi 0, %s110
      %s112 = sphi 0, %s110
      %s113 = sphi 0, %s112
      %s127 = sphi 0, %s113
      %s131 = sphi 0, %s131
      %s133 = sphi 0, %s131
      %s134 = sphi 0, %s133
      %s148 = sphi 0, %s134
      %s152 = sphi 0, %s152
      %s154 = sphi 0, %s152
      %s155 = sphi 0, %s154
      %s169 = sphi 0, %s155
      %s173 = sphi 0, %s173
      %s175 = sphi 0, %s173
      %s176 = sphi 0, %s175
      %s190 = sphi 0, %s176
      %s194 = sphi 0, %s194
      %s196 = sphi 0, %s194
      %s197 = sphi 0, %s196
      %s211 = sphi 0, %s197
      %s215 = sphi 0, %s215
      %s217 = sphi 0, %s215
      %s218 = sphi 0, %s217
      %s232 = sphi 0, %s218
      %s236 = sphi 0, %s236
      %s238 = sphi 0, %s236
      %s239 = sphi 0, %s238
      %s253 = sphi 0, %s239
      %s257 = sphi 0, %s257
      %s259 = sphi 0, %s257
      %s260 = sphi 0, %s259
      %s274 = sphi 0, %s260
      %s278 = sphi 0, %s278
      %s280 = sphi 0, %s278
      %s281 = sphi 0, %s280
      %s295 = sphi 0, %s281
      %s299 = sphi 0, %s299
      %s301 = sphi 0, %s299
      %s302 = sphi 0, %s301
      %s316 = sphi 0, %s302
      %s320 = sphi 0, %s320
      %s322 = sphi 0, %s320
      %s323 = sphi 0, %s322
      %s337 = sphi 0, %s323
      %s341 = sphi 0, %s341
      %s343 = sphi 0, %s341
      %s344 = sphi 0, %s343
      %s358 = sphi 0, %s344
      %s362 = sphi 0, %s362
      %s364 = sphi 0, %s362
      %s365 = sphi 0, %s364
      %s379 = sphi 0, %s365
      %s383 = sphi 0, %s383
      %s385 = sphi 0, %s383
      %s386 = sphi 0, %s385
      %s400 = sphi 0, %s386
      %s404 = sphi 0, %s404
      %s406 = sphi 0, %s404
      %s407 = sphi 0, %s406
      %s421 = sphi 0, %s407
      %s425 = sphi 0, %s425
      %s427 = sphi 0, %s425
      %s428 = sphi 0, %s427
      %s442 = sphi 0, %s428
      %s446 = sphi 0, %s446
      %s448 = sphi 0, %s446
      %s449 = sphi 0, %s448
      %s463 = sphi 0, %s449
      %s469 = sphi 0, %s471
      %s472 = sphi 0, %s469
      %s473 = sphi 0, %s472
      %s489 = sphi 0, %s473
    $region4: #{inverted_endogenous_encoder_forward.1} parent=1 // loop_header_branch
      %32 = sbr.rel (%p30) target = $region8
    $region5: #{inverted_endogenous_encoder_forward.1} parent=1 // loop_body
      %s34 = ssub.s32 %s29, 1
      %s35 = ssub.s32 %s29, 2
      %s36 = sadd.s32 %s29, 1
      %s37 = ssub.s32 %s29, %s36
      %p38 = scmp.eq.s32.totalorder %s37, 0
      %s40 = sadd.s32 %s39, 1
      %s41 = scalar_select %p38, %s39, %s40
      %p44 = pneg %p38
      %p45 = scmp.eq.s32.totalorder %s29, 1
      %p46 = por %p44, %p45
      %p47 = scmp.ne.s32.totalorder %s39, %s42
      %p48 = scmp.eq.s32.totalorder %s29, 0
      %p49 = por %p47, %p48
      %p50 = scmp.ne.s32.totalorder %s39, %s42
      %p51 = scmp.eq.s32.totalorder %s34, 1
      %p52 = por %p50, %p51
      %p53 = scmp.ne.s32.totalorder %s42, %s43
      %p54 = scmp.eq.s32.totalorder %s34, 0
      %p55 = por %p53, %p54
      %p56 = scmp.ne.s32.totalorder %s42, %s43
      %p57 = scmp.eq.s32.totalorder %s35, 1
      %p58 = por %p56, %p57
      %p60 = scmp.ne.s32.totalorder %s43, %s59
      %p61 = scmp.eq.s32.totalorder %s35, 0
      %p62 = por %p60, %p61
      %s63 = ssub.s32 %s29, %s36
      %p64 = scmp.eq.s32.totalorder %s63, 0
      %s66 = sadd.s32 %s65, 1
      %s67 = scalar_select %p64, %s65, %s66
      %p70 = pneg %p64
      %p71 = scmp.eq.s32.totalorder %s29, 1
      %p72 = por %p70, %p71
      %p73 = scmp.ne.s32.totalorder %s65, %s68
      %p74 = scmp.eq.s32.totalorder %s29, 0
      %p75 = por %p73, %p74
      %p76 = scmp.ne.s32.totalorder %s65, %s68
      %p77 = scmp.eq.s32.totalorder %s34, 1
      %p78 = por %p76, %p77
      %p79 = scmp.ne.s32.totalorder %s68, %s69
      %p80 = scmp.eq.s32.totalorder %s34, 0
      %p81 = por %p79, %p80
      %p82 = scmp.ne.s32.totalorder %s68, %s69
      %p83 = scmp.eq.s32.totalorder %s35, 1
      %p84 = por %p82, %p83
      %p86 = scmp.ne.s32.totalorder %s69, %s85
      %p87 = scmp.eq.s32.totalorder %s35, 0
      %p88 = por %p86, %p87
      %s90 = sadd.s32 %s89, 1
      %p93 = scmp.eq.s32.totalorder %s29, 1
      %p94 = scmp.ne.s32.totalorder %s89, %s91
      %p95 = scmp.eq.s32.totalorder %s29, 0
      %p96 = por %p94, %p95
      %p97 = scmp.ne.s32.totalorder %s89, %s91
      %p98 = scmp.eq.s32.totalorder %s34, 1
      %p99 = por %p97, %p98
      %p100 = scmp.ne.s32.totalorder %s91, %s92
      %p101 = scmp.eq.s32.totalorder %s34, 0
      %p102 = por %p100, %p101
      %p103 = scmp.ne.s32.totalorder %s91, %s92
      %p104 = scmp.eq.s32.totalorder %s35, 1
      %p105 = por %p103, %p104
      %p107 = scmp.ne.s32.totalorder %s92, %s106
      %p108 = scmp.eq.s32.totalorder %s35, 0
      %p109 = por %p107, %p108
      %s111 = sadd.s32 %s110, 1
      %p114 = scmp.eq.s32.totalorder %s29, 1
      %p115 = scmp.ne.s32.totalorder %s110, %s112
      %p116 = scmp.eq.s32.totalorder %s29, 0
      %p117 = por %p115, %p116
      %p118 = scmp.ne.s32.totalorder %s110, %s112
      %p119 = scmp.eq.s32.totalorder %s34, 1
      %p120 = por %p118, %p119
      %p121 = scmp.ne.s32.totalorder %s112, %s113
      %p122 = scmp.eq.s32.totalorder %s34, 0
      %p123 = por %p121, %p122
      %p124 = scmp.ne.s32.totalorder %s112, %s113
      %p125 = scmp.eq.s32.totalorder %s35, 1
      %p126 = por %p124, %p125
      %p128 = scmp.ne.s32.totalorder %s113, %s127
      %p129 = scmp.eq.s32.totalorder %s35, 0
      %p130 = por %p128, %p129
      %s132 = sadd.s32 %s131, 1
      %p135 = scmp.eq.s32.totalorder %s29, 1
      %p136 = scmp.ne.s32.totalorder %s131, %s133
      %p137 = scmp.eq.s32.totalorder %s29, 0
      %p138 = por %p136, %p137
      %p139 = scmp.ne.s32.totalorder %s131, %s133
      %p140 = scmp.eq.s32.totalorder %s34, 1
      %p141 = por %p139, %p140
      %p142 = scmp.ne.s32.totalorder %s133, %s134
      %p143 = scmp.eq.s32.totalorder %s34, 0
      %p144 = por %p142, %p143
      %p145 = scmp.ne.s32.totalorder %s133, %s134
      %p146 = scmp.eq.s32.totalorder %s35, 1
      %p147 = por %p145, %p146
      %p149 = scmp.ne.s32.totalorder %s134, %s148
      %p150 = scmp.eq.s32.totalorder %s35, 0
      %p151 = por %p149, %p150
      %s153 = sadd.s32 %s152, 1
      %p156 = scmp.eq.s32.totalorder %s29, 1
      %p157 = scmp.ne.s32.totalorder %s152, %s154
      %p158 = scmp.eq.s32.totalorder %s29, 0
      %p159 = por %p157, %p158
      %p160 = scmp.ne.s32.totalorder %s152, %s154
      %p161 = scmp.eq.s32.totalorder %s34, 1
      %p162 = por %p160, %p161
      %p163 = scmp.ne.s32.totalorder %s154, %s155
      %p164 = scmp.eq.s32.totalorder %s34, 0
      %p165 = por %p163, %p164
      %p166 = scmp.ne.s32.totalorder %s154, %s155
      %p167 = scmp.eq.s32.totalorder %s35, 1
      %p168 = por %p166, %p167
      %p170 = scmp.ne.s32.totalorder %s155, %s169
      %p171 = scmp.eq.s32.totalorder %s35, 0
      %p172 = por %p170, %p171
      %s174 = sadd.s32 %s173, 1
      %p177 = scmp.eq.s32.totalorder %s29, 1
      %p178 = scmp.ne.s32.totalorder %s173, %s175
      %p179 = scmp.eq.s32.totalorder %s29, 0
      %p180 = por %p178, %p179
      %p181 = scmp.ne.s32.totalorder %s173, %s175
      %p182 = scmp.eq.s32.totalorder %s34, 1
      %p183 = por %p181, %p182
      %p184 = scmp.ne.s32.totalorder %s175, %s176
      %p185 = scmp.eq.s32.totalorder %s34, 0
      %p186 = por %p184, %p185
      %p187 = scmp.ne.s32.totalorder %s175, %s176
      %p188 = scmp.eq.s32.totalorder %s35, 1
      %p189 = por %p187, %p188
      %p191 = scmp.ne.s32.totalorder %s176, %s190
      %p192 = scmp.eq.s32.totalorder %s35, 0
      %p193 = por %p191, %p192
      %s195 = sadd.s32 %s194, 1
      %p198 = scmp.eq.s32.totalorder %s29, 1
      %p199 = scmp.ne.s32.totalorder %s194, %s196
      %p200 = scmp.eq.s32.totalorder %s29, 0
      %p201 = por %p199, %p200
      %p202 = scmp.ne.s32.totalorder %s194, %s196
      %p203 = scmp.eq.s32.totalorder %s34, 1
      %p204 = por %p202, %p203
      %p205 = scmp.ne.s32.totalorder %s196, %s197
      %p206 = scmp.eq.s32.totalorder %s34, 0
      %p207 = por %p205, %p206
      %p208 = scmp.ne.s32.totalorder %s196, %s197
      %p209 = scmp.eq.s32.totalorder %s35, 1
      %p210 = por %p208, %p209
      %p212 = scmp.ne.s32.totalorder %s197, %s211
      %p213 = scmp.eq.s32.totalorder %s35, 0
      %p214 = por %p212, %p213
      %s216 = sadd.s32 %s215, 1
      %p219 = scmp.eq.s32.totalorder %s29, 1
      %p220 = scmp.ne.s32.totalorder %s215, %s217
      %p221 = scmp.eq.s32.totalorder %s29, 0
      %p222 = por %p220, %p221
      %p223 = scmp.ne.s32.totalorder %s215, %s217
      %p224 = scmp.eq.s32.totalorder %s34, 1
      %p225 = por %p223, %p224
      %p226 = scmp.ne.s32.totalorder %s217, %s218
      %p227 = scmp.eq.s32.totalorder %s34, 0
      %p228 = por %p226, %p227
      %p229 = scmp.ne.s32.totalorder %s217, %s218
      %p230 = scmp.eq.s32.totalorder %s35, 1
      %p231 = por %p229, %p230
      %p233 = scmp.ne.s32.totalorder %s218, %s232
      %p234 = scmp.eq.s32.totalorder %s35, 0
      %p235 = por %p233, %p234
      %s237 = sadd.s32 %s236, 1
      %p240 = scmp.eq.s32.totalorder %s29, 1
      %p241 = scmp.ne.s32.totalorder %s236, %s238
      %p242 = scmp.eq.s32.totalorder %s29, 0
      %p243 = por %p241, %p242
      %p244 = scmp.ne.s32.totalorder %s236, %s238
      %p245 = scmp.eq.s32.totalorder %s34, 1
      %p246 = por %p244, %p245
      %p247 = scmp.ne.s32.totalorder %s238, %s239
      %p248 = scmp.eq.s32.totalorder %s34, 0
      %p249 = por %p247, %p248
      %p250 = scmp.ne.s32.totalorder %s238, %s239
      %p251 = scmp.eq.s32.totalorder %s35, 1
      %p252 = por %p250, %p251
      %p254 = scmp.ne.s32.totalorder %s239, %s253
      %p255 = scmp.eq.s32.totalorder %s35, 0
      %p256 = por %p254, %p255
      %s258 = sadd.s32 %s257, 1
      %p261 = scmp.eq.s32.totalorder %s29, 1
      %p262 = scmp.ne.s32.totalorder %s257, %s259
      %p263 = scmp.eq.s32.totalorder %s29, 0
      %p264 = por %p262, %p263
      %p265 = scmp.ne.s32.totalorder %s257, %s259
      %p266 = scmp.eq.s32.totalorder %s34, 1
      %p267 = por %p265, %p266
      %p268 = scmp.ne.s32.totalorder %s259, %s260
      %p269 = scmp.eq.s32.totalorder %s34, 0
      %p270 = por %p268, %p269
      %p271 = scmp.ne.s32.totalorder %s259, %s260
      %p272 = scmp.eq.s32.totalorder %s35, 1
      %p273 = por %p271, %p272
      %p275 = scmp.ne.s32.totalorder %s260, %s274
      %p276 = scmp.eq.s32.totalorder %s35, 0
      %p277 = por %p275, %p276
      %s279 = sadd.s32 %s278, 1
      %p282 = scmp.eq.s32.totalorder %s29, 1
      %p283 = scmp.ne.s32.totalorder %s278, %s280
      %p284 = scmp.eq.s32.totalorder %s29, 0
      %p285 = por %p283, %p284
      %p286 = scmp.ne.s32.totalorder %s278, %s280
      %p287 = scmp.eq.s32.totalorder %s34, 1
      %p288 = por %p286, %p287
      %p289 = scmp.ne.s32.totalorder %s280, %s281
      %p290 = scmp.eq.s32.totalorder %s34, 0
      %p291 = por %p289, %p290
      %p292 = scmp.ne.s32.totalorder %s280, %s281
      %p293 = scmp.eq.s32.totalorder %s35, 1
      %p294 = por %p292, %p293
      %p296 = scmp.ne.s32.totalorder %s281, %s295
      %p297 = scmp.eq.s32.totalorder %s35, 0
      %p298 = por %p296, %p297
      %s300 = sadd.s32 %s299, 1
      %p303 = scmp.eq.s32.totalorder %s29, 1
      %p304 = scmp.ne.s32.totalorder %s299, %s301
      %p305 = scmp.eq.s32.totalorder %s29, 0
      %p306 = por %p304, %p305
      %p307 = scmp.ne.s32.totalorder %s299, %s301
      %p308 = scmp.eq.s32.totalorder %s34, 1
      %p309 = por %p307, %p308
      %p310 = scmp.ne.s32.totalorder %s301, %s302
      %p311 = scmp.eq.s32.totalorder %s34, 0
      %p312 = por %p310, %p311
      %p313 = scmp.ne.s32.totalorder %s301, %s302
      %p314 = scmp.eq.s32.totalorder %s35, 1
      %p315 = por %p313, %p314
      %p317 = scmp.ne.s32.totalorder %s302, %s316
      %p318 = scmp.eq.s32.totalorder %s35, 0
      %p319 = por %p317, %p318
      %s321 = sadd.s32 %s320, 1
      %p324 = scmp.eq.s32.totalorder %s29, 1
      %p325 = scmp.ne.s32.totalorder %s320, %s322
      %p326 = scmp.eq.s32.totalorder %s29, 0
      %p327 = por %p325, %p326
      %p328 = scmp.ne.s32.totalorder %s320, %s322
      %p329 = scmp.eq.s32.totalorder %s34, 1
      %p330 = por %p328, %p329
      %p331 = scmp.ne.s32.totalorder %s322, %s323
      %p332 = scmp.eq.s32.totalorder %s34, 0
      %p333 = por %p331, %p332
      %p334 = scmp.ne.s32.totalorder %s322, %s323
      %p335 = scmp.eq.s32.totalorder %s35, 1
      %p336 = por %p334, %p335
      %p338 = scmp.ne.s32.totalorder %s323, %s337
      %p339 = scmp.eq.s32.totalorder %s35, 0
      %p340 = por %p338, %p339
      %s342 = sadd.s32 %s341, 1
      %p345 = scmp.eq.s32.totalorder %s29, 1
      %p346 = scmp.ne.s32.totalorder %s341, %s343
      %p347 = scmp.eq.s32.totalorder %s29, 0
      %p348 = por %p346, %p347
      %p349 = scmp.ne.s32.totalorder %s341, %s343
      %p350 = scmp.eq.s32.totalorder %s34, 1
      %p351 = por %p349, %p350
      %p352 = scmp.ne.s32.totalorder %s343, %s344
      %p353 = scmp.eq.s32.totalorder %s34, 0
      %p354 = por %p352, %p353
      %p355 = scmp.ne.s32.totalorder %s343, %s344
      %p356 = scmp.eq.s32.totalorder %s35, 1
      %p357 = por %p355, %p356
      %p359 = scmp.ne.s32.totalorder %s344, %s358
      %p360 = scmp.eq.s32.totalorder %s35, 0
      %p361 = por %p359, %p360
      %s363 = sadd.s32 %s362, 1
      %p366 = scmp.eq.s32.totalorder %s29, 1
      %p367 = scmp.ne.s32.totalorder %s362, %s364
      %p368 = scmp.eq.s32.totalorder %s29, 0
      %p369 = por %p367, %p368
      %p370 = scmp.ne.s32.totalorder %s362, %s364
      %p371 = scmp.eq.s32.totalorder %s34, 1
      %p372 = por %p370, %p371
      %p373 = scmp.ne.s32.totalorder %s364, %s365
      %p374 = scmp.eq.s32.totalorder %s34, 0
      %p375 = por %p373, %p374
      %p376 = scmp.ne.s32.totalorder %s364, %s365
      %p377 = scmp.eq.s32.totalorder %s35, 1
      %p378 = por %p376, %p377
      %p380 = scmp.ne.s32.totalorder %s365, %s379
      %p381 = scmp.eq.s32.totalorder %s35, 0
      %p382 = por %p380, %p381
      %s384 = sadd.s32 %s383, 1
      %p387 = scmp.eq.s32.totalorder %s29, 1
      %p388 = scmp.ne.s32.totalorder %s383, %s385
      %p389 = scmp.eq.s32.totalorder %s29, 0
      %p390 = por %p388, %p389
      %p391 = scmp.ne.s32.totalorder %s383, %s385
      %p392 = scmp.eq.s32.totalorder %s34, 1
      %p393 = por %p391, %p392
      %p394 = scmp.ne.s32.totalorder %s385, %s386
      %p395 = scmp.eq.s32.totalorder %s34, 0
      %p396 = por %p394, %p395
      %p397 = scmp.ne.s32.totalorder %s385, %s386
      %p398 = scmp.eq.s32.totalorder %s35, 1
      %p399 = por %p397, %p398
      %p401 = scmp.ne.s32.totalorder %s386, %s400
      %p402 = scmp.eq.s32.totalorder %s35, 0
      %p403 = por %p401, %p402
      %s405 = sadd.s32 %s404, 1
      %p408 = scmp.eq.s32.totalorder %s29, 1
      %p409 = scmp.ne.s32.totalorder %s404, %s406
      %p410 = scmp.eq.s32.totalorder %s29, 0
      %p411 = por %p409, %p410
      %p412 = scmp.ne.s32.totalorder %s404, %s406
      %p413 = scmp.eq.s32.totalorder %s34, 1
      %p414 = por %p412, %p413
      %p415 = scmp.ne.s32.totalorder %s406, %s407
      %p416 = scmp.eq.s32.totalorder %s34, 0
      %p417 = por %p415, %p416
      %p418 = scmp.ne.s32.totalorder %s406, %s407
      %p419 = scmp.eq.s32.totalorder %s35, 1
      %p420 = por %p418, %p419
      %p422 = scmp.ne.s32.totalorder %s407, %s421
      %p423 = scmp.eq.s32.totalorder %s35, 0
      %p424 = por %p422, %p423
      %s426 = sadd.s32 %s425, 1
      %p429 = scmp.eq.s32.totalorder %s29, 1
      %p430 = scmp.ne.s32.totalorder %s425, %s427
      %p431 = scmp.eq.s32.totalorder %s29, 0
      %p432 = por %p430, %p431
      %p433 = scmp.ne.s32.totalorder %s425, %s427
      %p434 = scmp.eq.s32.totalorder %s34, 1
      %p435 = por %p433, %p434
      %p436 = scmp.ne.s32.totalorder %s427, %s428
      %p437 = scmp.eq.s32.totalorder %s34, 0
      %p438 = por %p436, %p437
      %p439 = scmp.ne.s32.totalorder %s427, %s428
      %p440 = scmp.eq.s32.totalorder %s35, 1
      %p441 = por %p439, %p440
      %p443 = scmp.ne.s32.totalorder %s428, %s442
      %p444 = scmp.eq.s32.totalorder %s35, 0
      %p445 = por %p443, %p444
      %s447 = sadd.s32 %s446, 1
      %p450 = scmp.eq.s32.totalorder %s29, 1
      %p451 = scmp.ne.s32.totalorder %s446, %s448
      %p452 = scmp.eq.s32.totalorder %s29, 0
      %p453 = por %p451, %p452
      %p454 = scmp.ne.s32.totalorder %s446, %s448
      %p455 = scmp.eq.s32.totalorder %s34, 1
      %p456 = por %p454, %p455
      %p457 = scmp.ne.s32.totalorder %s448, %s449
      %p458 = scmp.eq.s32.totalorder %s34, 0
      %p459 = por %p457, %p458
      %p460 = scmp.ne.s32.totalorder %s448, %s449
      %p461 = scmp.eq.s32.totalorder %s35, 1
      %p462 = por %p460, %p461
      %p464 = scmp.ne.s32.totalorder %s449, %s463
      %p465 = scmp.eq.s32.totalorder %s35, 0
      %p466 = por %p464, %p465
      %s467 = ssub.s32 %s29, %s36
      %p468 = scmp.eq.s32.totalorder %s467, 0
      %s470 = sadd.s32 %s469, 1
      %s471 = scalar_select %p468, %s469, %s470
      %p474 = pneg %p468
      %p475 = scmp.eq.s32.totalorder %s29, 1
      %p476 = por %p474, %p475
      %p477 = scmp.ne.s32.totalorder %s469, %s472
      %p478 = scmp.eq.s32.totalorder %s29, 0
      %p479 = por %p477, %p478
      %p480 = scmp.ne.s32.totalorder %s469, %s472
      %p481 = scmp.eq.s32.totalorder %s34, 1
      %p482 = por %p480, %p481
      %p483 = scmp.ne.s32.totalorder %s472, %s473
      %p484 = scmp.eq.s32.totalorder %s34, 0
      %p485 = por %p483, %p484
      %p486 = scmp.ne.s32.totalorder %s472, %s473
      %p487 = scmp.eq.s32.totalorder %s35, 1
      %p488 = por %p486, %p487
      %p490 = scmp.ne.s32.totalorder %s473, %s489
      %p491 = scmp.eq.s32.totalorder %s35, 0
      %p492 = por %p490, %p491
      %p493 = scmp.le.s32.totalorder 1, %s29
      %p494 = scmp.lt.s32.totalorder %s29, 3
      %p495 = pnand %p493, %p494
      %p496 = pneg %p495
      // Predicated region
      $region9: #{inverted_endogenous_encoder_forward.1} parent=5 // pred_check
        _
      $region10: #{inverted_endogenous_encoder_forward.1} parent=5 // pred_check_branch
        %498 = sbr.rel (%p495) target = $region12
      $region11: #{inverted_endogenous_encoder_forward.1} parent=5 // pred_region
        %s499 = ssub.s32 %s29, 1
        // Predicated region
        $region13: #{inverted_endogenous_encoder_forward.1} parent=11 // pred_check
          %p500 = pneg %p102
        $region14: #{inverted_endogenous_encoder_forward.1} parent=11 // pred_check_branch
          %502 = sbr.rel (%p500) target = $region16
        $region15: #{inverted_endogenous_encoder_forward.1} parent=11 // pred_region
          _
        $region16: #{inverted_endogenous_encoder_forward.1} parent=11 // pred_fallthru
          _
        // Predicated region
        $region17: #{inverted_endogenous_encoder_forward.1} parent=11 // pred_check
          %p503 = pneg %p123
        $region18: #{inverted_endogenous_encoder_forward.1} parent=11 // pred_check_branch
          %505 = sbr.rel (%p503) target = $region20
        $region19: #{inverted_endogenous_encoder_forward.1} parent=11 // pred_region
          _
        $region20: #{inverted_endogenous_encoder_forward.1} parent=11 // pred_fallthru
          _
        // Predicated region
        $region21: #{inverted_endogenous_encoder_forward.1} parent=11 // pred_check
          %p506 = pneg %p144
        $region22: #{inverted_endogenous_encoder_forward.1} parent=11 // pred_check_branch
          %508 = sbr.rel (%p506) target = $region24
        $region23: #{inverted_endogenous_encoder_forward.1} parent=11 // pred_region
          _
        $region24: #{inverted_endogenous_encoder_forward.1} parent=11 // pred_fallthru
          _
        // Predicated region
        $region25: #{inverted_endogenous_encoder_forward.1} parent=11 // pred_check
          %p509 = pneg %p165
        $region26: #{inverted_endogenous_encoder_forward.1} parent=11 // pred_check_branch
          %511 = sbr.rel (%p509) target = $region28
        $region27: #{inverted_endogenous_encoder_forward.1} parent=11 // pred_region
          _
        $region28: #{inverted_endogenous_encoder_forward.1} parent=11 // pred_fallthru
          _
        // Predicated region
        $region29: #{inverted_endogenous_encoder_forward.1} parent=11 // pred_check
          %p512 = pneg %p186
        $region30: #{inverted_endogenous_encoder_forward.1} parent=11 // pred_check_branch
          %514 = sbr.rel (%p512) target = $region32
        $region31: #{inverted_endogenous_encoder_forward.1} parent=11 // pred_region
          _
        $region32: #{inverted_endogenous_encoder_forward.1} parent=11 // pred_fallthru
          _
        // Predicated region
        $region33: #{inverted_endogenous_encoder_forward.1} parent=11 // pred_check
          %p515 = pneg %p207
        $region34: #{inverted_endogenous_encoder_forward.1} parent=11 // pred_check_branch
          %517 = sbr.rel (%p515) target = $region36
        $region35: #{inverted_endogenous_encoder_forward.1} parent=11 // pred_region
          _
        $region36: #{inverted_endogenous_encoder_forward.1} parent=11 // pred_fallthru
          _
        // Predicated region
        $region37: #{inverted_endogenous_encoder_forward.1} parent=11 // pred_check
          %p518 = pneg %p228
        $region38: #{inverted_endogenous_encoder_forward.1} parent=11 // pred_check_branch
          %520 = sbr.rel (%p518) target = $region40
        $region39: #{inverted_endogenous_encoder_forward.1} parent=11 // pred_region
          _
        $region40: #{inverted_endogenous_encoder_forward.1} parent=11 // pred_fallthru
          _
        // Predicated region
        $region41: #{inverted_endogenous_encoder_forward.1} parent=11 // pred_check
          %p521 = pneg %p249
        $region42: #{inverted_endogenous_encoder_forward.1} parent=11 // pred_check_branch
          %523 = sbr.rel (%p521) target = $region44
        $region43: #{inverted_endogenous_encoder_forward.1} parent=11 // pred_region
          _
        $region44: #{inverted_endogenous_encoder_forward.1} parent=11 // pred_fallthru
          _
        // Predicated region
        $region45: #{inverted_endogenous_encoder_forward.1} parent=11 // pred_check
          %p524 = pneg %p270
        $region46: #{inverted_endogenous_encoder_forward.1} parent=11 // pred_check_branch
          %526 = sbr.rel (%p524) target = $region48
        $region47: #{inverted_endogenous_encoder_forward.1} parent=11 // pred_region
          _
        $region48: #{inverted_endogenous_encoder_forward.1} parent=11 // pred_fallthru
          _
        // Predicated region
        $region49: #{inverted_endogenous_encoder_forward.1} parent=11 // pred_check
          %p527 = pneg %p291
        $region50: #{inverted_endogenous_encoder_forward.1} parent=11 // pred_check_branch
          %529 = sbr.rel (%p527) target = $region52
        $region51: #{inverted_endogenous_encoder_forward.1} parent=11 // pred_region
          _
        $region52: #{inverted_endogenous_encoder_forward.1} parent=11 // pred_fallthru
          _
        // Predicated region
        $region53: #{inverted_endogenous_encoder_forward.1} parent=11 // pred_check
          %p530 = pneg %p312
        $region54: #{inverted_endogenous_encoder_forward.1} parent=11 // pred_check_branch
          %532 = sbr.rel (%p530) target = $region56
        $region55: #{inverted_endogenous_encoder_forward.1} parent=11 // pred_region
          _
        $region56: #{inverted_endogenous_encoder_forward.1} parent=11 // pred_fallthru
          _
        // Predicated region
        $region57: #{inverted_endogenous_encoder_forward.1} parent=11 // pred_check
          %p533 = pneg %p333
        $region58: #{inverted_endogenous_encoder_forward.1} parent=11 // pred_check_branch
          %535 = sbr.rel (%p533) target = $region60
        $region59: #{inverted_endogenous_encoder_forward.1} parent=11 // pred_region
          _
        $region60: #{inverted_endogenous_encoder_forward.1} parent=11 // pred_fallthru
          _
        // Predicated region
        $region61: #{inverted_endogenous_encoder_forward.1} parent=11 // pred_check
          %p536 = pneg %p354
        $region62: #{inverted_endogenous_encoder_forward.1} parent=11 // pred_check_branch
          %538 = sbr.rel (%p536) target = $region64
        $region63: #{inverted_endogenous_encoder_forward.1} parent=11 // pred_region
          _
        $region64: #{inverted_endogenous_encoder_forward.1} parent=11 // pred_fallthru
          _
        // Predicated region
        $region65: #{inverted_endogenous_encoder_forward.1} parent=11 // pred_check
          %p539 = pneg %p375
        $region66: #{inverted_endogenous_encoder_forward.1} parent=11 // pred_check_branch
          %541 = sbr.rel (%p539) target = $region68
        $region67: #{inverted_endogenous_encoder_forward.1} parent=11 // pred_region
          _
        $region68: #{inverted_endogenous_encoder_forward.1} parent=11 // pred_fallthru
          _
        // Predicated region
        $region69: #{inverted_endogenous_encoder_forward.1} parent=11 // pred_check
          %p542 = pneg %p396
        $region70: #{inverted_endogenous_encoder_forward.1} parent=11 // pred_check_branch
          %544 = sbr.rel (%p542) target = $region72
        $region71: #{inverted_endogenous_encoder_forward.1} parent=11 // pred_region
          _
        $region72: #{inverted_endogenous_encoder_forward.1} parent=11 // pred_fallthru
          _
        // Predicated region
        $region73: #{inverted_endogenous_encoder_forward.1} parent=11 // pred_check
          %p545 = pneg %p417
        $region74: #{inverted_endogenous_encoder_forward.1} parent=11 // pred_check_branch
          %547 = sbr.rel (%p545) target = $region76
        $region75: #{inverted_endogenous_encoder_forward.1} parent=11 // pred_region
          _
        $region76: #{inverted_endogenous_encoder_forward.1} parent=11 // pred_fallthru
          _
        // Predicated region
        $region77: #{inverted_endogenous_encoder_forward.1} parent=11 // pred_check
          %p548 = pneg %p438
        $region78: #{inverted_endogenous_encoder_forward.1} parent=11 // pred_check_branch
          %550 = sbr.rel (%p548) target = $region80
        $region79: #{inverted_endogenous_encoder_forward.1} parent=11 // pred_region
          _
        $region80: #{inverted_endogenous_encoder_forward.1} parent=11 // pred_fallthru
          _
        // Predicated region
        $region81: #{inverted_endogenous_encoder_forward.1} parent=11 // pred_check
          %p551 = pneg %p459
        $region82: #{inverted_endogenous_encoder_forward.1} parent=11 // pred_check_branch
          %553 = sbr.rel (%p551) target = $region84
        $region83: #{inverted_endogenous_encoder_forward.1} parent=11 // pred_region
          _
        $region84: #{inverted_endogenous_encoder_forward.1} parent=11 // pred_fallthru
          _
      $region12: #{inverted_endogenous_encoder_forward.1} parent=5 // pred_fallthru
        _
      %p554 = scmp.lt.s32.totalorder %s29, 2
      // Predicated region
      $region85: #{inverted_endogenous_encoder_forward.1} parent=5 // pred_check
        %p555 = pneg %p554
      $region86: #{inverted_endogenous_encoder_forward.1} parent=5 // pred_check_branch
        %557 = sbr.rel (%p555) target = $region88
      $region87: #{inverted_endogenous_encoder_forward.1} parent=5 // pred_region
        // Predicated region
        $region89: #{inverted_endogenous_encoder_forward.1} parent=87 // pred_check
          %p558 = pneg %p49
        $region90: #{inverted_endogenous_encoder_forward.1} parent=87 // pred_check_branch
          %560 = sbr.rel (%p558) target = $region92
        $region91: #{inverted_endogenous_encoder_forward.1} parent=87 // pred_region
          %p561 = scmp.lt.s32.totalorder %s29, 1
          %s562 = scalar_select %p561, %s29, 1
          %s563 = smul.addr %s562, 4
          %s564 = scalar_lea.vmem %s0, %s563
        $region92: #{inverted_endogenous_encoder_forward.1} parent=87 // pred_fallthru
          _
        // Predicated region
        $region93: #{inverted_endogenous_encoder_forward.1} parent=87 // pred_check
          %p565 = pneg %p75
        $region94: #{inverted_endogenous_encoder_forward.1} parent=87 // pred_check_branch
          %567 = sbr.rel (%p565) target = $region96
        $region95: #{inverted_endogenous_encoder_forward.1} parent=87 // pred_region
          %p568 = scmp.lt.s32.totalorder %s29, 1
          %s569 = scalar_select %p568, %s29, 1
          %s570 = smul.addr %s569, 4
          %s571 = scalar_lea.vmem %s1, %s570
        $region96: #{inverted_endogenous_encoder_forward.1} parent=87 // pred_fallthru
          _
      $region88: #{inverted_endogenous_encoder_forward.1} parent=5 // pred_fallthru
        _
      %p572 = scmp.le.s32.totalorder 1, %s29
      %p573 = scmp.lt.s32.totalorder %s29, 3
      %p574 = pnand %p572, %p573
      %p575 = pneg %p574
      // Predicated region
      $region97: #{inverted_endogenous_encoder_forward.1} parent=5 // pred_check
        _
      $region98: #{inverted_endogenous_encoder_forward.1} parent=5 // pred_check_branch
        %577 = sbr.rel (%p574) target = $region100
      $region99: #{inverted_endogenous_encoder_forward.1} parent=5 // pred_region
        %s578 = ssub.s32 %s29, 1
        %p579 = scmp.lt.s32.totalorder %s34, 1
        %s580 = scalar_select %p579, %s34, 1
        %s581 = smul.addr %s580, 4
        %s582 = scalar_lea.vmem %s0, %s581
        %p583 = pneg %p55
        %p584 = pneg %p52
        %p585 = scmp.lt.s32.totalorder %s34, 1
        %s586 = scalar_select %p585, %s34, 1
        %s587 = smul.addr %s586, 4
        %s588 = scalar_lea.vmem %s1, %s587
        %p589 = pneg %p81
        %p590 = pneg %p78
        %p591 = pneg %p102
        %p592 = pneg %p99
        %p593 = pneg %p123
        %p594 = pneg %p120
        %p595 = pneg %p144
        %p596 = pneg %p141
        %p597 = pneg %p165
        %p598 = pneg %p162
        %p599 = pneg %p186
        %p600 = pneg %p183
        %p601 = pneg %p207
        %p602 = pneg %p204
        %p603 = pneg %p228
        %p604 = pneg %p225
        %p605 = pneg %p249
        %p606 = pneg %p246
        %p607 = pneg %p270
        %p608 = pneg %p267
        %p609 = pneg %p291
        %p610 = pneg %p288
        %p611 = pneg %p312
        %p612 = pneg %p309
        %p613 = pneg %p333
        %p614 = pneg %p330
        %p615 = pneg %p354
        %p616 = pneg %p351
        %p617 = pneg %p375
        %p618 = pneg %p372
        %p619 = pneg %p396
        %p620 = pneg %p393
        %p621 = pneg %p417
        %p622 = pneg %p414
        %p623 = pneg %p438
        %p624 = pneg %p435
        %p625 = pneg %p459
        %p626 = pneg %p456
        %p627 = pneg %p485
        %p628 = pneg %p482
        %s629 = sand.u32 %s472, 1
        %s630 = scalar_lea.sflag [#allocation4], %s629
        %s631 = sand.u32 %s472, 1
        %s632 = scalar_lea.vmem [#allocation3], %s631
        %p633 = scmp.lt.s32.totalorder %s34, 1
        %s634 = scalar_select %p633, %s34, 1
        %s635 = smul.addr %s634, 4
        %s636 = scalar_lea.vmem %s0, %s635
        %p637 = scmp.lt.s32.totalorder %s34, 1
        %s638 = scalar_select %p637, %s34, 1
        %s639 = smul.addr %s638, 4
        %s640 = scalar_lea.vmem %s1, %s639
        %v641 = vld [vmem:[%s2] sm:$0xff]
        %v642 = vld [vmem:[%s3] sm:$0x1]
        %v643 = vld [vmem:[%s636] sm:$0xf]
        %v645 = vlaneseq
        %v646 = vshrl.u32 %v645, 7
        %v647 = vsub.s32 0, %v646
        %v648 = vrot.slane %v642, %v647
        %vm650 = vcmask 64512
        %v652 = vsel %vm650, %v643, 0
        %654 = vmatprep.subr.mxu0 0.0
        %655 = vmatpush1.msra.mxu0 %v641
        %656 = vmatprep.subr.mxu0 0.0
        %657 = vmatpush1.msra.mxu0 0.0
        %658 = vmatprep.subr.mxu0 0.0
        %659 = vmatpush1.msra.mxu0 0.0
        %660 = vmatprep.subr.mxu0 0.0
        %661 = vmatpush1.msra.mxu0 0.0
        %662 = vmatprep.subr.mxu0 0.0
        %663 = vmatpush1.msra.mxu0 0.0
        %664 = vmatprep.subr.mxu0 0.0
        %665 = vmatpush1.msra.mxu0 0.0
        %666 = vmatprep.subr.mxu0 0.0
        %667 = vmatpush1.msra.mxu0 0.0
        %668 = vmatprep.subr.mxu0 0.0
        %669 = vmatpush1.msra.mxu0 0.0
        %670 = vmatprep.subr.mxu0 0.0
        %671 = vmatpush1.msra.mxu0 0.0
        %672 = vmatprep.subr.mxu0 0.0
        %673 = vmatpush1.msra.mxu0 0.0
        %674 = vmatprep.subr.mxu0 0.0
        %675 = vmatpush1.msra.mxu0 0.0
        %676 = vmatprep.subr.mxu0 0.0
        %677 = vmatpush1.msra.mxu0 0.0
        %678 = vmatprep.subr.mxu0 0.0
        %679 = vmatpush1.msra.mxu0 0.0
        %680 = vmatprep.subr.mxu0 0.0
        %681 = vmatpush1.msra.mxu0 0.0
        %682 = vmatprep.subr.mxu0 0.0
        %683 = vmatpush1.msra.mxu0 0.0
        %684 = vmatprep.subr.mxu0 0.0
        %685 = vmatpush1.msra.mxu0 0.0
        %686 = vmatprep.subr.mxu0 0.0
        %687 = vmatpush1.msra.mxu0 0.0
        %688 = vmatprep.subr.mxu0 0.0
        %689 = vmatpush1.msra.mxu0 0.0
        %690 = vmatprep.subr.mxu0 0.0
        %691 = vmatpush1.msra.mxu0 0.0
        %692 = vmatprep.subr.mxu0 0.0
        %693 = vmatpush1.msra.mxu0 0.0
        %694 = vmatprep.subr.mxu0 0.0
        %695 = vmatpush1.msra.mxu0 0.0
        %696 = vmatprep.subr.mxu0 0.0
        %697 = vmatpush1.msra.mxu0 0.0
        %698 = vmatprep.subr.mxu0 0.0
        %699 = vmatpush1.msra.mxu0 0.0
        %700 = vmatprep.subr.mxu0 0.0
        %701 = vmatpush1.msra.mxu0 0.0
        %702 = vmatprep.subr.mxu0 0.0
        %703 = vmatpush1.msra.mxu0 0.0
        %704 = vmatprep.subr.mxu0 0.0
        %705 = vmatpush1.msra.mxu0 0.0
        %706 = vmatprep.subr.mxu0 0.0
        %707 = vmatpush1.msra.mxu0 0.0
        %708 = vmatprep.subr.mxu0 0.0
        %709 = vmatpush1.msra.mxu0 0.0
        %710 = vmatprep.subr.mxu0 0.0
        %711 = vmatpush1.msra.mxu0 0.0
        %712 = vmatprep.subr.mxu0 0.0
        %713 = vmatpush1.msra.mxu0 0.0
        %714 = vmatprep.subr.mxu0 0.0
        %715 = vmatpush1.msra.mxu0 0.0
        %716 = vmatprep.subr.mxu0 0.0
        %717 = vmatpush1.msra.mxu0 0.0
        %718 = vmatprep.mubr.f32.mxu0 0.0
        %719 = vmatmul.mubr.f32.gmra.mrb[0].mxu0 %v652
        %v720 = vpop.f32.mrb[0].mxu0
        %v721 = vadd.f32 %v648, %v720
        %v722 = vpop.f32.mrb[0].mxu0
        %723 = vdwg.mxu0
        %vm724 = vcmask 257024
        %725 = vst.msk [vmem:[#allocation2] sm:$0xf] %vm724, %v721
        %v726 = vld [vmem:[%s640] sm:$0xf]
        %727 = vst.msk [vmem:[#allocation2 + $0x4] sm:$0xf] %vm724, %v726
        %v728 = vld [vmem:[#allocation2] sm:$0xff]
        %v729 = vld [vmem:[%s4] sm:$0xff]
        %v730 = vld [vmem:[%s4 + $0x8] sm:$0xff]
        %v731 = vld [vmem:[%s4 + $0x10] sm:$0xff]
        %v732 = vld [vmem:[%s4 + $0x18] sm:$0xff]
        %v733 = vld [vmem:[%s7] sm:$0x1]
        %v735 = vlaneseq
        %v736 = vshrl.u32 %v735, 7
        %v737 = vsub.s32 0, %v736
        %v738 = vrot.slane %v733, %v737
        %vm740 = vcmask 261120
        %v742 = vsel %vm740, %v728, 0
        %744 = vmatprep.subr.mxu0 0.0
        %745 = vmatpush1.msra.mxu0 %v729
        %746 = vmatprep.subr.mxu0 0.0
        %747 = vmatpush1.msra.mxu0 %v730
        %748 = vmatprep.subr.mxu0 0.0
        %749 = vmatpush1.msra.mxu0 %v731
        %750 = vmatprep.subr.mxu0 0.0
        %751 = vmatpush1.msra.mxu0 %v732
        %752 = vmatprep.subr.mxu0 0.0
        %753 = vmatpush1.msra.mxu0 0.0
        %754 = vmatprep.subr.mxu0 0.0
        %755 = vmatpush1.msra.mxu0 0.0
        %756 = vmatprep.subr.mxu0 0.0
        %757 = vmatpush1.msra.mxu0 0.0
        %758 = vmatprep.subr.mxu0 0.0
        %759 = vmatpush1.msra.mxu0 0.0
        %760 = vmatprep.subr.mxu0 0.0
        %761 = vmatpush1.msra.mxu0 0.0
        %762 = vmatprep.subr.mxu0 0.0
        %763 = vmatpush1.msra.mxu0 0.0
        %764 = vmatprep.subr.mxu0 0.0
        %765 = vmatpush1.msra.mxu0 0.0
        %766 = vmatprep.subr.mxu0 0.0
        %767 = vmatpush1.msra.mxu0 0.0
        %768 = vmatprep.subr.mxu0 0.0
        %769 = vmatpush1.msra.mxu0 0.0
        %770 = vmatprep.subr.mxu0 0.0
        %771 = vmatpush1.msra.mxu0 0.0
        %772 = vmatprep.subr.mxu0 0.0
        %773 = vmatpush1.msra.mxu0 0.0
        %774 = vmatprep.subr.mxu0 0.0
        %775 = vmatpush1.msra.mxu0 0.0
        %776 = vmatprep.subr.mxu0 0.0
        %777 = vmatpush1.msra.mxu0 0.0
        %778 = vmatprep.subr.mxu0 0.0
        %779 = vmatpush1.msra.mxu0 0.0
        %780 = vmatprep.subr.mxu0 0.0
        %781 = vmatpush1.msra.mxu0 0.0
        %782 = vmatprep.subr.mxu0 0.0
        %783 = vmatpush1.msra.mxu0 0.0
        %784 = vmatprep.subr.mxu0 0.0
        %785 = vmatpush1.msra.mxu0 0.0
        %786 = vmatprep.subr.mxu0 0.0
        %787 = vmatpush1.msra.mxu0 0.0
        %788 = vmatprep.subr.mxu0 0.0
        %789 = vmatpush1.msra.mxu0 0.0
        %790 = vmatprep.subr.mxu0 0.0
        %791 = vmatpush1.msra.mxu0 0.0
        %792 = vmatprep.subr.mxu0 0.0
        %793 = vmatpush1.msra.mxu0 0.0
        %794 = vmatprep.subr.mxu0 0.0
        %795 = vmatpush1.msra.mxu0 0.0
        %796 = vmatprep.subr.mxu0 0.0
        %797 = vmatpush1.msra.mxu0 0.0
        %798 = vmatprep.subr.mxu0 0.0
        %799 = vmatpush1.msra.mxu0 0.0
        %800 = vmatprep.subr.mxu0 0.0
        %801 = vmatpush1.msra.mxu0 0.0
        %802 = vmatprep.subr.mxu0 0.0
        %803 = vmatpush1.msra.mxu0 0.0
        %804 = vmatprep.subr.mxu0 0.0
        %805 = vmatpush1.msra.mxu0 0.0
        %806 = vmatprep.subr.mxu0 0.0
        %807 = vmatpush1.msra.mxu0 0.0
        %808 = vmatprep.mubr.f32.mxu0 0.0
        %809 = vmatmul.mubr.f32.gmra.mrb[0].mxu0 %v742
        %v810 = vpop.f32.mrb[0].mxu0
        %v811 = vadd.f32 %v738, %v810
        %v812 = vpop.f32.mrb[0].mxu0
        %813 = vdwg.mxu0
        %v814 = vld [vmem:[%s5] sm:$0xff]
        %v815 = vld [vmem:[%s5 + $0x8] sm:$0xff]
        %v816 = vld [vmem:[%s5 + $0x10] sm:$0xff]
        %v817 = vld [vmem:[%s5 + $0x18] sm:$0xff]
        %v818 = vld [vmem:[%s8] sm:$0x1]
        %v820 = vlaneseq
        %v821 = vshrl.u32 %v820, 7
        %v822 = vsub.s32 0, %v821
        %v823 = vrot.slane %v818, %v822
        %825 = vmatprep.subr.mxu0 0.0
        %826 = vmatpush1.msra.mxu0 %v814
        %827 = vmatprep.subr.mxu0 0.0
        %828 = vmatpush1.msra.mxu0 %v815
        %829 = vmatprep.subr.mxu0 0.0
        %830 = vmatpush1.msra.mxu0 %v816
        %831 = vmatprep.subr.mxu0 0.0
        %832 = vmatpush1.msra.mxu0 %v817
        %833 = vmatprep.subr.mxu0 0.0
        %834 = vmatpush1.msra.mxu0 0.0
        %835 = vmatprep.subr.mxu0 0.0
        %836 = vmatpush1.msra.mxu0 0.0
        %837 = vmatprep.subr.mxu0 0.0
        %838 = vmatpush1.msra.mxu0 0.0
        %839 = vmatprep.subr.mxu0 0.0
        %840 = vmatpush1.msra.mxu0 0.0
        %841 = vmatprep.subr.mxu0 0.0
        %842 = vmatpush1.msra.mxu0 0.0
        %843 = vmatprep.subr.mxu0 0.0
        %844 = vmatpush1.msra.mxu0 0.0
        %845 = vmatprep.subr.mxu0 0.0
        %846 = vmatpush1.msra.mxu0 0.0
        %847 = vmatprep.subr.mxu0 0.0
        %848 = vmatpush1.msra.mxu0 0.0
        %849 = vmatprep.subr.mxu0 0.0
        %850 = vmatpush1.msra.mxu0 0.0
        %851 = vmatprep.subr.mxu0 0.0
        %852 = vmatpush1.msra.mxu0 0.0
        %853 = vmatprep.subr.mxu0 0.0
        %854 = vmatpush1.msra.mxu0 0.0
        %855 = vmatprep.subr.mxu0 0.0
        %856 = vmatpush1.msra.mxu0 0.0
        %857 = vmatprep.subr.mxu0 0.0
        %858 = vmatpush1.msra.mxu0 0.0
        %859 = vmatprep.subr.mxu0 0.0
        %860 = vmatpush1.msra.mxu0 0.0
        %861 = vmatprep.subr.mxu0 0.0
        %862 = vmatpush1.msra.mxu0 0.0
        %863 = vmatprep.subr.mxu0 0.0
        %864 = vmatpush1.msra.mxu0 0.0
        %865 = vmatprep.subr.mxu0 0.0
        %866 = vmatpush1.msra.mxu0 0.0
        %867 = vmatprep.subr.mxu0 0.0
        %868 = vmatpush1.msra.mxu0 0.0
        %869 = vmatprep.subr.mxu0 0.0
        %870 = vmatpush1.msra.mxu0 0.0
        %871 = vmatprep.subr.mxu0 0.0
        %872 = vmatpush1.msra.mxu0 0.0
        %873 = vmatprep.subr.mxu0 0.0
        %874 = vmatpush1.msra.mxu0 0.0
        %875 = vmatprep.subr.mxu0 0.0
        %876 = vmatpush1.msra.mxu0 0.0
        %877 = vmatprep.subr.mxu0 0.0
        %878 = vmatpush1.msra.mxu0 0.0
        %879 = vmatprep.subr.mxu0 0.0
        %880 = vmatpush1.msra.mxu0 0.0
        %881 = vmatprep.subr.mxu0 0.0
        %882 = vmatpush1.msra.mxu0 0.0
        %883 = vmatprep.subr.mxu0 0.0
        %884 = vmatpush1.msra.mxu0 0.0
        %885 = vmatprep.subr.mxu0 0.0
        %886 = vmatpush1.msra.mxu0 0.0
        %887 = vmatprep.subr.mxu0 0.0
        %888 = vmatpush1.msra.mxu0 0.0
        %889 = vmatprep.mubr.f32.mxu0 0.0
        %890 = vmatmul.mubr.f32.gmra.mrb[0].mxu0 %v742
        %v891 = vpop.f32.mrb[0].mxu0
        %v892 = vadd.f32 %v823, %v891
        %v893 = vpop.f32.mrb[0].mxu0
        %894 = vdwg.mxu0
        %v895 = vld [vmem:[%s6] sm:$0xff]
        %v896 = vld [vmem:[%s6 + $0x8] sm:$0xff]
        %v897 = vld [vmem:[%s6 + $0x10] sm:$0xff]
        %v898 = vld [vmem:[%s6 + $0x18] sm:$0xff]
        %v899 = vld [vmem:[%s9] sm:$0x1]
        %v901 = vlaneseq
        %v902 = vshrl.u32 %v901, 7
        %v903 = vsub.s32 0, %v902
        %v904 = vrot.slane %v899, %v903
        %906 = vmatprep.subr.mxu0 0.0
        %907 = vmatpush1.msra.mxu0 %v895
        %908 = vmatprep.subr.mxu0 0.0
        %909 = vmatpush1.msra.mxu0 %v896
        %910 = vmatprep.subr.mxu0 0.0
        %911 = vmatpush1.msra.mxu0 %v897
        %912 = vmatprep.subr.mxu0 0.0
        %913 = vmatpush1.msra.mxu0 %v898
        %914 = vmatprep.subr.mxu0 0.0
        %915 = vmatpush1.msra.mxu0 0.0
        %916 = vmatprep.subr.mxu0 0.0
        %917 = vmatpush1.msra.mxu0 0.0
        %918 = vmatprep.subr.mxu0 0.0
        %919 = vmatpush1.msra.mxu0 0.0
        %920 = vmatprep.subr.mxu0 0.0
        %921 = vmatpush1.msra.mxu0 0.0
        %922 = vmatprep.subr.mxu0 0.0
        %923 = vmatpush1.msra.mxu0 0.0
        %924 = vmatprep.subr.mxu0 0.0
        %925 = vmatpush1.msra.mxu0 0.0
        %926 = vmatprep.subr.mxu0 0.0
        %927 = vmatpush1.msra.mxu0 0.0
        %928 = vmatprep.subr.mxu0 0.0
        %929 = vmatpush1.msra.mxu0 0.0
        %930 = vmatprep.subr.mxu0 0.0
        %931 = vmatpush1.msra.mxu0 0.0
        %932 = vmatprep.subr.mxu0 0.0
        %933 = vmatpush1.msra.mxu0 0.0
        %934 = vmatprep.subr.mxu0 0.0
        %935 = vmatpush1.msra.mxu0 0.0
        %936 = vmatprep.subr.mxu0 0.0
        %937 = vmatpush1.msra.mxu0 0.0
        %938 = vmatprep.subr.mxu0 0.0
        %939 = vmatpush1.msra.mxu0 0.0
        %940 = vmatprep.subr.mxu0 0.0
        %941 = vmatpush1.msra.mxu0 0.0
        %942 = vmatprep.subr.mxu0 0.0
        %943 = vmatpush1.msra.mxu0 0.0
        %944 = vmatprep.subr.mxu0 0.0
        %945 = vmatpush1.msra.mxu0 0.0
        %946 = vmatprep.subr.mxu0 0.0
        %947 = vmatpush1.msra.mxu0 0.0
        %948 = vmatprep.subr.mxu0 0.0
        %949 = vmatpush1.msra.mxu0 0.0
        %950 = vmatprep.subr.mxu0 0.0
        %951 = vmatpush1.msra.mxu0 0.0
        %952 = vmatprep.subr.mxu0 0.0
        %953 = vmatpush1.msra.mxu0 0.0
        %954 = vmatprep.subr.mxu0 0.0
        %955 = vmatpush1.msra.mxu0 0.0
        %956 = vmatprep.subr.mxu0 0.0
        %957 = vmatpush1.msra.mxu0 0.0
        %958 = vmatprep.subr.mxu0 0.0
        %959 = vmatpush1.msra.mxu0 0.0
        %960 = vmatprep.subr.mxu0 0.0
        %961 = vmatpush1.msra.mxu0 0.0
        %962 = vmatprep.subr.mxu0 0.0
        %963 = vmatpush1.msra.mxu0 0.0
        %964 = vmatprep.subr.mxu0 0.0
        %965 = vmatpush1.msra.mxu0 0.0
        %966 = vmatprep.subr.mxu0 0.0
        %967 = vmatpush1.msra.mxu0 0.0
        %968 = vmatprep.subr.mxu0 0.0
        %969 = vmatpush1.msra.mxu0 0.0
        %970 = vmatprep.mubr.f32.mxu0 0.0
        %971 = vmatmul.mubr.f32.gmra.mrb[0].mxu0 %v742
        %v972 = vpop.f32.mrb[0].mxu0
        %v973 = vadd.f32 %v904, %v972
        %v974 = vpop.f32.mrb[0].mxu0
        %975 = vdwg.mxu0
        %v976 = vlaneseq
        %v977 = vand.u32 %v976, 127
        %vm978 = vcmp.ge.s32.totalorder %v977, 0
        %vm979 = vcmp.lt.s32.totalorder %v977, 8
        %vm980 = vmand %vm978, %vm979
        %v981 = vsel %vm980, 1, 0
        %v982 = vcvt.s32.f32 %v981
        %v983 = vmul.f32 %v811, %v982
        %v985 = vsel %vm740, %v983, 0
        %v988 = vsel %vm740, %v892, 0
        %990 = vmatprep.subr.mxu0 0.0
        %991 = vmatpush1.xpose.msra.mxu0 %v988
        %992 = vmatprep.subr.mxu0 0.0
        %993 = vmatpush1.xpose.msra.mxu0 0.0
        %994 = vmatprep.subr.mxu0 0.0
        %995 = vmatpush1.xpose.msra.mxu0 0.0
        %996 = vmatprep.subr.mxu0 0.0
        %997 = vmatpush1.xpose.msra.mxu0 0.0
        %998 = vmatprep.subr.mxu0 0.0
        %999 = vmatpush1.xpose.msra.mxu0 0.0
        %1000 = vmatprep.subr.mxu0 0.0
        %1001 = vmatpush1.xpose.msra.mxu0 0.0
        %1002 = vmatprep.subr.mxu0 0.0
        %1003 = vmatpush1.xpose.msra.mxu0 0.0
        %1004 = vmatprep.subr.mxu0 0.0
        %1005 = vmatpush1.xpose.msra.mxu0 0.0
        %1006 = vmatprep.subr.mxu0 0.0
        %1007 = vmatpush1.xpose.msra.mxu0 0.0
        %1008 = vmatprep.subr.mxu0 0.0
        %1009 = vmatpush1.xpose.msra.mxu0 0.0
        %1010 = vmatprep.subr.mxu0 0.0
        %1011 = vmatpush1.xpose.msra.mxu0 0.0
        %1012 = vmatprep.subr.mxu0 0.0
        %1013 = vmatpush1.xpose.msra.mxu0 0.0
        %1014 = vmatprep.subr.mxu0 0.0
        %1015 = vmatpush1.xpose.msra.mxu0 0.0
        %1016 = vmatprep.subr.mxu0 0.0
        %1017 = vmatpush1.xpose.msra.mxu0 0.0
        %1018 = vmatprep.subr.mxu0 0.0
        %1019 = vmatpush1.xpose.msra.mxu0 0.0
        %1020 = vmatprep.subr.mxu0 0.0
        %1021 = vmatpush1.xpose.msra.mxu0 0.0
        %1022 = vmatprep.subr.mxu0 0.0
        %1023 = vmatpush1.xpose.msra.mxu0 0.0
        %1024 = vmatprep.subr.mxu0 0.0
        %1025 = vmatpush1.xpose.msra.mxu0 0.0
        %1026 = vmatprep.subr.mxu0 0.0
        %1027 = vmatpush1.xpose.msra.mxu0 0.0
        %1028 = vmatprep.subr.mxu0 0.0
        %1029 = vmatpush1.xpose.msra.mxu0 0.0
        %1030 = vmatprep.subr.mxu0 0.0
        %1031 = vmatpush1.xpose.msra.mxu0 0.0
        %1032 = vmatprep.subr.mxu0 0.0
        %1033 = vmatpush1.xpose.msra.mxu0 0.0
        %1034 = vmatprep.subr.mxu0 0.0
        %1035 = vmatpush1.xpose.msra.mxu0 0.0
        %1036 = vmatprep.subr.mxu0 0.0
        %1037 = vmatpush1.xpose.msra.mxu0 0.0
        %1038 = vmatprep.subr.mxu0 0.0
        %1039 = vmatpush1.xpose.msra.mxu0 0.0
        %1040 = vmatprep.subr.mxu0 0.0
        %1041 = vmatpush1.xpose.msra.mxu0 0.0
        %1042 = vmatprep.subr.mxu0 0.0
        %1043 = vmatpush1.xpose.msra.mxu0 0.0
        %1044 = vmatprep.subr.mxu0 0.0
        %1045 = vmatpush1.xpose.msra.mxu0 0.0
        %1046 = vmatprep.subr.mxu0 0.0
        %1047 = vmatpush1.xpose.msra.mxu0 0.0
        %1048 = vmatprep.subr.mxu0 0.0
        %1049 = vmatpush1.xpose.msra.mxu0 0.0
        %1050 = vmatprep.subr.mxu0 0.0
        %1051 = vmatpush1.xpose.msra.mxu0 0.0
        %1052 = vmatprep.subr.mxu0 0.0
        %1053 = vmatpush1.xpose.msra.mxu0 0.0
        %1054 = vmatprep.mubr.f32.mxu0 0.0
        %1055 = vmatmul.mubr.f32.gmra.mrb[0].mxu0 %v985
        %v1056 = vpop.f32.mrb[0].mxu0
        %v1057 = vadd.f32 0.0, %v1056
        %v1058 = vpop.f32.mrb[0].mxu0
        %1059 = vdwg.mxu0
        %v1060 = vmul.f32 %v1057, 0.35355338
        %v1061 = vsel %vm650, %v1060, -inf
        %1062 = vmax.xlane.f32.xlu0 %v1061
        %v1063 = vpop.xlane.xlu0 %1062
        %v1064 = vsub.f32 %v1060, %v1063
        %v1065 = vmul.f32 %v1064, 1.442695
        %v1066 = vpow.pop %v1065
        %v1067 = vsel %vm650, %v1066, 0.0
        %1068 = vadd.xlane.f32.xlu0 %v1067
        %v1069 = vpop.xlane.xlu0 %1068
        %v1070 = vrcp.pop %v1069
        %v1071 = vmul.f32 %v1066, %v1070
        %v1072 = vmul.f32 %v973, %v982
        %vm1073 = vcmp.ge.s32.totalorder %v977, 8
        %vm1074 = vcmp.lt.s32.totalorder %v977, 16
        %vm1075 = vmand %vm1073, %vm1074
        %v1076 = vsel %vm1075, 1, 0
        %v1077 = vcvt.s32.f32 %v1076
        %v1078 = vmul.f32 %v811, %v1077
        %v1080 = vsel %vm740, %v1078, 0
        %1082 = vmatprep.subr.mxu0 0.0
        %1083 = vmatpush1.xpose.msra.mxu0 %v988
        %1084 = vmatprep.subr.mxu0 0.0
        %1085 = vmatpush1.xpose.msra.mxu0 0.0
        %1086 = vmatprep.subr.mxu0 0.0
        %1087 = vmatpush1.xpose.msra.mxu0 0.0
        %1088 = vmatprep.subr.mxu0 0.0
        %1089 = vmatpush1.xpose.msra.mxu0 0.0
        %1090 = vmatprep.subr.mxu0 0.0
        %1091 = vmatpush1.xpose.msra.mxu0 0.0
        %1092 = vmatprep.subr.mxu0 0.0
        %1093 = vmatpush1.xpose.msra.mxu0 0.0
        %1094 = vmatprep.subr.mxu0 0.0
        %1095 = vmatpush1.xpose.msra.mxu0 0.0
        %1096 = vmatprep.subr.mxu0 0.0
        %1097 = vmatpush1.xpose.msra.mxu0 0.0
        %1098 = vmatprep.subr.mxu0 0.0
        %1099 = vmatpush1.xpose.msra.mxu0 0.0
        %1100 = vmatprep.subr.mxu0 0.0
        %1101 = vmatpush1.xpose.msra.mxu0 0.0
        %1102 = vmatprep.subr.mxu0 0.0
        %1103 = vmatpush1.xpose.msra.mxu0 0.0
        %1104 = vmatprep.subr.mxu0 0.0
        %1105 = vmatpush1.xpose.msra.mxu0 0.0
        %1106 = vmatprep.subr.mxu0 0.0
        %1107 = vmatpush1.xpose.msra.mxu0 0.0
        %1108 = vmatprep.subr.mxu0 0.0
        %1109 = vmatpush1.xpose.msra.mxu0 0.0
        %1110 = vmatprep.subr.mxu0 0.0
        %1111 = vmatpush1.xpose.msra.mxu0 0.0
        %1112 = vmatprep.subr.mxu0 0.0
        %1113 = vmatpush1.xpose.msra.mxu0 0.0
        %1114 = vmatprep.subr.mxu0 0.0
        %1115 = vmatpush1.xpose.msra.mxu0 0.0
        %1116 = vmatprep.subr.mxu0 0.0
        %1117 = vmatpush1.xpose.msra.mxu0 0.0
        %1118 = vmatprep.subr.mxu0 0.0
        %1119 = vmatpush1.xpose.msra.mxu0 0.0
        %1120 = vmatprep.subr.mxu0 0.0
        %1121 = vmatpush1.xpose.msra.mxu0 0.0
        %1122 = vmatprep.subr.mxu0 0.0
        %1123 = vmatpush1.xpose.msra.mxu0 0.0
        %1124 = vmatprep.subr.mxu0 0.0
        %1125 = vmatpush1.xpose.msra.mxu0 0.0
        %1126 = vmatprep.subr.mxu0 0.0
        %1127 = vmatpush1.xpose.msra.mxu0 0.0
        %1128 = vmatprep.subr.mxu0 0.0
        %1129 = vmatpush1.xpose.msra.mxu0 0.0
        %1130 = vmatprep.subr.mxu0 0.0
        %1131 = vmatpush1.xpose.msra.mxu0 0.0
        %1132 = vmatprep.subr.mxu0 0.0
        %1133 = vmatpush1.xpose.msra.mxu0 0.0
        %1134 = vmatprep.subr.mxu0 0.0
        %1135 = vmatpush1.xpose.msra.mxu0 0.0
        %1136 = vmatprep.subr.mxu0 0.0
        %1137 = vmatpush1.xpose.msra.mxu0 0.0
        %1138 = vmatprep.subr.mxu0 0.0
        %1139 = vmatpush1.xpose.msra.mxu0 0.0
        %1140 = vmatprep.subr.mxu0 0.0
        %1141 = vmatpush1.xpose.msra.mxu0 0.0
        %1142 = vmatprep.subr.mxu0 0.0
        %1143 = vmatpush1.xpose.msra.mxu0 0.0
        %1144 = vmatprep.subr.mxu0 0.0
        %1145 = vmatpush1.xpose.msra.mxu0 0.0
        %1146 = vmatprep.mubr.f32.mxu0 0.0
        %1147 = vmatmul.mubr.f32.gmra.mrb[0].mxu0 %v1080
        %v1148 = vpop.f32.mrb[0].mxu0
        %v1149 = vadd.f32 0.0, %v1148
        %v1150 = vpop.f32.mrb[0].mxu0
        %1151 = vdwg.mxu0
        %v1152 = vmul.f32 %v1149, 0.35355338
        %v1153 = vsel %vm650, %v1152, -inf
        %1154 = vmax.xlane.f32.xlu0 %v1153
        %v1155 = vpop.xlane.xlu0 %1154
        %v1156 = vsub.f32 %v1152, %v1155
        %v1157 = vmul.f32 %v1156, 1.442695
        %v1158 = vpow.pop %v1157
        %v1159 = vsel %vm650, %v1158, 0.0
        %1160 = vadd.xlane.f32.xlu0 %v1159
        %v1161 = vpop.xlane.xlu0 %1160
        %v1162 = vrcp.pop %v1161
        %v1163 = vmul.f32 %v1158, %v1162
        %v1164 = vmul.f32 %v973, %v1077
        %v1166 = vsel %vm650, %v1163, 0
        %1168 = vmatprep.subr.mxu0 0.0
        %1169 = vmatpush1.msra.mxu0 %v1164
        %1170 = vmatprep.subr.mxu0 0.0
        %1171 = vmatpush1.msra.mxu0 0.0
        %1172 = vmatprep.subr.mxu0 0.0
        %1173 = vmatpush1.msra.mxu0 0.0
        %1174 = vmatprep.subr.mxu0 0.0
        %1175 = vmatpush1.msra.mxu0 0.0
        %1176 = vmatprep.subr.mxu0 0.0
        %1177 = vmatpush1.msra.mxu0 0.0
        %1178 = vmatprep.subr.mxu0 0.0
        %1179 = vmatpush1.msra.mxu0 0.0
        %1180 = vmatprep.subr.mxu0 0.0
        %1181 = vmatpush1.msra.mxu0 0.0
        %1182 = vmatprep.subr.mxu0 0.0
        %1183 = vmatpush1.msra.mxu0 0.0
        %1184 = vmatprep.subr.mxu0 0.0
        %1185 = vmatpush1.msra.mxu0 0.0
        %1186 = vmatprep.subr.mxu0 0.0
        %1187 = vmatpush1.msra.mxu0 0.0
        %1188 = vmatprep.subr.mxu0 0.0
        %1189 = vmatpush1.msra.mxu0 0.0
        %1190 = vmatprep.subr.mxu0 0.0
        %1191 = vmatpush1.msra.mxu0 0.0
        %1192 = vmatprep.subr.mxu0 0.0
        %1193 = vmatpush1.msra.mxu0 0.0
        %1194 = vmatprep.subr.mxu0 0.0
        %1195 = vmatpush1.msra.mxu0 0.0
        %1196 = vmatprep.subr.mxu0 0.0
        %1197 = vmatpush1.msra.mxu0 0.0
        %1198 = vmatprep.subr.mxu0 0.0
        %1199 = vmatpush1.msra.mxu0 0.0
        %1200 = vmatprep.subr.mxu0 0.0
        %1201 = vmatpush1.msra.mxu0 0.0
        %1202 = vmatprep.subr.mxu0 0.0
        %1203 = vmatpush1.msra.mxu0 0.0
        %1204 = vmatprep.subr.mxu0 0.0
        %1205 = vmatpush1.msra.mxu0 0.0
        %1206 = vmatprep.subr.mxu0 0.0
        %1207 = vmatpush1.msra.mxu0 0.0
        %1208 = vmatprep.subr.mxu0 0.0
        %1209 = vmatpush1.msra.mxu0 0.0
        %1210 = vmatprep.subr.mxu0 0.0
        %1211 = vmatpush1.msra.mxu0 0.0
        %1212 = vmatprep.subr.mxu0 0.0
        %1213 = vmatpush1.msra.mxu0 0.0
        %1214 = vmatprep.subr.mxu0 0.0
        %1215 = vmatpush1.msra.mxu0 0.0
        %1216 = vmatprep.subr.mxu0 0.0
        %1217 = vmatpush1.msra.mxu0 0.0
        %1218 = vmatprep.subr.mxu0 0.0
        %1219 = vmatpush1.msra.mxu0 0.0
        %1220 = vmatprep.subr.mxu0 0.0
        %1221 = vmatpush1.msra.mxu0 0.0
        %1222 = vmatprep.subr.mxu0 0.0
        %1223 = vmatpush1.msra.mxu0 0.0
        %1224 = vmatprep.subr.mxu0 0.0
        %1225 = vmatpush1.msra.mxu0 0.0
        %1226 = vmatprep.subr.mxu0 0.0
        %1227 = vmatpush1.msra.mxu0 0.0
        %1228 = vmatprep.subr.mxu0 0.0
        %1229 = vmatpush1.msra.mxu0 0.0
        %1230 = vmatprep.subr.mxu0 0.0
        %1231 = vmatpush1.msra.mxu0 0.0
        %1232 = vmatprep.mubr.f32.mxu0 0.0
        %1233 = vmatmul.mubr.f32.gmra.mrb[0].mxu0 %v1166
        %v1234 = vpop.f32.mrb[0].mxu0
        %v1235 = vadd.f32 0.0, %v1234
        %v1236 = vpop.f32.mrb[0].mxu0
        %1237 = vdwg.mxu0
        %v1239 = vsel %vm650, %v1071, 0
        %1241 = vmatprep.subr.mxu0 0.0
        %1242 = vmatpush1.msra.mxu0 %v1072
        %1243 = vmatprep.subr.mxu0 0.0
        %1244 = vmatpush1.msra.mxu0 0.0
        %1245 = vmatprep.subr.mxu0 0.0
        %1246 = vmatpush1.msra.mxu0 0.0
        %1247 = vmatprep.subr.mxu0 0.0
        %1248 = vmatpush1.msra.mxu0 0.0
        %1249 = vmatprep.subr.mxu0 0.0
        %1250 = vmatpush1.msra.mxu0 0.0
        %1251 = vmatprep.subr.mxu0 0.0
        %1252 = vmatpush1.msra.mxu0 0.0
        %1253 = vmatprep.subr.mxu0 0.0
        %1254 = vmatpush1.msra.mxu0 0.0
        %1255 = vmatprep.subr.mxu0 0.0
        %1256 = vmatpush1.msra.mxu0 0.0
        %1257 = vmatprep.subr.mxu0 0.0
        %1258 = vmatpush1.msra.mxu0 0.0
        %1259 = vmatprep.subr.mxu0 0.0
        %1260 = vmatpush1.msra.mxu0 0.0
        %1261 = vmatprep.subr.mxu0 0.0
        %1262 = vmatpush1.msra.mxu0 0.0
        %1263 = vmatprep.subr.mxu0 0.0
        %1264 = vmatpush1.msra.mxu0 0.0
        %1265 = vmatprep.subr.mxu0 0.0
        %1266 = vmatpush1.msra.mxu0 0.0
        %1267 = vmatprep.subr.mxu0 0.0
        %1268 = vmatpush1.msra.mxu0 0.0
        %1269 = vmatprep.subr.mxu0 0.0
        %1270 = vmatpush1.msra.mxu0 0.0
        %1271 = vmatprep.subr.mxu0 0.0
        %1272 = vmatpush1.msra.mxu0 0.0
        %1273 = vmatprep.subr.mxu0 0.0
        %1274 = vmatpush1.msra.mxu0 0.0
        %1275 = vmatprep.subr.mxu0 0.0
        %1276 = vmatpush1.msra.mxu0 0.0
        %1277 = vmatprep.subr.mxu0 0.0
        %1278 = vmatpush1.msra.mxu0 0.0
        %1279 = vmatprep.subr.mxu0 0.0
        %1280 = vmatpush1.msra.mxu0 0.0
        %1281 = vmatprep.subr.mxu0 0.0
        %1282 = vmatpush1.msra.mxu0 0.0
        %1283 = vmatprep.subr.mxu0 0.0
        %1284 = vmatpush1.msra.mxu0 0.0
        %1285 = vmatprep.subr.mxu0 0.0
        %1286 = vmatpush1.msra.mxu0 0.0
        %1287 = vmatprep.subr.mxu0 0.0
        %1288 = vmatpush1.msra.mxu0 0.0
        %1289 = vmatprep.subr.mxu0 0.0
        %1290 = vmatpush1.msra.mxu0 0.0
        %1291 = vmatprep.subr.mxu0 0.0
        %1292 = vmatpush1.msra.mxu0 0.0
        %1293 = vmatprep.subr.mxu0 0.0
        %1294 = vmatpush1.msra.mxu0 0.0
        %1295 = vmatprep.subr.mxu0 0.0
        %1296 = vmatpush1.msra.mxu0 0.0
        %1297 = vmatprep.subr.mxu0 0.0
        %1298 = vmatpush1.msra.mxu0 0.0
        %1299 = vmatprep.subr.mxu0 0.0
        %1300 = vmatpush1.msra.mxu0 0.0
        %1301 = vmatprep.subr.mxu0 0.0
        %1302 = vmatpush1.msra.mxu0 0.0
        %1303 = vmatprep.subr.mxu0 0.0
        %1304 = vmatpush1.msra.mxu0 0.0
        %1305 = vmatprep.mubr.f32.mxu0 0.0
        %1306 = vmatmul.mubr.f32.gmra.mrb[0].mxu0 %v1239
        %v1307 = vpop.f32.mrb[0].mxu0
        %v1308 = vadd.f32 %v1235, %v1307
        %v1309 = vpop.f32.mrb[0].mxu0
        %1310 = vdwg.mxu0
        %vm1311 = vcmp.ge.s32.totalorder %v977, 16
        %vm1312 = vcmp.lt.s32.totalorder %v977, 24
        %vm1313 = vmand %vm1311, %vm1312
        %v1314 = vsel %vm1313, 1, 0
        %v1315 = vcvt.s32.f32 %v1314
        %v1316 = vmul.f32 %v811, %v1315
        %v1318 = vsel %vm740, %v1316, 0
        %1320 = vmatprep.subr.mxu0 0.0
        %1321 = vmatpush1.xpose.msra.mxu0 %v988
        %1322 = vmatprep.subr.mxu0 0.0
        %1323 = vmatpush1.xpose.msra.mxu0 0.0
        %1324 = vmatprep.subr.mxu0 0.0
        %1325 = vmatpush1.xpose.msra.mxu0 0.0
        %1326 = vmatprep.subr.mxu0 0.0
        %1327 = vmatpush1.xpose.msra.mxu0 0.0
        %1328 = vmatprep.subr.mxu0 0.0
        %1329 = vmatpush1.xpose.msra.mxu0 0.0
        %1330 = vmatprep.subr.mxu0 0.0
        %1331 = vmatpush1.xpose.msra.mxu0 0.0
        %1332 = vmatprep.subr.mxu0 0.0
        %1333 = vmatpush1.xpose.msra.mxu0 0.0
        %1334 = vmatprep.subr.mxu0 0.0
        %1335 = vmatpush1.xpose.msra.mxu0 0.0
        %1336 = vmatprep.subr.mxu0 0.0
        %1337 = vmatpush1.xpose.msra.mxu0 0.0
        %1338 = vmatprep.subr.mxu0 0.0
        %1339 = vmatpush1.xpose.msra.mxu0 0.0
        %1340 = vmatprep.subr.mxu0 0.0
        %1341 = vmatpush1.xpose.msra.mxu0 0.0
        %1342 = vmatprep.subr.mxu0 0.0
        %1343 = vmatpush1.xpose.msra.mxu0 0.0
        %1344 = vmatprep.subr.mxu0 0.0
        %1345 = vmatpush1.xpose.msra.mxu0 0.0
        %1346 = vmatprep.subr.mxu0 0.0
        %1347 = vmatpush1.xpose.msra.mxu0 0.0
        %1348 = vmatprep.subr.mxu0 0.0
        %1349 = vmatpush1.xpose.msra.mxu0 0.0
        %1350 = vmatprep.subr.mxu0 0.0
        %1351 = vmatpush1.xpose.msra.mxu0 0.0
        %1352 = vmatprep.subr.mxu0 0.0
        %1353 = vmatpush1.xpose.msra.mxu0 0.0
        %1354 = vmatprep.subr.mxu0 0.0
        %1355 = vmatpush1.xpose.msra.mxu0 0.0
        %1356 = vmatprep.subr.mxu0 0.0
        %1357 = vmatpush1.xpose.msra.mxu0 0.0
        %1358 = vmatprep.subr.mxu0 0.0
        %1359 = vmatpush1.xpose.msra.mxu0 0.0
        %1360 = vmatprep.subr.mxu0 0.0
        %1361 = vmatpush1.xpose.msra.mxu0 0.0
        %1362 = vmatprep.subr.mxu0 0.0
        %1363 = vmatpush1.xpose.msra.mxu0 0.0
        %1364 = vmatprep.subr.mxu0 0.0
        %1365 = vmatpush1.xpose.msra.mxu0 0.0
        %1366 = vmatprep.subr.mxu0 0.0
        %1367 = vmatpush1.xpose.msra.mxu0 0.0
        %1368 = vmatprep.subr.mxu0 0.0
        %1369 = vmatpush1.xpose.msra.mxu0 0.0
        %1370 = vmatprep.subr.mxu0 0.0
        %1371 = vmatpush1.xpose.msra.mxu0 0.0
        %1372 = vmatprep.subr.mxu0 0.0
        %1373 = vmatpush1.xpose.msra.mxu0 0.0
        %1374 = vmatprep.subr.mxu0 0.0
        %1375 = vmatpush1.xpose.msra.mxu0 0.0
        %1376 = vmatprep.subr.mxu0 0.0
        %1377 = vmatpush1.xpose.msra.mxu0 0.0
        %1378 = vmatprep.subr.mxu0 0.0
        %1379 = vmatpush1.xpose.msra.mxu0 0.0
        %1380 = vmatprep.subr.mxu0 0.0
        %1381 = vmatpush1.xpose.msra.mxu0 0.0
        %1382 = vmatprep.subr.mxu0 0.0
        %1383 = vmatpush1.xpose.msra.mxu0 0.0
        %1384 = vmatprep.mubr.f32.mxu0 0.0
        %1385 = vmatmul.mubr.f32.gmra.mrb[0].mxu0 %v1318
        %v1386 = vpop.f32.mrb[0].mxu0
        %v1387 = vadd.f32 0.0, %v1386
        %v1388 = vpop.f32.mrb[0].mxu0
        %1389 = vdwg.mxu0
        %v1390 = vmul.f32 %v1387, 0.35355338
        %v1391 = vsel %vm650, %v1390, -inf
        %1392 = vmax.xlane.f32.xlu0 %v1391
        %v1393 = vpop.xlane.xlu0 %1392
        %v1394 = vsub.f32 %v1390, %v1393
        %v1395 = vmul.f32 %v1394, 1.442695
        %v1396 = vpow.pop %v1395
        %v1397 = vsel %vm650, %v1396, 0.0
        %1398 = vadd.xlane.f32.xlu0 %v1397
        %v1399 = vpop.xlane.xlu0 %1398
        %v1400 = vrcp.pop %v1399
        %v1401 = vmul.f32 %v1396, %v1400
        %v1402 = vmul.f32 %v973, %v1315
        %v1404 = vsel %vm650, %v1401, 0
        %1406 = vmatprep.subr.mxu0 0.0
        %1407 = vmatpush1.msra.mxu0 %v1402
        %1408 = vmatprep.subr.mxu0 0.0
        %1409 = vmatpush1.msra.mxu0 0.0
        %1410 = vmatprep.subr.mxu0 0.0
        %1411 = vmatpush1.msra.mxu0 0.0
        %1412 = vmatprep.subr.mxu0 0.0
        %1413 = vmatpush1.msra.mxu0 0.0
        %1414 = vmatprep.subr.mxu0 0.0
        %1415 = vmatpush1.msra.mxu0 0.0
        %1416 = vmatprep.subr.mxu0 0.0
        %1417 = vmatpush1.msra.mxu0 0.0
        %1418 = vmatprep.subr.mxu0 0.0
        %1419 = vmatpush1.msra.mxu0 0.0
        %1420 = vmatprep.subr.mxu0 0.0
        %1421 = vmatpush1.msra.mxu0 0.0
        %1422 = vmatprep.subr.mxu0 0.0
        %1423 = vmatpush1.msra.mxu0 0.0
        %1424 = vmatprep.subr.mxu0 0.0
        %1425 = vmatpush1.msra.mxu0 0.0
        %1426 = vmatprep.subr.mxu0 0.0
        %1427 = vmatpush1.msra.mxu0 0.0
        %1428 = vmatprep.subr.mxu0 0.0
        %1429 = vmatpush1.msra.mxu0 0.0
        %1430 = vmatprep.subr.mxu0 0.0
        %1431 = vmatpush1.msra.mxu0 0.0
        %1432 = vmatprep.subr.mxu0 0.0
        %1433 = vmatpush1.msra.mxu0 0.0
        %1434 = vmatprep.subr.mxu0 0.0
        %1435 = vmatpush1.msra.mxu0 0.0
        %1436 = vmatprep.subr.mxu0 0.0
        %1437 = vmatpush1.msra.mxu0 0.0
        %1438 = vmatprep.subr.mxu0 0.0
        %1439 = vmatpush1.msra.mxu0 0.0
        %1440 = vmatprep.subr.mxu0 0.0
        %1441 = vmatpush1.msra.mxu0 0.0
        %1442 = vmatprep.subr.mxu0 0.0
        %1443 = vmatpush1.msra.mxu0 0.0
        %1444 = vmatprep.subr.mxu0 0.0
        %1445 = vmatpush1.msra.mxu0 0.0
        %1446 = vmatprep.subr.mxu0 0.0
        %1447 = vmatpush1.msra.mxu0 0.0
        %1448 = vmatprep.subr.mxu0 0.0
        %1449 = vmatpush1.msra.mxu0 0.0
        %1450 = vmatprep.subr.mxu0 0.0
        %1451 = vmatpush1.msra.mxu0 0.0
        %1452 = vmatprep.subr.mxu0 0.0
        %1453 = vmatpush1.msra.mxu0 0.0
        %1454 = vmatprep.subr.mxu0 0.0
        %1455 = vmatpush1.msra.mxu0 0.0
        %1456 = vmatprep.subr.mxu0 0.0
        %1457 = vmatpush1.msra.mxu0 0.0
        %1458 = vmatprep.subr.mxu0 0.0
        %1459 = vmatpush1.msra.mxu0 0.0
        %1460 = vmatprep.subr.mxu0 0.0
        %1461 = vmatpush1.msra.mxu0 0.0
        %1462 = vmatprep.subr.mxu0 0.0
        %1463 = vmatpush1.msra.mxu0 0.0
        %1464 = vmatprep.subr.mxu0 0.0
        %1465 = vmatpush1.msra.mxu0 0.0
        %1466 = vmatprep.subr.mxu0 0.0
        %1467 = vmatpush1.msra.mxu0 0.0
        %1468 = vmatprep.subr.mxu0 0.0
        %1469 = vmatpush1.msra.mxu0 0.0
        %1470 = vmatprep.mubr.f32.mxu0 0.0
        %1471 = vmatmul.mubr.f32.gmra.mrb[0].mxu0 %v1404
        %v1472 = vpop.f32.mrb[0].mxu0
        %v1473 = vadd.f32 0.0, %v1472
        %v1474 = vpop.f32.mrb[0].mxu0
        %1475 = vdwg.mxu0
        %v1476 = vadd.f32 %v1308, %v1473
        %vm1477 = vcmp.ge.s32.totalorder %v977, 24
        %vm1478 = vcmp.lt.s32.totalorder %v977, 32
        %vm1479 = vmand %vm1477, %vm1478
        %v1480 = vsel %vm1479, 1, 0
        %v1481 = vcvt.s32.f32 %v1480
        %v1482 = vmul.f32 %v811, %v1481
        %v1484 = vsel %vm740, %v1482, 0
        %1486 = vmatprep.subr.mxu0 0.0
        %1487 = vmatpush1.xpose.msra.mxu0 %v988
        %1488 = vmatprep.subr.mxu0 0.0
        %1489 = vmatpush1.xpose.msra.mxu0 0.0
        %1490 = vmatprep.subr.mxu0 0.0
        %1491 = vmatpush1.xpose.msra.mxu0 0.0
        %1492 = vmatprep.subr.mxu0 0.0
        %1493 = vmatpush1.xpose.msra.mxu0 0.0
        %1494 = vmatprep.subr.mxu0 0.0
        %1495 = vmatpush1.xpose.msra.mxu0 0.0
        %1496 = vmatprep.subr.mxu0 0.0
        %1497 = vmatpush1.xpose.msra.mxu0 0.0
        %1498 = vmatprep.subr.mxu0 0.0
        %1499 = vmatpush1.xpose.msra.mxu0 0.0
        %1500 = vmatprep.subr.mxu0 0.0
        %1501 = vmatpush1.xpose.msra.mxu0 0.0
        %1502 = vmatprep.subr.mxu0 0.0
        %1503 = vmatpush1.xpose.msra.mxu0 0.0
        %1504 = vmatprep.subr.mxu0 0.0
        %1505 = vmatpush1.xpose.msra.mxu0 0.0
        %1506 = vmatprep.subr.mxu0 0.0
        %1507 = vmatpush1.xpose.msra.mxu0 0.0
        %1508 = vmatprep.subr.mxu0 0.0
        %1509 = vmatpush1.xpose.msra.mxu0 0.0
        %1510 = vmatprep.subr.mxu0 0.0
        %1511 = vmatpush1.xpose.msra.mxu0 0.0
        %1512 = vmatprep.subr.mxu0 0.0
        %1513 = vmatpush1.xpose.msra.mxu0 0.0
        %1514 = vmatprep.subr.mxu0 0.0
        %1515 = vmatpush1.xpose.msra.mxu0 0.0
        %1516 = vmatprep.subr.mxu0 0.0
        %1517 = vmatpush1.xpose.msra.mxu0 0.0
        %1518 = vmatprep.subr.mxu0 0.0
        %1519 = vmatpush1.xpose.msra.mxu0 0.0
        %1520 = vmatprep.subr.mxu0 0.0
        %1521 = vmatpush1.xpose.msra.mxu0 0.0
        %1522 = vmatprep.subr.mxu0 0.0
        %1523 = vmatpush1.xpose.msra.mxu0 0.0
        %1524 = vmatprep.subr.mxu0 0.0
        %1525 = vmatpush1.xpose.msra.mxu0 0.0
        %1526 = vmatprep.subr.mxu0 0.0
        %1527 = vmatpush1.xpose.msra.mxu0 0.0
        %1528 = vmatprep.subr.mxu0 0.0
        %1529 = vmatpush1.xpose.msra.mxu0 0.0
        %1530 = vmatprep.subr.mxu0 0.0
        %1531 = vmatpush1.xpose.msra.mxu0 0.0
        %1532 = vmatprep.subr.mxu0 0.0
        %1533 = vmatpush1.xpose.msra.mxu0 0.0
        %1534 = vmatprep.subr.mxu0 0.0
        %1535 = vmatpush1.xpose.msra.mxu0 0.0
        %1536 = vmatprep.subr.mxu0 0.0
        %1537 = vmatpush1.xpose.msra.mxu0 0.0
        %1538 = vmatprep.subr.mxu0 0.0
        %1539 = vmatpush1.xpose.msra.mxu0 0.0
        %1540 = vmatprep.subr.mxu0 0.0
        %1541 = vmatpush1.xpose.msra.mxu0 0.0
        %1542 = vmatprep.subr.mxu0 0.0
        %1543 = vmatpush1.xpose.msra.mxu0 0.0
        %1544 = vmatprep.subr.mxu0 0.0
        %1545 = vmatpush1.xpose.msra.mxu0 0.0
        %1546 = vmatprep.subr.mxu0 0.0
        %1547 = vmatpush1.xpose.msra.mxu0 0.0
        %1548 = vmatprep.subr.mxu0 0.0
        %1549 = vmatpush1.xpose.msra.mxu0 0.0
        %1550 = vmatprep.mubr.f32.mxu0 0.0
        %1551 = vmatmul.mubr.f32.gmra.mrb[0].mxu0 %v1484
        %v1552 = vpop.f32.mrb[0].mxu0
        %v1553 = vadd.f32 0.0, %v1552
        %v1554 = vpop.f32.mrb[0].mxu0
        %1555 = vdwg.mxu0
        %v1556 = vmul.f32 %v1553, 0.35355338
        %v1557 = vsel %vm650, %v1556, -inf
        %1558 = vmax.xlane.f32.xlu0 %v1557
        %v1559 = vpop.xlane.xlu0 %1558
        %v1560 = vsub.f32 %v1556, %v1559
        %v1561 = vmul.f32 %v1560, 1.442695
        %v1562 = vpow.pop %v1561
        %v1563 = vsel %vm650, %v1562, 0.0
        %1564 = vadd.xlane.f32.xlu0 %v1563
        %v1565 = vpop.xlane.xlu0 %1564
        %v1566 = vrcp.pop %v1565
        %v1567 = vmul.f32 %v1562, %v1566
        %v1568 = vmul.f32 %v973, %v1481
        %v1570 = vsel %vm650, %v1567, 0
        %1572 = vmatprep.subr.mxu0 0.0
        %1573 = vmatpush1.msra.mxu0 %v1568
        %1574 = vmatprep.subr.mxu0 0.0
        %1575 = vmatpush1.msra.mxu0 0.0
        %1576 = vmatprep.subr.mxu0 0.0
        %1577 = vmatpush1.msra.mxu0 0.0
        %1578 = vmatprep.subr.mxu0 0.0
        %1579 = vmatpush1.msra.mxu0 0.0
        %1580 = vmatprep.subr.mxu0 0.0
        %1581 = vmatpush1.msra.mxu0 0.0
        %1582 = vmatprep.subr.mxu0 0.0
        %1583 = vmatpush1.msra.mxu0 0.0
        %1584 = vmatprep.subr.mxu0 0.0
        %1585 = vmatpush1.msra.mxu0 0.0
        %1586 = vmatprep.subr.mxu0 0.0
        %1587 = vmatpush1.msra.mxu0 0.0
        %1588 = vmatprep.subr.mxu0 0.0
        %1589 = vmatpush1.msra.mxu0 0.0
        %1590 = vmatprep.subr.mxu0 0.0
        %1591 = vmatpush1.msra.mxu0 0.0
        %1592 = vmatprep.subr.mxu0 0.0
        %1593 = vmatpush1.msra.mxu0 0.0
        %1594 = vmatprep.subr.mxu0 0.0
        %1595 = vmatpush1.msra.mxu0 0.0
        %1596 = vmatprep.subr.mxu0 0.0
        %1597 = vmatpush1.msra.mxu0 0.0
        %1598 = vmatprep.subr.mxu0 0.0
        %1599 = vmatpush1.msra.mxu0 0.0
        %1600 = vmatprep.subr.mxu0 0.0
        %1601 = vmatpush1.msra.mxu0 0.0
        %1602 = vmatprep.subr.mxu0 0.0
        %1603 = vmatpush1.msra.mxu0 0.0
        %1604 = vmatprep.subr.mxu0 0.0
        %1605 = vmatpush1.msra.mxu0 0.0
        %1606 = vmatprep.subr.mxu0 0.0
        %1607 = vmatpush1.msra.mxu0 0.0
        %1608 = vmatprep.subr.mxu0 0.0
        %1609 = vmatpush1.msra.mxu0 0.0
        %1610 = vmatprep.subr.mxu0 0.0
        %1611 = vmatpush1.msra.mxu0 0.0
        %1612 = vmatprep.subr.mxu0 0.0
        %1613 = vmatpush1.msra.mxu0 0.0
        %1614 = vmatprep.subr.mxu0 0.0
        %1615 = vmatpush1.msra.mxu0 0.0
        %1616 = vmatprep.subr.mxu0 0.0
        %1617 = vmatpush1.msra.mxu0 0.0
        %1618 = vmatprep.subr.mxu0 0.0
        %1619 = vmatpush1.msra.mxu0 0.0
        %1620 = vmatprep.subr.mxu0 0.0
        %1621 = vmatpush1.msra.mxu0 0.0
        %1622 = vmatprep.subr.mxu0 0.0
        %1623 = vmatpush1.msra.mxu0 0.0
        %1624 = vmatprep.subr.mxu0 0.0
        %1625 = vmatpush1.msra.mxu0 0.0
        %1626 = vmatprep.subr.mxu0 0.0
        %1627 = vmatpush1.msra.mxu0 0.0
        %1628 = vmatprep.subr.mxu0 0.0
        %1629 = vmatpush1.msra.mxu0 0.0
        %1630 = vmatprep.subr.mxu0 0.0
        %1631 = vmatpush1.msra.mxu0 0.0
        %1632 = vmatprep.subr.mxu0 0.0
        %1633 = vmatpush1.msra.mxu0 0.0
        %1634 = vmatprep.subr.mxu0 0.0
        %1635 = vmatpush1.msra.mxu0 0.0
        %1636 = vmatprep.mubr.f32.mxu0 0.0
        %1637 = vmatmul.mubr.f32.gmra.mrb[0].mxu0 %v1570
        %v1638 = vpop.f32.mrb[0].mxu0
        %v1639 = vadd.f32 0.0, %v1638
        %v1640 = vpop.f32.mrb[0].mxu0
        %1641 = vdwg.mxu0
        %v1642 = vadd.f32 %v1476, %v1639
        %v1643 = vld [vmem:[%s10] sm:$0xff]
        %v1644 = vld [vmem:[%s10 + $0x8] sm:$0xff]
        %v1645 = vld [vmem:[%s10 + $0x10] sm:$0xff]
        %v1646 = vld [vmem:[%s10 + $0x18] sm:$0xff]
        %v1647 = vld [vmem:[%s11] sm:$0x1]
        %v1649 = vlaneseq
        %v1650 = vshrl.u32 %v1649, 7
        %v1651 = vsub.s32 0, %v1650
        %v1652 = vrot.slane %v1647, %v1651
        %v1655 = vsel %vm740, %v1642, 0
        %1657 = vmatprep.subr.mxu0 0.0
        %1658 = vmatpush1.msra.mxu0 %v1643
        %1659 = vmatprep.subr.mxu0 0.0
        %1660 = vmatpush1.msra.mxu0 %v1644
        %1661 = vmatprep.subr.mxu0 0.0
        %1662 = vmatpush1.msra.mxu0 %v1645
        %1663 = vmatprep.subr.mxu0 0.0
        %1664 = vmatpush1.msra.mxu0 %v1646
        %1665 = vmatprep.subr.mxu0 0.0
        %1666 = vmatpush1.msra.mxu0 0.0
        %1667 = vmatprep.subr.mxu0 0.0
        %1668 = vmatpush1.msra.mxu0 0.0
        %1669 = vmatprep.subr.mxu0 0.0
        %1670 = vmatpush1.msra.mxu0 0.0
        %1671 = vmatprep.subr.mxu0 0.0
        %1672 = vmatpush1.msra.mxu0 0.0
        %1673 = vmatprep.subr.mxu0 0.0
        %1674 = vmatpush1.msra.mxu0 0.0
        %1675 = vmatprep.subr.mxu0 0.0
        %1676 = vmatpush1.msra.mxu0 0.0
        %1677 = vmatprep.subr.mxu0 0.0
        %1678 = vmatpush1.msra.mxu0 0.0
        %1679 = vmatprep.subr.mxu0 0.0
        %1680 = vmatpush1.msra.mxu0 0.0
        %1681 = vmatprep.subr.mxu0 0.0
        %1682 = vmatpush1.msra.mxu0 0.0
        %1683 = vmatprep.subr.mxu0 0.0
        %1684 = vmatpush1.msra.mxu0 0.0
        %1685 = vmatprep.subr.mxu0 0.0
        %1686 = vmatpush1.msra.mxu0 0.0
        %1687 = vmatprep.subr.mxu0 0.0
        %1688 = vmatpush1.msra.mxu0 0.0
        %1689 = vmatprep.subr.mxu0 0.0
        %1690 = vmatpush1.msra.mxu0 0.0
        %1691 = vmatprep.subr.mxu0 0.0
        %1692 = vmatpush1.msra.mxu0 0.0
        %1693 = vmatprep.subr.mxu0 0.0
        %1694 = vmatpush1.msra.mxu0 0.0
        %1695 = vmatprep.subr.mxu0 0.0
        %1696 = vmatpush1.msra.mxu0 0.0
        %1697 = vmatprep.subr.mxu0 0.0
        %1698 = vmatpush1.msra.mxu0 0.0
        %1699 = vmatprep.subr.mxu0 0.0
        %1700 = vmatpush1.msra.mxu0 0.0
        %1701 = vmatprep.subr.mxu0 0.0
        %1702 = vmatpush1.msra.mxu0 0.0
        %1703 = vmatprep.subr.mxu0 0.0
        %1704 = vmatpush1.msra.mxu0 0.0
        %1705 = vmatprep.subr.mxu0 0.0
        %1706 = vmatpush1.msra.mxu0 0.0
        %1707 = vmatprep.subr.mxu0 0.0
        %1708 = vmatpush1.msra.mxu0 0.0
        %1709 = vmatprep.subr.mxu0 0.0
        %1710 = vmatpush1.msra.mxu0 0.0
        %1711 = vmatprep.subr.mxu0 0.0
        %1712 = vmatpush1.msra.mxu0 0.0
        %1713 = vmatprep.subr.mxu0 0.0
        %1714 = vmatpush1.msra.mxu0 0.0
        %1715 = vmatprep.subr.mxu0 0.0
        %1716 = vmatpush1.msra.mxu0 0.0
        %1717 = vmatprep.subr.mxu0 0.0
        %1718 = vmatpush1.msra.mxu0 0.0
        %1719 = vmatprep.subr.mxu0 0.0
        %1720 = vmatpush1.msra.mxu0 0.0
        %1721 = vmatprep.mubr.f32.mxu0 0.0
        %1722 = vmatmul.mubr.f32.gmra.mrb[0].mxu0 %v1655
        %v1723 = vpop.f32.mrb[0].mxu0
        %v1724 = vadd.f32 %v1652, %v1723
        %v1725 = vpop.f32.mrb[0].mxu0
        %1726 = vdwg.mxu0
        %v1727 = vadd.f32 %v728, %v1724
        %v1728 = vld [vmem:[%s16] sm:$0x1]
        %v1729 = vld [vmem:[%s17] sm:$0x1]
        %v1730 = vsel %vm740, %v1727, 0.0
        %1731 = vadd.xlane.f32.xlu0 %v1730
        %v1732 = vpop.xlane.xlu0 %1731
        %v1733 = vrcp.pop 32.0
        %v1734 = vmul.f32 %v1732, %v1733
        %v1735 = vsub.f32 %v1727, %v1734
        %v1736 = vmul.f32 %v1735, %v1735
        %v1737 = vsel %vm740, %v1736, 0.0
        %1738 = vadd.xlane.f32.xlu0 %v1737
        %v1739 = vpop.xlane.xlu0 %1738
        %v1740 = vmul.f32 %v1739, %v1733
        %v1741 = vadd.f32 %v1740, 1e-05
        %v1742 = vrsqrt.pop %v1741
        %v1743 = vmul.f32 %v1735, %v1742
        %v1745 = vlaneseq
        %v1746 = vshrl.u32 %v1745, 7
        %v1747 = vsub.s32 0, %v1746
        %v1748 = vrot.slane %v1728, %v1747
        %v1750 = vmul.f32 %v1743, %v1748
        %v1752 = vlaneseq
        %v1753 = vshrl.u32 %v1752, 7
        %v1754 = vsub.s32 0, %v1753
        %v1755 = vrot.slane %v1729, %v1754
        %v1757 = vadd.f32 %v1750, %v1755
        %v1758 = vld [vmem:[%s12] sm:$0xff]
        %v1759 = vld [vmem:[%s12 + $0x8] sm:$0xff]
        %v1760 = vld [vmem:[%s12 + $0x10] sm:$0xff]
        %v1761 = vld [vmem:[%s12 + $0x18] sm:$0xff]
        %v1762 = vld [vmem:[%s12 + $0x20] sm:$0xff]
        %v1763 = vld [vmem:[%s12 + $0x28] sm:$0xff]
        %v1764 = vld [vmem:[%s12 + $0x30] sm:$0xff]
        %v1765 = vld [vmem:[%s12 + $0x38] sm:$0xff]
        %v1766 = vld [vmem:[%s12 + $0x40] sm:$0xff]
        %v1767 = vld [vmem:[%s12 + $0x48] sm:$0xff]
        %v1768 = vld [vmem:[%s12 + $0x50] sm:$0xff]
        %v1769 = vld [vmem:[%s12 + $0x58] sm:$0xff]
        %v1770 = vld [vmem:[%s12 + $0x60] sm:$0xff]
        %v1771 = vld [vmem:[%s12 + $0x68] sm:$0xff]
        %v1772 = vld [vmem:[%s12 + $0x70] sm:$0xff]
        %v1773 = vld [vmem:[%s12 + $0x78] sm:$0xff]
        %v1774 = vld [vmem:[%s12 + $0x80] sm:$0xff]
        %v1775 = vld [vmem:[%s12 + $0x88] sm:$0xff]
        %v1776 = vld [vmem:[%s12 + $0x90] sm:$0xff]
        %v1777 = vld [vmem:[%s12 + $0x98] sm:$0xff]
        %v1778 = vld [vmem:[%s12 + $0xa0] sm:$0xff]
        %v1779 = vld [vmem:[%s12 + $0xa8] sm:$0xff]
        %v1780 = vld [vmem:[%s12 + $0xb0] sm:$0xff]
        %v1781 = vld [vmem:[%s12 + $0xb8] sm:$0xff]
        %v1782 = vld [vmem:[%s12 + $0xc0] sm:$0xff]
        %v1783 = vld [vmem:[%s12 + $0xc8] sm:$0xff]
        %v1784 = vld [vmem:[%s12 + $0xd0] sm:$0xff]
        %v1785 = vld [vmem:[%s12 + $0xd8] sm:$0xff]
        %v1786 = vld [vmem:[%s12 + $0xe0] sm:$0xff]
        %v1787 = vld [vmem:[%s12 + $0xe8] sm:$0xff]
        %v1788 = vld [vmem:[%s12 + $0xf0] sm:$0xff]
        %v1789 = vld [vmem:[%s12 + $0xf8] sm:$0xff]
        %v1790 = vld [vmem:[%s12 + $0x100] sm:$0xff]
        %v1791 = vld [vmem:[%s12 + $0x108] sm:$0xff]
        %v1792 = vld [vmem:[%s12 + $0x110] sm:$0xff]
        %v1793 = vld [vmem:[%s12 + $0x118] sm:$0xff]
        %v1794 = vld [vmem:[%s12 + $0x120] sm:$0xff]
        %v1795 = vld [vmem:[%s12 + $0x128] sm:$0xff]
        %v1796 = vld [vmem:[%s12 + $0x130] sm:$0xff]
        %v1797 = vld [vmem:[%s12 + $0x138] sm:$0xff]
        %v1798 = vld [vmem:[%s12 + $0x140] sm:$0xff]
        %v1799 = vld [vmem:[%s12 + $0x148] sm:$0xff]
        %v1800 = vld [vmem:[%s12 + $0x150] sm:$0xff]
        %v1801 = vld [vmem:[%s12 + $0x158] sm:$0xff]
        %v1802 = vld [vmem:[%s12 + $0x160] sm:$0xff]
        %v1803 = vld [vmem:[%s12 + $0x168] sm:$0xff]
        %v1804 = vld [vmem:[%s12 + $0x170] sm:$0xff]
        %v1805 = vld [vmem:[%s12 + $0x178] sm:$0xff]
        %v1806 = vld [vmem:[%s12 + $0x180] sm:$0xff]
        %v1807 = vld [vmem:[%s12 + $0x188] sm:$0xff]
        %v1808 = vld [vmem:[%s12 + $0x190] sm:$0xff]
        %v1809 = vld [vmem:[%s12 + $0x198] sm:$0xff]
        %v1810 = vld [vmem:[%s12 + $0x1a0] sm:$0xff]
        %v1811 = vld [vmem:[%s12 + $0x1a8] sm:$0xff]
        %v1812 = vld [vmem:[%s12 + $0x1b0] sm:$0xff]
        %v1813 = vld [vmem:[%s12 + $0x1b8] sm:$0xff]
        %v1814 = vld [vmem:[%s12 + $0x1c0] sm:$0xff]
        %v1815 = vld [vmem:[%s12 + $0x1c8] sm:$0xff]
        %v1816 = vld [vmem:[%s12 + $0x1d0] sm:$0xff]
        %v1817 = vld [vmem:[%s12 + $0x1d8] sm:$0xff]
        %v1818 = vld [vmem:[%s12 + $0x1e0] sm:$0xff]
        %v1819 = vld [vmem:[%s12 + $0x1e8] sm:$0xff]
        %v1820 = vld [vmem:[%s12 + $0x1f0] sm:$0xff]
        %v1821 = vld [vmem:[%s12 + $0x1f8] sm:$0xff]
        %v1822 = vld [vmem:[%s13] sm:$0xff]
        %v1823 = vld [vmem:[%s13 + $0x8] sm:$0xff]
        %v1826 = vlaneseq
        %v1827 = vshrl.u32 %v1826, 7
        %v1828 = vsub.s32 0, %v1827
        %v1829 = vrot.slane %v1822, %v1828
        %v1830 = vlaneseq
        %v1831 = vshrl.u32 %v1830, 7
        %v1832 = vsub.s32 1, %v1831
        %v1833 = vrot.slane %v1822, %v1832
        %v1834 = vlaneseq
        %v1835 = vshrl.u32 %v1834, 7
        %v1836 = vsub.s32 2, %v1835
        %v1837 = vrot.slane %v1822, %v1836
        %v1838 = vlaneseq
        %v1839 = vshrl.u32 %v1838, 7
        %v1840 = vsub.s32 3, %v1839
        %v1841 = vrot.slane %v1822, %v1840
        %v1842 = vlaneseq
        %v1843 = vshrl.u32 %v1842, 7
        %v1844 = vsub.s32 4, %v1843
        %v1845 = vrot.slane %v1822, %v1844
        %v1846 = vlaneseq
        %v1847 = vshrl.u32 %v1846, 7
        %v1848 = vsub.s32 5, %v1847
        %v1849 = vrot.slane %v1822, %v1848
        %v1850 = vlaneseq
        %v1851 = vshrl.u32 %v1850, 7
        %v1852 = vsub.s32 6, %v1851
        %v1853 = vrot.slane %v1822, %v1852
        %v1854 = vlaneseq
        %v1855 = vshrl.u32 %v1854, 7
        %v1856 = vsub.s32 7, %v1855
        %v1857 = vrot.slane %v1822, %v1856
        %v1858 = vlaneseq
        %v1859 = vshrl.u32 %v1858, 7
        %v1860 = vsub.s32 0, %v1859
        %v1861 = vrot.slane %v1823, %v1860
        %v1862 = vlaneseq
        %v1863 = vshrl.u32 %v1862, 7
        %v1864 = vsub.s32 1, %v1863
        %v1865 = vrot.slane %v1823, %v1864
        %v1866 = vlaneseq
        %v1867 = vshrl.u32 %v1866, 7
        %v1868 = vsub.s32 2, %v1867
        %v1869 = vrot.slane %v1823, %v1868
        %v1870 = vlaneseq
        %v1871 = vshrl.u32 %v1870, 7
        %v1872 = vsub.s32 3, %v1871
        %v1873 = vrot.slane %v1823, %v1872
        %v1874 = vlaneseq
        %v1875 = vshrl.u32 %v1874, 7
        %v1876 = vsub.s32 4, %v1875
        %v1877 = vrot.slane %v1823, %v1876
        %v1878 = vlaneseq
        %v1879 = vshrl.u32 %v1878, 7
        %v1880 = vsub.s32 5, %v1879
        %v1881 = vrot.slane %v1823, %v1880
        %v1882 = vlaneseq
        %v1883 = vshrl.u32 %v1882, 7
        %v1884 = vsub.s32 6, %v1883
        %v1885 = vrot.slane %v1823, %v1884
        %v1886 = vlaneseq
        %v1887 = vshrl.u32 %v1886, 7
        %v1888 = vsub.s32 7, %v1887
        %v1889 = vrot.slane %v1823, %v1888
        %v1907 = vsel %vm740, %v1757, 0
        %1909 = vmatprep.subr.mxu0 %v1759
        %1910 = vmatpush1.msra.mxu0 %v1758
        %1911 = vmatprep.subr.mxu0 %v1775
        %1912 = vmatpush1.msra.mxu0 %v1774
        %1913 = vmatprep.subr.mxu0 %v1791
        %1914 = vmatpush1.msra.mxu0 %v1790
        %1915 = vmatprep.subr.mxu0 %v1807
        %1916 = vmatpush1.msra.mxu0 %v1806
        %1917 = vmatprep.subr.mxu0 0.0
        %1918 = vmatpush1.msra.mxu0 0.0
        %1919 = vmatprep.subr.mxu0 0.0
        %1920 = vmatpush1.msra.mxu0 0.0
        %1921 = vmatprep.subr.mxu0 0.0
        %1922 = vmatpush1.msra.mxu0 0.0
        %1923 = vmatprep.subr.mxu0 0.0
        %1924 = vmatpush1.msra.mxu0 0.0
        %1925 = vmatprep.subr.mxu0 0.0
        %1926 = vmatpush1.msra.mxu0 0.0
        %1927 = vmatprep.subr.mxu0 0.0
        %1928 = vmatpush1.msra.mxu0 0.0
        %1929 = vmatprep.subr.mxu0 0.0
        %1930 = vmatpush1.msra.mxu0 0.0
        %1931 = vmatprep.subr.mxu0 0.0
        %1932 = vmatpush1.msra.mxu0 0.0
        %1933 = vmatprep.subr.mxu0 0.0
        %1934 = vmatpush1.msra.mxu0 0.0
        %1935 = vmatprep.subr.mxu0 0.0
        %1936 = vmatpush1.msra.mxu0 0.0
        %1937 = vmatprep.subr.mxu0 0.0
        %1938 = vmatpush1.msra.mxu0 0.0
        %1939 = vmatprep.subr.mxu0 0.0
        %1940 = vmatpush1.msra.mxu0 0.0
        %1941 = vmatprep.subr.mxu0 0.0
        %1942 = vmatpush1.msra.mxu0 0.0
        %1943 = vmatprep.subr.mxu0 0.0
        %1944 = vmatpush1.msra.mxu0 0.0
        %1945 = vmatprep.subr.mxu0 0.0
        %1946 = vmatpush1.msra.mxu0 0.0
        %1947 = vmatprep.subr.mxu0 0.0
        %1948 = vmatpush1.msra.mxu0 0.0
        %1949 = vmatprep.subr.mxu0 0.0
        %1950 = vmatpush1.msra.mxu0 0.0
        %1951 = vmatprep.subr.mxu0 0.0
        %1952 = vmatpush1.msra.mxu0 0.0
        %1953 = vmatprep.subr.mxu0 0.0
        %1954 = vmatpush1.msra.mxu0 0.0
        %1955 = vmatprep.subr.mxu0 0.0
        %1956 = vmatpush1.msra.mxu0 0.0
        %1957 = vmatprep.subr.mxu0 0.0
        %1958 = vmatpush1.msra.mxu0 0.0
        %1959 = vmatprep.subr.mxu0 0.0
        %1960 = vmatpush1.msra.mxu0 0.0
        %1961 = vmatprep.subr.mxu0 0.0
        %1962 = vmatpush1.msra.mxu0 0.0
        %1963 = vmatprep.subr.mxu0 0.0
        %1964 = vmatpush1.msra.mxu0 0.0
        %1965 = vmatprep.subr.mxu0 0.0
        %1966 = vmatpush1.msra.mxu0 0.0
        %1967 = vmatprep.subr.mxu0 0.0
        %1968 = vmatpush1.msra.mxu0 0.0
        %1969 = vmatprep.subr.mxu0 0.0
        %1970 = vmatpush1.msra.mxu0 0.0
        %1971 = vmatprep.subr.mxu0 0.0
        %1972 = vmatpush1.msra.mxu0 0.0
        %1973 = vmatprep.mubr.f32.mxu0 0.0
        %1974 = vmatmul.mubr.f32.gmra.mrb[0].mxu0 %v1907
        %v1975 = vpop.f32.mrb[0].mxu0
        %v1976 = vadd.f32 %v1829, %v1975
        %v1977 = vpop.f32.mrb[0].mxu0
        %v1978 = vadd.f32 %v1833, %v1977
        %1979 = vdwg.mxu0
        %1980 = vmatprep.subr.mxu0 %v1761
        %1981 = vmatpush1.msra.mxu0 %v1760
        %1982 = vmatprep.subr.mxu0 %v1777
        %1983 = vmatpush1.msra.mxu0 %v1776
        %1984 = vmatprep.subr.mxu0 %v1793
        %1985 = vmatpush1.msra.mxu0 %v1792
        %1986 = vmatprep.subr.mxu0 %v1809
        %1987 = vmatpush1.msra.mxu0 %v1808
        %1988 = vmatprep.subr.mxu0 0.0
        %1989 = vmatpush1.msra.mxu0 0.0
        %1990 = vmatprep.subr.mxu0 0.0
        %1991 = vmatpush1.msra.mxu0 0.0
        %1992 = vmatprep.subr.mxu0 0.0
        %1993 = vmatpush1.msra.mxu0 0.0
        %1994 = vmatprep.subr.mxu0 0.0
        %1995 = vmatpush1.msra.mxu0 0.0
        %1996 = vmatprep.subr.mxu0 0.0
        %1997 = vmatpush1.msra.mxu0 0.0
        %1998 = vmatprep.subr.mxu0 0.0
        %1999 = vmatpush1.msra.mxu0 0.0
        %2000 = vmatprep.subr.mxu0 0.0
        %2001 = vmatpush1.msra.mxu0 0.0
        %2002 = vmatprep.subr.mxu0 0.0
        %2003 = vmatpush1.msra.mxu0 0.0
        %2004 = vmatprep.subr.mxu0 0.0
        %2005 = vmatpush1.msra.mxu0 0.0
        %2006 = vmatprep.subr.mxu0 0.0
        %2007 = vmatpush1.msra.mxu0 0.0
        %2008 = vmatprep.subr.mxu0 0.0
        %2009 = vmatpush1.msra.mxu0 0.0
        %2010 = vmatprep.subr.mxu0 0.0
        %2011 = vmatpush1.msra.mxu0 0.0
        %2012 = vmatprep.subr.mxu0 0.0
        %2013 = vmatpush1.msra.mxu0 0.0
        %2014 = vmatprep.subr.mxu0 0.0
        %2015 = vmatpush1.msra.mxu0 0.0
        %2016 = vmatprep.subr.mxu0 0.0
        %2017 = vmatpush1.msra.mxu0 0.0
        %2018 = vmatprep.subr.mxu0 0.0
        %2019 = vmatpush1.msra.mxu0 0.0
        %2020 = vmatprep.subr.mxu0 0.0
        %2021 = vmatpush1.msra.mxu0 0.0
        %2022 = vmatprep.subr.mxu0 0.0
        %2023 = vmatpush1.msra.mxu0 0.0
        %2024 = vmatprep.subr.mxu0 0.0
        %2025 = vmatpush1.msra.mxu0 0.0
        %2026 = vmatprep.subr.mxu0 0.0
        %2027 = vmatpush1.msra.mxu0 0.0
        %2028 = vmatprep.subr.mxu0 0.0
        %2029 = vmatpush1.msra.mxu0 0.0
        %2030 = vmatprep.subr.mxu0 0.0
        %2031 = vmatpush1.msra.mxu0 0.0
        %2032 = vmatprep.subr.mxu0 0.0
        %2033 = vmatpush1.msra.mxu0 0.0
        %2034 = vmatprep.subr.mxu0 0.0
        %2035 = vmatpush1.msra.mxu0 0.0
        %2036 = vmatprep.subr.mxu0 0.0
        %2037 = vmatpush1.msra.mxu0 0.0
        %2038 = vmatprep.subr.mxu0 0.0
        %2039 = vmatpush1.msra.mxu0 0.0
        %2040 = vmatprep.subr.mxu0 0.0
        %2041 = vmatpush1.msra.mxu0 0.0
        %2042 = vmatprep.subr.mxu0 0.0
        %2043 = vmatpush1.msra.mxu0 0.0
        %2044 = vmatprep.mubr.f32.mxu0 0.0
        %2045 = vmatmul.mubr.f32.gmra.mrb[0].mxu0 %v1907
        %v2046 = vpop.f32.mrb[0].mxu0
        %v2047 = vadd.f32 %v1837, %v2046
        %v2048 = vpop.f32.mrb[0].mxu0
        %v2049 = vadd.f32 %v1841, %v2048
        %2050 = vdwg.mxu0
        %2051 = vmatprep.subr.mxu0 %v1763
        %2052 = vmatpush1.msra.mxu0 %v1762
        %2053 = vmatprep.subr.mxu0 %v1779
        %2054 = vmatpush1.msra.mxu0 %v1778
        %2055 = vmatprep.subr.mxu0 %v1795
        %2056 = vmatpush1.msra.mxu0 %v1794
        %2057 = vmatprep.subr.mxu0 %v1811
        %2058 = vmatpush1.msra.mxu0 %v1810
        %2059 = vmatprep.subr.mxu0 0.0
        %2060 = vmatpush1.msra.mxu0 0.0
        %2061 = vmatprep.subr.mxu0 0.0
        %2062 = vmatpush1.msra.mxu0 0.0
        %2063 = vmatprep.subr.mxu0 0.0
        %2064 = vmatpush1.msra.mxu0 0.0
        %2065 = vmatprep.subr.mxu0 0.0
        %2066 = vmatpush1.msra.mxu0 0.0
        %2067 = vmatprep.subr.mxu0 0.0
        %2068 = vmatpush1.msra.mxu0 0.0
        %2069 = vmatprep.subr.mxu0 0.0
        %2070 = vmatpush1.msra.mxu0 0.0
        %2071 = vmatprep.subr.mxu0 0.0
        %2072 = vmatpush1.msra.mxu0 0.0
        %2073 = vmatprep.subr.mxu0 0.0
        %2074 = vmatpush1.msra.mxu0 0.0
        %2075 = vmatprep.subr.mxu0 0.0
        %2076 = vmatpush1.msra.mxu0 0.0
        %2077 = vmatprep.subr.mxu0 0.0
        %2078 = vmatpush1.msra.mxu0 0.0
        %2079 = vmatprep.subr.mxu0 0.0
        %2080 = vmatpush1.msra.mxu0 0.0
        %2081 = vmatprep.subr.mxu0 0.0
        %2082 = vmatpush1.msra.mxu0 0.0
        %2083 = vmatprep.subr.mxu0 0.0
        %2084 = vmatpush1.msra.mxu0 0.0
        %2085 = vmatprep.subr.mxu0 0.0
        %2086 = vmatpush1.msra.mxu0 0.0
        %2087 = vmatprep.subr.mxu0 0.0
        %2088 = vmatpush1.msra.mxu0 0.0
        %2089 = vmatprep.subr.mxu0 0.0
        %2090 = vmatpush1.msra.mxu0 0.0
        %2091 = vmatprep.subr.mxu0 0.0
        %2092 = vmatpush1.msra.mxu0 0.0
        %2093 = vmatprep.subr.mxu0 0.0
        %2094 = vmatpush1.msra.mxu0 0.0
        %2095 = vmatprep.subr.mxu0 0.0
        %2096 = vmatpush1.msra.mxu0 0.0
        %2097 = vmatprep.subr.mxu0 0.0
        %2098 = vmatpush1.msra.mxu0 0.0
        %2099 = vmatprep.subr.mxu0 0.0
        %2100 = vmatpush1.msra.mxu0 0.0
        %2101 = vmatprep.subr.mxu0 0.0
        %2102 = vmatpush1.msra.mxu0 0.0
        %2103 = vmatprep.subr.mxu0 0.0
        %2104 = vmatpush1.msra.mxu0 0.0
        %2105 = vmatprep.subr.mxu0 0.0
        %2106 = vmatpush1.msra.mxu0 0.0
        %2107 = vmatprep.subr.mxu0 0.0
        %2108 = vmatpush1.msra.mxu0 0.0
        %2109 = vmatprep.subr.mxu0 0.0
        %2110 = vmatpush1.msra.mxu0 0.0
        %2111 = vmatprep.subr.mxu0 0.0
        %2112 = vmatpush1.msra.mxu0 0.0
        %2113 = vmatprep.subr.mxu0 0.0
        %2114 = vmatpush1.msra.mxu0 0.0
        %2115 = vmatprep.mubr.f32.mxu0 0.0
        %2116 = vmatmul.mubr.f32.gmra.mrb[0].mxu0 %v1907
        %v2117 = vpop.f32.mrb[0].mxu0
        %v2118 = vadd.f32 %v1845, %v2117
        %v2119 = vpop.f32.mrb[0].mxu0
        %v2120 = vadd.f32 %v1849, %v2119
        %2121 = vdwg.mxu0
        %2122 = vmatprep.subr.mxu0 %v1765
        %2123 = vmatpush1.msra.mxu0 %v1764
        %2124 = vmatprep.subr.mxu0 %v1781
        %2125 = vmatpush1.msra.mxu0 %v1780
        %2126 = vmatprep.subr.mxu0 %v1797
        %2127 = vmatpush1.msra.mxu0 %v1796
        %2128 = vmatprep.subr.mxu0 %v1813
        %2129 = vmatpush1.msra.mxu0 %v1812
        %2130 = vmatprep.subr.mxu0 0.0
        %2131 = vmatpush1.msra.mxu0 0.0
        %2132 = vmatprep.subr.mxu0 0.0
        %2133 = vmatpush1.msra.mxu0 0.0
        %2134 = vmatprep.subr.mxu0 0.0
        %2135 = vmatpush1.msra.mxu0 0.0
        %2136 = vmatprep.subr.mxu0 0.0
        %2137 = vmatpush1.msra.mxu0 0.0
        %2138 = vmatprep.subr.mxu0 0.0
        %2139 = vmatpush1.msra.mxu0 0.0
        %2140 = vmatprep.subr.mxu0 0.0
        %2141 = vmatpush1.msra.mxu0 0.0
        %2142 = vmatprep.subr.mxu0 0.0
        %2143 = vmatpush1.msra.mxu0 0.0
        %2144 = vmatprep.subr.mxu0 0.0
        %2145 = vmatpush1.msra.mxu0 0.0
        %2146 = vmatprep.subr.mxu0 0.0
        %2147 = vmatpush1.msra.mxu0 0.0
        %2148 = vmatprep.subr.mxu0 0.0
        %2149 = vmatpush1.msra.mxu0 0.0
        %2150 = vmatprep.subr.mxu0 0.0
        %2151 = vmatpush1.msra.mxu0 0.0
        %2152 = vmatprep.subr.mxu0 0.0
        %2153 = vmatpush1.msra.mxu0 0.0
        %2154 = vmatprep.subr.mxu0 0.0
        %2155 = vmatpush1.msra.mxu0 0.0
        %2156 = vmatprep.subr.mxu0 0.0
        %2157 = vmatpush1.msra.mxu0 0.0
        %2158 = vmatprep.subr.mxu0 0.0
        %2159 = vmatpush1.msra.mxu0 0.0
        %2160 = vmatprep.subr.mxu0 0.0
        %2161 = vmatpush1.msra.mxu0 0.0
        %2162 = vmatprep.subr.mxu0 0.0
        %2163 = vmatpush1.msra.mxu0 0.0
        %2164 = vmatprep.subr.mxu0 0.0
        %2165 = vmatpush1.msra.mxu0 0.0
        %2166 = vmatprep.subr.mxu0 0.0
        %2167 = vmatpush1.msra.mxu0 0.0
        %2168 = vmatprep.subr.mxu0 0.0
        %2169 = vmatpush1.msra.mxu0 0.0
        %2170 = vmatprep.subr.mxu0 0.0
        %2171 = vmatpush1.msra.mxu0 0.0
        %2172 = vmatprep.subr.mxu0 0.0
        %2173 = vmatpush1.msra.mxu0 0.0
        %2174 = vmatprep.subr.mxu0 0.0
        %2175 = vmatpush1.msra.mxu0 0.0
        %2176 = vmatprep.subr.mxu0 0.0
        %2177 = vmatpush1.msra.mxu0 0.0
        %2178 = vmatprep.subr.mxu0 0.0
        %2179 = vmatpush1.msra.mxu0 0.0
        %2180 = vmatprep.subr.mxu0 0.0
        %2181 = vmatpush1.msra.mxu0 0.0
        %2182 = vmatprep.subr.mxu0 0.0
        %2183 = vmatpush1.msra.mxu0 0.0
        %2184 = vmatprep.subr.mxu0 0.0
        %2185 = vmatpush1.msra.mxu0 0.0
        %2186 = vmatprep.mubr.f32.mxu0 0.0
        %2187 = vmatmul.mubr.f32.gmra.mrb[0].mxu0 %v1907
        %v2188 = vpop.f32.mrb[0].mxu0
        %v2189 = vadd.f32 %v1853, %v2188
        %v2190 = vpop.f32.mrb[0].mxu0
        %v2191 = vadd.f32 %v1857, %v2190
        %2192 = vdwg.mxu0
        %2193 = vmatprep.subr.mxu0 %v1767
        %2194 = vmatpush1.msra.mxu0 %v1766
        %2195 = vmatprep.subr.mxu0 %v1783
        %2196 = vmatpush1.msra.mxu0 %v1782
        %2197 = vmatprep.subr.mxu0 %v1799
        %2198 = vmatpush1.msra.mxu0 %v1798
        %2199 = vmatprep.subr.mxu0 %v1815
        %2200 = vmatpush1.msra.mxu0 %v1814
        %2201 = vmatprep.subr.mxu0 0.0
        %2202 = vmatpush1.msra.mxu0 0.0
        %2203 = vmatprep.subr.mxu0 0.0
        %2204 = vmatpush1.msra.mxu0 0.0
        %2205 = vmatprep.subr.mxu0 0.0
        %2206 = vmatpush1.msra.mxu0 0.0
        %2207 = vmatprep.subr.mxu0 0.0
        %2208 = vmatpush1.msra.mxu0 0.0
        %2209 = vmatprep.subr.mxu0 0.0
        %2210 = vmatpush1.msra.mxu0 0.0
        %2211 = vmatprep.subr.mxu0 0.0
        %2212 = vmatpush1.msra.mxu0 0.0
        %2213 = vmatprep.subr.mxu0 0.0
        %2214 = vmatpush1.msra.mxu0 0.0
        %2215 = vmatprep.subr.mxu0 0.0
        %2216 = vmatpush1.msra.mxu0 0.0
        %2217 = vmatprep.subr.mxu0 0.0
        %2218 = vmatpush1.msra.mxu0 0.0
        %2219 = vmatprep.subr.mxu0 0.0
        %2220 = vmatpush1.msra.mxu0 0.0
        %2221 = vmatprep.subr.mxu0 0.0
        %2222 = vmatpush1.msra.mxu0 0.0
        %2223 = vmatprep.subr.mxu0 0.0
        %2224 = vmatpush1.msra.mxu0 0.0
        %2225 = vmatprep.subr.mxu0 0.0
        %2226 = vmatpush1.msra.mxu0 0.0
        %2227 = vmatprep.subr.mxu0 0.0
        %2228 = vmatpush1.msra.mxu0 0.0
        %2229 = vmatprep.subr.mxu0 0.0
        %2230 = vmatpush1.msra.mxu0 0.0
        %2231 = vmatprep.subr.mxu0 0.0
        %2232 = vmatpush1.msra.mxu0 0.0
        %2233 = vmatprep.subr.mxu0 0.0
        %2234 = vmatpush1.msra.mxu0 0.0
        %2235 = vmatprep.subr.mxu0 0.0
        %2236 = vmatpush1.msra.mxu0 0.0
        %2237 = vmatprep.subr.mxu0 0.0
        %2238 = vmatpush1.msra.mxu0 0.0
        %2239 = vmatprep.subr.mxu0 0.0
        %2240 = vmatpush1.msra.mxu0 0.0
        %2241 = vmatprep.subr.mxu0 0.0
        %2242 = vmatpush1.msra.mxu0 0.0
        %2243 = vmatprep.subr.mxu0 0.0
        %2244 = vmatpush1.msra.mxu0 0.0
        %2245 = vmatprep.subr.mxu0 0.0
        %2246 = vmatpush1.msra.mxu0 0.0
        %2247 = vmatprep.subr.mxu0 0.0
        %2248 = vmatpush1.msra.mxu0 0.0
        %2249 = vmatprep.subr.mxu0 0.0
        %2250 = vmatpush1.msra.mxu0 0.0
        %2251 = vmatprep.subr.mxu0 0.0
        %2252 = vmatpush1.msra.mxu0 0.0
        %2253 = vmatprep.subr.mxu0 0.0
        %2254 = vmatpush1.msra.mxu0 0.0
        %2255 = vmatprep.subr.mxu0 0.0
        %2256 = vmatpush1.msra.mxu0 0.0
        %2257 = vmatprep.mubr.f32.mxu0 0.0
        %2258 = vmatmul.mubr.f32.gmra.mrb[0].mxu0 %v1907
        %v2259 = vpop.f32.mrb[0].mxu0
        %v2260 = vadd.f32 %v1861, %v2259
        %v2261 = vpop.f32.mrb[0].mxu0
        %v2262 = vadd.f32 %v1865, %v2261
        %2263 = vdwg.mxu0
        %2264 = vmatprep.subr.mxu0 %v1769
        %2265 = vmatpush1.msra.mxu0 %v1768
        %2266 = vmatprep.subr.mxu0 %v1785
        %2267 = vmatpush1.msra.mxu0 %v1784
        %2268 = vmatprep.subr.mxu0 %v1801
        %2269 = vmatpush1.msra.mxu0 %v1800
        %2270 = vmatprep.subr.mxu0 %v1817
        %2271 = vmatpush1.msra.mxu0 %v1816
        %2272 = vmatprep.subr.mxu0 0.0
        %2273 = vmatpush1.msra.mxu0 0.0
        %2274 = vmatprep.subr.mxu0 0.0
        %2275 = vmatpush1.msra.mxu0 0.0
        %2276 = vmatprep.subr.mxu0 0.0
        %2277 = vmatpush1.msra.mxu0 0.0
        %2278 = vmatprep.subr.mxu0 0.0
        %2279 = vmatpush1.msra.mxu0 0.0
        %2280 = vmatprep.subr.mxu0 0.0
        %2281 = vmatpush1.msra.mxu0 0.0
        %2282 = vmatprep.subr.mxu0 0.0
        %2283 = vmatpush1.msra.mxu0 0.0
        %2284 = vmatprep.subr.mxu0 0.0
        %2285 = vmatpush1.msra.mxu0 0.0
        %2286 = vmatprep.subr.mxu0 0.0
        %2287 = vmatpush1.msra.mxu0 0.0
        %2288 = vmatprep.subr.mxu0 0.0
        %2289 = vmatpush1.msra.mxu0 0.0
        %2290 = vmatprep.subr.mxu0 0.0
        %2291 = vmatpush1.msra.mxu0 0.0
        %2292 = vmatprep.subr.mxu0 0.0
        %2293 = vmatpush1.msra.mxu0 0.0
        %2294 = vmatprep.subr.mxu0 0.0
        %2295 = vmatpush1.msra.mxu0 0.0
        %2296 = vmatprep.subr.mxu0 0.0
        %2297 = vmatpush1.msra.mxu0 0.0
        %2298 = vmatprep.subr.mxu0 0.0
        %2299 = vmatpush1.msra.mxu0 0.0
        %2300 = vmatprep.subr.mxu0 0.0
        %2301 = vmatpush1.msra.mxu0 0.0
        %2302 = vmatprep.subr.mxu0 0.0
        %2303 = vmatpush1.msra.mxu0 0.0
        %2304 = vmatprep.subr.mxu0 0.0
        %2305 = vmatpush1.msra.mxu0 0.0
        %2306 = vmatprep.subr.mxu0 0.0
        %2307 = vmatpush1.msra.mxu0 0.0
        %2308 = vmatprep.subr.mxu0 0.0
        %2309 = vmatpush1.msra.mxu0 0.0
        %2310 = vmatprep.subr.mxu0 0.0
        %2311 = vmatpush1.msra.mxu0 0.0
        %2312 = vmatprep.subr.mxu0 0.0
        %2313 = vmatpush1.msra.mxu0 0.0
        %2314 = vmatprep.subr.mxu0 0.0
        %2315 = vmatpush1.msra.mxu0 0.0
        %2316 = vmatprep.subr.mxu0 0.0
        %2317 = vmatpush1.msra.mxu0 0.0
        %2318 = vmatprep.subr.mxu0 0.0
        %2319 = vmatpush1.msra.mxu0 0.0
        %2320 = vmatprep.subr.mxu0 0.0
        %2321 = vmatpush1.msra.mxu0 0.0
        %2322 = vmatprep.subr.mxu0 0.0
        %2323 = vmatpush1.msra.mxu0 0.0
        %2324 = vmatprep.subr.mxu0 0.0
        %2325 = vmatpush1.msra.mxu0 0.0
        %2326 = vmatprep.subr.mxu0 0.0
        %2327 = vmatpush1.msra.mxu0 0.0
        %2328 = vmatprep.mubr.f32.mxu0 0.0
        %2329 = vmatmul.mubr.f32.gmra.mrb[0].mxu0 %v1907
        %v2330 = vpop.f32.mrb[0].mxu0
        %v2331 = vadd.f32 %v1869, %v2330
        %v2332 = vpop.f32.mrb[0].mxu0
        %v2333 = vadd.f32 %v1873, %v2332
        %2334 = vdwg.mxu0
        %2335 = vmatprep.subr.mxu0 %v1771
        %2336 = vmatpush1.msra.mxu0 %v1770
        %2337 = vmatprep.subr.mxu0 %v1787
        %2338 = vmatpush1.msra.mxu0 %v1786
        %2339 = vmatprep.subr.mxu0 %v1803
        %2340 = vmatpush1.msra.mxu0 %v1802
        %2341 = vmatprep.subr.mxu0 %v1819
        %2342 = vmatpush1.msra.mxu0 %v1818
        %2343 = vmatprep.subr.mxu0 0.0
        %2344 = vmatpush1.msra.mxu0 0.0
        %2345 = vmatprep.subr.mxu0 0.0
        %2346 = vmatpush1.msra.mxu0 0.0
        %2347 = vmatprep.subr.mxu0 0.0
        %2348 = vmatpush1.msra.mxu0 0.0
        %2349 = vmatprep.subr.mxu0 0.0
        %2350 = vmatpush1.msra.mxu0 0.0
        %2351 = vmatprep.subr.mxu0 0.0
        %2352 = vmatpush1.msra.mxu0 0.0
        %2353 = vmatprep.subr.mxu0 0.0
        %2354 = vmatpush1.msra.mxu0 0.0
        %2355 = vmatprep.subr.mxu0 0.0
        %2356 = vmatpush1.msra.mxu0 0.0
        %2357 = vmatprep.subr.mxu0 0.0
        %2358 = vmatpush1.msra.mxu0 0.0
        %2359 = vmatprep.subr.mxu0 0.0
        %2360 = vmatpush1.msra.mxu0 0.0
        %2361 = vmatprep.subr.mxu0 0.0
        %2362 = vmatpush1.msra.mxu0 0.0
        %2363 = vmatprep.subr.mxu0 0.0
        %2364 = vmatpush1.msra.mxu0 0.0
        %2365 = vmatprep.subr.mxu0 0.0
        %2366 = vmatpush1.msra.mxu0 0.0
        %2367 = vmatprep.subr.mxu0 0.0
        %2368 = vmatpush1.msra.mxu0 0.0
        %2369 = vmatprep.subr.mxu0 0.0
        %2370 = vmatpush1.msra.mxu0 0.0
        %2371 = vmatprep.subr.mxu0 0.0
        %2372 = vmatpush1.msra.mxu0 0.0
        %2373 = vmatprep.subr.mxu0 0.0
        %2374 = vmatpush1.msra.mxu0 0.0
        %2375 = vmatprep.subr.mxu0 0.0
        %2376 = vmatpush1.msra.mxu0 0.0
        %2377 = vmatprep.subr.mxu0 0.0
        %2378 = vmatpush1.msra.mxu0 0.0
        %2379 = vmatprep.subr.mxu0 0.0
        %2380 = vmatpush1.msra.mxu0 0.0
        %2381 = vmatprep.subr.mxu0 0.0
        %2382 = vmatpush1.msra.mxu0 0.0
        %2383 = vmatprep.subr.mxu0 0.0
        %2384 = vmatpush1.msra.mxu0 0.0
        %2385 = vmatprep.subr.mxu0 0.0
        %2386 = vmatpush1.msra.mxu0 0.0
        %2387 = vmatprep.subr.mxu0 0.0
        %2388 = vmatpush1.msra.mxu0 0.0
        %2389 = vmatprep.subr.mxu0 0.0
        %2390 = vmatpush1.msra.mxu0 0.0
        %2391 = vmatprep.subr.mxu0 0.0
        %2392 = vmatpush1.msra.mxu0 0.0
        %2393 = vmatprep.subr.mxu0 0.0
        %2394 = vmatpush1.msra.mxu0 0.0
        %2395 = vmatprep.subr.mxu0 0.0
        %2396 = vmatpush1.msra.mxu0 0.0
        %2397 = vmatprep.subr.mxu0 0.0
        %2398 = vmatpush1.msra.mxu0 0.0
        %2399 = vmatprep.mubr.f32.mxu0 0.0
        %2400 = vmatmul.mubr.f32.gmra.mrb[0].mxu0 %v1907
        %v2401 = vpop.f32.mrb[0].mxu0
        %v2402 = vadd.f32 %v1877, %v2401
        %v2403 = vpop.f32.mrb[0].mxu0
        %v2404 = vadd.f32 %v1881, %v2403
        %2405 = vdwg.mxu0
        %2406 = vmatprep.subr.mxu0 %v1773
        %2407 = vmatpush1.msra.mxu0 %v1772
        %2408 = vmatprep.subr.mxu0 %v1789
        %2409 = vmatpush1.msra.mxu0 %v1788
        %2410 = vmatprep.subr.mxu0 %v1805
        %2411 = vmatpush1.msra.mxu0 %v1804
        %2412 = vmatprep.subr.mxu0 %v1821
        %2413 = vmatpush1.msra.mxu0 %v1820
        %2414 = vmatprep.subr.mxu0 0.0
        %2415 = vmatpush1.msra.mxu0 0.0
        %2416 = vmatprep.subr.mxu0 0.0
        %2417 = vmatpush1.msra.mxu0 0.0
        %2418 = vmatprep.subr.mxu0 0.0
        %2419 = vmatpush1.msra.mxu0 0.0
        %2420 = vmatprep.subr.mxu0 0.0
        %2421 = vmatpush1.msra.mxu0 0.0
        %2422 = vmatprep.subr.mxu0 0.0
        %2423 = vmatpush1.msra.mxu0 0.0
        %2424 = vmatprep.subr.mxu0 0.0
        %2425 = vmatpush1.msra.mxu0 0.0
        %2426 = vmatprep.subr.mxu0 0.0
        %2427 = vmatpush1.msra.mxu0 0.0
        %2428 = vmatprep.subr.mxu0 0.0
        %2429 = vmatpush1.msra.mxu0 0.0
        %2430 = vmatprep.subr.mxu0 0.0
        %2431 = vmatpush1.msra.mxu0 0.0
        %2432 = vmatprep.subr.mxu0 0.0
        %2433 = vmatpush1.msra.mxu0 0.0
        %2434 = vmatprep.subr.mxu0 0.0
        %2435 = vmatpush1.msra.mxu0 0.0
        %2436 = vmatprep.subr.mxu0 0.0
        %2437 = vmatpush1.msra.mxu0 0.0
        %2438 = vmatprep.subr.mxu0 0.0
        %2439 = vmatpush1.msra.mxu0 0.0
        %2440 = vmatprep.subr.mxu0 0.0
        %2441 = vmatpush1.msra.mxu0 0.0
        %2442 = vmatprep.subr.mxu0 0.0
        %2443 = vmatpush1.msra.mxu0 0.0
        %2444 = vmatprep.subr.mxu0 0.0
        %2445 = vmatpush1.msra.mxu0 0.0
        %2446 = vmatprep.subr.mxu0 0.0
        %2447 = vmatpush1.msra.mxu0 0.0
        %2448 = vmatprep.subr.mxu0 0.0
        %2449 = vmatpush1.msra.mxu0 0.0
        %2450 = vmatprep.subr.mxu0 0.0
        %2451 = vmatpush1.msra.mxu0 0.0
        %2452 = vmatprep.subr.mxu0 0.0
        %2453 = vmatpush1.msra.mxu0 0.0
        %2454 = vmatprep.subr.mxu0 0.0
        %2455 = vmatpush1.msra.mxu0 0.0
        %2456 = vmatprep.subr.mxu0 0.0
        %2457 = vmatpush1.msra.mxu0 0.0
        %2458 = vmatprep.subr.mxu0 0.0
        %2459 = vmatpush1.msra.mxu0 0.0
        %2460 = vmatprep.subr.mxu0 0.0
        %2461 = vmatpush1.msra.mxu0 0.0
        %2462 = vmatprep.subr.mxu0 0.0
        %2463 = vmatpush1.msra.mxu0 0.0
        %2464 = vmatprep.subr.mxu0 0.0
        %2465 = vmatpush1.msra.mxu0 0.0
        %2466 = vmatprep.subr.mxu0 0.0
        %2467 = vmatpush1.msra.mxu0 0.0
        %2468 = vmatprep.subr.mxu0 0.0
        %2469 = vmatpush1.msra.mxu0 0.0
        %2470 = vmatprep.mubr.f32.mxu0 0.0
        %2471 = vmatmul.mubr.f32.gmra.mrb[0].mxu0 %v1907
        %v2472 = vpop.f32.mrb[0].mxu0
        %v2473 = vadd.f32 %v1885, %v2472
        %v2474 = vpop.f32.mrb[0].mxu0
        %v2475 = vadd.f32 %v1889, %v2474
        %2476 = vdwg.mxu0
        %v2477 = vmax.f32 %v1976, 0.0
        %v2478 = vmax.f32 %v1978, 0.0
        %v2479 = vmax.f32 %v2047, 0.0
        %v2480 = vmax.f32 %v2049, 0.0
        %v2481 = vmax.f32 %v2118, 0.0
        %v2482 = vmax.f32 %v2120, 0.0
        %v2483 = vmax.f32 %v2189, 0.0
        %v2484 = vmax.f32 %v2191, 0.0
        %v2485 = vmax.f32 %v2260, 0.0
        %v2486 = vmax.f32 %v2262, 0.0
        %v2487 = vmax.f32 %v2331, 0.0
        %v2488 = vmax.f32 %v2333, 0.0
        %v2489 = vmax.f32 %v2402, 0.0
        %v2490 = vmax.f32 %v2404, 0.0
        %v2491 = vmax.f32 %v2473, 0.0
        %v2492 = vmax.f32 %v2475, 0.0
        %v2493 = vld [vmem:[%s14] sm:$0xff]
        %v2494 = vld [vmem:[%s14 + $0x8] sm:$0xff]
        %v2495 = vld [vmem:[%s14 + $0x10] sm:$0xff]
        %v2496 = vld [vmem:[%s14 + $0x18] sm:$0xff]
        %v2497 = vld [vmem:[%s14 + $0x20] sm:$0xff]
        %v2498 = vld [vmem:[%s14 + $0x28] sm:$0xff]
        %v2499 = vld [vmem:[%s14 + $0x30] sm:$0xff]
        %v2500 = vld [vmem:[%s14 + $0x38] sm:$0xff]
        %v2501 = vld [vmem:[%s14 + $0x40] sm:$0xff]
        %v2502 = vld [vmem:[%s14 + $0x48] sm:$0xff]
        %v2503 = vld [vmem:[%s14 + $0x50] sm:$0xff]
        %v2504 = vld [vmem:[%s14 + $0x58] sm:$0xff]
        %v2505 = vld [vmem:[%s14 + $0x60] sm:$0xff]
        %v2506 = vld [vmem:[%s14 + $0x68] sm:$0xff]
        %v2507 = vld [vmem:[%s14 + $0x70] sm:$0xff]
        %v2508 = vld [vmem:[%s14 + $0x78] sm:$0xff]
        %v2509 = vld [vmem:[%s14 + $0x80] sm:$0xff]
        %v2510 = vld [vmem:[%s14 + $0x88] sm:$0xff]
        %v2511 = vld [vmem:[%s14 + $0x90] sm:$0xff]
        %v2512 = vld [vmem:[%s14 + $0x98] sm:$0xff]
        %v2513 = vld [vmem:[%s14 + $0xa0] sm:$0xff]
        %v2514 = vld [vmem:[%s14 + $0xa8] sm:$0xff]
        %v2515 = vld [vmem:[%s14 + $0xb0] sm:$0xff]
        %v2516 = vld [vmem:[%s14 + $0xb8] sm:$0xff]
        %v2517 = vld [vmem:[%s14 + $0xc0] sm:$0xff]
        %v2518 = vld [vmem:[%s14 + $0xc8] sm:$0xff]
        %v2519 = vld [vmem:[%s14 + $0xd0] sm:$0xff]
        %v2520 = vld [vmem:[%s14 + $0xd8] sm:$0xff]
        %v2521 = vld [vmem:[%s14 + $0xe0] sm:$0xff]
        %v2522 = vld [vmem:[%s14 + $0xe8] sm:$0xff]
        %v2523 = vld [vmem:[%s14 + $0xf0] sm:$0xff]
        %v2524 = vld [vmem:[%s14 + $0xf8] sm:$0xff]
        %v2525 = vld [vmem:[%s14 + $0x100] sm:$0xff]
        %v2526 = vld [vmem:[%s14 + $0x108] sm:$0xff]
        %v2527 = vld [vmem:[%s14 + $0x110] sm:$0xff]
        %v2528 = vld [vmem:[%s14 + $0x118] sm:$0xff]
        %v2529 = vld [vmem:[%s14 + $0x120] sm:$0xff]
        %v2530 = vld [vmem:[%s14 + $0x128] sm:$0xff]
        %v2531 = vld [vmem:[%s14 + $0x130] sm:$0xff]
        %v2532 = vld [vmem:[%s14 + $0x138] sm:$0xff]
        %v2533 = vld [vmem:[%s14 + $0x140] sm:$0xff]
        %v2534 = vld [vmem:[%s14 + $0x148] sm:$0xff]
        %v2535 = vld [vmem:[%s14 + $0x150] sm:$0xff]
        %v2536 = vld [vmem:[%s14 + $0x158] sm:$0xff]
        %v2537 = vld [vmem:[%s14 + $0x160] sm:$0xff]
        %v2538 = vld [vmem:[%s14 + $0x168] sm:$0xff]
        %v2539 = vld [vmem:[%s14 + $0x170] sm:$0xff]
        %v2540 = vld [vmem:[%s14 + $0x178] sm:$0xff]
        %v2541 = vld [vmem:[%s14 + $0x180] sm:$0xff]
        %v2542 = vld [vmem:[%s14 + $0x188] sm:$0xff]
        %v2543 = vld [vmem:[%s14 + $0x190] sm:$0xff]
        %v2544 = vld [vmem:[%s14 + $0x198] sm:$0xff]
        %v2545 = vld [vmem:[%s14 + $0x1a0] sm:$0xff]
        %v2546 = vld [vmem:[%s14 + $0x1a8] sm:$0xff]
        %v2547 = vld [vmem:[%s14 + $0x1b0] sm:$0xff]
        %v2548 = vld [vmem:[%s14 + $0x1b8] sm:$0xff]
        %v2549 = vld [vmem:[%s14 + $0x1c0] sm:$0xff]
        %v2550 = vld [vmem:[%s14 + $0x1c8] sm:$0xff]
        %v2551 = vld [vmem:[%s14 + $0x1d0] sm:$0xff]
        %v2552 = vld [vmem:[%s14 + $0x1d8] sm:$0xff]
        %v2553 = vld [vmem:[%s14 + $0x1e0] sm:$0xff]
        %v2554 = vld [vmem:[%s14 + $0x1e8] sm:$0xff]
        %v2555 = vld [vmem:[%s14 + $0x1f0] sm:$0xff]
        %v2556 = vld [vmem:[%s14 + $0x1f8] sm:$0xff]
        %v2557 = vld [vmem:[%s14 + $0x200] sm:$0xff]
        %v2558 = vld [vmem:[%s14 + $0x208] sm:$0xff]
        %v2559 = vld [vmem:[%s14 + $0x210] sm:$0xff]
        %v2560 = vld [vmem:[%s14 + $0x218] sm:$0xff]
        %v2561 = vld [vmem:[%s14 + $0x220] sm:$0xff]
        %v2562 = vld [vmem:[%s14 + $0x228] sm:$0xff]
        %v2563 = vld [vmem:[%s14 + $0x230] sm:$0xff]
        %v2564 = vld [vmem:[%s14 + $0x238] sm:$0xff]
        %v2565 = vld [vmem:[%s14 + $0x240] sm:$0xff]
        %v2566 = vld [vmem:[%s14 + $0x248] sm:$0xff]
        %v2567 = vld [vmem:[%s14 + $0x250] sm:$0xff]
        %v2568 = vld [vmem:[%s14 + $0x258] sm:$0xff]
        %v2569 = vld [vmem:[%s14 + $0x260] sm:$0xff]
        %v2570 = vld [vmem:[%s14 + $0x268] sm:$0xff]
        %v2571 = vld [vmem:[%s14 + $0x270] sm:$0xff]
        %v2572 = vld [vmem:[%s14 + $0x278] sm:$0xff]
        %v2573 = vld [vmem:[%s14 + $0x280] sm:$0xff]
        %v2574 = vld [vmem:[%s14 + $0x288] sm:$0xff]
        %v2575 = vld [vmem:[%s14 + $0x290] sm:$0xff]
        %v2576 = vld [vmem:[%s14 + $0x298] sm:$0xff]
        %v2577 = vld [vmem:[%s14 + $0x2a0] sm:$0xff]
        %v2578 = vld [vmem:[%s14 + $0x2a8] sm:$0xff]
        %v2579 = vld [vmem:[%s14 + $0x2b0] sm:$0xff]
        %v2580 = vld [vmem:[%s14 + $0x2b8] sm:$0xff]
        %v2581 = vld [vmem:[%s14 + $0x2c0] sm:$0xff]
        %v2582 = vld [vmem:[%s14 + $0x2c8] sm:$0xff]
        %v2583 = vld [vmem:[%s14 + $0x2d0] sm:$0xff]
        %v2584 = vld [vmem:[%s14 + $0x2d8] sm:$0xff]
        %v2585 = vld [vmem:[%s14 + $0x2e0] sm:$0xff]
        %v2586 = vld [vmem:[%s14 + $0x2e8] sm:$0xff]
        %v2587 = vld [vmem:[%s14 + $0x2f0] sm:$0xff]
        %v2588 = vld [vmem:[%s14 + $0x2f8] sm:$0xff]
        %v2589 = vld [vmem:[%s14 + $0x300] sm:$0xff]
        %v2590 = vld [vmem:[%s14 + $0x308] sm:$0xff]
        %v2591 = vld [vmem:[%s14 + $0x310] sm:$0xff]
        %v2592 = vld [vmem:[%s14 + $0x318] sm:$0xff]
        %v2593 = vld [vmem:[%s14 + $0x320] sm:$0xff]
        %v2594 = vld [vmem:[%s14 + $0x328] sm:$0xff]
        %v2595 = vld [vmem:[%s14 + $0x330] sm:$0xff]
        %v2596 = vld [vmem:[%s14 + $0x338] sm:$0xff]
        %v2597 = vld [vmem:[%s14 + $0x340] sm:$0xff]
        %v2598 = vld [vmem:[%s14 + $0x348] sm:$0xff]
        %v2599 = vld [vmem:[%s14 + $0x350] sm:$0xff]
        %v2600 = vld [vmem:[%s14 + $0x358] sm:$0xff]
        %v2601 = vld [vmem:[%s14 + $0x360] sm:$0xff]
        %v2602 = vld [vmem:[%s14 + $0x368] sm:$0xff]
        %v2603 = vld [vmem:[%s14 + $0x370] sm:$0xff]
        %v2604 = vld [vmem:[%s14 + $0x378] sm:$0xff]
        %v2605 = vld [vmem:[%s14 + $0x380] sm:$0xff]
        %v2606 = vld [vmem:[%s14 + $0x388] sm:$0xff]
        %v2607 = vld [vmem:[%s14 + $0x390] sm:$0xff]
        %v2608 = vld [vmem:[%s14 + $0x398] sm:$0xff]
        %v2609 = vld [vmem:[%s14 + $0x3a0] sm:$0xff]
        %v2610 = vld [vmem:[%s14 + $0x3a8] sm:$0xff]
        %v2611 = vld [vmem:[%s14 + $0x3b0] sm:$0xff]
        %v2612 = vld [vmem:[%s14 + $0x3b8] sm:$0xff]
        %v2613 = vld [vmem:[%s14 + $0x3c0] sm:$0xff]
        %v2614 = vld [vmem:[%s14 + $0x3c8] sm:$0xff]
        %v2615 = vld [vmem:[%s14 + $0x3d0] sm:$0xff]
        %v2616 = vld [vmem:[%s14 + $0x3d8] sm:$0xff]
        %v2617 = vld [vmem:[%s14 + $0x3e0] sm:$0xff]
        %v2618 = vld [vmem:[%s14 + $0x3e8] sm:$0xff]
        %v2619 = vld [vmem:[%s14 + $0x3f0] sm:$0xff]
        %v2620 = vld [vmem:[%s14 + $0x3f8] sm:$0xff]
        %v2621 = vld [vmem:[%s14 + $0x400] sm:$0xff]
        %v2622 = vld [vmem:[%s14 + $0x408] sm:$0xff]
        %v2623 = vld [vmem:[%s14 + $0x410] sm:$0xff]
        %v2624 = vld [vmem:[%s14 + $0x418] sm:$0xff]
        %v2625 = vld [vmem:[%s14 + $0x420] sm:$0xff]
        %v2626 = vld [vmem:[%s14 + $0x428] sm:$0xff]
        %v2627 = vld [vmem:[%s14 + $0x430] sm:$0xff]
        %v2628 = vld [vmem:[%s14 + $0x438] sm:$0xff]
        %v2629 = vld [vmem:[%s14 + $0x440] sm:$0xff]
        %v2630 = vld [vmem:[%s14 + $0x448] sm:$0xff]
        %v2631 = vld [vmem:[%s14 + $0x450] sm:$0xff]
        %v2632 = vld [vmem:[%s14 + $0x458] sm:$0xff]
        %v2633 = vld [vmem:[%s14 + $0x460] sm:$0xff]
        %v2634 = vld [vmem:[%s14 + $0x468] sm:$0xff]
        %v2635 = vld [vmem:[%s14 + $0x470] sm:$0xff]
        %v2636 = vld [vmem:[%s14 + $0x478] sm:$0xff]
        %v2637 = vld [vmem:[%s14 + $0x480] sm:$0xff]
        %v2638 = vld [vmem:[%s14 + $0x488] sm:$0xff]
        %v2639 = vld [vmem:[%s14 + $0x490] sm:$0xff]
        %v2640 = vld [vmem:[%s14 + $0x498] sm:$0xff]
        %v2641 = vld [vmem:[%s14 + $0x4a0] sm:$0xff]
        %v2642 = vld [vmem:[%s14 + $0x4a8] sm:$0xff]
        %v2643 = vld [vmem:[%s14 + $0x4b0] sm:$0xff]
        %v2644 = vld [vmem:[%s14 + $0x4b8] sm:$0xff]
        %v2645 = vld [vmem:[%s14 + $0x4c0] sm:$0xff]
        %v2646 = vld [vmem:[%s14 + $0x4c8] sm:$0xff]
        %v2647 = vld [vmem:[%s14 + $0x4d0] sm:$0xff]
        %v2648 = vld [vmem:[%s14 + $0x4d8] sm:$0xff]
        %v2649 = vld [vmem:[%s14 + $0x4e0] sm:$0xff]
        %v2650 = vld [vmem:[%s14 + $0x4e8] sm:$0xff]
        %v2651 = vld [vmem:[%s14 + $0x4f0] sm:$0xff]
        %v2652 = vld [vmem:[%s14 + $0x4f8] sm:$0xff]
        %v2653 = vld [vmem:[%s14 + $0x500] sm:$0xff]
        %v2654 = vld [vmem:[%s14 + $0x508] sm:$0xff]
        %v2655 = vld [vmem:[%s14 + $0x510] sm:$0xff]
        %v2656 = vld [vmem:[%s14 + $0x518] sm:$0xff]
        %v2657 = vld [vmem:[%s14 + $0x520] sm:$0xff]
        %v2658 = vld [vmem:[%s14 + $0x528] sm:$0xff]
        %v2659 = vld [vmem:[%s14 + $0x530] sm:$0xff]
        %v2660 = vld [vmem:[%s14 + $0x538] sm:$0xff]
        %v2661 = vld [vmem:[%s14 + $0x540] sm:$0xff]
        %v2662 = vld [vmem:[%s14 + $0x548] sm:$0xff]
        %v2663 = vld [vmem:[%s14 + $0x550] sm:$0xff]
        %v2664 = vld [vmem:[%s14 + $0x558] sm:$0xff]
        %v2665 = vld [vmem:[%s14 + $0x560] sm:$0xff]
        %v2666 = vld [vmem:[%s14 + $0x568] sm:$0xff]
        %v2667 = vld [vmem:[%s14 + $0x570] sm:$0xff]
        %v2668 = vld [vmem:[%s14 + $0x578] sm:$0xff]
        %v2669 = vld [vmem:[%s14 + $0x580] sm:$0xff]
        %v2670 = vld [vmem:[%s14 + $0x588] sm:$0xff]
        %v2671 = vld [vmem:[%s14 + $0x590] sm:$0xff]
        %v2672 = vld [vmem:[%s14 + $0x598] sm:$0xff]
        %v2673 = vld [vmem:[%s14 + $0x5a0] sm:$0xff]
        %v2674 = vld [vmem:[%s14 + $0x5a8] sm:$0xff]
        %v2675 = vld [vmem:[%s14 + $0x5b0] sm:$0xff]
        %v2676 = vld [vmem:[%s14 + $0x5b8] sm:$0xff]
        %v2677 = vld [vmem:[%s14 + $0x5c0] sm:$0xff]
        %v2678 = vld [vmem:[%s14 + $0x5c8] sm:$0xff]
        %v2679 = vld [vmem:[%s14 + $0x5d0] sm:$0xff]
        %v2680 = vld [vmem:[%s14 + $0x5d8] sm:$0xff]
        %v2681 = vld [vmem:[%s14 + $0x5e0] sm:$0xff]
        %v2682 = vld [vmem:[%s14 + $0x5e8] sm:$0xff]
        %v2683 = vld [vmem:[%s14 + $0x5f0] sm:$0xff]
        %v2684 = vld [vmem:[%s14 + $0x5f8] sm:$0xff]
        %v2685 = vld [vmem:[%s14 + $0x600] sm:$0xff]
        %v2686 = vld [vmem:[%s14 + $0x608] sm:$0xff]
        %v2687 = vld [vmem:[%s14 + $0x610] sm:$0xff]
        %v2688 = vld [vmem:[%s14 + $0x618] sm:$0xff]
        %v2689 = vld [vmem:[%s14 + $0x620] sm:$0xff]
        %v2690 = vld [vmem:[%s14 + $0x628] sm:$0xff]
        %v2691 = vld [vmem:[%s14 + $0x630] sm:$0xff]
        %v2692 = vld [vmem:[%s14 + $0x638] sm:$0xff]
        %v2693 = vld [vmem:[%s14 + $0x640] sm:$0xff]
        %v2694 = vld [vmem:[%s14 + $0x648] sm:$0xff]
        %v2695 = vld [vmem:[%s14 + $0x650] sm:$0xff]
        %v2696 = vld [vmem:[%s14 + $0x658] sm:$0xff]
        %v2697 = vld [vmem:[%s14 + $0x660] sm:$0xff]
        %v2698 = vld [vmem:[%s14 + $0x668] sm:$0xff]
        %v2699 = vld [vmem:[%s14 + $0x670] sm:$0xff]
        %v2700 = vld [vmem:[%s14 + $0x678] sm:$0xff]
        %v2701 = vld [vmem:[%s14 + $0x680] sm:$0xff]
        %v2702 = vld [vmem:[%s14 + $0x688] sm:$0xff]
        %v2703 = vld [vmem:[%s14 + $0x690] sm:$0xff]
        %v2704 = vld [vmem:[%s14 + $0x698] sm:$0xff]
        %v2705 = vld [vmem:[%s14 + $0x6a0] sm:$0xff]
        %v2706 = vld [vmem:[%s14 + $0x6a8] sm:$0xff]
        %v2707 = vld [vmem:[%s14 + $0x6b0] sm:$0xff]
        %v2708 = vld [vmem:[%s14 + $0x6b8] sm:$0xff]
        %v2709 = vld [vmem:[%s14 + $0x6c0] sm:$0xff]
        %v2710 = vld [vmem:[%s14 + $0x6c8] sm:$0xff]
        %v2711 = vld [vmem:[%s14 + $0x6d0] sm:$0xff]
        %v2712 = vld [vmem:[%s14 + $0x6d8] sm:$0xff]
        %v2713 = vld [vmem:[%s14 + $0x6e0] sm:$0xff]
        %v2714 = vld [vmem:[%s14 + $0x6e8] sm:$0xff]
        %v2715 = vld [vmem:[%s14 + $0x6f0] sm:$0xff]
        %v2716 = vld [vmem:[%s14 + $0x6f8] sm:$0xff]
        %v2717 = vld [vmem:[%s14 + $0x700] sm:$0xff]
        %v2718 = vld [vmem:[%s14 + $0x708] sm:$0xff]
        %v2719 = vld [vmem:[%s14 + $0x710] sm:$0xff]
        %v2720 = vld [vmem:[%s14 + $0x718] sm:$0xff]
        %v2721 = vld [vmem:[%s14 + $0x720] sm:$0xff]
        %v2722 = vld [vmem:[%s14 + $0x728] sm:$0xff]
        %v2723 = vld [vmem:[%s14 + $0x730] sm:$0xff]
        %v2724 = vld [vmem:[%s14 + $0x738] sm:$0xff]
        %v2725 = vld [vmem:[%s14 + $0x740] sm:$0xff]
        %v2726 = vld [vmem:[%s14 + $0x748] sm:$0xff]
        %v2727 = vld [vmem:[%s14 + $0x750] sm:$0xff]
        %v2728 = vld [vmem:[%s14 + $0x758] sm:$0xff]
        %v2729 = vld [vmem:[%s14 + $0x760] sm:$0xff]
        %v2730 = vld [vmem:[%s14 + $0x768] sm:$0xff]
        %v2731 = vld [vmem:[%s14 + $0x770] sm:$0xff]
        %v2732 = vld [vmem:[%s14 + $0x778] sm:$0xff]
        %v2733 = vld [vmem:[%s14 + $0x780] sm:$0xff]
        %v2734 = vld [vmem:[%s14 + $0x788] sm:$0xff]
        %v2735 = vld [vmem:[%s14 + $0x790] sm:$0xff]
        %v2736 = vld [vmem:[%s14 + $0x798] sm:$0xff]
        %v2737 = vld [vmem:[%s14 + $0x7a0] sm:$0xff]
        %v2738 = vld [vmem:[%s14 + $0x7a8] sm:$0xff]
        %v2739 = vld [vmem:[%s14 + $0x7b0] sm:$0xff]
        %v2740 = vld [vmem:[%s14 + $0x7b8] sm:$0xff]
        %v2741 = vld [vmem:[%s14 + $0x7c0] sm:$0xff]
        %v2742 = vld [vmem:[%s14 + $0x7c8] sm:$0xff]
        %v2743 = vld [vmem:[%s14 + $0x7d0] sm:$0xff]
        %v2744 = vld [vmem:[%s14 + $0x7d8] sm:$0xff]
        %v2745 = vld [vmem:[%s14 + $0x7e0] sm:$0xff]
        %v2746 = vld [vmem:[%s14 + $0x7e8] sm:$0xff]
        %v2747 = vld [vmem:[%s14 + $0x7f0] sm:$0xff]
        %v2748 = vld [vmem:[%s14 + $0x7f8] sm:$0xff]
        %v2749 = vld [vmem:[%s15] sm:$0x1]
        %v2751 = vlaneseq
        %v2752 = vshrl.u32 %v2751, 7
        %v2753 = vsub.s32 0, %v2752
        %v2754 = vrot.slane %v2749, %v2753
        %2756 = vmatprep.subr.mxu0 0.0
        %2757 = vmatpush1.msra.mxu0 %v2493
        %2758 = vmatprep.subr.mxu0 0.0
        %2759 = vmatpush1.msra.mxu0 %v2494
        %2760 = vmatprep.subr.mxu0 0.0
        %2761 = vmatpush1.msra.mxu0 %v2495
        %2762 = vmatprep.subr.mxu0 0.0
        %2763 = vmatpush1.msra.mxu0 %v2496
        %2764 = vmatprep.subr.mxu0 0.0
        %2765 = vmatpush1.msra.mxu0 %v2497
        %2766 = vmatprep.subr.mxu0 0.0
        %2767 = vmatpush1.msra.mxu0 %v2498
        %2768 = vmatprep.subr.mxu0 0.0
        %2769 = vmatpush1.msra.mxu0 %v2499
        %2770 = vmatprep.subr.mxu0 0.0
        %2771 = vmatpush1.msra.mxu0 %v2500
        %2772 = vmatprep.subr.mxu0 0.0
        %2773 = vmatpush1.msra.mxu0 %v2501
        %2774 = vmatprep.subr.mxu0 0.0
        %2775 = vmatpush1.msra.mxu0 %v2502
        %2776 = vmatprep.subr.mxu0 0.0
        %2777 = vmatpush1.msra.mxu0 %v2503
        %2778 = vmatprep.subr.mxu0 0.0
        %2779 = vmatpush1.msra.mxu0 %v2504
        %2780 = vmatprep.subr.mxu0 0.0
        %2781 = vmatpush1.msra.mxu0 %v2505
        %2782 = vmatprep.subr.mxu0 0.0
        %2783 = vmatpush1.msra.mxu0 %v2506
        %2784 = vmatprep.subr.mxu0 0.0
        %2785 = vmatpush1.msra.mxu0 %v2507
        %2786 = vmatprep.subr.mxu0 0.0
        %2787 = vmatpush1.msra.mxu0 %v2508
        %2788 = vmatprep.subr.mxu0 0.0
        %2789 = vmatpush1.msra.mxu0 %v2509
        %2790 = vmatprep.subr.mxu0 0.0
        %2791 = vmatpush1.msra.mxu0 %v2510
        %2792 = vmatprep.subr.mxu0 0.0
        %2793 = vmatpush1.msra.mxu0 %v2511
        %2794 = vmatprep.subr.mxu0 0.0
        %2795 = vmatpush1.msra.mxu0 %v2512
        %2796 = vmatprep.subr.mxu0 0.0
        %2797 = vmatpush1.msra.mxu0 %v2513
        %2798 = vmatprep.subr.mxu0 0.0
        %2799 = vmatpush1.msra.mxu0 %v2514
        %2800 = vmatprep.subr.mxu0 0.0
        %2801 = vmatpush1.msra.mxu0 %v2515
        %2802 = vmatprep.subr.mxu0 0.0
        %2803 = vmatpush1.msra.mxu0 %v2516
        %2804 = vmatprep.subr.mxu0 0.0
        %2805 = vmatpush1.msra.mxu0 %v2517
        %2806 = vmatprep.subr.mxu0 0.0
        %2807 = vmatpush1.msra.mxu0 %v2518
        %2808 = vmatprep.subr.mxu0 0.0
        %2809 = vmatpush1.msra.mxu0 %v2519
        %2810 = vmatprep.subr.mxu0 0.0
        %2811 = vmatpush1.msra.mxu0 %v2520
        %2812 = vmatprep.subr.mxu0 0.0
        %2813 = vmatpush1.msra.mxu0 %v2521
        %2814 = vmatprep.subr.mxu0 0.0
        %2815 = vmatpush1.msra.mxu0 %v2522
        %2816 = vmatprep.subr.mxu0 0.0
        %2817 = vmatpush1.msra.mxu0 %v2523
        %2818 = vmatprep.subr.mxu0 0.0
        %2819 = vmatpush1.msra.mxu0 %v2524
        %2820 = vmatprep.mubr.f32.mxu0 %v2478
        %2821 = vmatmul.mubr.f32.gmra.mrb[0].mxu0 %v2477
        %v2822 = vpop.f32.mrb[0].mxu0
        %v2823 = vadd.f32 %v2754, %v2822
        %v2824 = vpop.f32.mrb[0].mxu0
        %2825 = vdwg.mxu0
        %2826 = vmatprep.subr.mxu0 0.0
        %2827 = vmatpush1.msra.mxu0 %v2525
        %2828 = vmatprep.subr.mxu0 0.0
        %2829 = vmatpush1.msra.mxu0 %v2526
        %2830 = vmatprep.subr.mxu0 0.0
        %2831 = vmatpush1.msra.mxu0 %v2527
        %2832 = vmatprep.subr.mxu0 0.0
        %2833 = vmatpush1.msra.mxu0 %v2528
        %2834 = vmatprep.subr.mxu0 0.0
        %2835 = vmatpush1.msra.mxu0 %v2529
        %2836 = vmatprep.subr.mxu0 0.0
        %2837 = vmatpush1.msra.mxu0 %v2530
        %2838 = vmatprep.subr.mxu0 0.0
        %2839 = vmatpush1.msra.mxu0 %v2531
        %2840 = vmatprep.subr.mxu0 0.0
        %2841 = vmatpush1.msra.mxu0 %v2532
        %2842 = vmatprep.subr.mxu0 0.0
        %2843 = vmatpush1.msra.mxu0 %v2533
        %2844 = vmatprep.subr.mxu0 0.0
        %2845 = vmatpush1.msra.mxu0 %v2534
        %2846 = vmatprep.subr.mxu0 0.0
        %2847 = vmatpush1.msra.mxu0 %v2535
        %2848 = vmatprep.subr.mxu0 0.0
        %2849 = vmatpush1.msra.mxu0 %v2536
        %2850 = vmatprep.subr.mxu0 0.0
        %2851 = vmatpush1.msra.mxu0 %v2537
        %2852 = vmatprep.subr.mxu0 0.0
        %2853 = vmatpush1.msra.mxu0 %v2538
        %2854 = vmatprep.subr.mxu0 0.0
        %2855 = vmatpush1.msra.mxu0 %v2539
        %2856 = vmatprep.subr.mxu0 0.0
        %2857 = vmatpush1.msra.mxu0 %v2540
        %2858 = vmatprep.subr.mxu0 0.0
        %2859 = vmatpush1.msra.mxu0 %v2541
        %2860 = vmatprep.subr.mxu0 0.0
        %2861 = vmatpush1.msra.mxu0 %v2542
        %2862 = vmatprep.subr.mxu0 0.0
        %2863 = vmatpush1.msra.mxu0 %v2543
        %2864 = vmatprep.subr.mxu0 0.0
        %2865 = vmatpush1.msra.mxu0 %v2544
        %2866 = vmatprep.subr.mxu0 0.0
        %2867 = vmatpush1.msra.mxu0 %v2545
        %2868 = vmatprep.subr.mxu0 0.0
        %2869 = vmatpush1.msra.mxu0 %v2546
        %2870 = vmatprep.subr.mxu0 0.0
        %2871 = vmatpush1.msra.mxu0 %v2547
        %2872 = vmatprep.subr.mxu0 0.0
        %2873 = vmatpush1.msra.mxu0 %v2548
        %2874 = vmatprep.subr.mxu0 0.0
        %2875 = vmatpush1.msra.mxu0 %v2549
        %2876 = vmatprep.subr.mxu0 0.0
        %2877 = vmatpush1.msra.mxu0 %v2550
        %2878 = vmatprep.subr.mxu0 0.0
        %2879 = vmatpush1.msra.mxu0 %v2551
        %2880 = vmatprep.subr.mxu0 0.0
        %2881 = vmatpush1.msra.mxu0 %v2552
        %2882 = vmatprep.subr.mxu0 0.0
        %2883 = vmatpush1.msra.mxu0 %v2553
        %2884 = vmatprep.subr.mxu0 0.0
        %2885 = vmatpush1.msra.mxu0 %v2554
        %2886 = vmatprep.subr.mxu0 0.0
        %2887 = vmatpush1.msra.mxu0 %v2555
        %2888 = vmatprep.subr.mxu0 0.0
        %2889 = vmatpush1.msra.mxu0 %v2556
        %2890 = vmatprep.mubr.f32.mxu0 %v2480
        %2891 = vmatmul.mubr.f32.gmra.mrb[0].mxu0 %v2479
        %v2892 = vpop.f32.mrb[0].mxu0
        %v2893 = vadd.f32 %v2823, %v2892
        %v2894 = vpop.f32.mrb[0].mxu0
        %2895 = vdwg.mxu0
        %2896 = vmatprep.subr.mxu0 0.0
        %2897 = vmatpush1.msra.mxu0 %v2557
        %2898 = vmatprep.subr.mxu0 0.0
        %2899 = vmatpush1.msra.mxu0 %v2558
        %2900 = vmatprep.subr.mxu0 0.0
        %2901 = vmatpush1.msra.mxu0 %v2559
        %2902 = vmatprep.subr.mxu0 0.0
        %2903 = vmatpush1.msra.mxu0 %v2560
        %2904 = vmatprep.subr.mxu0 0.0
        %2905 = vmatpush1.msra.mxu0 %v2561
        %2906 = vmatprep.subr.mxu0 0.0
        %2907 = vmatpush1.msra.mxu0 %v2562
        %2908 = vmatprep.subr.mxu0 0.0
        %2909 = vmatpush1.msra.mxu0 %v2563
        %2910 = vmatprep.subr.mxu0 0.0
        %2911 = vmatpush1.msra.mxu0 %v2564
        %2912 = vmatprep.subr.mxu0 0.0
        %2913 = vmatpush1.msra.mxu0 %v2565
        %2914 = vmatprep.subr.mxu0 0.0
        %2915 = vmatpush1.msra.mxu0 %v2566
        %2916 = vmatprep.subr.mxu0 0.0
        %2917 = vmatpush1.msra.mxu0 %v2567
        %2918 = vmatprep.subr.mxu0 0.0
        %2919 = vmatpush1.msra.mxu0 %v2568
        %2920 = vmatprep.subr.mxu0 0.0
        %2921 = vmatpush1.msra.mxu0 %v2569
        %2922 = vmatprep.subr.mxu0 0.0
        %2923 = vmatpush1.msra.mxu0 %v2570
        %2924 = vmatprep.subr.mxu0 0.0
        %2925 = vmatpush1.msra.mxu0 %v2571
        %2926 = vmatprep.subr.mxu0 0.0
        %2927 = vmatpush1.msra.mxu0 %v2572
        %2928 = vmatprep.subr.mxu0 0.0
        %2929 = vmatpush1.msra.mxu0 %v2573
        %2930 = vmatprep.subr.mxu0 0.0
        %2931 = vmatpush1.msra.mxu0 %v2574
        %2932 = vmatprep.subr.mxu0 0.0
        %2933 = vmatpush1.msra.mxu0 %v2575
        %2934 = vmatprep.subr.mxu0 0.0
        %2935 = vmatpush1.msra.mxu0 %v2576
        %2936 = vmatprep.subr.mxu0 0.0
        %2937 = vmatpush1.msra.mxu0 %v2577
        %2938 = vmatprep.subr.mxu0 0.0
        %2939 = vmatpush1.msra.mxu0 %v2578
        %2940 = vmatprep.subr.mxu0 0.0
        %2941 = vmatpush1.msra.mxu0 %v2579
        %2942 = vmatprep.subr.mxu0 0.0
        %2943 = vmatpush1.msra.mxu0 %v2580
        %2944 = vmatprep.subr.mxu0 0.0
        %2945 = vmatpush1.msra.mxu0 %v2581
        %2946 = vmatprep.subr.mxu0 0.0
        %2947 = vmatpush1.msra.mxu0 %v2582
        %2948 = vmatprep.subr.mxu0 0.0
        %2949 = vmatpush1.msra.mxu0 %v2583
        %2950 = vmatprep.subr.mxu0 0.0
        %2951 = vmatpush1.msra.mxu0 %v2584
        %2952 = vmatprep.subr.mxu0 0.0
        %2953 = vmatpush1.msra.mxu0 %v2585
        %2954 = vmatprep.subr.mxu0 0.0
        %2955 = vmatpush1.msra.mxu0 %v2586
        %2956 = vmatprep.subr.mxu0 0.0
        %2957 = vmatpush1.msra.mxu0 %v2587
        %2958 = vmatprep.subr.mxu0 0.0
        %2959 = vmatpush1.msra.mxu0 %v2588
        %2960 = vmatprep.mubr.f32.mxu0 %v2482
        %2961 = vmatmul.mubr.f32.gmra.mrb[0].mxu0 %v2481
        %v2962 = vpop.f32.mrb[0].mxu0
        %v2963 = vadd.f32 %v2893, %v2962
        %v2964 = vpop.f32.mrb[0].mxu0
        %2965 = vdwg.mxu0
        %2966 = vmatprep.subr.mxu0 0.0
        %2967 = vmatpush1.msra.mxu0 %v2589
        %2968 = vmatprep.subr.mxu0 0.0
        %2969 = vmatpush1.msra.mxu0 %v2590
        %2970 = vmatprep.subr.mxu0 0.0
        %2971 = vmatpush1.msra.mxu0 %v2591
        %2972 = vmatprep.subr.mxu0 0.0
        %2973 = vmatpush1.msra.mxu0 %v2592
        %2974 = vmatprep.subr.mxu0 0.0
        %2975 = vmatpush1.msra.mxu0 %v2593
        %2976 = vmatprep.subr.mxu0 0.0
        %2977 = vmatpush1.msra.mxu0 %v2594
        %2978 = vmatprep.subr.mxu0 0.0
        %2979 = vmatpush1.msra.mxu0 %v2595
        %2980 = vmatprep.subr.mxu0 0.0
        %2981 = vmatpush1.msra.mxu0 %v2596
        %2982 = vmatprep.subr.mxu0 0.0
        %2983 = vmatpush1.msra.mxu0 %v2597
        %2984 = vmatprep.subr.mxu0 0.0
        %2985 = vmatpush1.msra.mxu0 %v2598
        %2986 = vmatprep.subr.mxu0 0.0
        %2987 = vmatpush1.msra.mxu0 %v2599
        %2988 = vmatprep.subr.mxu0 0.0
        %2989 = vmatpush1.msra.mxu0 %v2600
        %2990 = vmatprep.subr.mxu0 0.0
        %2991 = vmatpush1.msra.mxu0 %v2601
        %2992 = vmatprep.subr.mxu0 0.0
        %2993 = vmatpush1.msra.mxu0 %v2602
        %2994 = vmatprep.subr.mxu0 0.0
        %2995 = vmatpush1.msra.mxu0 %v2603
        %2996 = vmatprep.subr.mxu0 0.0
        %2997 = vmatpush1.msra.mxu0 %v2604
        %2998 = vmatprep.subr.mxu0 0.0
        %2999 = vmatpush1.msra.mxu0 %v2605
        %3000 = vmatprep.subr.mxu0 0.0
        %3001 = vmatpush1.msra.mxu0 %v2606
        %3002 = vmatprep.subr.mxu0 0.0
        %3003 = vmatpush1.msra.mxu0 %v2607
        %3004 = vmatprep.subr.mxu0 0.0
        %3005 = vmatpush1.msra.mxu0 %v2608
        %3006 = vmatprep.subr.mxu0 0.0
        %3007 = vmatpush1.msra.mxu0 %v2609
        %3008 = vmatprep.subr.mxu0 0.0
        %3009 = vmatpush1.msra.mxu0 %v2610
        %3010 = vmatprep.subr.mxu0 0.0
        %3011 = vmatpush1.msra.mxu0 %v2611
        %3012 = vmatprep.subr.mxu0 0.0
        %3013 = vmatpush1.msra.mxu0 %v2612
        %3014 = vmatprep.subr.mxu0 0.0
        %3015 = vmatpush1.msra.mxu0 %v2613
        %3016 = vmatprep.subr.mxu0 0.0
        %3017 = vmatpush1.msra.mxu0 %v2614
        %3018 = vmatprep.subr.mxu0 0.0
        %3019 = vmatpush1.msra.mxu0 %v2615
        %3020 = vmatprep.subr.mxu0 0.0
        %3021 = vmatpush1.msra.mxu0 %v2616
        %3022 = vmatprep.subr.mxu0 0.0
        %3023 = vmatpush1.msra.mxu0 %v2617
        %3024 = vmatprep.subr.mxu0 0.0
        %3025 = vmatpush1.msra.mxu0 %v2618
        %3026 = vmatprep.subr.mxu0 0.0
        %3027 = vmatpush1.msra.mxu0 %v2619
        %3028 = vmatprep.subr.mxu0 0.0
        %3029 = vmatpush1.msra.mxu0 %v2620
        %3030 = vmatprep.mubr.f32.mxu0 %v2484
        %3031 = vmatmul.mubr.f32.gmra.mrb[0].mxu0 %v2483
        %v3032 = vpop.f32.mrb[0].mxu0
        %v3033 = vadd.f32 %v2963, %v3032
        %v3034 = vpop.f32.mrb[0].mxu0
        %3035 = vdwg.mxu0
        %3036 = vmatprep.subr.mxu0 0.0
        %3037 = vmatpush1.msra.mxu0 %v2621
        %3038 = vmatprep.subr.mxu0 0.0
        %3039 = vmatpush1.msra.mxu0 %v2622
        %3040 = vmatprep.subr.mxu0 0.0
        %3041 = vmatpush1.msra.mxu0 %v2623
        %3042 = vmatprep.subr.mxu0 0.0
        %3043 = vmatpush1.msra.mxu0 %v2624
        %3044 = vmatprep.subr.mxu0 0.0
        %3045 = vmatpush1.msra.mxu0 %v2625
        %3046 = vmatprep.subr.mxu0 0.0
        %3047 = vmatpush1.msra.mxu0 %v2626
        %3048 = vmatprep.subr.mxu0 0.0
        %3049 = vmatpush1.msra.mxu0 %v2627
        %3050 = vmatprep.subr.mxu0 0.0
        %3051 = vmatpush1.msra.mxu0 %v2628
        %3052 = vmatprep.subr.mxu0 0.0
        %3053 = vmatpush1.msra.mxu0 %v2629
        %3054 = vmatprep.subr.mxu0 0.0
        %3055 = vmatpush1.msra.mxu0 %v2630
        %3056 = vmatprep.subr.mxu0 0.0
        %3057 = vmatpush1.msra.mxu0 %v2631
        %3058 = vmatprep.subr.mxu0 0.0
        %3059 = vmatpush1.msra.mxu0 %v2632
        %3060 = vmatprep.subr.mxu0 0.0
        %3061 = vmatpush1.msra.mxu0 %v2633
        %3062 = vmatprep.subr.mxu0 0.0
        %3063 = vmatpush1.msra.mxu0 %v2634
        %3064 = vmatprep.subr.mxu0 0.0
        %3065 = vmatpush1.msra.mxu0 %v2635
        %3066 = vmatprep.subr.mxu0 0.0
        %3067 = vmatpush1.msra.mxu0 %v2636
        %3068 = vmatprep.subr.mxu0 0.0
        %3069 = vmatpush1.msra.mxu0 %v2637
        %3070 = vmatprep.subr.mxu0 0.0
        %3071 = vmatpush1.msra.mxu0 %v2638
        %3072 = vmatprep.subr.mxu0 0.0
        %3073 = vmatpush1.msra.mxu0 %v2639
        %3074 = vmatprep.subr.mxu0 0.0
        %3075 = vmatpush1.msra.mxu0 %v2640
        %3076 = vmatprep.subr.mxu0 0.0
        %3077 = vmatpush1.msra.mxu0 %v2641
        %3078 = vmatprep.subr.mxu0 0.0
        %3079 = vmatpush1.msra.mxu0 %v2642
        %3080 = vmatprep.subr.mxu0 0.0
        %3081 = vmatpush1.msra.mxu0 %v2643
        %3082 = vmatprep.subr.mxu0 0.0
        %3083 = vmatpush1.msra.mxu0 %v2644
        %3084 = vmatprep.subr.mxu0 0.0
        %3085 = vmatpush1.msra.mxu0 %v2645
        %3086 = vmatprep.subr.mxu0 0.0
        %3087 = vmatpush1.msra.mxu0 %v2646
        %3088 = vmatprep.subr.mxu0 0.0
        %3089 = vmatpush1.msra.mxu0 %v2647
        %3090 = vmatprep.subr.mxu0 0.0
        %3091 = vmatpush1.msra.mxu0 %v2648
        %3092 = vmatprep.subr.mxu0 0.0
        %3093 = vmatpush1.msra.mxu0 %v2649
        %3094 = vmatprep.subr.mxu0 0.0
        %3095 = vmatpush1.msra.mxu0 %v2650
        %3096 = vmatprep.subr.mxu0 0.0
        %3097 = vmatpush1.msra.mxu0 %v2651
        %3098 = vmatprep.subr.mxu0 0.0
        %3099 = vmatpush1.msra.mxu0 %v2652
        %3100 = vmatprep.mubr.f32.mxu0 %v2486
        %3101 = vmatmul.mubr.f32.gmra.mrb[0].mxu0 %v2485
        %v3102 = vpop.f32.mrb[0].mxu0
        %v3103 = vadd.f32 %v3033, %v3102
        %v3104 = vpop.f32.mrb[0].mxu0
        %3105 = vdwg.mxu0
        %3106 = vmatprep.subr.mxu0 0.0
        %3107 = vmatpush1.msra.mxu0 %v2653
        %3108 = vmatprep.subr.mxu0 0.0
        %3109 = vmatpush1.msra.mxu0 %v2654
        %3110 = vmatprep.subr.mxu0 0.0
        %3111 = vmatpush1.msra.mxu0 %v2655
        %3112 = vmatprep.subr.mxu0 0.0
        %3113 = vmatpush1.msra.mxu0 %v2656
        %3114 = vmatprep.subr.mxu0 0.0
        %3115 = vmatpush1.msra.mxu0 %v2657
        %3116 = vmatprep.subr.mxu0 0.0
        %3117 = vmatpush1.msra.mxu0 %v2658
        %3118 = vmatprep.subr.mxu0 0.0
        %3119 = vmatpush1.msra.mxu0 %v2659
        %3120 = vmatprep.subr.mxu0 0.0
        %3121 = vmatpush1.msra.mxu0 %v2660
        %3122 = vmatprep.subr.mxu0 0.0
        %3123 = vmatpush1.msra.mxu0 %v2661
        %3124 = vmatprep.subr.mxu0 0.0
        %3125 = vmatpush1.msra.mxu0 %v2662
        %3126 = vmatprep.subr.mxu0 0.0
        %3127 = vmatpush1.msra.mxu0 %v2663
        %3128 = vmatprep.subr.mxu0 0.0
        %3129 = vmatpush1.msra.mxu0 %v2664
        %3130 = vmatprep.subr.mxu0 0.0
        %3131 = vmatpush1.msra.mxu0 %v2665
        %3132 = vmatprep.subr.mxu0 0.0
        %3133 = vmatpush1.msra.mxu0 %v2666
        %3134 = vmatprep.subr.mxu0 0.0
        %3135 = vmatpush1.msra.mxu0 %v2667
        %3136 = vmatprep.subr.mxu0 0.0
        %3137 = vmatpush1.msra.mxu0 %v2668
        %3138 = vmatprep.subr.mxu0 0.0
        %3139 = vmatpush1.msra.mxu0 %v2669
        %3140 = vmatprep.subr.mxu0 0.0
        %3141 = vmatpush1.msra.mxu0 %v2670
        %3142 = vmatprep.subr.mxu0 0.0
        %3143 = vmatpush1.msra.mxu0 %v2671
        %3144 = vmatprep.subr.mxu0 0.0
        %3145 = vmatpush1.msra.mxu0 %v2672
        %3146 = vmatprep.subr.mxu0 0.0
        %3147 = vmatpush1.msra.mxu0 %v2673
        %3148 = vmatprep.subr.mxu0 0.0
        %3149 = vmatpush1.msra.mxu0 %v2674
        %3150 = vmatprep.subr.mxu0 0.0
        %3151 = vmatpush1.msra.mxu0 %v2675
        %3152 = vmatprep.subr.mxu0 0.0
        %3153 = vmatpush1.msra.mxu0 %v2676
        %3154 = vmatprep.subr.mxu0 0.0
        %3155 = vmatpush1.msra.mxu0 %v2677
        %3156 = vmatprep.subr.mxu0 0.0
        %3157 = vmatpush1.msra.mxu0 %v2678
        %3158 = vmatprep.subr.mxu0 0.0
        %3159 = vmatpush1.msra.mxu0 %v2679
        %3160 = vmatprep.subr.mxu0 0.0
        %3161 = vmatpush1.msra.mxu0 %v2680
        %3162 = vmatprep.subr.mxu0 0.0
        %3163 = vmatpush1.msra.mxu0 %v2681
        %3164 = vmatprep.subr.mxu0 0.0
        %3165 = vmatpush1.msra.mxu0 %v2682
        %3166 = vmatprep.subr.mxu0 0.0
        %3167 = vmatpush1.msra.mxu0 %v2683
        %3168 = vmatprep.subr.mxu0 0.0
        %3169 = vmatpush1.msra.mxu0 %v2684
        %3170 = vmatprep.mubr.f32.mxu0 %v2488
        %3171 = vmatmul.mubr.f32.gmra.mrb[0].mxu0 %v2487
        %v3172 = vpop.f32.mrb[0].mxu0
        %v3173 = vadd.f32 %v3103, %v3172
        %v3174 = vpop.f32.mrb[0].mxu0
        %3175 = vdwg.mxu0
        %3176 = vmatprep.subr.mxu0 0.0
        %3177 = vmatpush1.msra.mxu0 %v2685
        %3178 = vmatprep.subr.mxu0 0.0
        %3179 = vmatpush1.msra.mxu0 %v2686
        %3180 = vmatprep.subr.mxu0 0.0
        %3181 = vmatpush1.msra.mxu0 %v2687
        %3182 = vmatprep.subr.mxu0 0.0
        %3183 = vmatpush1.msra.mxu0 %v2688
        %3184 = vmatprep.subr.mxu0 0.0
        %3185 = vmatpush1.msra.mxu0 %v2689
        %3186 = vmatprep.subr.mxu0 0.0
        %3187 = vmatpush1.msra.mxu0 %v2690
        %3188 = vmatprep.subr.mxu0 0.0
        %3189 = vmatpush1.msra.mxu0 %v2691
        %3190 = vmatprep.subr.mxu0 0.0
        %3191 = vmatpush1.msra.mxu0 %v2692
        %3192 = vmatprep.subr.mxu0 0.0
        %3193 = vmatpush1.msra.mxu0 %v2693
        %3194 = vmatprep.subr.mxu0 0.0
        %3195 = vmatpush1.msra.mxu0 %v2694
        %3196 = vmatprep.subr.mxu0 0.0
        %3197 = vmatpush1.msra.mxu0 %v2695
        %3198 = vmatprep.subr.mxu0 0.0
        %3199 = vmatpush1.msra.mxu0 %v2696
        %3200 = vmatprep.subr.mxu0 0.0
        %3201 = vmatpush1.msra.mxu0 %v2697
        %3202 = vmatprep.subr.mxu0 0.0
        %3203 = vmatpush1.msra.mxu0 %v2698
        %3204 = vmatprep.subr.mxu0 0.0
        %3205 = vmatpush1.msra.mxu0 %v2699
        %3206 = vmatprep.subr.mxu0 0.0
        %3207 = vmatpush1.msra.mxu0 %v2700
        %3208 = vmatprep.subr.mxu0 0.0
        %3209 = vmatpush1.msra.mxu0 %v2701
        %3210 = vmatprep.subr.mxu0 0.0
        %3211 = vmatpush1.msra.mxu0 %v2702
        %3212 = vmatprep.subr.mxu0 0.0
        %3213 = vmatpush1.msra.mxu0 %v2703
        %3214 = vmatprep.subr.mxu0 0.0
        %3215 = vmatpush1.msra.mxu0 %v2704
        %3216 = vmatprep.subr.mxu0 0.0
        %3217 = vmatpush1.msra.mxu0 %v2705
        %3218 = vmatprep.subr.mxu0 0.0
        %3219 = vmatpush1.msra.mxu0 %v2706
        %3220 = vmatprep.subr.mxu0 0.0
        %3221 = vmatpush1.msra.mxu0 %v2707
        %3222 = vmatprep.subr.mxu0 0.0
        %3223 = vmatpush1.msra.mxu0 %v2708
        %3224 = vmatprep.subr.mxu0 0.0
        %3225 = vmatpush1.msra.mxu0 %v2709
        %3226 = vmatprep.subr.mxu0 0.0
        %3227 = vmatpush1.msra.mxu0 %v2710
        %3228 = vmatprep.subr.mxu0 0.0
        %3229 = vmatpush1.msra.mxu0 %v2711
        %3230 = vmatprep.subr.mxu0 0.0
        %3231 = vmatpush1.msra.mxu0 %v2712
        %3232 = vmatprep.subr.mxu0 0.0
        %3233 = vmatpush1.msra.mxu0 %v2713
        %3234 = vmatprep.subr.mxu0 0.0
        %3235 = vmatpush1.msra.mxu0 %v2714
        %3236 = vmatprep.subr.mxu0 0.0
        %3237 = vmatpush1.msra.mxu0 %v2715
        %3238 = vmatprep.subr.mxu0 0.0
        %3239 = vmatpush1.msra.mxu0 %v2716
        %3240 = vmatprep.mubr.f32.mxu0 %v2490
        %3241 = vmatmul.mubr.f32.gmra.mrb[0].mxu0 %v2489
        %v3242 = vpop.f32.mrb[0].mxu0
        %v3243 = vadd.f32 %v3173, %v3242
        %v3244 = vpop.f32.mrb[0].mxu0
        %3245 = vdwg.mxu0
        %3246 = vmatprep.subr.mxu0 0.0
        %3247 = vmatpush1.msra.mxu0 %v2717
        %3248 = vmatprep.subr.mxu0 0.0
        %3249 = vmatpush1.msra.mxu0 %v2718
        %3250 = vmatprep.subr.mxu0 0.0
        %3251 = vmatpush1.msra.mxu0 %v2719
        %3252 = vmatprep.subr.mxu0 0.0
        %3253 = vmatpush1.msra.mxu0 %v2720
        %3254 = vmatprep.subr.mxu0 0.0
        %3255 = vmatpush1.msra.mxu0 %v2721
        %3256 = vmatprep.subr.mxu0 0.0
        %3257 = vmatpush1.msra.mxu0 %v2722
        %3258 = vmatprep.subr.mxu0 0.0
        %3259 = vmatpush1.msra.mxu0 %v2723
        %3260 = vmatprep.subr.mxu0 0.0
        %3261 = vmatpush1.msra.mxu0 %v2724
        %3262 = vmatprep.subr.mxu0 0.0
        %3263 = vmatpush1.msra.mxu0 %v2725
        %3264 = vmatprep.subr.mxu0 0.0
        %3265 = vmatpush1.msra.mxu0 %v2726
        %3266 = vmatprep.subr.mxu0 0.0
        %3267 = vmatpush1.msra.mxu0 %v2727
        %3268 = vmatprep.subr.mxu0 0.0
        %3269 = vmatpush1.msra.mxu0 %v2728
        %3270 = vmatprep.subr.mxu0 0.0
        %3271 = vmatpush1.msra.mxu0 %v2729
        %3272 = vmatprep.subr.mxu0 0.0
        %3273 = vmatpush1.msra.mxu0 %v2730
        %3274 = vmatprep.subr.mxu0 0.0
        %3275 = vmatpush1.msra.mxu0 %v2731
        %3276 = vmatprep.subr.mxu0 0.0
        %3277 = vmatpush1.msra.mxu0 %v2732
        %3278 = vmatprep.subr.mxu0 0.0
        %3279 = vmatpush1.msra.mxu0 %v2733
        %3280 = vmatprep.subr.mxu0 0.0
        %3281 = vmatpush1.msra.mxu0 %v2734
        %3282 = vmatprep.subr.mxu0 0.0
        %3283 = vmatpush1.msra.mxu0 %v2735
        %3284 = vmatprep.subr.mxu0 0.0
        %3285 = vmatpush1.msra.mxu0 %v2736
        %3286 = vmatprep.subr.mxu0 0.0
        %3287 = vmatpush1.msra.mxu0 %v2737
        %3288 = vmatprep.subr.mxu0 0.0
        %3289 = vmatpush1.msra.mxu0 %v2738
        %3290 = vmatprep.subr.mxu0 0.0
        %3291 = vmatpush1.msra.mxu0 %v2739
        %3292 = vmatprep.subr.mxu0 0.0
        %3293 = vmatpush1.msra.mxu0 %v2740
        %3294 = vmatprep.subr.mxu0 0.0
        %3295 = vmatpush1.msra.mxu0 %v2741
        %3296 = vmatprep.subr.mxu0 0.0
        %3297 = vmatpush1.msra.mxu0 %v2742
        %3298 = vmatprep.subr.mxu0 0.0
        %3299 = vmatpush1.msra.mxu0 %v2743
        %3300 = vmatprep.subr.mxu0 0.0
        %3301 = vmatpush1.msra.mxu0 %v2744
        %3302 = vmatprep.subr.mxu0 0.0
        %3303 = vmatpush1.msra.mxu0 %v2745
        %3304 = vmatprep.subr.mxu0 0.0
        %3305 = vmatpush1.msra.mxu0 %v2746
        %3306 = vmatprep.subr.mxu0 0.0
        %3307 = vmatpush1.msra.mxu0 %v2747
        %3308 = vmatprep.subr.mxu0 0.0
        %3309 = vmatpush1.msra.mxu0 %v2748
        %3310 = vmatprep.mubr.f32.mxu0 %v2492
        %3311 = vmatmul.mubr.f32.gmra.mrb[0].mxu0 %v2491
        %v3312 = vpop.f32.mrb[0].mxu0
        %v3313 = vadd.f32 %v3243, %v3312
        %v3314 = vpop.f32.mrb[0].mxu0
        %3315 = vdwg.mxu0
        %v3316 = vadd.f32 %v1757, %v3313
        %v3317 = vld [vmem:[%s18] sm:$0x1]
        %v3318 = vld [vmem:[%s19] sm:$0x1]
        %v3319 = vsel %vm740, %v3316, 0.0
        %3320 = vadd.xlane.f32.xlu0 %v3319
        %v3321 = vpop.xlane.xlu0 %3320
        %v3322 = vmul.f32 %v3321, %v1733
        %v3323 = vsub.f32 %v3316, %v3322
        %v3324 = vmul.f32 %v3323, %v3323
        %v3325 = vsel %vm740, %v3324, 0.0
        %3326 = vadd.xlane.f32.xlu0 %v3325
        %v3327 = vpop.xlane.xlu0 %3326
        %v3328 = vmul.f32 %v3327, %v1733
        %v3329 = vadd.f32 %v3328, 1e-05
        %v3330 = vrsqrt.pop %v3329
        %v3331 = vmul.f32 %v3323, %v3330
        %v3333 = vlaneseq
        %v3334 = vshrl.u32 %v3333, 7
        %v3335 = vsub.s32 0, %v3334
        %v3336 = vrot.slane %v3317, %v3335
        %v3338 = vmul.f32 %v3331, %v3336
        %v3340 = vlaneseq
        %v3341 = vshrl.u32 %v3340, 7
        %v3342 = vsub.s32 0, %v3341
        %v3343 = vrot.slane %v3318, %v3342
        %v3345 = vadd.f32 %v3338, %v3343
        %s3346 = scalar_lea.vmem %s5, 32
        %v3347 = vld [vmem:[%s3346] sm:$0xff]
        %v3348 = vld [vmem:[%s3346 + $0x8] sm:$0xff]
        %v3349 = vld [vmem:[%s3346 + $0x10] sm:$0xff]
        %v3350 = vld [vmem:[%s3346 + $0x18] sm:$0xff]
        %s3351 = scalar_lea.vmem %s8, 1
        %v3352 = vld [vmem:[%s3351] sm:$0x1]
        %v3354 = vlaneseq
        %v3355 = vshrl.u32 %v3354, 7
        %v3356 = vsub.s32 0, %v3355
        %v3357 = vrot.slane %v3352, %v3356
        %v3360 = vsel %vm740, %v3345, 0
        %3362 = vmatprep.subr.mxu0 0.0
        %3363 = vmatpush1.msra.mxu0 %v3347
        %3364 = vmatprep.subr.mxu0 0.0
        %3365 = vmatpush1.msra.mxu0 %v3348
        %3366 = vmatprep.subr.mxu0 0.0
        %3367 = vmatpush1.msra.mxu0 %v3349
        %3368 = vmatprep.subr.mxu0 0.0
        %3369 = vmatpush1.msra.mxu0 %v3350
        %3370 = vmatprep.subr.mxu0 0.0
        %3371 = vmatpush1.msra.mxu0 0.0
        %3372 = vmatprep.subr.mxu0 0.0
        %3373 = vmatpush1.msra.mxu0 0.0
        %3374 = vmatprep.subr.mxu0 0.0
        %3375 = vmatpush1.msra.mxu0 0.0
        %3376 = vmatprep.subr.mxu0 0.0
        %3377 = vmatpush1.msra.mxu0 0.0
        %3378 = vmatprep.subr.mxu0 0.0
        %3379 = vmatpush1.msra.mxu0 0.0
        %3380 = vmatprep.subr.mxu0 0.0
        %3381 = vmatpush1.msra.mxu0 0.0
        %3382 = vmatprep.subr.mxu0 0.0
        %3383 = vmatpush1.msra.mxu0 0.0
        %3384 = vmatprep.subr.mxu0 0.0
        %3385 = vmatpush1.msra.mxu0 0.0
        %3386 = vmatprep.subr.mxu0 0.0
        %3387 = vmatpush1.msra.mxu0 0.0
        %3388 = vmatprep.subr.mxu0 0.0
        %3389 = vmatpush1.msra.mxu0 0.0
        %3390 = vmatprep.subr.mxu0 0.0
        %3391 = vmatpush1.msra.mxu0 0.0
        %3392 = vmatprep.subr.mxu0 0.0
        %3393 = vmatpush1.msra.mxu0 0.0
        %3394 = vmatprep.subr.mxu0 0.0
        %3395 = vmatpush1.msra.mxu0 0.0
        %3396 = vmatprep.subr.mxu0 0.0
        %3397 = vmatpush1.msra.mxu0 0.0
        %3398 = vmatprep.subr.mxu0 0.0
        %3399 = vmatpush1.msra.mxu0 0.0
        %3400 = vmatprep.subr.mxu0 0.0
        %3401 = vmatpush1.msra.mxu0 0.0
        %3402 = vmatprep.subr.mxu0 0.0
        %3403 = vmatpush1.msra.mxu0 0.0
        %3404 = vmatprep.subr.mxu0 0.0
        %3405 = vmatpush1.msra.mxu0 0.0
        %3406 = vmatprep.subr.mxu0 0.0
        %3407 = vmatpush1.msra.mxu0 0.0
        %3408 = vmatprep.subr.mxu0 0.0
        %3409 = vmatpush1.msra.mxu0 0.0
        %3410 = vmatprep.subr.mxu0 0.0
        %3411 = vmatpush1.msra.mxu0 0.0
        %3412 = vmatprep.subr.mxu0 0.0
        %3413 = vmatpush1.msra.mxu0 0.0
        %3414 = vmatprep.subr.mxu0 0.0
        %3415 = vmatpush1.msra.mxu0 0.0
        %3416 = vmatprep.subr.mxu0 0.0
        %3417 = vmatpush1.msra.mxu0 0.0
        %3418 = vmatprep.subr.mxu0 0.0
        %3419 = vmatpush1.msra.mxu0 0.0
        %3420 = vmatprep.subr.mxu0 0.0
        %3421 = vmatpush1.msra.mxu0 0.0
        %3422 = vmatprep.subr.mxu0 0.0
        %3423 = vmatpush1.msra.mxu0 0.0
        %3424 = vmatprep.subr.mxu0 0.0
        %3425 = vmatpush1.msra.mxu0 0.0
        %3426 = vmatprep.mubr.f32.mxu0 0.0
        %3427 = vmatmul.mubr.f32.gmra.mrb[0].mxu0 %v3360
        %v3428 = vpop.f32.mrb[0].mxu0
        %v3429 = vadd.f32 %v3357, %v3428
        %v3430 = vpop.f32.mrb[0].mxu0
        %3431 = vdwg.mxu0
        %s3432 = scalar_lea.vmem %s6, 32
        %v3433 = vld [vmem:[%s3432] sm:$0xff]
        %v3434 = vld [vmem:[%s3432 + $0x8] sm:$0xff]
        %v3435 = vld [vmem:[%s3432 + $0x10] sm:$0xff]
        %v3436 = vld [vmem:[%s3432 + $0x18] sm:$0xff]
        %s3437 = scalar_lea.vmem %s9, 1
        %v3438 = vld [vmem:[%s3437] sm:$0x1]
        %v3440 = vlaneseq
        %v3441 = vshrl.u32 %v3440, 7
        %v3442 = vsub.s32 0, %v3441
        %v3443 = vrot.slane %v3438, %v3442
        %3445 = vmatprep.subr.mxu0 0.0
        %3446 = vmatpush1.msra.mxu0 %v3433
        %3447 = vmatprep.subr.mxu0 0.0
        %3448 = vmatpush1.msra.mxu0 %v3434
        %3449 = vmatprep.subr.mxu0 0.0
        %3450 = vmatpush1.msra.mxu0 %v3435
        %3451 = vmatprep.subr.mxu0 0.0
        %3452 = vmatpush1.msra.mxu0 %v3436
        %3453 = vmatprep.subr.mxu0 0.0
        %3454 = vmatpush1.msra.mxu0 0.0
        %3455 = vmatprep.subr.mxu0 0.0
        %3456 = vmatpush1.msra.mxu0 0.0
        %3457 = vmatprep.subr.mxu0 0.0
        %3458 = vmatpush1.msra.mxu0 0.0
        %3459 = vmatprep.subr.mxu0 0.0
        %3460 = vmatpush1.msra.mxu0 0.0
        %3461 = vmatprep.subr.mxu0 0.0
        %3462 = vmatpush1.msra.mxu0 0.0
        %3463 = vmatprep.subr.mxu0 0.0
        %3464 = vmatpush1.msra.mxu0 0.0
        %3465 = vmatprep.subr.mxu0 0.0
        %3466 = vmatpush1.msra.mxu0 0.0
        %3467 = vmatprep.subr.mxu0 0.0
        %3468 = vmatpush1.msra.mxu0 0.0
        %3469 = vmatprep.subr.mxu0 0.0
        %3470 = vmatpush1.msra.mxu0 0.0
        %3471 = vmatprep.subr.mxu0 0.0
        %3472 = vmatpush1.msra.mxu0 0.0
        %3473 = vmatprep.subr.mxu0 0.0
        %3474 = vmatpush1.msra.mxu0 0.0
        %3475 = vmatprep.subr.mxu0 0.0
        %3476 = vmatpush1.msra.mxu0 0.0
        %3477 = vmatprep.subr.mxu0 0.0
        %3478 = vmatpush1.msra.mxu0 0.0
        %3479 = vmatprep.subr.mxu0 0.0
        %3480 = vmatpush1.msra.mxu0 0.0
        %3481 = vmatprep.subr.mxu0 0.0
        %3482 = vmatpush1.msra.mxu0 0.0
        %3483 = vmatprep.subr.mxu0 0.0
        %3484 = vmatpush1.msra.mxu0 0.0
        %3485 = vmatprep.subr.mxu0 0.0
        %3486 = vmatpush1.msra.mxu0 0.0
        %3487 = vmatprep.subr.mxu0 0.0
        %3488 = vmatpush1.msra.mxu0 0.0
        %3489 = vmatprep.subr.mxu0 0.0
        %3490 = vmatpush1.msra.mxu0 0.0
        %3491 = vmatprep.subr.mxu0 0.0
        %3492 = vmatpush1.msra.mxu0 0.0
        %3493 = vmatprep.subr.mxu0 0.0
        %3494 = vmatpush1.msra.mxu0 0.0
        %3495 = vmatprep.subr.mxu0 0.0
        %3496 = vmatpush1.msra.mxu0 0.0
        %3497 = vmatprep.subr.mxu0 0.0
        %3498 = vmatpush1.msra.mxu0 0.0
        %3499 = vmatprep.subr.mxu0 0.0
        %3500 = vmatpush1.msra.mxu0 0.0
        %3501 = vmatprep.subr.mxu0 0.0
        %3502 = vmatpush1.msra.mxu0 0.0
        %3503 = vmatprep.subr.mxu0 0.0
        %3504 = vmatpush1.msra.mxu0 0.0
        %3505 = vmatprep.subr.mxu0 0.0
        %3506 = vmatpush1.msra.mxu0 0.0
        %3507 = vmatprep.subr.mxu0 0.0
        %3508 = vmatpush1.msra.mxu0 0.0
        %3509 = vmatprep.mubr.f32.mxu0 0.0
        %3510 = vmatmul.mubr.f32.gmra.mrb[0].mxu0 %v3360
        %v3511 = vpop.f32.mrb[0].mxu0
        %v3512 = vadd.f32 %v3443, %v3511
        %v3513 = vpop.f32.mrb[0].mxu0
        %3514 = vdwg.mxu0
        %s3515 = scalar_lea.vmem %s4, 32
        %v3516 = vld [vmem:[%s3515] sm:$0xff]
        %v3517 = vld [vmem:[%s3515 + $0x8] sm:$0xff]
        %v3518 = vld [vmem:[%s3515 + $0x10] sm:$0xff]
        %v3519 = vld [vmem:[%s3515 + $0x18] sm:$0xff]
        %s3520 = scalar_lea.vmem %s7, 1
        %v3521 = vld [vmem:[%s3520] sm:$0x1]
        %v3522 = vrot.slane %v3345, 7
        %v3523 = vsel %vm740, %v3522, 0
        %3525 = vmatprep.subr.mxu0 0.0
        %3526 = vmatpush1.msra.mxu0 %v3516
        %3527 = vmatprep.subr.mxu0 0.0
        %3528 = vmatpush1.msra.mxu0 %v3517
        %3529 = vmatprep.subr.mxu0 0.0
        %3530 = vmatpush1.msra.mxu0 %v3518
        %3531 = vmatprep.subr.mxu0 0.0
        %3532 = vmatpush1.msra.mxu0 %v3519
        %3533 = vmatprep.subr.mxu0 0.0
        %3534 = vmatpush1.msra.mxu0 0.0
        %3535 = vmatprep.subr.mxu0 0.0
        %3536 = vmatpush1.msra.mxu0 0.0
        %3537 = vmatprep.subr.mxu0 0.0
        %3538 = vmatpush1.msra.mxu0 0.0
        %3539 = vmatprep.subr.mxu0 0.0
        %3540 = vmatpush1.msra.mxu0 0.0
        %3541 = vmatprep.subr.mxu0 0.0
        %3542 = vmatpush1.msra.mxu0 0.0
        %3543 = vmatprep.subr.mxu0 0.0
        %3544 = vmatpush1.msra.mxu0 0.0
        %3545 = vmatprep.subr.mxu0 0.0
        %3546 = vmatpush1.msra.mxu0 0.0
        %3547 = vmatprep.subr.mxu0 0.0
        %3548 = vmatpush1.msra.mxu0 0.0
        %3549 = vmatprep.subr.mxu0 0.0
        %3550 = vmatpush1.msra.mxu0 0.0
        %3551 = vmatprep.subr.mxu0 0.0
        %3552 = vmatpush1.msra.mxu0 0.0
        %3553 = vmatprep.subr.mxu0 0.0
        %3554 = vmatpush1.msra.mxu0 0.0
        %3555 = vmatprep.subr.mxu0 0.0
        %3556 = vmatpush1.msra.mxu0 0.0
        %3557 = vmatprep.subr.mxu0 0.0
        %3558 = vmatpush1.msra.mxu0 0.0
        %3559 = vmatprep.subr.mxu0 0.0
        %3560 = vmatpush1.msra.mxu0 0.0
        %3561 = vmatprep.subr.mxu0 0.0
        %3562 = vmatpush1.msra.mxu0 0.0
        %3563 = vmatprep.subr.mxu0 0.0
        %3564 = vmatpush1.msra.mxu0 0.0
        %3565 = vmatprep.subr.mxu0 0.0
        %3566 = vmatpush1.msra.mxu0 0.0
        %3567 = vmatprep.subr.mxu0 0.0
        %3568 = vmatpush1.msra.mxu0 0.0
        %3569 = vmatprep.subr.mxu0 0.0
        %3570 = vmatpush1.msra.mxu0 0.0
        %3571 = vmatprep.subr.mxu0 0.0
        %3572 = vmatpush1.msra.mxu0 0.0
        %3573 = vmatprep.subr.mxu0 0.0
        %3574 = vmatpush1.msra.mxu0 0.0
        %3575 = vmatprep.subr.mxu0 0.0
        %3576 = vmatpush1.msra.mxu0 0.0
        %3577 = vmatprep.subr.mxu0 0.0
        %3578 = vmatpush1.msra.mxu0 0.0
        %3579 = vmatprep.subr.mxu0 0.0
        %3580 = vmatpush1.msra.mxu0 0.0
        %3581 = vmatprep.subr.mxu0 0.0
        %3582 = vmatpush1.msra.mxu0 0.0
        %3583 = vmatprep.subr.mxu0 0.0
        %3584 = vmatpush1.msra.mxu0 0.0
        %3585 = vmatprep.subr.mxu0 0.0
        %3586 = vmatpush1.msra.mxu0 0.0
        %3587 = vmatprep.subr.mxu0 0.0
        %3588 = vmatpush1.msra.mxu0 0.0
        %3589 = vmatprep.mubr.f32.mxu0 0.0
        %3590 = vmatmul.mubr.f32.gmra.mrb[0].mxu0 %v3523
        %v3591 = vpop.f32.mrb[0].mxu0
        %v3592 = vadd.f32 %v3521, %v3591
        %v3593 = vpop.f32.mrb[0].mxu0
        %3594 = vdwg.mxu0
        %v3595 = vmul.f32 %v3592, %v982
        %v3597 = vsel %vm740, %v3595, 0
        %v3600 = vsel %vm740, %v3429, 0
        %3602 = vmatprep.subr.mxu0 0.0
        %3603 = vmatpush1.xpose.msra.mxu0 %v3600
        %3604 = vmatprep.subr.mxu0 0.0
        %3605 = vmatpush1.xpose.msra.mxu0 0.0
        %3606 = vmatprep.subr.mxu0 0.0
        %3607 = vmatpush1.xpose.msra.mxu0 0.0
        %3608 = vmatprep.subr.mxu0 0.0
        %3609 = vmatpush1.xpose.msra.mxu0 0.0
        %3610 = vmatprep.subr.mxu0 0.0
        %3611 = vmatpush1.xpose.msra.mxu0 0.0
        %3612 = vmatprep.subr.mxu0 0.0
        %3613 = vmatpush1.xpose.msra.mxu0 0.0
        %3614 = vmatprep.subr.mxu0 0.0
        %3615 = vmatpush1.xpose.msra.mxu0 0.0
        %3616 = vmatprep.subr.mxu0 0.0
        %3617 = vmatpush1.xpose.msra.mxu0 0.0
        %3618 = vmatprep.subr.mxu0 0.0
        %3619 = vmatpush1.xpose.msra.mxu0 0.0
        %3620 = vmatprep.subr.mxu0 0.0
        %3621 = vmatpush1.xpose.msra.mxu0 0.0
        %3622 = vmatprep.subr.mxu0 0.0
        %3623 = vmatpush1.xpose.msra.mxu0 0.0
        %3624 = vmatprep.subr.mxu0 0.0
        %3625 = vmatpush1.xpose.msra.mxu0 0.0
        %3626 = vmatprep.subr.mxu0 0.0
        %3627 = vmatpush1.xpose.msra.mxu0 0.0
        %3628 = vmatprep.subr.mxu0 0.0
        %3629 = vmatpush1.xpose.msra.mxu0 0.0
        %3630 = vmatprep.subr.mxu0 0.0
        %3631 = vmatpush1.xpose.msra.mxu0 0.0
        %3632 = vmatprep.subr.mxu0 0.0
        %3633 = vmatpush1.xpose.msra.mxu0 0.0
        %3634 = vmatprep.subr.mxu0 0.0
        %3635 = vmatpush1.xpose.msra.mxu0 0.0
        %3636 = vmatprep.subr.mxu0 0.0
        %3637 = vmatpush1.xpose.msra.mxu0 0.0
        %3638 = vmatprep.subr.mxu0 0.0
        %3639 = vmatpush1.xpose.msra.mxu0 0.0
        %3640 = vmatprep.subr.mxu0 0.0
        %3641 = vmatpush1.xpose.msra.mxu0 0.0
        %3642 = vmatprep.subr.mxu0 0.0
        %3643 = vmatpush1.xpose.msra.mxu0 0.0
        %3644 = vmatprep.subr.mxu0 0.0
        %3645 = vmatpush1.xpose.msra.mxu0 0.0
        %3646 = vmatprep.subr.mxu0 0.0
        %3647 = vmatpush1.xpose.msra.mxu0 0.0
        %3648 = vmatprep.subr.mxu0 0.0
        %3649 = vmatpush1.xpose.msra.mxu0 0.0
        %3650 = vmatprep.subr.mxu0 0.0
        %3651 = vmatpush1.xpose.msra.mxu0 0.0
        %3652 = vmatprep.subr.mxu0 0.0
        %3653 = vmatpush1.xpose.msra.mxu0 0.0
        %3654 = vmatprep.subr.mxu0 0.0
        %3655 = vmatpush1.xpose.msra.mxu0 0.0
        %3656 = vmatprep.subr.mxu0 0.0
        %3657 = vmatpush1.xpose.msra.mxu0 0.0
        %3658 = vmatprep.subr.mxu0 0.0
        %3659 = vmatpush1.xpose.msra.mxu0 0.0
        %3660 = vmatprep.subr.mxu0 0.0
        %3661 = vmatpush1.xpose.msra.mxu0 0.0
        %3662 = vmatprep.subr.mxu0 0.0
        %3663 = vmatpush1.xpose.msra.mxu0 0.0
        %3664 = vmatprep.subr.mxu0 0.0
        %3665 = vmatpush1.xpose.msra.mxu0 0.0
        %3666 = vmatprep.mubr.f32.mxu0 0.0
        %3667 = vmatmul.mubr.f32.gmra.mrb[0].mxu0 %v3597
        %v3668 = vpop.f32.mrb[0].mxu0
        %v3669 = vadd.f32 0.0, %v3668
        %v3670 = vpop.f32.mrb[0].mxu0
        %3671 = vdwg.mxu0
        %v3672 = vmul.f32 %v3669, 0.35355338
        %vm3673 = vcmask 57344
        %v3674 = vsel %vm3673, %v3672, -inf
        %3675 = vmax.xlane.f32.xlu0 %v3674
        %v3676 = vpop.xlane.xlu0 %3675
        %v3677 = vsub.f32 %v3672, %v3676
        %v3678 = vmul.f32 %v3677, 1.442695
        %v3679 = vpow.pop %v3678
        %v3680 = vsel %vm3673, %v3679, 0.0
        %3681 = vadd.xlane.f32.xlu0 %v3680
        %v3682 = vpop.xlane.xlu0 %3681
        %v3683 = vrcp.pop %v3682
        %v3684 = vmul.f32 %v3679, %v3683
        %v3685 = vmul.f32 %v3512, %v982
        %v3686 = vmul.f32 %v3592, %v1077
        %v3688 = vsel %vm740, %v3686, 0
        %3690 = vmatprep.subr.mxu0 0.0
        %3691 = vmatpush1.xpose.msra.mxu0 %v3600
        %3692 = vmatprep.subr.mxu0 0.0
        %3693 = vmatpush1.xpose.msra.mxu0 0.0
        %3694 = vmatprep.subr.mxu0 0.0
        %3695 = vmatpush1.xpose.msra.mxu0 0.0
        %3696 = vmatprep.subr.mxu0 0.0
        %3697 = vmatpush1.xpose.msra.mxu0 0.0
        %3698 = vmatprep.subr.mxu0 0.0
        %3699 = vmatpush1.xpose.msra.mxu0 0.0
        %3700 = vmatprep.subr.mxu0 0.0
        %3701 = vmatpush1.xpose.msra.mxu0 0.0
        %3702 = vmatprep.subr.mxu0 0.0
        %3703 = vmatpush1.xpose.msra.mxu0 0.0
        %3704 = vmatprep.subr.mxu0 0.0
        %3705 = vmatpush1.xpose.msra.mxu0 0.0
        %3706 = vmatprep.subr.mxu0 0.0
        %3707 = vmatpush1.xpose.msra.mxu0 0.0
        %3708 = vmatprep.subr.mxu0 0.0
        %3709 = vmatpush1.xpose.msra.mxu0 0.0
        %3710 = vmatprep.subr.mxu0 0.0
        %3711 = vmatpush1.xpose.msra.mxu0 0.0
        %3712 = vmatprep.subr.mxu0 0.0
        %3713 = vmatpush1.xpose.msra.mxu0 0.0
        %3714 = vmatprep.subr.mxu0 0.0
        %3715 = vmatpush1.xpose.msra.mxu0 0.0
        %3716 = vmatprep.subr.mxu0 0.0
        %3717 = vmatpush1.xpose.msra.mxu0 0.0
        %3718 = vmatprep.subr.mxu0 0.0
        %3719 = vmatpush1.xpose.msra.mxu0 0.0
        %3720 = vmatprep.subr.mxu0 0.0
        %3721 = vmatpush1.xpose.msra.mxu0 0.0
        %3722 = vmatprep.subr.mxu0 0.0
        %3723 = vmatpush1.xpose.msra.mxu0 0.0
        %3724 = vmatprep.subr.mxu0 0.0
        %3725 = vmatpush1.xpose.msra.mxu0 0.0
        %3726 = vmatprep.subr.mxu0 0.0
        %3727 = vmatpush1.xpose.msra.mxu0 0.0
        %3728 = vmatprep.subr.mxu0 0.0
        %3729 = vmatpush1.xpose.msra.mxu0 0.0
        %3730 = vmatprep.subr.mxu0 0.0
        %3731 = vmatpush1.xpose.msra.mxu0 0.0
        %3732 = vmatprep.subr.mxu0 0.0
        %3733 = vmatpush1.xpose.msra.mxu0 0.0
        %3734 = vmatprep.subr.mxu0 0.0
        %3735 = vmatpush1.xpose.msra.mxu0 0.0
        %3736 = vmatprep.subr.mxu0 0.0
        %3737 = vmatpush1.xpose.msra.mxu0 0.0
        %3738 = vmatprep.subr.mxu0 0.0
        %3739 = vmatpush1.xpose.msra.mxu0 0.0
        %3740 = vmatprep.subr.mxu0 0.0
        %3741 = vmatpush1.xpose.msra.mxu0 0.0
        %3742 = vmatprep.subr.mxu0 0.0
        %3743 = vmatpush1.xpose.msra.mxu0 0.0
        %3744 = vmatprep.subr.mxu0 0.0
        %3745 = vmatpush1.xpose.msra.mxu0 0.0
        %3746 = vmatprep.subr.mxu0 0.0
        %3747 = vmatpush1.xpose.msra.mxu0 0.0
        %3748 = vmatprep.subr.mxu0 0.0
        %3749 = vmatpush1.xpose.msra.mxu0 0.0
        %3750 = vmatprep.subr.mxu0 0.0
        %3751 = vmatpush1.xpose.msra.mxu0 0.0
        %3752 = vmatprep.subr.mxu0 0.0
        %3753 = vmatpush1.xpose.msra.mxu0 0.0
        %3754 = vmatprep.mubr.f32.mxu0 0.0
        %3755 = vmatmul.mubr.f32.gmra.mrb[0].mxu0 %v3688
        %v3756 = vpop.f32.mrb[0].mxu0
        %v3757 = vadd.f32 0.0, %v3756
        %v3758 = vpop.f32.mrb[0].mxu0
        %3759 = vdwg.mxu0
        %v3760 = vmul.f32 %v3757, 0.35355338
        %v3761 = vsel %vm3673, %v3760, -inf
        %3762 = vmax.xlane.f32.xlu0 %v3761
        %v3763 = vpop.xlane.xlu0 %3762
        %v3764 = vsub.f32 %v3760, %v3763
        %v3765 = vmul.f32 %v3764, 1.442695
        %v3766 = vpow.pop %v3765
        %v3767 = vsel %vm3673, %v3766, 0.0
        %3768 = vadd.xlane.f32.xlu0 %v3767
        %v3769 = vpop.xlane.xlu0 %3768
        %v3770 = vrcp.pop %v3769
        %v3771 = vmul.f32 %v3766, %v3770
        %v3772 = vmul.f32 %v3512, %v1077
        %v3774 = vsel %vm650, %v3771, 0
        %3776 = vmatprep.subr.mxu0 0.0
        %3777 = vmatpush1.msra.mxu0 %v3772
        %3778 = vmatprep.subr.mxu0 0.0
        %3779 = vmatpush1.msra.mxu0 0.0
        %3780 = vmatprep.subr.mxu0 0.0
        %3781 = vmatpush1.msra.mxu0 0.0
        %3782 = vmatprep.subr.mxu0 0.0
        %3783 = vmatpush1.msra.mxu0 0.0
        %3784 = vmatprep.subr.mxu0 0.0
        %3785 = vmatpush1.msra.mxu0 0.0
        %3786 = vmatprep.subr.mxu0 0.0
        %3787 = vmatpush1.msra.mxu0 0.0
        %3788 = vmatprep.subr.mxu0 0.0
        %3789 = vmatpush1.msra.mxu0 0.0
        %3790 = vmatprep.subr.mxu0 0.0
        %3791 = vmatpush1.msra.mxu0 0.0
        %3792 = vmatprep.subr.mxu0 0.0
        %3793 = vmatpush1.msra.mxu0 0.0
        %3794 = vmatprep.subr.mxu0 0.0
        %3795 = vmatpush1.msra.mxu0 0.0
        %3796 = vmatprep.subr.mxu0 0.0
        %3797 = vmatpush1.msra.mxu0 0.0
        %3798 = vmatprep.subr.mxu0 0.0
        %3799 = vmatpush1.msra.mxu0 0.0
        %3800 = vmatprep.subr.mxu0 0.0
        %3801 = vmatpush1.msra.mxu0 0.0
        %3802 = vmatprep.subr.mxu0 0.0
        %3803 = vmatpush1.msra.mxu0 0.0
        %3804 = vmatprep.subr.mxu0 0.0
        %3805 = vmatpush1.msra.mxu0 0.0
        %3806 = vmatprep.subr.mxu0 0.0
        %3807 = vmatpush1.msra.mxu0 0.0
        %3808 = vmatprep.subr.mxu0 0.0
        %3809 = vmatpush1.msra.mxu0 0.0
        %3810 = vmatprep.subr.mxu0 0.0
        %3811 = vmatpush1.msra.mxu0 0.0
        %3812 = vmatprep.subr.mxu0 0.0
        %3813 = vmatpush1.msra.mxu0 0.0
        %3814 = vmatprep.subr.mxu0 0.0
        %3815 = vmatpush1.msra.mxu0 0.0
        %3816 = vmatprep.subr.mxu0 0.0
        %3817 = vmatpush1.msra.mxu0 0.0
        %3818 = vmatprep.subr.mxu0 0.0
        %3819 = vmatpush1.msra.mxu0 0.0
        %3820 = vmatprep.subr.mxu0 0.0
        %3821 = vmatpush1.msra.mxu0 0.0
        %3822 = vmatprep.subr.mxu0 0.0
        %3823 = vmatpush1.msra.mxu0 0.0
        %3824 = vmatprep.subr.mxu0 0.0
        %3825 = vmatpush1.msra.mxu0 0.0
        %3826 = vmatprep.subr.mxu0 0.0
        %3827 = vmatpush1.msra.mxu0 0.0
        %3828 = vmatprep.subr.mxu0 0.0
        %3829 = vmatpush1.msra.mxu0 0.0
        %3830 = vmatprep.subr.mxu0 0.0
        %3831 = vmatpush1.msra.mxu0 0.0
        %3832 = vmatprep.subr.mxu0 0.0
        %3833 = vmatpush1.msra.mxu0 0.0
        %3834 = vmatprep.subr.mxu0 0.0
        %3835 = vmatpush1.msra.mxu0 0.0
        %3836 = vmatprep.subr.mxu0 0.0
        %3837 = vmatpush1.msra.mxu0 0.0
        %3838 = vmatprep.subr.mxu0 0.0
        %3839 = vmatpush1.msra.mxu0 0.0
        %3840 = vmatprep.mubr.f32.mxu0 0.0
        %3841 = vmatmul.mubr.f32.gmra.mrb[0].mxu0 %v3774
        %v3842 = vpop.f32.mrb[0].mxu0
        %v3843 = vadd.f32 0.0, %v3842
        %v3844 = vpop.f32.mrb[0].mxu0
        %3845 = vdwg.mxu0
        %v3847 = vsel %vm650, %v3684, 0
        %3849 = vmatprep.subr.mxu0 0.0
        %3850 = vmatpush1.msra.mxu0 %v3685
        %3851 = vmatprep.subr.mxu0 0.0
        %3852 = vmatpush1.msra.mxu0 0.0
        %3853 = vmatprep.subr.mxu0 0.0
        %3854 = vmatpush1.msra.mxu0 0.0
        %3855 = vmatprep.subr.mxu0 0.0
        %3856 = vmatpush1.msra.mxu0 0.0
        %3857 = vmatprep.subr.mxu0 0.0
        %3858 = vmatpush1.msra.mxu0 0.0
        %3859 = vmatprep.subr.mxu0 0.0
        %3860 = vmatpush1.msra.mxu0 0.0
        %3861 = vmatprep.subr.mxu0 0.0
        %3862 = vmatpush1.msra.mxu0 0.0
        %3863 = vmatprep.subr.mxu0 0.0
        %3864 = vmatpush1.msra.mxu0 0.0
        %3865 = vmatprep.subr.mxu0 0.0
        %3866 = vmatpush1.msra.mxu0 0.0
        %3867 = vmatprep.subr.mxu0 0.0
        %3868 = vmatpush1.msra.mxu0 0.0
        %3869 = vmatprep.subr.mxu0 0.0
        %3870 = vmatpush1.msra.mxu0 0.0
        %3871 = vmatprep.subr.mxu0 0.0
        %3872 = vmatpush1.msra.mxu0 0.0
        %3873 = vmatprep.subr.mxu0 0.0
        %3874 = vmatpush1.msra.mxu0 0.0
        %3875 = vmatprep.subr.mxu0 0.0
        %3876 = vmatpush1.msra.mxu0 0.0
        %3877 = vmatprep.subr.mxu0 0.0
        %3878 = vmatpush1.msra.mxu0 0.0
        %3879 = vmatprep.subr.mxu0 0.0
        %3880 = vmatpush1.msra.mxu0 0.0
        %3881 = vmatprep.subr.mxu0 0.0
        %3882 = vmatpush1.msra.mxu0 0.0
        %3883 = vmatprep.subr.mxu0 0.0
        %3884 = vmatpush1.msra.mxu0 0.0
        %3885 = vmatprep.subr.mxu0 0.0
        %3886 = vmatpush1.msra.mxu0 0.0
        %3887 = vmatprep.subr.mxu0 0.0
        %3888 = vmatpush1.msra.mxu0 0.0
        %3889 = vmatprep.subr.mxu0 0.0
        %3890 = vmatpush1.msra.mxu0 0.0
        %3891 = vmatprep.subr.mxu0 0.0
        %3892 = vmatpush1.msra.mxu0 0.0
        %3893 = vmatprep.subr.mxu0 0.0
        %3894 = vmatpush1.msra.mxu0 0.0
        %3895 = vmatprep.subr.mxu0 0.0
        %3896 = vmatpush1.msra.mxu0 0.0
        %3897 = vmatprep.subr.mxu0 0.0
        %3898 = vmatpush1.msra.mxu0 0.0
        %3899 = vmatprep.subr.mxu0 0.0
        %3900 = vmatpush1.msra.mxu0 0.0
        %3901 = vmatprep.subr.mxu0 0.0
        %3902 = vmatpush1.msra.mxu0 0.0
        %3903 = vmatprep.subr.mxu0 0.0
        %3904 = vmatpush1.msra.mxu0 0.0
        %3905 = vmatprep.subr.mxu0 0.0
        %3906 = vmatpush1.msra.mxu0 0.0
        %3907 = vmatprep.subr.mxu0 0.0
        %3908 = vmatpush1.msra.mxu0 0.0
        %3909 = vmatprep.subr.mxu0 0.0
        %3910 = vmatpush1.msra.mxu0 0.0
        %3911 = vmatprep.subr.mxu0 0.0
        %3912 = vmatpush1.msra.mxu0 0.0
        %3913 = vmatprep.mubr.f32.mxu0 0.0
        %3914 = vmatmul.mubr.f32.gmra.mrb[0].mxu0 %v3847
        %v3915 = vpop.f32.mrb[0].mxu0
        %v3916 = vadd.f32 %v3843, %v3915
        %v3917 = vpop.f32.mrb[0].mxu0
        %3918 = vdwg.mxu0
        %v3919 = vmul.f32 %v3592, %v1315
        %v3921 = vsel %vm740, %v3919, 0
        %3923 = vmatprep.subr.mxu0 0.0
        %3924 = vmatpush1.xpose.msra.mxu0 %v3600
        %3925 = vmatprep.subr.mxu0 0.0
        %3926 = vmatpush1.xpose.msra.mxu0 0.0
        %3927 = vmatprep.subr.mxu0 0.0
        %3928 = vmatpush1.xpose.msra.mxu0 0.0
        %3929 = vmatprep.subr.mxu0 0.0
        %3930 = vmatpush1.xpose.msra.mxu0 0.0
        %3931 = vmatprep.subr.mxu0 0.0
        %3932 = vmatpush1.xpose.msra.mxu0 0.0
        %3933 = vmatprep.subr.mxu0 0.0
        %3934 = vmatpush1.xpose.msra.mxu0 0.0
        %3935 = vmatprep.subr.mxu0 0.0
        %3936 = vmatpush1.xpose.msra.mxu0 0.0
        %3937 = vmatprep.subr.mxu0 0.0
        %3938 = vmatpush1.xpose.msra.mxu0 0.0
        %3939 = vmatprep.subr.mxu0 0.0
        %3940 = vmatpush1.xpose.msra.mxu0 0.0
        %3941 = vmatprep.subr.mxu0 0.0
        %3942 = vmatpush1.xpose.msra.mxu0 0.0
        %3943 = vmatprep.subr.mxu0 0.0
        %3944 = vmatpush1.xpose.msra.mxu0 0.0
        %3945 = vmatprep.subr.mxu0 0.0
        %3946 = vmatpush1.xpose.msra.mxu0 0.0
        %3947 = vmatprep.subr.mxu0 0.0
        %3948 = vmatpush1.xpose.msra.mxu0 0.0
        %3949 = vmatprep.subr.mxu0 0.0
        %3950 = vmatpush1.xpose.msra.mxu0 0.0
        %3951 = vmatprep.subr.mxu0 0.0
        %3952 = vmatpush1.xpose.msra.mxu0 0.0
        %3953 = vmatprep.subr.mxu0 0.0
        %3954 = vmatpush1.xpose.msra.mxu0 0.0
        %3955 = vmatprep.subr.mxu0 0.0
        %3956 = vmatpush1.xpose.msra.mxu0 0.0
        %3957 = vmatprep.subr.mxu0 0.0
        %3958 = vmatpush1.xpose.msra.mxu0 0.0
        %3959 = vmatprep.subr.mxu0 0.0
        %3960 = vmatpush1.xpose.msra.mxu0 0.0
        %3961 = vmatprep.subr.mxu0 0.0
        %3962 = vmatpush1.xpose.msra.mxu0 0.0
        %3963 = vmatprep.subr.mxu0 0.0
        %3964 = vmatpush1.xpose.msra.mxu0 0.0
        %3965 = vmatprep.subr.mxu0 0.0
        %3966 = vmatpush1.xpose.msra.mxu0 0.0
        %3967 = vmatprep.subr.mxu0 0.0
        %3968 = vmatpush1.xpose.msra.mxu0 0.0
        %3969 = vmatprep.subr.mxu0 0.0
        %3970 = vmatpush1.xpose.msra.mxu0 0.0
        %3971 = vmatprep.subr.mxu0 0.0
        %3972 = vmatpush1.xpose.msra.mxu0 0.0
        %3973 = vmatprep.subr.mxu0 0.0
        %3974 = vmatpush1.xpose.msra.mxu0 0.0
        %3975 = vmatprep.subr.mxu0 0.0
        %3976 = vmatpush1.xpose.msra.mxu0 0.0
        %3977 = vmatprep.subr.mxu0 0.0
        %3978 = vmatpush1.xpose.msra.mxu0 0.0
        %3979 = vmatprep.subr.mxu0 0.0
        %3980 = vmatpush1.xpose.msra.mxu0 0.0
        %3981 = vmatprep.subr.mxu0 0.0
        %3982 = vmatpush1.xpose.msra.mxu0 0.0
        %3983 = vmatprep.subr.mxu0 0.0
        %3984 = vmatpush1.xpose.msra.mxu0 0.0
        %3985 = vmatprep.subr.mxu0 0.0
        %3986 = vmatpush1.xpose.msra.mxu0 0.0
        %3987 = vmatprep.mubr.f32.mxu0 0.0
        %3988 = vmatmul.mubr.f32.gmra.mrb[0].mxu0 %v3921
        %v3989 = vpop.f32.mrb[0].mxu0
        %v3990 = vadd.f32 0.0, %v3989
        %v3991 = vpop.f32.mrb[0].mxu0
        %3992 = vdwg.mxu0
        %v3993 = vmul.f32 %v3990, 0.35355338
        %v3994 = vsel %vm3673, %v3993, -inf
        %3995 = vmax.xlane.f32.xlu0 %v3994
        %v3996 = vpop.xlane.xlu0 %3995
        %v3997 = vsub.f32 %v3993, %v3996
        %v3998 = vmul.f32 %v3997, 1.442695
        %v3999 = vpow.pop %v3998
        %v4000 = vsel %vm3673, %v3999, 0.0
        %4001 = vadd.xlane.f32.xlu0 %v4000
        %v4002 = vpop.xlane.xlu0 %4001
        %v4003 = vrcp.pop %v4002
        %v4004 = vmul.f32 %v3999, %v4003
        %v4005 = vmul.f32 %v3512, %v1315
        %v4007 = vsel %vm650, %v4004, 0
        %4009 = vmatprep.subr.mxu0 0.0
        %4010 = vmatpush1.msra.mxu0 %v4005
        %4011 = vmatprep.subr.mxu0 0.0
        %4012 = vmatpush1.msra.mxu0 0.0
        %4013 = vmatprep.subr.mxu0 0.0
        %4014 = vmatpush1.msra.mxu0 0.0
        %4015 = vmatprep.subr.mxu0 0.0
        %4016 = vmatpush1.msra.mxu0 0.0
        %4017 = vmatprep.subr.mxu0 0.0
        %4018 = vmatpush1.msra.mxu0 0.0
        %4019 = vmatprep.subr.mxu0 0.0
        %4020 = vmatpush1.msra.mxu0 0.0
        %4021 = vmatprep.subr.mxu0 0.0
        %4022 = vmatpush1.msra.mxu0 0.0
        %4023 = vmatprep.subr.mxu0 0.0
        %4024 = vmatpush1.msra.mxu0 0.0
        %4025 = vmatprep.subr.mxu0 0.0
        %4026 = vmatpush1.msra.mxu0 0.0
        %4027 = vmatprep.subr.mxu0 0.0
        %4028 = vmatpush1.msra.mxu0 0.0
        %4029 = vmatprep.subr.mxu0 0.0
        %4030 = vmatpush1.msra.mxu0 0.0
        %4031 = vmatprep.subr.mxu0 0.0
        %4032 = vmatpush1.msra.mxu0 0.0
        %4033 = vmatprep.subr.mxu0 0.0
        %4034 = vmatpush1.msra.mxu0 0.0
        %4035 = vmatprep.subr.mxu0 0.0
        %4036 = vmatpush1.msra.mxu0 0.0
        %4037 = vmatprep.subr.mxu0 0.0
        %4038 = vmatpush1.msra.mxu0 0.0
        %4039 = vmatprep.subr.mxu0 0.0
        %4040 = vmatpush1.msra.mxu0 0.0
        %4041 = vmatprep.subr.mxu0 0.0
        %4042 = vmatpush1.msra.mxu0 0.0
        %4043 = vmatprep.subr.mxu0 0.0
        %4044 = vmatpush1.msra.mxu0 0.0
        %4045 = vmatprep.subr.mxu0 0.0
        %4046 = vmatpush1.msra.mxu0 0.0
        %4047 = vmatprep.subr.mxu0 0.0
        %4048 = vmatpush1.msra.mxu0 0.0
        %4049 = vmatprep.subr.mxu0 0.0
        %4050 = vmatpush1.msra.mxu0 0.0
        %4051 = vmatprep.subr.mxu0 0.0
        %4052 = vmatpush1.msra.mxu0 0.0
        %4053 = vmatprep.subr.mxu0 0.0
        %4054 = vmatpush1.msra.mxu0 0.0
        %4055 = vmatprep.subr.mxu0 0.0
        %4056 = vmatpush1.msra.mxu0 0.0
        %4057 = vmatprep.subr.mxu0 0.0
        %4058 = vmatpush1.msra.mxu0 0.0
        %4059 = vmatprep.subr.mxu0 0.0
        %4060 = vmatpush1.msra.mxu0 0.0
        %4061 = vmatprep.subr.mxu0 0.0
        %4062 = vmatpush1.msra.mxu0 0.0
        %4063 = vmatprep.subr.mxu0 0.0
        %4064 = vmatpush1.msra.mxu0 0.0
        %4065 = vmatprep.subr.mxu0 0.0
        %4066 = vmatpush1.msra.mxu0 0.0
        %4067 = vmatprep.subr.mxu0 0.0
        %4068 = vmatpush1.msra.mxu0 0.0
        %4069 = vmatprep.subr.mxu0 0.0
        %4070 = vmatpush1.msra.mxu0 0.0
        %4071 = vmatprep.subr.mxu0 0.0
        %4072 = vmatpush1.msra.mxu0 0.0
        %4073 = vmatprep.mubr.f32.mxu0 0.0
        %4074 = vmatmul.mubr.f32.gmra.mrb[0].mxu0 %v4007
        %v4075 = vpop.f32.mrb[0].mxu0
        %v4076 = vadd.f32 0.0, %v4075
        %v4077 = vpop.f32.mrb[0].mxu0
        %4078 = vdwg.mxu0
        %v4079 = vadd.f32 %v3916, %v4076
        %v4080 = vmul.f32 %v3592, %v1481
        %v4082 = vsel %vm740, %v4080, 0
        %4084 = vmatprep.subr.mxu0 0.0
        %4085 = vmatpush1.xpose.msra.mxu0 %v3600
        %4086 = vmatprep.subr.mxu0 0.0
        %4087 = vmatpush1.xpose.msra.mxu0 0.0
        %4088 = vmatprep.subr.mxu0 0.0
        %4089 = vmatpush1.xpose.msra.mxu0 0.0
        %4090 = vmatprep.subr.mxu0 0.0
        %4091 = vmatpush1.xpose.msra.mxu0 0.0
        %4092 = vmatprep.subr.mxu0 0.0
        %4093 = vmatpush1.xpose.msra.mxu0 0.0
        %4094 = vmatprep.subr.mxu0 0.0
        %4095 = vmatpush1.xpose.msra.mxu0 0.0
        %4096 = vmatprep.subr.mxu0 0.0
        %4097 = vmatpush1.xpose.msra.mxu0 0.0
        %4098 = vmatprep.subr.mxu0 0.0
        %4099 = vmatpush1.xpose.msra.mxu0 0.0
        %4100 = vmatprep.subr.mxu0 0.0
        %4101 = vmatpush1.xpose.msra.mxu0 0.0
        %4102 = vmatprep.subr.mxu0 0.0
        %4103 = vmatpush1.xpose.msra.mxu0 0.0
        %4104 = vmatprep.subr.mxu0 0.0
        %4105 = vmatpush1.xpose.msra.mxu0 0.0
        %4106 = vmatprep.subr.mxu0 0.0
        %4107 = vmatpush1.xpose.msra.mxu0 0.0
        %4108 = vmatprep.subr.mxu0 0.0
        %4109 = vmatpush1.xpose.msra.mxu0 0.0
        %4110 = vmatprep.subr.mxu0 0.0
        %4111 = vmatpush1.xpose.msra.mxu0 0.0
        %4112 = vmatprep.subr.mxu0 0.0
        %4113 = vmatpush1.xpose.msra.mxu0 0.0
        %4114 = vmatprep.subr.mxu0 0.0
        %4115 = vmatpush1.xpose.msra.mxu0 0.0
        %4116 = vmatprep.subr.mxu0 0.0
        %4117 = vmatpush1.xpose.msra.mxu0 0.0
        %4118 = vmatprep.subr.mxu0 0.0
        %4119 = vmatpush1.xpose.msra.mxu0 0.0
        %4120 = vmatprep.subr.mxu0 0.0
        %4121 = vmatpush1.xpose.msra.mxu0 0.0
        %4122 = vmatprep.subr.mxu0 0.0
        %4123 = vmatpush1.xpose.msra.mxu0 0.0
        %4124 = vmatprep.subr.mxu0 0.0
        %4125 = vmatpush1.xpose.msra.mxu0 0.0
        %4126 = vmatprep.subr.mxu0 0.0
        %4127 = vmatpush1.xpose.msra.mxu0 0.0
        %4128 = vmatprep.subr.mxu0 0.0
        %4129 = vmatpush1.xpose.msra.mxu0 0.0
        %4130 = vmatprep.subr.mxu0 0.0
        %4131 = vmatpush1.xpose.msra.mxu0 0.0
        %4132 = vmatprep.subr.mxu0 0.0
        %4133 = vmatpush1.xpose.msra.mxu0 0.0
        %4134 = vmatprep.subr.mxu0 0.0
        %4135 = vmatpush1.xpose.msra.mxu0 0.0
        %4136 = vmatprep.subr.mxu0 0.0
        %4137 = vmatpush1.xpose.msra.mxu0 0.0
        %4138 = vmatprep.subr.mxu0 0.0
        %4139 = vmatpush1.xpose.msra.mxu0 0.0
        %4140 = vmatprep.subr.mxu0 0.0
        %4141 = vmatpush1.xpose.msra.mxu0 0.0
        %4142 = vmatprep.subr.mxu0 0.0
        %4143 = vmatpush1.xpose.msra.mxu0 0.0
        %4144 = vmatprep.subr.mxu0 0.0
        %4145 = vmatpush1.xpose.msra.mxu0 0.0
        %4146 = vmatprep.subr.mxu0 0.0
        %4147 = vmatpush1.xpose.msra.mxu0 0.0
        %4148 = vmatprep.mubr.f32.mxu0 0.0
        %4149 = vmatmul.mubr.f32.gmra.mrb[0].mxu0 %v4082
        %v4150 = vpop.f32.mrb[0].mxu0
        %v4151 = vadd.f32 0.0, %v4150
        %v4152 = vpop.f32.mrb[0].mxu0
        %4153 = vdwg.mxu0
        %v4154 = vmul.f32 %v4151, 0.35355338
        %v4155 = vsel %vm3673, %v4154, -inf
        %4156 = vmax.xlane.f32.xlu0 %v4155
        %v4157 = vpop.xlane.xlu0 %4156
        %v4158 = vsub.f32 %v4154, %v4157
        %v4159 = vmul.f32 %v4158, 1.442695
        %v4160 = vpow.pop %v4159
        %v4161 = vsel %vm3673, %v4160, 0.0
        %4162 = vadd.xlane.f32.xlu0 %v4161
        %v4163 = vpop.xlane.xlu0 %4162
        %v4164 = vrcp.pop %v4163
        %v4165 = vmul.f32 %v4160, %v4164
        %v4166 = vmul.f32 %v3512, %v1481
        %v4168 = vsel %vm650, %v4165, 0
        %4170 = vmatprep.subr.mxu0 0.0
        %4171 = vmatpush1.msra.mxu0 %v4166
        %4172 = vmatprep.subr.mxu0 0.0
        %4173 = vmatpush1.msra.mxu0 0.0
        %4174 = vmatprep.subr.mxu0 0.0
        %4175 = vmatpush1.msra.mxu0 0.0
        %4176 = vmatprep.subr.mxu0 0.0
        %4177 = vmatpush1.msra.mxu0 0.0
        %4178 = vmatprep.subr.mxu0 0.0
        %4179 = vmatpush1.msra.mxu0 0.0
        %4180 = vmatprep.subr.mxu0 0.0
        %4181 = vmatpush1.msra.mxu0 0.0
        %4182 = vmatprep.subr.mxu0 0.0
        %4183 = vmatpush1.msra.mxu0 0.0
        %4184 = vmatprep.subr.mxu0 0.0
        %4185 = vmatpush1.msra.mxu0 0.0
        %4186 = vmatprep.subr.mxu0 0.0
        %4187 = vmatpush1.msra.mxu0 0.0
        %4188 = vmatprep.subr.mxu0 0.0
        %4189 = vmatpush1.msra.mxu0 0.0
        %4190 = vmatprep.subr.mxu0 0.0
        %4191 = vmatpush1.msra.mxu0 0.0
        %4192 = vmatprep.subr.mxu0 0.0
        %4193 = vmatpush1.msra.mxu0 0.0
        %4194 = vmatprep.subr.mxu0 0.0
        %4195 = vmatpush1.msra.mxu0 0.0
        %4196 = vmatprep.subr.mxu0 0.0
        %4197 = vmatpush1.msra.mxu0 0.0
        %4198 = vmatprep.subr.mxu0 0.0
        %4199 = vmatpush1.msra.mxu0 0.0
        %4200 = vmatprep.subr.mxu0 0.0
        %4201 = vmatpush1.msra.mxu0 0.0
        %4202 = vmatprep.subr.mxu0 0.0
        %4203 = vmatpush1.msra.mxu0 0.0
        %4204 = vmatprep.subr.mxu0 0.0
        %4205 = vmatpush1.msra.mxu0 0.0
        %4206 = vmatprep.subr.mxu0 0.0
        %4207 = vmatpush1.msra.mxu0 0.0
        %4208 = vmatprep.subr.mxu0 0.0
        %4209 = vmatpush1.msra.mxu0 0.0
        %4210 = vmatprep.subr.mxu0 0.0
        %4211 = vmatpush1.msra.mxu0 0.0
        %4212 = vmatprep.subr.mxu0 0.0
        %4213 = vmatpush1.msra.mxu0 0.0
        %4214 = vmatprep.subr.mxu0 0.0
        %4215 = vmatpush1.msra.mxu0 0.0
        %4216 = vmatprep.subr.mxu0 0.0
        %4217 = vmatpush1.msra.mxu0 0.0
        %4218 = vmatprep.subr.mxu0 0.0
        %4219 = vmatpush1.msra.mxu0 0.0
        %4220 = vmatprep.subr.mxu0 0.0
        %4221 = vmatpush1.msra.mxu0 0.0
        %4222 = vmatprep.subr.mxu0 0.0
        %4223 = vmatpush1.msra.mxu0 0.0
        %4224 = vmatprep.subr.mxu0 0.0
        %4225 = vmatpush1.msra.mxu0 0.0
        %4226 = vmatprep.subr.mxu0 0.0
        %4227 = vmatpush1.msra.mxu0 0.0
        %4228 = vmatprep.subr.mxu0 0.0
        %4229 = vmatpush1.msra.mxu0 0.0
        %4230 = vmatprep.subr.mxu0 0.0
        %4231 = vmatpush1.msra.mxu0 0.0
        %4232 = vmatprep.subr.mxu0 0.0
        %4233 = vmatpush1.msra.mxu0 0.0
        %4234 = vmatprep.mubr.f32.mxu0 0.0
        %4235 = vmatmul.mubr.f32.gmra.mrb[0].mxu0 %v4168
        %v4236 = vpop.f32.mrb[0].mxu0
        %v4237 = vadd.f32 0.0, %v4236
        %v4238 = vpop.f32.mrb[0].mxu0
        %4239 = vdwg.mxu0
        %v4240 = vadd.f32 %v4079, %v4237
        %s4241 = scalar_lea.vmem %s10, 32
        %v4242 = vld [vmem:[%s4241] sm:$0xff]
        %v4243 = vld [vmem:[%s4241 + $0x8] sm:$0xff]
        %v4244 = vld [vmem:[%s4241 + $0x10] sm:$0xff]
        %v4245 = vld [vmem:[%s4241 + $0x18] sm:$0xff]
        %s4246 = scalar_lea.vmem %s11, 1
        %v4247 = vld [vmem:[%s4246] sm:$0x1]
        %v4249 = vsel %vm740, %v4240, 0
        %4251 = vmatprep.subr.mxu0 0.0
        %4252 = vmatpush1.msra.mxu0 %v4242
        %4253 = vmatprep.subr.mxu0 0.0
        %4254 = vmatpush1.msra.mxu0 %v4243
        %4255 = vmatprep.subr.mxu0 0.0
        %4256 = vmatpush1.msra.mxu0 %v4244
        %4257 = vmatprep.subr.mxu0 0.0
        %4258 = vmatpush1.msra.mxu0 %v4245
        %4259 = vmatprep.subr.mxu0 0.0
        %4260 = vmatpush1.msra.mxu0 0.0
        %4261 = vmatprep.subr.mxu0 0.0
        %4262 = vmatpush1.msra.mxu0 0.0
        %4263 = vmatprep.subr.mxu0 0.0
        %4264 = vmatpush1.msra.mxu0 0.0
        %4265 = vmatprep.subr.mxu0 0.0
        %4266 = vmatpush1.msra.mxu0 0.0
        %4267 = vmatprep.subr.mxu0 0.0
        %4268 = vmatpush1.msra.mxu0 0.0
        %4269 = vmatprep.subr.mxu0 0.0
        %4270 = vmatpush1.msra.mxu0 0.0
        %4271 = vmatprep.subr.mxu0 0.0
        %4272 = vmatpush1.msra.mxu0 0.0
        %4273 = vmatprep.subr.mxu0 0.0
        %4274 = vmatpush1.msra.mxu0 0.0
        %4275 = vmatprep.subr.mxu0 0.0
        %4276 = vmatpush1.msra.mxu0 0.0
        %4277 = vmatprep.subr.mxu0 0.0
        %4278 = vmatpush1.msra.mxu0 0.0
        %4279 = vmatprep.subr.mxu0 0.0
        %4280 = vmatpush1.msra.mxu0 0.0
        %4281 = vmatprep.subr.mxu0 0.0
        %4282 = vmatpush1.msra.mxu0 0.0
        %4283 = vmatprep.subr.mxu0 0.0
        %4284 = vmatpush1.msra.mxu0 0.0
        %4285 = vmatprep.subr.mxu0 0.0
        %4286 = vmatpush1.msra.mxu0 0.0
        %4287 = vmatprep.subr.mxu0 0.0
        %4288 = vmatpush1.msra.mxu0 0.0
        %4289 = vmatprep.subr.mxu0 0.0
        %4290 = vmatpush1.msra.mxu0 0.0
        %4291 = vmatprep.subr.mxu0 0.0
        %4292 = vmatpush1.msra.mxu0 0.0
        %4293 = vmatprep.subr.mxu0 0.0
        %4294 = vmatpush1.msra.mxu0 0.0
        %4295 = vmatprep.subr.mxu0 0.0
        %4296 = vmatpush1.msra.mxu0 0.0
        %4297 = vmatprep.subr.mxu0 0.0
        %4298 = vmatpush1.msra.mxu0 0.0
        %4299 = vmatprep.subr.mxu0 0.0
        %4300 = vmatpush1.msra.mxu0 0.0
        %4301 = vmatprep.subr.mxu0 0.0
        %4302 = vmatpush1.msra.mxu0 0.0
        %4303 = vmatprep.subr.mxu0 0.0
        %4304 = vmatpush1.msra.mxu0 0.0
        %4305 = vmatprep.subr.mxu0 0.0
        %4306 = vmatpush1.msra.mxu0 0.0
        %4307 = vmatprep.subr.mxu0 0.0
        %4308 = vmatpush1.msra.mxu0 0.0
        %4309 = vmatprep.subr.mxu0 0.0
        %4310 = vmatpush1.msra.mxu0 0.0
        %4311 = vmatprep.subr.mxu0 0.0
        %4312 = vmatpush1.msra.mxu0 0.0
        %4313 = vmatprep.subr.mxu0 0.0
        %4314 = vmatpush1.msra.mxu0 0.0
        %4315 = vmatprep.mubr.f32.mxu0 0.0
        %4316 = vmatmul.mubr.f32.gmra.mrb[0].mxu0 %v4249
        %v4317 = vpop.f32.mrb[0].mxu0
        %v4318 = vadd.f32 %v4247, %v4317
        %v4319 = vpop.f32.mrb[0].mxu0
        %4320 = vdwg.mxu0
        %v4322 = vrot.slane %v4318, 1
        %v4324 = vadd.f32 %v3345, %v4322
        %s4325 = scalar_lea.vmem %s16, 1
        %v4326 = vld [vmem:[%s4325] sm:$0x1]
        %s4327 = scalar_lea.vmem %s17, 1
        %v4328 = vld [vmem:[%s4327] sm:$0x1]
        %vm4329 = vcmask 261127
        %v4330 = vsel %vm4329, %v4324, 0.0
        %4331 = vadd.xlane.f32.xlu0 %v4330
        %v4332 = vpop.xlane.xlu0 %4331
        %v4333 = vmul.f32 %v4332, %v1733
        %v4334 = vsub.f32 %v4324, %v4333
        %v4335 = vmul.f32 %v4334, %v4334
        %v4336 = vsel %vm4329, %v4335, 0.0
        %4337 = vadd.xlane.f32.xlu0 %v4336
        %v4338 = vpop.xlane.xlu0 %4337
        %v4339 = vmul.f32 %v4338, %v1733
        %v4340 = vadd.f32 %v4339, 1e-05
        %v4341 = vrsqrt.pop %v4340
        %v4342 = vmul.f32 %v4334, %v4341
        %v4344 = vlaneseq
        %v4345 = vshrl.u32 %v4344, 7
        %v4346 = vsub.s32 0, %v4345
        %v4347 = vrot.slane %v4326, %v4346
        %v4349 = vmul.f32 %v4342, %v4347
        %v4351 = vlaneseq
        %v4352 = vshrl.u32 %v4351, 7
        %v4353 = vsub.s32 0, %v4352
        %v4354 = vrot.slane %v4328, %v4353
        %v4356 = vadd.f32 %v4349, %v4354
        %s4357 = scalar_lea.vmem %s12, 512
        %v4358 = vld [vmem:[%s4357] sm:$0xff]
        %v4359 = vld [vmem:[%s4357 + $0x8] sm:$0xff]
        %v4360 = vld [vmem:[%s4357 + $0x10] sm:$0xff]
        %v4361 = vld [vmem:[%s4357 + $0x18] sm:$0xff]
        %v4362 = vld [vmem:[%s4357 + $0x20] sm:$0xff]
        %v4363 = vld [vmem:[%s4357 + $0x28] sm:$0xff]
        %v4364 = vld [vmem:[%s4357 + $0x30] sm:$0xff]
        %v4365 = vld [vmem:[%s4357 + $0x38] sm:$0xff]
        %v4366 = vld [vmem:[%s4357 + $0x40] sm:$0xff]
        %v4367 = vld [vmem:[%s4357 + $0x48] sm:$0xff]
        %v4368 = vld [vmem:[%s4357 + $0x50] sm:$0xff]
        %v4369 = vld [vmem:[%s4357 + $0x58] sm:$0xff]
        %v4370 = vld [vmem:[%s4357 + $0x60] sm:$0xff]
        %v4371 = vld [vmem:[%s4357 + $0x68] sm:$0xff]
        %v4372 = vld [vmem:[%s4357 + $0x70] sm:$0xff]
        %v4373 = vld [vmem:[%s4357 + $0x78] sm:$0xff]
        %v4374 = vld [vmem:[%s4357 + $0x80] sm:$0xff]
        %v4375 = vld [vmem:[%s4357 + $0x88] sm:$0xff]
        %v4376 = vld [vmem:[%s4357 + $0x90] sm:$0xff]
        %v4377 = vld [vmem:[%s4357 + $0x98] sm:$0xff]
        %v4378 = vld [vmem:[%s4357 + $0xa0] sm:$0xff]
        %v4379 = vld [vmem:[%s4357 + $0xa8] sm:$0xff]
        %v4380 = vld [vmem:[%s4357 + $0xb0] sm:$0xff]
        %v4381 = vld [vmem:[%s4357 + $0xb8] sm:$0xff]
        %v4382 = vld [vmem:[%s4357 + $0xc0] sm:$0xff]
        %v4383 = vld [vmem:[%s4357 + $0xc8] sm:$0xff]
        %v4384 = vld [vmem:[%s4357 + $0xd0] sm:$0xff]
        %v4385 = vld [vmem:[%s4357 + $0xd8] sm:$0xff]
        %v4386 = vld [vmem:[%s4357 + $0xe0] sm:$0xff]
        %v4387 = vld [vmem:[%s4357 + $0xe8] sm:$0xff]
        %v4388 = vld [vmem:[%s4357 + $0xf0] sm:$0xff]
        %v4389 = vld [vmem:[%s4357 + $0xf8] sm:$0xff]
        %v4390 = vld [vmem:[%s4357 + $0x100] sm:$0xff]
        %v4391 = vld [vmem:[%s4357 + $0x108] sm:$0xff]
        %v4392 = vld [vmem:[%s4357 + $0x110] sm:$0xff]
        %v4393 = vld [vmem:[%s4357 + $0x118] sm:$0xff]
        %v4394 = vld [vmem:[%s4357 + $0x120] sm:$0xff]
        %v4395 = vld [vmem:[%s4357 + $0x128] sm:$0xff]
        %v4396 = vld [vmem:[%s4357 + $0x130] sm:$0xff]
        %v4397 = vld [vmem:[%s4357 + $0x138] sm:$0xff]
        %v4398 = vld [vmem:[%s4357 + $0x140] sm:$0xff]
        %v4399 = vld [vmem:[%s4357 + $0x148] sm:$0xff]
        %v4400 = vld [vmem:[%s4357 + $0x150] sm:$0xff]
        %v4401 = vld [vmem:[%s4357 + $0x158] sm:$0xff]
        %v4402 = vld [vmem:[%s4357 + $0x160] sm:$0xff]
        %v4403 = vld [vmem:[%s4357 + $0x168] sm:$0xff]
        %v4404 = vld [vmem:[%s4357 + $0x170] sm:$0xff]
        %v4405 = vld [vmem:[%s4357 + $0x178] sm:$0xff]
        %v4406 = vld [vmem:[%s4357 + $0x180] sm:$0xff]
        %v4407 = vld [vmem:[%s4357 + $0x188] sm:$0xff]
        %v4408 = vld [vmem:[%s4357 + $0x190] sm:$0xff]
        %v4409 = vld [vmem:[%s4357 + $0x198] sm:$0xff]
        %v4410 = vld [vmem:[%s4357 + $0x1a0] sm:$0xff]
        %v4411 = vld [vmem:[%s4357 + $0x1a8] sm:$0xff]
        %v4412 = vld [vmem:[%s4357 + $0x1b0] sm:$0xff]
        %v4413 = vld [vmem:[%s4357 + $0x1b8] sm:$0xff]
        %v4414 = vld [vmem:[%s4357 + $0x1c0] sm:$0xff]
        %v4415 = vld [vmem:[%s4357 + $0x1c8] sm:$0xff]
        %v4416 = vld [vmem:[%s4357 + $0x1d0] sm:$0xff]
        %v4417 = vld [vmem:[%s4357 + $0x1d8] sm:$0xff]
        %v4418 = vld [vmem:[%s4357 + $0x1e0] sm:$0xff]
        %v4419 = vld [vmem:[%s4357 + $0x1e8] sm:$0xff]
        %v4420 = vld [vmem:[%s4357 + $0x1f0] sm:$0xff]
        %v4421 = vld [vmem:[%s4357 + $0x1f8] sm:$0xff]
        %s4422 = scalar_lea.vmem %s13, 16
        %v4423 = vld [vmem:[%s4422] sm:$0xff]
        %v4424 = vld [vmem:[%s4422 + $0x8] sm:$0xff]
        %v4426 = vrot.slane %v4356, 7
        %v4429 = vlaneseq
        %v4430 = vshrl.u32 %v4429, 7
        %v4431 = vsub.s32 0, %v4430
        %v4432 = vrot.slane %v4423, %v4431
        %v4433 = vlaneseq
        %v4434 = vshrl.u32 %v4433, 7
        %v4435 = vsub.s32 1, %v4434
        %v4436 = vrot.slane %v4423, %v4435
        %v4437 = vlaneseq
        %v4438 = vshrl.u32 %v4437, 7
        %v4439 = vsub.s32 2, %v4438
        %v4440 = vrot.slane %v4423, %v4439
        %v4441 = vlaneseq
        %v4442 = vshrl.u32 %v4441, 7
        %v4443 = vsub.s32 3, %v4442
        %v4444 = vrot.slane %v4423, %v4443
        %v4445 = vlaneseq
        %v4446 = vshrl.u32 %v4445, 7
        %v4447 = vsub.s32 4, %v4446
        %v4448 = vrot.slane %v4423, %v4447
        %v4449 = vlaneseq
        %v4450 = vshrl.u32 %v4449, 7
        %v4451 = vsub.s32 5, %v4450
        %v4452 = vrot.slane %v4423, %v4451
        %v4453 = vlaneseq
        %v4454 = vshrl.u32 %v4453, 7
        %v4455 = vsub.s32 6, %v4454
        %v4456 = vrot.slane %v4423, %v4455
        %v4457 = vlaneseq
        %v4458 = vshrl.u32 %v4457, 7
        %v4459 = vsub.s32 7, %v4458
        %v4460 = vrot.slane %v4423, %v4459
        %v4461 = vlaneseq
        %v4462 = vshrl.u32 %v4461, 7
        %v4463 = vsub.s32 0, %v4462
        %v4464 = vrot.slane %v4424, %v4463
        %v4465 = vlaneseq
        %v4466 = vshrl.u32 %v4465, 7
        %v4467 = vsub.s32 1, %v4466
        %v4468 = vrot.slane %v4424, %v4467
        %v4469 = vlaneseq
        %v4470 = vshrl.u32 %v4469, 7
        %v4471 = vsub.s32 2, %v4470
        %v4472 = vrot.slane %v4424, %v4471
        %v4473 = vlaneseq
        %v4474 = vshrl.u32 %v4473, 7
        %v4475 = vsub.s32 3, %v4474
        %v4476 = vrot.slane %v4424, %v4475
        %v4477 = vlaneseq
        %v4478 = vshrl.u32 %v4477, 7
        %v4479 = vsub.s32 4, %v4478
        %v4480 = vrot.slane %v4424, %v4479
        %v4481 = vlaneseq
        %v4482 = vshrl.u32 %v4481, 7
        %v4483 = vsub.s32 5, %v4482
        %v4484 = vrot.slane %v4424, %v4483
        %v4485 = vlaneseq
        %v4486 = vshrl.u32 %v4485, 7
        %v4487 = vsub.s32 6, %v4486
        %v4488 = vrot.slane %v4424, %v4487
        %v4489 = vlaneseq
        %v4490 = vshrl.u32 %v4489, 7
        %v4491 = vsub.s32 7, %v4490
        %v4492 = vrot.slane %v4424, %v4491
        %v4509 = vsel %vm740, %v4426, 0
        %4511 = vmatprep.subr.mxu0 %v4359
        %4512 = vmatpush1.msra.mxu0 %v4358
        %4513 = vmatprep.subr.mxu0 %v4375
        %4514 = vmatpush1.msra.mxu0 %v4374
        %4515 = vmatprep.subr.mxu0 %v4391
        %4516 = vmatpush1.msra.mxu0 %v4390
        %4517 = vmatprep.subr.mxu0 %v4407
        %4518 = vmatpush1.msra.mxu0 %v4406
        %4519 = vmatprep.subr.mxu0 0.0
        %4520 = vmatpush1.msra.mxu0 0.0
        %4521 = vmatprep.subr.mxu0 0.0
        %4522 = vmatpush1.msra.mxu0 0.0
        %4523 = vmatprep.subr.mxu0 0.0
        %4524 = vmatpush1.msra.mxu0 0.0
        %4525 = vmatprep.subr.mxu0 0.0
        %4526 = vmatpush1.msra.mxu0 0.0
        %4527 = vmatprep.subr.mxu0 0.0
        %4528 = vmatpush1.msra.mxu0 0.0
        %4529 = vmatprep.subr.mxu0 0.0
        %4530 = vmatpush1.msra.mxu0 0.0
        %4531 = vmatprep.subr.mxu0 0.0
        %4532 = vmatpush1.msra.mxu0 0.0
        %4533 = vmatprep.subr.mxu0 0.0
        %4534 = vmatpush1.msra.mxu0 0.0
        %4535 = vmatprep.subr.mxu0 0.0
        %4536 = vmatpush1.msra.mxu0 0.0
        %4537 = vmatprep.subr.mxu0 0.0
        %4538 = vmatpush1.msra.mxu0 0.0
        %4539 = vmatprep.subr.mxu0 0.0
        %4540 = vmatpush1.msra.mxu0 0.0
        %4541 = vmatprep.subr.mxu0 0.0
        %4542 = vmatpush1.msra.mxu0 0.0
        %4543 = vmatprep.subr.mxu0 0.0
        %4544 = vmatpush1.msra.mxu0 0.0
        %4545 = vmatprep.subr.mxu0 0.0
        %4546 = vmatpush1.msra.mxu0 0.0
        %4547 = vmatprep.subr.mxu0 0.0
        %4548 = vmatpush1.msra.mxu0 0.0
        %4549 = vmatprep.subr.mxu0 0.0
        %4550 = vmatpush1.msra.mxu0 0.0
        %4551 = vmatprep.subr.mxu0 0.0
        %4552 = vmatpush1.msra.mxu0 0.0
        %4553 = vmatprep.subr.mxu0 0.0
        %4554 = vmatpush1.msra.mxu0 0.0
        %4555 = vmatprep.subr.mxu0 0.0
        %4556 = vmatpush1.msra.mxu0 0.0
        %4557 = vmatprep.subr.mxu0 0.0
        %4558 = vmatpush1.msra.mxu0 0.0
        %4559 = vmatprep.subr.mxu0 0.0
        %4560 = vmatpush1.msra.mxu0 0.0
        %4561 = vmatprep.subr.mxu0 0.0
        %4562 = vmatpush1.msra.mxu0 0.0
        %4563 = vmatprep.subr.mxu0 0.0
        %4564 = vmatpush1.msra.mxu0 0.0
        %4565 = vmatprep.subr.mxu0 0.0
        %4566 = vmatpush1.msra.mxu0 0.0
        %4567 = vmatprep.subr.mxu0 0.0
        %4568 = vmatpush1.msra.mxu0 0.0
        %4569 = vmatprep.subr.mxu0 0.0
        %4570 = vmatpush1.msra.mxu0 0.0
        %4571 = vmatprep.subr.mxu0 0.0
        %4572 = vmatpush1.msra.mxu0 0.0
        %4573 = vmatprep.subr.mxu0 0.0
        %4574 = vmatpush1.msra.mxu0 0.0
        %4575 = vmatprep.mubr.f32.mxu0 0.0
        %4576 = vmatmul.mubr.f32.gmra.mrb[0].mxu0 %v4509
        %v4577 = vpop.f32.mrb[0].mxu0
        %v4578 = vadd.f32 %v4432, %v4577
        %v4579 = vpop.f32.mrb[0].mxu0
        %v4580 = vadd.f32 %v4436, %v4579
        %4581 = vdwg.mxu0
        %4582 = vmatprep.subr.mxu0 %v4361
        %4583 = vmatpush1.msra.mxu0 %v4360
        %4584 = vmatprep.subr.mxu0 %v4377
        %4585 = vmatpush1.msra.mxu0 %v4376
        %4586 = vmatprep.subr.mxu0 %v4393
        %4587 = vmatpush1.msra.mxu0 %v4392
        %4588 = vmatprep.subr.mxu0 %v4409
        %4589 = vmatpush1.msra.mxu0 %v4408
        %4590 = vmatprep.subr.mxu0 0.0
        %4591 = vmatpush1.msra.mxu0 0.0
        %4592 = vmatprep.subr.mxu0 0.0
        %4593 = vmatpush1.msra.mxu0 0.0
        %4594 = vmatprep.subr.mxu0 0.0
        %4595 = vmatpush1.msra.mxu0 0.0
        %4596 = vmatprep.subr.mxu0 0.0
        %4597 = vmatpush1.msra.mxu0 0.0
        %4598 = vmatprep.subr.mxu0 0.0
        %4599 = vmatpush1.msra.mxu0 0.0
        %4600 = vmatprep.subr.mxu0 0.0
        %4601 = vmatpush1.msra.mxu0 0.0
        %4602 = vmatprep.subr.mxu0 0.0
        %4603 = vmatpush1.msra.mxu0 0.0
        %4604 = vmatprep.subr.mxu0 0.0
        %4605 = vmatpush1.msra.mxu0 0.0
        %4606 = vmatprep.subr.mxu0 0.0
        %4607 = vmatpush1.msra.mxu0 0.0
        %4608 = vmatprep.subr.mxu0 0.0
        %4609 = vmatpush1.msra.mxu0 0.0
        %4610 = vmatprep.subr.mxu0 0.0
        %4611 = vmatpush1.msra.mxu0 0.0
        %4612 = vmatprep.subr.mxu0 0.0
        %4613 = vmatpush1.msra.mxu0 0.0
        %4614 = vmatprep.subr.mxu0 0.0
        %4615 = vmatpush1.msra.mxu0 0.0
        %4616 = vmatprep.subr.mxu0 0.0
        %4617 = vmatpush1.msra.mxu0 0.0
        %4618 = vmatprep.subr.mxu0 0.0
        %4619 = vmatpush1.msra.mxu0 0.0
        %4620 = vmatprep.subr.mxu0 0.0
        %4621 = vmatpush1.msra.mxu0 0.0
        %4622 = vmatprep.subr.mxu0 0.0
        %4623 = vmatpush1.msra.mxu0 0.0
        %4624 = vmatprep.subr.mxu0 0.0
        %4625 = vmatpush1.msra.mxu0 0.0
        %4626 = vmatprep.subr.mxu0 0.0
        %4627 = vmatpush1.msra.mxu0 0.0
        %4628 = vmatprep.subr.mxu0 0.0
        %4629 = vmatpush1.msra.mxu0 0.0
        %4630 = vmatprep.subr.mxu0 0.0
        %4631 = vmatpush1.msra.mxu0 0.0
        %4632 = vmatprep.subr.mxu0 0.0
        %4633 = vmatpush1.msra.mxu0 0.0
        %4634 = vmatprep.subr.mxu0 0.0
        %4635 = vmatpush1.msra.mxu0 0.0
        %4636 = vmatprep.subr.mxu0 0.0
        %4637 = vmatpush1.msra.mxu0 0.0
        %4638 = vmatprep.subr.mxu0 0.0
        %4639 = vmatpush1.msra.mxu0 0.0
        %4640 = vmatprep.subr.mxu0 0.0
        %4641 = vmatpush1.msra.mxu0 0.0
        %4642 = vmatprep.subr.mxu0 0.0
        %4643 = vmatpush1.msra.mxu0 0.0
        %4644 = vmatprep.subr.mxu0 0.0
        %4645 = vmatpush1.msra.mxu0 0.0
        %4646 = vmatprep.mubr.f32.mxu0 0.0
        %4647 = vmatmul.mubr.f32.gmra.mrb[0].mxu0 %v4509
        %v4648 = vpop.f32.mrb[0].mxu0
        %v4649 = vadd.f32 %v4440, %v4648
        %v4650 = vpop.f32.mrb[0].mxu0
        %v4651 = vadd.f32 %v4444, %v4650
        %4652 = vdwg.mxu0
        %4653 = vmatprep.subr.mxu0 %v4363
        %4654 = vmatpush1.msra.mxu0 %v4362
        %4655 = vmatprep.subr.mxu0 %v4379
        %4656 = vmatpush1.msra.mxu0 %v4378
        %4657 = vmatprep.subr.mxu0 %v4395
        %4658 = vmatpush1.msra.mxu0 %v4394
        %4659 = vmatprep.subr.mxu0 %v4411
        %4660 = vmatpush1.msra.mxu0 %v4410
        %4661 = vmatprep.subr.mxu0 0.0
        %4662 = vmatpush1.msra.mxu0 0.0
        %4663 = vmatprep.subr.mxu0 0.0
        %4664 = vmatpush1.msra.mxu0 0.0
        %4665 = vmatprep.subr.mxu0 0.0
        %4666 = vmatpush1.msra.mxu0 0.0
        %4667 = vmatprep.subr.mxu0 0.0
        %4668 = vmatpush1.msra.mxu0 0.0
        %4669 = vmatprep.subr.mxu0 0.0
        %4670 = vmatpush1.msra.mxu0 0.0
        %4671 = vmatprep.subr.mxu0 0.0
        %4672 = vmatpush1.msra.mxu0 0.0
        %4673 = vmatprep.subr.mxu0 0.0
        %4674 = vmatpush1.msra.mxu0 0.0
        %4675 = vmatprep.subr.mxu0 0.0
        %4676 = vmatpush1.msra.mxu0 0.0
        %4677 = vmatprep.subr.mxu0 0.0
        %4678 = vmatpush1.msra.mxu0 0.0
        %4679 = vmatprep.subr.mxu0 0.0
        %4680 = vmatpush1.msra.mxu0 0.0
        %4681 = vmatprep.subr.mxu0 0.0
        %4682 = vmatpush1.msra.mxu0 0.0
        %4683 = vmatprep.subr.mxu0 0.0
        %4684 = vmatpush1.msra.mxu0 0.0
        %4685 = vmatprep.subr.mxu0 0.0
        %4686 = vmatpush1.msra.mxu0 0.0
        %4687 = vmatprep.subr.mxu0 0.0
        %4688 = vmatpush1.msra.mxu0 0.0
        %4689 = vmatprep.subr.mxu0 0.0
        %4690 = vmatpush1.msra.mxu0 0.0
        %4691 = vmatprep.subr.mxu0 0.0
        %4692 = vmatpush1.msra.mxu0 0.0
        %4693 = vmatprep.subr.mxu0 0.0
        %4694 = vmatpush1.msra.mxu0 0.0
        %4695 = vmatprep.subr.mxu0 0.0
        %4696 = vmatpush1.msra.mxu0 0.0
        %4697 = vmatprep.subr.mxu0 0.0
        %4698 = vmatpush1.msra.mxu0 0.0
        %4699 = vmatprep.subr.mxu0 0.0
        %4700 = vmatpush1.msra.mxu0 0.0
        %4701 = vmatprep.subr.mxu0 0.0
        %4702 = vmatpush1.msra.mxu0 0.0
        %4703 = vmatprep.subr.mxu0 0.0
        %4704 = vmatpush1.msra.mxu0 0.0
        %4705 = vmatprep.subr.mxu0 0.0
        %4706 = vmatpush1.msra.mxu0 0.0
        %4707 = vmatprep.subr.mxu0 0.0
        %4708 = vmatpush1.msra.mxu0 0.0
        %4709 = vmatprep.subr.mxu0 0.0
        %4710 = vmatpush1.msra.mxu0 0.0
        %4711 = vmatprep.subr.mxu0 0.0
        %4712 = vmatpush1.msra.mxu0 0.0
        %4713 = vmatprep.subr.mxu0 0.0
        %4714 = vmatpush1.msra.mxu0 0.0
        %4715 = vmatprep.subr.mxu0 0.0
        %4716 = vmatpush1.msra.mxu0 0.0
        %4717 = vmatprep.mubr.f32.mxu0 0.0
        %4718 = vmatmul.mubr.f32.gmra.mrb[0].mxu0 %v4509
        %v4719 = vpop.f32.mrb[0].mxu0
        %v4720 = vadd.f32 %v4448, %v4719
        %v4721 = vpop.f32.mrb[0].mxu0
        %v4722 = vadd.f32 %v4452, %v4721
        %4723 = vdwg.mxu0
        %4724 = vmatprep.subr.mxu0 %v4365
        %4725 = vmatpush1.msra.mxu0 %v4364
        %4726 = vmatprep.subr.mxu0 %v4381
        %4727 = vmatpush1.msra.mxu0 %v4380
        %4728 = vmatprep.subr.mxu0 %v4397
        %4729 = vmatpush1.msra.mxu0 %v4396
        %4730 = vmatprep.subr.mxu0 %v4413
        %4731 = vmatpush1.msra.mxu0 %v4412
        %4732 = vmatprep.subr.mxu0 0.0
        %4733 = vmatpush1.msra.mxu0 0.0
        %4734 = vmatprep.subr.mxu0 0.0
        %4735 = vmatpush1.msra.mxu0 0.0
        %4736 = vmatprep.subr.mxu0 0.0
        %4737 = vmatpush1.msra.mxu0 0.0
        %4738 = vmatprep.subr.mxu0 0.0
        %4739 = vmatpush1.msra.mxu0 0.0
        %4740 = vmatprep.subr.mxu0 0.0
        %4741 = vmatpush1.msra.mxu0 0.0
        %4742 = vmatprep.subr.mxu0 0.0
        %4743 = vmatpush1.msra.mxu0 0.0
        %4744 = vmatprep.subr.mxu0 0.0
        %4745 = vmatpush1.msra.mxu0 0.0
        %4746 = vmatprep.subr.mxu0 0.0
        %4747 = vmatpush1.msra.mxu0 0.0
        %4748 = vmatprep.subr.mxu0 0.0
        %4749 = vmatpush1.msra.mxu0 0.0
        %4750 = vmatprep.subr.mxu0 0.0
        %4751 = vmatpush1.msra.mxu0 0.0
        %4752 = vmatprep.subr.mxu0 0.0
        %4753 = vmatpush1.msra.mxu0 0.0
        %4754 = vmatprep.subr.mxu0 0.0
        %4755 = vmatpush1.msra.mxu0 0.0
        %4756 = vmatprep.subr.mxu0 0.0
        %4757 = vmatpush1.msra.mxu0 0.0
        %4758 = vmatprep.subr.mxu0 0.0
        %4759 = vmatpush1.msra.mxu0 0.0
        %4760 = vmatprep.subr.mxu0 0.0
        %4761 = vmatpush1.msra.mxu0 0.0
        %4762 = vmatprep.subr.mxu0 0.0
        %4763 = vmatpush1.msra.mxu0 0.0
        %4764 = vmatprep.subr.mxu0 0.0
        %4765 = vmatpush1.msra.mxu0 0.0
        %4766 = vmatprep.subr.mxu0 0.0
        %4767 = vmatpush1.msra.mxu0 0.0
        %4768 = vmatprep.subr.mxu0 0.0
        %4769 = vmatpush1.msra.mxu0 0.0
        %4770 = vmatprep.subr.mxu0 0.0
        %4771 = vmatpush1.msra.mxu0 0.0
        %4772 = vmatprep.subr.mxu0 0.0
        %4773 = vmatpush1.msra.mxu0 0.0
        %4774 = vmatprep.subr.mxu0 0.0
        %4775 = vmatpush1.msra.mxu0 0.0
        %4776 = vmatprep.subr.mxu0 0.0
        %4777 = vmatpush1.msra.mxu0 0.0
        %4778 = vmatprep.subr.mxu0 0.0
        %4779 = vmatpush1.msra.mxu0 0.0
        %4780 = vmatprep.subr.mxu0 0.0
        %4781 = vmatpush1.msra.mxu0 0.0
        %4782 = vmatprep.subr.mxu0 0.0
        %4783 = vmatpush1.msra.mxu0 0.0
        %4784 = vmatprep.subr.mxu0 0.0
        %4785 = vmatpush1.msra.mxu0 0.0
        %4786 = vmatprep.subr.mxu0 0.0
        %4787 = vmatpush1.msra.mxu0 0.0
        %4788 = vmatprep.mubr.f32.mxu0 0.0
        %4789 = vmatmul.mubr.f32.gmra.mrb[0].mxu0 %v4509
        %v4790 = vpop.f32.mrb[0].mxu0
        %v4791 = vadd.f32 %v4456, %v4790
        %v4792 = vpop.f32.mrb[0].mxu0
        %v4793 = vadd.f32 %v4460, %v4792
        %4794 = vdwg.mxu0
        %4795 = vmatprep.subr.mxu0 %v4367
        %4796 = vmatpush1.msra.mxu0 %v4366
        %4797 = vmatprep.subr.mxu0 %v4383
        %4798 = vmatpush1.msra.mxu0 %v4382
        %4799 = vmatprep.subr.mxu0 %v4399
        %4800 = vmatpush1.msra.mxu0 %v4398
        %4801 = vmatprep.subr.mxu0 %v4415
        %4802 = vmatpush1.msra.mxu0 %v4414
        %4803 = vmatprep.subr.mxu0 0.0
        %4804 = vmatpush1.msra.mxu0 0.0
        %4805 = vmatprep.subr.mxu0 0.0
        %4806 = vmatpush1.msra.mxu0 0.0
        %4807 = vmatprep.subr.mxu0 0.0
        %4808 = vmatpush1.msra.mxu0 0.0
        %4809 = vmatprep.subr.mxu0 0.0
        %4810 = vmatpush1.msra.mxu0 0.0
        %4811 = vmatprep.subr.mxu0 0.0
        %4812 = vmatpush1.msra.mxu0 0.0
        %4813 = vmatprep.subr.mxu0 0.0
        %4814 = vmatpush1.msra.mxu0 0.0
        %4815 = vmatprep.subr.mxu0 0.0
        %4816 = vmatpush1.msra.mxu0 0.0
        %4817 = vmatprep.subr.mxu0 0.0
        %4818 = vmatpush1.msra.mxu0 0.0
        %4819 = vmatprep.subr.mxu0 0.0
        %4820 = vmatpush1.msra.mxu0 0.0
        %4821 = vmatprep.subr.mxu0 0.0
        %4822 = vmatpush1.msra.mxu0 0.0
        %4823 = vmatprep.subr.mxu0 0.0
        %4824 = vmatpush1.msra.mxu0 0.0
        %4825 = vmatprep.subr.mxu0 0.0
        %4826 = vmatpush1.msra.mxu0 0.0
        %4827 = vmatprep.subr.mxu0 0.0
        %4828 = vmatpush1.msra.mxu0 0.0
        %4829 = vmatprep.subr.mxu0 0.0
        %4830 = vmatpush1.msra.mxu0 0.0
        %4831 = vmatprep.subr.mxu0 0.0
        %4832 = vmatpush1.msra.mxu0 0.0
        %4833 = vmatprep.subr.mxu0 0.0
        %4834 = vmatpush1.msra.mxu0 0.0
        %4835 = vmatprep.subr.mxu0 0.0
        %4836 = vmatpush1.msra.mxu0 0.0
        %4837 = vmatprep.subr.mxu0 0.0
        %4838 = vmatpush1.msra.mxu0 0.0
        %4839 = vmatprep.subr.mxu0 0.0
        %4840 = vmatpush1.msra.mxu0 0.0
        %4841 = vmatprep.subr.mxu0 0.0
        %4842 = vmatpush1.msra.mxu0 0.0
        %4843 = vmatprep.subr.mxu0 0.0
        %4844 = vmatpush1.msra.mxu0 0.0
        %4845 = vmatprep.subr.mxu0 0.0
        %4846 = vmatpush1.msra.mxu0 0.0
        %4847 = vmatprep.subr.mxu0 0.0
        %4848 = vmatpush1.msra.mxu0 0.0
        %4849 = vmatprep.subr.mxu0 0.0
        %4850 = vmatpush1.msra.mxu0 0.0
        %4851 = vmatprep.subr.mxu0 0.0
        %4852 = vmatpush1.msra.mxu0 0.0
        %4853 = vmatprep.subr.mxu0 0.0
        %4854 = vmatpush1.msra.mxu0 0.0
        %4855 = vmatprep.subr.mxu0 0.0
        %4856 = vmatpush1.msra.mxu0 0.0
        %4857 = vmatprep.subr.mxu0 0.0
        %4858 = vmatpush1.msra.mxu0 0.0
        %4859 = vmatprep.mubr.f32.mxu0 0.0
        %4860 = vmatmul.mubr.f32.gmra.mrb[0].mxu0 %v4509
        %v4861 = vpop.f32.mrb[0].mxu0
        %v4862 = vadd.f32 %v4464, %v4861
        %v4863 = vpop.f32.mrb[0].mxu0
        %v4864 = vadd.f32 %v4468, %v4863
        %4865 = vdwg.mxu0
        %4866 = vmatprep.subr.mxu0 %v4369
        %4867 = vmatpush1.msra.mxu0 %v4368
        %4868 = vmatprep.subr.mxu0 %v4385
        %4869 = vmatpush1.msra.mxu0 %v4384
        %4870 = vmatprep.subr.mxu0 %v4401
        %4871 = vmatpush1.msra.mxu0 %v4400
        %4872 = vmatprep.subr.mxu0 %v4417
        %4873 = vmatpush1.msra.mxu0 %v4416
        %4874 = vmatprep.subr.mxu0 0.0
        %4875 = vmatpush1.msra.mxu0 0.0
        %4876 = vmatprep.subr.mxu0 0.0
        %4877 = vmatpush1.msra.mxu0 0.0
        %4878 = vmatprep.subr.mxu0 0.0
        %4879 = vmatpush1.msra.mxu0 0.0
        %4880 = vmatprep.subr.mxu0 0.0
        %4881 = vmatpush1.msra.mxu0 0.0
        %4882 = vmatprep.subr.mxu0 0.0
        %4883 = vmatpush1.msra.mxu0 0.0
        %4884 = vmatprep.subr.mxu0 0.0
        %4885 = vmatpush1.msra.mxu0 0.0
        %4886 = vmatprep.subr.mxu0 0.0
        %4887 = vmatpush1.msra.mxu0 0.0
        %4888 = vmatprep.subr.mxu0 0.0
        %4889 = vmatpush1.msra.mxu0 0.0
        %4890 = vmatprep.subr.mxu0 0.0
        %4891 = vmatpush1.msra.mxu0 0.0
        %4892 = vmatprep.subr.mxu0 0.0
        %4893 = vmatpush1.msra.mxu0 0.0
        %4894 = vmatprep.subr.mxu0 0.0
        %4895 = vmatpush1.msra.mxu0 0.0
        %4896 = vmatprep.subr.mxu0 0.0
        %4897 = vmatpush1.msra.mxu0 0.0
        %4898 = vmatprep.subr.mxu0 0.0
        %4899 = vmatpush1.msra.mxu0 0.0
        %4900 = vmatprep.subr.mxu0 0.0
        %4901 = vmatpush1.msra.mxu0 0.0
        %4902 = vmatprep.subr.mxu0 0.0
        %4903 = vmatpush1.msra.mxu0 0.0
        %4904 = vmatprep.subr.mxu0 0.0
        %4905 = vmatpush1.msra.mxu0 0.0
        %4906 = vmatprep.subr.mxu0 0.0
        %4907 = vmatpush1.msra.mxu0 0.0
        %4908 = vmatprep.subr.mxu0 0.0
        %4909 = vmatpush1.msra.mxu0 0.0
        %4910 = vmatprep.subr.mxu0 0.0
        %4911 = vmatpush1.msra.mxu0 0.0
        %4912 = vmatprep.subr.mxu0 0.0
        %4913 = vmatpush1.msra.mxu0 0.0
        %4914 = vmatprep.subr.mxu0 0.0
        %4915 = vmatpush1.msra.mxu0 0.0
        %4916 = vmatprep.subr.mxu0 0.0
        %4917 = vmatpush1.msra.mxu0 0.0
        %4918 = vmatprep.subr.mxu0 0.0
        %4919 = vmatpush1.msra.mxu0 0.0
        %4920 = vmatprep.subr.mxu0 0.0
        %4921 = vmatpush1.msra.mxu0 0.0
        %4922 = vmatprep.subr.mxu0 0.0
        %4923 = vmatpush1.msra.mxu0 0.0
        %4924 = vmatprep.subr.mxu0 0.0
        %4925 = vmatpush1.msra.mxu0 0.0
        %4926 = vmatprep.subr.mxu0 0.0
        %4927 = vmatpush1.msra.mxu0 0.0
        %4928 = vmatprep.subr.mxu0 0.0
        %4929 = vmatpush1.msra.mxu0 0.0
        %4930 = vmatprep.mubr.f32.mxu0 0.0
        %4931 = vmatmul.mubr.f32.gmra.mrb[0].mxu0 %v4509
        %v4932 = vpop.f32.mrb[0].mxu0
        %v4933 = vadd.f32 %v4472, %v4932
        %v4934 = vpop.f32.mrb[0].mxu0
        %v4935 = vadd.f32 %v4476, %v4934
        %4936 = vdwg.mxu0
        %4937 = vmatprep.subr.mxu0 %v4371
        %4938 = vmatpush1.msra.mxu0 %v4370
        %4939 = vmatprep.subr.mxu0 %v4387
        %4940 = vmatpush1.msra.mxu0 %v4386
        %4941 = vmatprep.subr.mxu0 %v4403
        %4942 = vmatpush1.msra.mxu0 %v4402
        %4943 = vmatprep.subr.mxu0 %v4419
        %4944 = vmatpush1.msra.mxu0 %v4418
        %4945 = vmatprep.subr.mxu0 0.0
        %4946 = vmatpush1.msra.mxu0 0.0
        %4947 = vmatprep.subr.mxu0 0.0
        %4948 = vmatpush1.msra.mxu0 0.0
        %4949 = vmatprep.subr.mxu0 0.0
        %4950 = vmatpush1.msra.mxu0 0.0
        %4951 = vmatprep.subr.mxu0 0.0
        %4952 = vmatpush1.msra.mxu0 0.0
        %4953 = vmatprep.subr.mxu0 0.0
        %4954 = vmatpush1.msra.mxu0 0.0
        %4955 = vmatprep.subr.mxu0 0.0
        %4956 = vmatpush1.msra.mxu0 0.0
        %4957 = vmatprep.subr.mxu0 0.0
        %4958 = vmatpush1.msra.mxu0 0.0
        %4959 = vmatprep.subr.mxu0 0.0
        %4960 = vmatpush1.msra.mxu0 0.0
        %4961 = vmatprep.subr.mxu0 0.0
        %4962 = vmatpush1.msra.mxu0 0.0
        %4963 = vmatprep.subr.mxu0 0.0
        %4964 = vmatpush1.msra.mxu0 0.0
        %4965 = vmatprep.subr.mxu0 0.0
        %4966 = vmatpush1.msra.mxu0 0.0
        %4967 = vmatprep.subr.mxu0 0.0
        %4968 = vmatpush1.msra.mxu0 0.0
        %4969 = vmatprep.subr.mxu0 0.0
        %4970 = vmatpush1.msra.mxu0 0.0
        %4971 = vmatprep.subr.mxu0 0.0
        %4972 = vmatpush1.msra.mxu0 0.0
        %4973 = vmatprep.subr.mxu0 0.0
        %4974 = vmatpush1.msra.mxu0 0.0
        %4975 = vmatprep.subr.mxu0 0.0
        %4976 = vmatpush1.msra.mxu0 0.0
        %4977 = vmatprep.subr.mxu0 0.0
        %4978 = vmatpush1.msra.mxu0 0.0
        %4979 = vmatprep.subr.mxu0 0.0
        %4980 = vmatpush1.msra.mxu0 0.0
        %4981 = vmatprep.subr.mxu0 0.0
        %4982 = vmatpush1.msra.mxu0 0.0
        %4983 = vmatprep.subr.mxu0 0.0
        %4984 = vmatpush1.msra.mxu0 0.0
        %4985 = vmatprep.subr.mxu0 0.0
        %4986 = vmatpush1.msra.mxu0 0.0
        %4987 = vmatprep.subr.mxu0 0.0
        %4988 = vmatpush1.msra.mxu0 0.0
        %4989 = vmatprep.subr.mxu0 0.0
        %4990 = vmatpush1.msra.mxu0 0.0
        %4991 = vmatprep.subr.mxu0 0.0
        %4992 = vmatpush1.msra.mxu0 0.0
        %4993 = vmatprep.subr.mxu0 0.0
        %4994 = vmatpush1.msra.mxu0 0.0
        %4995 = vmatprep.subr.mxu0 0.0
        %4996 = vmatpush1.msra.mxu0 0.0
        %4997 = vmatprep.subr.mxu0 0.0
        %4998 = vmatpush1.msra.mxu0 0.0
        %4999 = vmatprep.subr.mxu0 0.0
        %5000 = vmatpush1.msra.mxu0 0.0
        %5001 = vmatprep.mubr.f32.mxu0 0.0
        %5002 = vmatmul.mubr.f32.gmra.mrb[0].mxu0 %v4509
        %v5003 = vpop.f32.mrb[0].mxu0
        %v5004 = vadd.f32 %v4480, %v5003
        %v5005 = vpop.f32.mrb[0].mxu0
        %v5006 = vadd.f32 %v4484, %v5005
        %5007 = vdwg.mxu0
        %5008 = vmatprep.subr.mxu0 %v4373
        %5009 = vmatpush1.msra.mxu0 %v4372
        %5010 = vmatprep.subr.mxu0 %v4389
        %5011 = vmatpush1.msra.mxu0 %v4388
        %5012 = vmatprep.subr.mxu0 %v4405
        %5013 = vmatpush1.msra.mxu0 %v4404
        %5014 = vmatprep.subr.mxu0 %v4421
        %5015 = vmatpush1.msra.mxu0 %v4420
        %5016 = vmatprep.subr.mxu0 0.0
        %5017 = vmatpush1.msra.mxu0 0.0
        %5018 = vmatprep.subr.mxu0 0.0
        %5019 = vmatpush1.msra.mxu0 0.0
        %5020 = vmatprep.subr.mxu0 0.0
        %5021 = vmatpush1.msra.mxu0 0.0
        %5022 = vmatprep.subr.mxu0 0.0
        %5023 = vmatpush1.msra.mxu0 0.0
        %5024 = vmatprep.subr.mxu0 0.0
        %5025 = vmatpush1.msra.mxu0 0.0
        %5026 = vmatprep.subr.mxu0 0.0
        %5027 = vmatpush1.msra.mxu0 0.0
        %5028 = vmatprep.subr.mxu0 0.0
        %5029 = vmatpush1.msra.mxu0 0.0
        %5030 = vmatprep.subr.mxu0 0.0
        %5031 = vmatpush1.msra.mxu0 0.0
        %5032 = vmatprep.subr.mxu0 0.0
        %5033 = vmatpush1.msra.mxu0 0.0
        %5034 = vmatprep.subr.mxu0 0.0
        %5035 = vmatpush1.msra.mxu0 0.0
        %5036 = vmatprep.subr.mxu0 0.0
        %5037 = vmatpush1.msra.mxu0 0.0
        %5038 = vmatprep.subr.mxu0 0.0
        %5039 = vmatpush1.msra.mxu0 0.0
        %5040 = vmatprep.subr.mxu0 0.0
        %5041 = vmatpush1.msra.mxu0 0.0
        %5042 = vmatprep.subr.mxu0 0.0
        %5043 = vmatpush1.msra.mxu0 0.0
        %5044 = vmatprep.subr.mxu0 0.0
        %5045 = vmatpush1.msra.mxu0 0.0
        %5046 = vmatprep.subr.mxu0 0.0
        %5047 = vmatpush1.msra.mxu0 0.0
        %5048 = vmatprep.subr.mxu0 0.0
        %5049 = vmatpush1.msra.mxu0 0.0
        %5050 = vmatprep.subr.mxu0 0.0
        %5051 = vmatpush1.msra.mxu0 0.0
        %5052 = vmatprep.subr.mxu0 0.0
        %5053 = vmatpush1.msra.mxu0 0.0
        %5054 = vmatprep.subr.mxu0 0.0
        %5055 = vmatpush1.msra.mxu0 0.0
        %5056 = vmatprep.subr.mxu0 0.0
        %5057 = vmatpush1.msra.mxu0 0.0
        %5058 = vmatprep.subr.mxu0 0.0
        %5059 = vmatpush1.msra.mxu0 0.0
        %5060 = vmatprep.subr.mxu0 0.0
        %5061 = vmatpush1.msra.mxu0 0.0
        %5062 = vmatprep.subr.mxu0 0.0
        %5063 = vmatpush1.msra.mxu0 0.0
        %5064 = vmatprep.subr.mxu0 0.0
        %5065 = vmatpush1.msra.mxu0 0.0
        %5066 = vmatprep.subr.mxu0 0.0
        %5067 = vmatpush1.msra.mxu0 0.0
        %5068 = vmatprep.subr.mxu0 0.0
        %5069 = vmatpush1.msra.mxu0 0.0
        %5070 = vmatprep.subr.mxu0 0.0
        %5071 = vmatpush1.msra.mxu0 0.0
        %5072 = vmatprep.mubr.f32.mxu0 0.0
        %5073 = vmatmul.mubr.f32.gmra.mrb[0].mxu0 %v4509
        %v5074 = vpop.f32.mrb[0].mxu0
        %v5075 = vadd.f32 %v4488, %v5074
        %v5076 = vpop.f32.mrb[0].mxu0
        %v5077 = vadd.f32 %v4492, %v5076
        %5078 = vdwg.mxu0
        %v5079 = vmax.f32 %v4578, 0.0
        %v5080 = vmax.f32 %v4580, 0.0
        %v5081 = vmax.f32 %v4649, 0.0
        %v5082 = vmax.f32 %v4651, 0.0
        %v5083 = vmax.f32 %v4720, 0.0
        %v5084 = vmax.f32 %v4722, 0.0
        %v5085 = vmax.f32 %v4791, 0.0
        %v5086 = vmax.f32 %v4793, 0.0
        %v5087 = vmax.f32 %v4862, 0.0
        %v5088 = vmax.f32 %v4864, 0.0
        %v5089 = vmax.f32 %v4933, 0.0
        %v5090 = vmax.f32 %v4935, 0.0
        %v5091 = vmax.f32 %v5004, 0.0
        %v5092 = vmax.f32 %v5006, 0.0
        %v5093 = vmax.f32 %v5075, 0.0
        %v5094 = vmax.f32 %v5077, 0.0
        %s5095 = scalar_lea.vmem %s14, 2048
        %v5096 = vld [vmem:[%s5095] sm:$0xff]
        %v5097 = vld [vmem:[%s5095 + $0x8] sm:$0xff]
        %v5098 = vld [vmem:[%s5095 + $0x10] sm:$0xff]
        %v5099 = vld [vmem:[%s5095 + $0x18] sm:$0xff]
        %v5100 = vld [vmem:[%s5095 + $0x20] sm:$0xff]
        %v5101 = vld [vmem:[%s5095 + $0x28] sm:$0xff]
        %v5102 = vld [vmem:[%s5095 + $0x30] sm:$0xff]
        %v5103 = vld [vmem:[%s5095 + $0x38] sm:$0xff]
        %v5104 = vld [vmem:[%s5095 + $0x40] sm:$0xff]
        %v5105 = vld [vmem:[%s5095 + $0x48] sm:$0xff]
        %v5106 = vld [vmem:[%s5095 + $0x50] sm:$0xff]
        %v5107 = vld [vmem:[%s5095 + $0x58] sm:$0xff]
        %v5108 = vld [vmem:[%s5095 + $0x60] sm:$0xff]
        %v5109 = vld [vmem:[%s5095 + $0x68] sm:$0xff]
        %v5110 = vld [vmem:[%s5095 + $0x70] sm:$0xff]
        %v5111 = vld [vmem:[%s5095 + $0x78] sm:$0xff]
        %v5112 = vld [vmem:[%s5095 + $0x80] sm:$0xff]
        %v5113 = vld [vmem:[%s5095 + $0x88] sm:$0xff]
        %v5114 = vld [vmem:[%s5095 + $0x90] sm:$0xff]
        %v5115 = vld [vmem:[%s5095 + $0x98] sm:$0xff]
        %v5116 = vld [vmem:[%s5095 + $0xa0] sm:$0xff]
        %v5117 = vld [vmem:[%s5095 + $0xa8] sm:$0xff]
        %v5118 = vld [vmem:[%s5095 + $0xb0] sm:$0xff]
        %v5119 = vld [vmem:[%s5095 + $0xb8] sm:$0xff]
        %v5120 = vld [vmem:[%s5095 + $0xc0] sm:$0xff]
        %v5121 = vld [vmem:[%s5095 + $0xc8] sm:$0xff]
        %v5122 = vld [vmem:[%s5095 + $0xd0] sm:$0xff]
        %v5123 = vld [vmem:[%s5095 + $0xd8] sm:$0xff]
        %v5124 = vld [vmem:[%s5095 + $0xe0] sm:$0xff]
        %v5125 = vld [vmem:[%s5095 + $0xe8] sm:$0xff]
        %v5126 = vld [vmem:[%s5095 + $0xf0] sm:$0xff]
        %v5127 = vld [vmem:[%s5095 + $0xf8] sm:$0xff]
        %v5128 = vld [vmem:[%s5095 + $0x100] sm:$0xff]
        %v5129 = vld [vmem:[%s5095 + $0x108] sm:$0xff]
        %v5130 = vld [vmem:[%s5095 + $0x110] sm:$0xff]
        %v5131 = vld [vmem:[%s5095 + $0x118] sm:$0xff]
        %v5132 = vld [vmem:[%s5095 + $0x120] sm:$0xff]
        %v5133 = vld [vmem:[%s5095 + $0x128] sm:$0xff]
        %v5134 = vld [vmem:[%s5095 + $0x130] sm:$0xff]
        %v5135 = vld [vmem:[%s5095 + $0x138] sm:$0xff]
        %v5136 = vld [vmem:[%s5095 + $0x140] sm:$0xff]
        %v5137 = vld [vmem:[%s5095 + $0x148] sm:$0xff]
        %v5138 = vld [vmem:[%s5095 + $0x150] sm:$0xff]
        %v5139 = vld [vmem:[%s5095 + $0x158] sm:$0xff]
        %v5140 = vld [vmem:[%s5095 + $0x160] sm:$0xff]
        %v5141 = vld [vmem:[%s5095 + $0x168] sm:$0xff]
        %v5142 = vld [vmem:[%s5095 + $0x170] sm:$0xff]
        %v5143 = vld [vmem:[%s5095 + $0x178] sm:$0xff]
        %v5144 = vld [vmem:[%s5095 + $0x180] sm:$0xff]
        %v5145 = vld [vmem:[%s5095 + $0x188] sm:$0xff]
        %v5146 = vld [vmem:[%s5095 + $0x190] sm:$0xff]
        %v5147 = vld [vmem:[%s5095 + $0x198] sm:$0xff]
        %v5148 = vld [vmem:[%s5095 + $0x1a0] sm:$0xff]
        %v5149 = vld [vmem:[%s5095 + $0x1a8] sm:$0xff]
        %v5150 = vld [vmem:[%s5095 + $0x1b0] sm:$0xff]
        %v5151 = vld [vmem:[%s5095 + $0x1b8] sm:$0xff]
        %v5152 = vld [vmem:[%s5095 + $0x1c0] sm:$0xff]
        %v5153 = vld [vmem:[%s5095 + $0x1c8] sm:$0xff]
        %v5154 = vld [vmem:[%s5095 + $0x1d0] sm:$0xff]
        %v5155 = vld [vmem:[%s5095 + $0x1d8] sm:$0xff]
        %v5156 = vld [vmem:[%s5095 + $0x1e0] sm:$0xff]
        %v5157 = vld [vmem:[%s5095 + $0x1e8] sm:$0xff]
        %v5158 = vld [vmem:[%s5095 + $0x1f0] sm:$0xff]
        %v5159 = vld [vmem:[%s5095 + $0x1f8] sm:$0xff]
        %v5160 = vld [vmem:[%s5095 + $0x200] sm:$0xff]
        %v5161 = vld [vmem:[%s5095 + $0x208] sm:$0xff]
        %v5162 = vld [vmem:[%s5095 + $0x210] sm:$0xff]
        %v5163 = vld [vmem:[%s5095 + $0x218] sm:$0xff]
        %v5164 = vld [vmem:[%s5095 + $0x220] sm:$0xff]
        %v5165 = vld [vmem:[%s5095 + $0x228] sm:$0xff]
        %v5166 = vld [vmem:[%s5095 + $0x230] sm:$0xff]
        %v5167 = vld [vmem:[%s5095 + $0x238] sm:$0xff]
        %v5168 = vld [vmem:[%s5095 + $0x240] sm:$0xff]
        %v5169 = vld [vmem:[%s5095 + $0x248] sm:$0xff]
        %v5170 = vld [vmem:[%s5095 + $0x250] sm:$0xff]
        %v5171 = vld [vmem:[%s5095 + $0x258] sm:$0xff]
        %v5172 = vld [vmem:[%s5095 + $0x260] sm:$0xff]
        %v5173 = vld [vmem:[%s5095 + $0x268] sm:$0xff]
        %v5174 = vld [vmem:[%s5095 + $0x270] sm:$0xff]
        %v5175 = vld [vmem:[%s5095 + $0x278] sm:$0xff]
        %v5176 = vld [vmem:[%s5095 + $0x280] sm:$0xff]
        %v5177 = vld [vmem:[%s5095 + $0x288] sm:$0xff]
        %v5178 = vld [vmem:[%s5095 + $0x290] sm:$0xff]
        %v5179 = vld [vmem:[%s5095 + $0x298] sm:$0xff]
        %v5180 = vld [vmem:[%s5095 + $0x2a0] sm:$0xff]
        %v5181 = vld [vmem:[%s5095 + $0x2a8] sm:$0xff]
        %v5182 = vld [vmem:[%s5095 + $0x2b0] sm:$0xff]
        %v5183 = vld [vmem:[%s5095 + $0x2b8] sm:$0xff]
        %v5184 = vld [vmem:[%s5095 + $0x2c0] sm:$0xff]
        %v5185 = vld [vmem:[%s5095 + $0x2c8] sm:$0xff]
        %v5186 = vld [vmem:[%s5095 + $0x2d0] sm:$0xff]
        %v5187 = vld [vmem:[%s5095 + $0x2d8] sm:$0xff]
        %v5188 = vld [vmem:[%s5095 + $0x2e0] sm:$0xff]
        %v5189 = vld [vmem:[%s5095 + $0x2e8] sm:$0xff]
        %v5190 = vld [vmem:[%s5095 + $0x2f0] sm:$0xff]
        %v5191 = vld [vmem:[%s5095 + $0x2f8] sm:$0xff]
        %v5192 = vld [vmem:[%s5095 + $0x300] sm:$0xff]
        %v5193 = vld [vmem:[%s5095 + $0x308] sm:$0xff]
        %v5194 = vld [vmem:[%s5095 + $0x310] sm:$0xff]
        %v5195 = vld [vmem:[%s5095 + $0x318] sm:$0xff]
        %v5196 = vld [vmem:[%s5095 + $0x320] sm:$0xff]
        %v5197 = vld [vmem:[%s5095 + $0x328] sm:$0xff]
        %v5198 = vld [vmem:[%s5095 + $0x330] sm:$0xff]
        %v5199 = vld [vmem:[%s5095 + $0x338] sm:$0xff]
        %v5200 = vld [vmem:[%s5095 + $0x340] sm:$0xff]
        %v5201 = vld [vmem:[%s5095 + $0x348] sm:$0xff]
        %v5202 = vld [vmem:[%s5095 + $0x350] sm:$0xff]
        %v5203 = vld [vmem:[%s5095 + $0x358] sm:$0xff]
        %v5204 = vld [vmem:[%s5095 + $0x360] sm:$0xff]
        %v5205 = vld [vmem:[%s5095 + $0x368] sm:$0xff]
        %v5206 = vld [vmem:[%s5095 + $0x370] sm:$0xff]
        %v5207 = vld [vmem:[%s5095 + $0x378] sm:$0xff]
        %v5208 = vld [vmem:[%s5095 + $0x380] sm:$0xff]
        %v5209 = vld [vmem:[%s5095 + $0x388] sm:$0xff]
        %v5210 = vld [vmem:[%s5095 + $0x390] sm:$0xff]
        %v5211 = vld [vmem:[%s5095 + $0x398] sm:$0xff]
        %v5212 = vld [vmem:[%s5095 + $0x3a0] sm:$0xff]
        %v5213 = vld [vmem:[%s5095 + $0x3a8] sm:$0xff]
        %v5214 = vld [vmem:[%s5095 + $0x3b0] sm:$0xff]
        %v5215 = vld [vmem:[%s5095 + $0x3b8] sm:$0xff]
        %v5216 = vld [vmem:[%s5095 + $0x3c0] sm:$0xff]
        %v5217 = vld [vmem:[%s5095 + $0x3c8] sm:$0xff]
        %v5218 = vld [vmem:[%s5095 + $0x3d0] sm:$0xff]
        %v5219 = vld [vmem:[%s5095 + $0x3d8] sm:$0xff]
        %v5220 = vld [vmem:[%s5095 + $0x3e0] sm:$0xff]
        %v5221 = vld [vmem:[%s5095 + $0x3e8] sm:$0xff]
        %v5222 = vld [vmem:[%s5095 + $0x3f0] sm:$0xff]
        %v5223 = vld [vmem:[%s5095 + $0x3f8] sm:$0xff]
        %v5224 = vld [vmem:[%s5095 + $0x400] sm:$0xff]
        %v5225 = vld [vmem:[%s5095 + $0x408] sm:$0xff]
        %v5226 = vld [vmem:[%s5095 + $0x410] sm:$0xff]
        %v5227 = vld [vmem:[%s5095 + $0x418] sm:$0xff]
        %v5228 = vld [vmem:[%s5095 + $0x420] sm:$0xff]
        %v5229 = vld [vmem:[%s5095 + $0x428] sm:$0xff]
        %v5230 = vld [vmem:[%s5095 + $0x430] sm:$0xff]
        %v5231 = vld [vmem:[%s5095 + $0x438] sm:$0xff]
        %v5232 = vld [vmem:[%s5095 + $0x440] sm:$0xff]
        %v5233 = vld [vmem:[%s5095 + $0x448] sm:$0xff]
        %v5234 = vld [vmem:[%s5095 + $0x450] sm:$0xff]
        %v5235 = vld [vmem:[%s5095 + $0x458] sm:$0xff]
        %v5236 = vld [vmem:[%s5095 + $0x460] sm:$0xff]
        %v5237 = vld [vmem:[%s5095 + $0x468] sm:$0xff]
        %v5238 = vld [vmem:[%s5095 + $0x470] sm:$0xff]
        %v5239 = vld [vmem:[%s5095 + $0x478] sm:$0xff]
        %v5240 = vld [vmem:[%s5095 + $0x480] sm:$0xff]
        %v5241 = vld [vmem:[%s5095 + $0x488] sm:$0xff]
        %v5242 = vld [vmem:[%s5095 + $0x490] sm:$0xff]
        %v5243 = vld [vmem:[%s5095 + $0x498] sm:$0xff]
        %v5244 = vld [vmem:[%s5095 + $0x4a0] sm:$0xff]
        %v5245 = vld [vmem:[%s5095 + $0x4a8] sm:$0xff]
        %v5246 = vld [vmem:[%s5095 + $0x4b0] sm:$0xff]
        %v5247 = vld [vmem:[%s5095 + $0x4b8] sm:$0xff]
        %v5248 = vld [vmem:[%s5095 + $0x4c0] sm:$0xff]
        %v5249 = vld [vmem:[%s5095 + $0x4c8] sm:$0xff]
        %v5250 = vld [vmem:[%s5095 + $0x4d0] sm:$0xff]
        %v5251 = vld [vmem:[%s5095 + $0x4d8] sm:$0xff]
        %v5252 = vld [vmem:[%s5095 + $0x4e0] sm:$0xff]
        %v5253 = vld [vmem:[%s5095 + $0x4e8] sm:$0xff]
        %v5254 = vld [vmem:[%s5095 + $0x4f0] sm:$0xff]
        %v5255 = vld [vmem:[%s5095 + $0x4f8] sm:$0xff]
        %v5256 = vld [vmem:[%s5095 + $0x500] sm:$0xff]
        %v5257 = vld [vmem:[%s5095 + $0x508] sm:$0xff]
        %v5258 = vld [vmem:[%s5095 + $0x510] sm:$0xff]
        %v5259 = vld [vmem:[%s5095 + $0x518] sm:$0xff]
        %v5260 = vld [vmem:[%s5095 + $0x520] sm:$0xff]
        %v5261 = vld [vmem:[%s5095 + $0x528] sm:$0xff]
        %v5262 = vld [vmem:[%s5095 + $0x530] sm:$0xff]
        %v5263 = vld [vmem:[%s5095 + $0x538] sm:$0xff]
        %v5264 = vld [vmem:[%s5095 + $0x540] sm:$0xff]
        %v5265 = vld [vmem:[%s5095 + $0x548] sm:$0xff]
        %v5266 = vld [vmem:[%s5095 + $0x550] sm:$0xff]
        %v5267 = vld [vmem:[%s5095 + $0x558] sm:$0xff]
        %v5268 = vld [vmem:[%s5095 + $0x560] sm:$0xff]
        %v5269 = vld [vmem:[%s5095 + $0x568] sm:$0xff]
        %v5270 = vld [vmem:[%s5095 + $0x570] sm:$0xff]
        %v5271 = vld [vmem:[%s5095 + $0x578] sm:$0xff]
        %v5272 = vld [vmem:[%s5095 + $0x580] sm:$0xff]
        %v5273 = vld [vmem:[%s5095 + $0x588] sm:$0xff]
        %v5274 = vld [vmem:[%s5095 + $0x590] sm:$0xff]
        %v5275 = vld [vmem:[%s5095 + $0x598] sm:$0xff]
        %v5276 = vld [vmem:[%s5095 + $0x5a0] sm:$0xff]
        %v5277 = vld [vmem:[%s5095 + $0x5a8] sm:$0xff]
        %v5278 = vld [vmem:[%s5095 + $0x5b0] sm:$0xff]
        %v5279 = vld [vmem:[%s5095 + $0x5b8] sm:$0xff]
        %v5280 = vld [vmem:[%s5095 + $0x5c0] sm:$0xff]
        %v5281 = vld [vmem:[%s5095 + $0x5c8] sm:$0xff]
        %v5282 = vld [vmem:[%s5095 + $0x5d0] sm:$0xff]
        %v5283 = vld [vmem:[%s5095 + $0x5d8] sm:$0xff]
        %v5284 = vld [vmem:[%s5095 + $0x5e0] sm:$0xff]
        %v5285 = vld [vmem:[%s5095 + $0x5e8] sm:$0xff]
        %v5286 = vld [vmem:[%s5095 + $0x5f0] sm:$0xff]
        %v5287 = vld [vmem:[%s5095 + $0x5f8] sm:$0xff]
        %v5288 = vld [vmem:[%s5095 + $0x600] sm:$0xff]
        %v5289 = vld [vmem:[%s5095 + $0x608] sm:$0xff]
        %v5290 = vld [vmem:[%s5095 + $0x610] sm:$0xff]
        %v5291 = vld [vmem:[%s5095 + $0x618] sm:$0xff]
        %v5292 = vld [vmem:[%s5095 + $0x620] sm:$0xff]
        %v5293 = vld [vmem:[%s5095 + $0x628] sm:$0xff]
        %v5294 = vld [vmem:[%s5095 + $0x630] sm:$0xff]
        %v5295 = vld [vmem:[%s5095 + $0x638] sm:$0xff]
        %v5296 = vld [vmem:[%s5095 + $0x640] sm:$0xff]
        %v5297 = vld [vmem:[%s5095 + $0x648] sm:$0xff]
        %v5298 = vld [vmem:[%s5095 + $0x650] sm:$0xff]
        %v5299 = vld [vmem:[%s5095 + $0x658] sm:$0xff]
        %v5300 = vld [vmem:[%s5095 + $0x660] sm:$0xff]
        %v5301 = vld [vmem:[%s5095 + $0x668] sm:$0xff]
        %v5302 = vld [vmem:[%s5095 + $0x670] sm:$0xff]
        %v5303 = vld [vmem:[%s5095 + $0x678] sm:$0xff]
        %v5304 = vld [vmem:[%s5095 + $0x680] sm:$0xff]
        %v5305 = vld [vmem:[%s5095 + $0x688] sm:$0xff]
        %v5306 = vld [vmem:[%s5095 + $0x690] sm:$0xff]
        %v5307 = vld [vmem:[%s5095 + $0x698] sm:$0xff]
        %v5308 = vld [vmem:[%s5095 + $0x6a0] sm:$0xff]
        %v5309 = vld [vmem:[%s5095 + $0x6a8] sm:$0xff]
        %v5310 = vld [vmem:[%s5095 + $0x6b0] sm:$0xff]
        %v5311 = vld [vmem:[%s5095 + $0x6b8] sm:$0xff]
        %v5312 = vld [vmem:[%s5095 + $0x6c0] sm:$0xff]
        %v5313 = vld [vmem:[%s5095 + $0x6c8] sm:$0xff]
        %v5314 = vld [vmem:[%s5095 + $0x6d0] sm:$0xff]
        %v5315 = vld [vmem:[%s5095 + $0x6d8] sm:$0xff]
        %v5316 = vld [vmem:[%s5095 + $0x6e0] sm:$0xff]
        %v5317 = vld [vmem:[%s5095 + $0x6e8] sm:$0xff]
        %v5318 = vld [vmem:[%s5095 + $0x6f0] sm:$0xff]
        %v5319 = vld [vmem:[%s5095 + $0x6f8] sm:$0xff]
        %v5320 = vld [vmem:[%s5095 + $0x700] sm:$0xff]
        %v5321 = vld [vmem:[%s5095 + $0x708] sm:$0xff]
        %v5322 = vld [vmem:[%s5095 + $0x710] sm:$0xff]
        %v5323 = vld [vmem:[%s5095 + $0x718] sm:$0xff]
        %v5324 = vld [vmem:[%s5095 + $0x720] sm:$0xff]
        %v5325 = vld [vmem:[%s5095 + $0x728] sm:$0xff]
        %v5326 = vld [vmem:[%s5095 + $0x730] sm:$0xff]
        %v5327 = vld [vmem:[%s5095 + $0x738] sm:$0xff]
        %v5328 = vld [vmem:[%s5095 + $0x740] sm:$0xff]
        %v5329 = vld [vmem:[%s5095 + $0x748] sm:$0xff]
        %v5330 = vld [vmem:[%s5095 + $0x750] sm:$0xff]
        %v5331 = vld [vmem:[%s5095 + $0x758] sm:$0xff]
        %v5332 = vld [vmem:[%s5095 + $0x760] sm:$0xff]
        %v5333 = vld [vmem:[%s5095 + $0x768] sm:$0xff]
        %v5334 = vld [vmem:[%s5095 + $0x770] sm:$0xff]
        %v5335 = vld [vmem:[%s5095 + $0x778] sm:$0xff]
        %v5336 = vld [vmem:[%s5095 + $0x780] sm:$0xff]
        %v5337 = vld [vmem:[%s5095 + $0x788] sm:$0xff]
        %v5338 = vld [vmem:[%s5095 + $0x790] sm:$0xff]
        %v5339 = vld [vmem:[%s5095 + $0x798] sm:$0xff]
        %v5340 = vld [vmem:[%s5095 + $0x7a0] sm:$0xff]
        %v5341 = vld [vmem:[%s5095 + $0x7a8] sm:$0xff]
        %v5342 = vld [vmem:[%s5095 + $0x7b0] sm:$0xff]
        %v5343 = vld [vmem:[%s5095 + $0x7b8] sm:$0xff]
        %v5344 = vld [vmem:[%s5095 + $0x7c0] sm:$0xff]
        %v5345 = vld [vmem:[%s5095 + $0x7c8] sm:$0xff]
        %v5346 = vld [vmem:[%s5095 + $0x7d0] sm:$0xff]
        %v5347 = vld [vmem:[%s5095 + $0x7d8] sm:$0xff]
        %v5348 = vld [vmem:[%s5095 + $0x7e0] sm:$0xff]
        %v5349 = vld [vmem:[%s5095 + $0x7e8] sm:$0xff]
        %v5350 = vld [vmem:[%s5095 + $0x7f0] sm:$0xff]
        %v5351 = vld [vmem:[%s5095 + $0x7f8] sm:$0xff]
        %s5352 = scalar_lea.vmem %s15, 1
        %v5353 = vld [vmem:[%s5352] sm:$0x1]
        %5354 = vmatprep.subr.mxu0 0.0
        %5355 = vmatpush1.msra.mxu0 %v5096
        %5356 = vmatprep.subr.mxu0 0.0
        %5357 = vmatpush1.msra.mxu0 %v5097
        %5358 = vmatprep.subr.mxu0 0.0
        %5359 = vmatpush1.msra.mxu0 %v5098
        %5360 = vmatprep.subr.mxu0 0.0
        %5361 = vmatpush1.msra.mxu0 %v5099
        %5362 = vmatprep.subr.mxu0 0.0
        %5363 = vmatpush1.msra.mxu0 %v5100
        %5364 = vmatprep.subr.mxu0 0.0
        %5365 = vmatpush1.msra.mxu0 %v5101
        %5366 = vmatprep.subr.mxu0 0.0
        %5367 = vmatpush1.msra.mxu0 %v5102
        %5368 = vmatprep.subr.mxu0 0.0
        %5369 = vmatpush1.msra.mxu0 %v5103
        %5370 = vmatprep.subr.mxu0 0.0
        %5371 = vmatpush1.msra.mxu0 %v5104
        %5372 = vmatprep.subr.mxu0 0.0
        %5373 = vmatpush1.msra.mxu0 %v5105
        %5374 = vmatprep.subr.mxu0 0.0
        %5375 = vmatpush1.msra.mxu0 %v5106
        %5376 = vmatprep.subr.mxu0 0.0
        %5377 = vmatpush1.msra.mxu0 %v5107
        %5378 = vmatprep.subr.mxu0 0.0
        %5379 = vmatpush1.msra.mxu0 %v5108
        %5380 = vmatprep.subr.mxu0 0.0
        %5381 = vmatpush1.msra.mxu0 %v5109
        %5382 = vmatprep.subr.mxu0 0.0
        %5383 = vmatpush1.msra.mxu0 %v5110
        %5384 = vmatprep.subr.mxu0 0.0
        %5385 = vmatpush1.msra.mxu0 %v5111
        %5386 = vmatprep.subr.mxu0 0.0
        %5387 = vmatpush1.msra.mxu0 %v5112
        %5388 = vmatprep.subr.mxu0 0.0
        %5389 = vmatpush1.msra.mxu0 %v5113
        %5390 = vmatprep.subr.mxu0 0.0
        %5391 = vmatpush1.msra.mxu0 %v5114
        %5392 = vmatprep.subr.mxu0 0.0
        %5393 = vmatpush1.msra.mxu0 %v5115
        %5394 = vmatprep.subr.mxu0 0.0
        %5395 = vmatpush1.msra.mxu0 %v5116
        %5396 = vmatprep.subr.mxu0 0.0
        %5397 = vmatpush1.msra.mxu0 %v5117
        %5398 = vmatprep.subr.mxu0 0.0
        %5399 = vmatpush1.msra.mxu0 %v5118
        %5400 = vmatprep.subr.mxu0 0.0
        %5401 = vmatpush1.msra.mxu0 %v5119
        %5402 = vmatprep.subr.mxu0 0.0
        %5403 = vmatpush1.msra.mxu0 %v5120
        %5404 = vmatprep.subr.mxu0 0.0
        %5405 = vmatpush1.msra.mxu0 %v5121
        %5406 = vmatprep.subr.mxu0 0.0
        %5407 = vmatpush1.msra.mxu0 %v5122
        %5408 = vmatprep.subr.mxu0 0.0
        %5409 = vmatpush1.msra.mxu0 %v5123
        %5410 = vmatprep.subr.mxu0 0.0
        %5411 = vmatpush1.msra.mxu0 %v5124
        %5412 = vmatprep.subr.mxu0 0.0
        %5413 = vmatpush1.msra.mxu0 %v5125
        %5414 = vmatprep.subr.mxu0 0.0
        %5415 = vmatpush1.msra.mxu0 %v5126
        %5416 = vmatprep.subr.mxu0 0.0
        %5417 = vmatpush1.msra.mxu0 %v5127
        %5418 = vmatprep.mubr.f32.mxu0 %v5080
        %5419 = vmatmul.mubr.f32.gmra.mrb[0].mxu0 %v5079
        %v5420 = vpop.f32.mrb[0].mxu0
        %v5421 = vadd.f32 %v5353, %v5420
        %v5422 = vpop.f32.mrb[0].mxu0
        %5423 = vdwg.mxu0
        %5424 = vmatprep.subr.mxu0 0.0
        %5425 = vmatpush1.msra.mxu0 %v5128
        %5426 = vmatprep.subr.mxu0 0.0
        %5427 = vmatpush1.msra.mxu0 %v5129
        %5428 = vmatprep.subr.mxu0 0.0
        %5429 = vmatpush1.msra.mxu0 %v5130
        %5430 = vmatprep.subr.mxu0 0.0
        %5431 = vmatpush1.msra.mxu0 %v5131
        %5432 = vmatprep.subr.mxu0 0.0
        %5433 = vmatpush1.msra.mxu0 %v5132
        %5434 = vmatprep.subr.mxu0 0.0
        %5435 = vmatpush1.msra.mxu0 %v5133
        %5436 = vmatprep.subr.mxu0 0.0
        %5437 = vmatpush1.msra.mxu0 %v5134
        %5438 = vmatprep.subr.mxu0 0.0
        %5439 = vmatpush1.msra.mxu0 %v5135
        %5440 = vmatprep.subr.mxu0 0.0
        %5441 = vmatpush1.msra.mxu0 %v5136
        %5442 = vmatprep.subr.mxu0 0.0
        %5443 = vmatpush1.msra.mxu0 %v5137
        %5444 = vmatprep.subr.mxu0 0.0
        %5445 = vmatpush1.msra.mxu0 %v5138
        %5446 = vmatprep.subr.mxu0 0.0
        %5447 = vmatpush1.msra.mxu0 %v5139
        %5448 = vmatprep.subr.mxu0 0.0
        %5449 = vmatpush1.msra.mxu0 %v5140
        %5450 = vmatprep.subr.mxu0 0.0
        %5451 = vmatpush1.msra.mxu0 %v5141
        %5452 = vmatprep.subr.mxu0 0.0
        %5453 = vmatpush1.msra.mxu0 %v5142
        %5454 = vmatprep.subr.mxu0 0.0
        %5455 = vmatpush1.msra.mxu0 %v5143
        %5456 = vmatprep.subr.mxu0 0.0
        %5457 = vmatpush1.msra.mxu0 %v5144
        %5458 = vmatprep.subr.mxu0 0.0
        %5459 = vmatpush1.msra.mxu0 %v5145
        %5460 = vmatprep.subr.mxu0 0.0
        %5461 = vmatpush1.msra.mxu0 %v5146
        %5462 = vmatprep.subr.mxu0 0.0
        %5463 = vmatpush1.msra.mxu0 %v5147
        %5464 = vmatprep.subr.mxu0 0.0
        %5465 = vmatpush1.msra.mxu0 %v5148
        %5466 = vmatprep.subr.mxu0 0.0
        %5467 = vmatpush1.msra.mxu0 %v5149
        %5468 = vmatprep.subr.mxu0 0.0
        %5469 = vmatpush1.msra.mxu0 %v5150
        %5470 = vmatprep.subr.mxu0 0.0
        %5471 = vmatpush1.msra.mxu0 %v5151
        %5472 = vmatprep.subr.mxu0 0.0
        %5473 = vmatpush1.msra.mxu0 %v5152
        %5474 = vmatprep.subr.mxu0 0.0
        %5475 = vmatpush1.msra.mxu0 %v5153
        %5476 = vmatprep.subr.mxu0 0.0
        %5477 = vmatpush1.msra.mxu0 %v5154
        %5478 = vmatprep.subr.mxu0 0.0
        %5479 = vmatpush1.msra.mxu0 %v5155
        %5480 = vmatprep.subr.mxu0 0.0
        %5481 = vmatpush1.msra.mxu0 %v5156
        %5482 = vmatprep.subr.mxu0 0.0
        %5483 = vmatpush1.msra.mxu0 %v5157
        %5484 = vmatprep.subr.mxu0 0.0
        %5485 = vmatpush1.msra.mxu0 %v5158
        %5486 = vmatprep.subr.mxu0 0.0
        %5487 = vmatpush1.msra.mxu0 %v5159
        %5488 = vmatprep.mubr.f32.mxu0 %v5082
        %5489 = vmatmul.mubr.f32.gmra.mrb[0].mxu0 %v5081
        %v5490 = vpop.f32.mrb[0].mxu0
        %v5491 = vadd.f32 %v5421, %v5490
        %v5492 = vpop.f32.mrb[0].mxu0
        %5493 = vdwg.mxu0
        %5494 = vmatprep.subr.mxu0 0.0
        %5495 = vmatpush1.msra.mxu0 %v5160
        %5496 = vmatprep.subr.mxu0 0.0
        %5497 = vmatpush1.msra.mxu0 %v5161
        %5498 = vmatprep.subr.mxu0 0.0
        %5499 = vmatpush1.msra.mxu0 %v5162
        %5500 = vmatprep.subr.mxu0 0.0
        %5501 = vmatpush1.msra.mxu0 %v5163
        %5502 = vmatprep.subr.mxu0 0.0
        %5503 = vmatpush1.msra.mxu0 %v5164
        %5504 = vmatprep.subr.mxu0 0.0
        %5505 = vmatpush1.msra.mxu0 %v5165
        %5506 = vmatprep.subr.mxu0 0.0
        %5507 = vmatpush1.msra.mxu0 %v5166
        %5508 = vmatprep.subr.mxu0 0.0
        %5509 = vmatpush1.msra.mxu0 %v5167
        %5510 = vmatprep.subr.mxu0 0.0
        %5511 = vmatpush1.msra.mxu0 %v5168
        %5512 = vmatprep.subr.mxu0 0.0
        %5513 = vmatpush1.msra.mxu0 %v5169
        %5514 = vmatprep.subr.mxu0 0.0
        %5515 = vmatpush1.msra.mxu0 %v5170
        %5516 = vmatprep.subr.mxu0 0.0
        %5517 = vmatpush1.msra.mxu0 %v5171
        %5518 = vmatprep.subr.mxu0 0.0
        %5519 = vmatpush1.msra.mxu0 %v5172
        %5520 = vmatprep.subr.mxu0 0.0
        %5521 = vmatpush1.msra.mxu0 %v5173
        %5522 = vmatprep.subr.mxu0 0.0
        %5523 = vmatpush1.msra.mxu0 %v5174
        %5524 = vmatprep.subr.mxu0 0.0
        %5525 = vmatpush1.msra.mxu0 %v5175
        %5526 = vmatprep.subr.mxu0 0.0
        %5527 = vmatpush1.msra.mxu0 %v5176
        %5528 = vmatprep.subr.mxu0 0.0
        %5529 = vmatpush1.msra.mxu0 %v5177
        %5530 = vmatprep.subr.mxu0 0.0
        %5531 = vmatpush1.msra.mxu0 %v5178
        %5532 = vmatprep.subr.mxu0 0.0
        %5533 = vmatpush1.msra.mxu0 %v5179
        %5534 = vmatprep.subr.mxu0 0.0
        %5535 = vmatpush1.msra.mxu0 %v5180
        %5536 = vmatprep.subr.mxu0 0.0
        %5537 = vmatpush1.msra.mxu0 %v5181
        %5538 = vmatprep.subr.mxu0 0.0
        %5539 = vmatpush1.msra.mxu0 %v5182
        %5540 = vmatprep.subr.mxu0 0.0
        %5541 = vmatpush1.msra.mxu0 %v5183
        %5542 = vmatprep.subr.mxu0 0.0
        %5543 = vmatpush1.msra.mxu0 %v5184
        %5544 = vmatprep.subr.mxu0 0.0
        %5545 = vmatpush1.msra.mxu0 %v5185
        %5546 = vmatprep.subr.mxu0 0.0
        %5547 = vmatpush1.msra.mxu0 %v5186
        %5548 = vmatprep.subr.mxu0 0.0
        %5549 = vmatpush1.msra.mxu0 %v5187
        %5550 = vmatprep.subr.mxu0 0.0
        %5551 = vmatpush1.msra.mxu0 %v5188
        %5552 = vmatprep.subr.mxu0 0.0
        %5553 = vmatpush1.msra.mxu0 %v5189
        %5554 = vmatprep.subr.mxu0 0.0
        %5555 = vmatpush1.msra.mxu0 %v5190
        %5556 = vmatprep.subr.mxu0 0.0
        %5557 = vmatpush1.msra.mxu0 %v5191
        %5558 = vmatprep.mubr.f32.mxu0 %v5084
        %5559 = vmatmul.mubr.f32.gmra.mrb[0].mxu0 %v5083
        %v5560 = vpop.f32.mrb[0].mxu0
        %v5561 = vadd.f32 %v5491, %v5560
        %v5562 = vpop.f32.mrb[0].mxu0
        %5563 = vdwg.mxu0
        %5564 = vmatprep.subr.mxu0 0.0
        %5565 = vmatpush1.msra.mxu0 %v5192
        %5566 = vmatprep.subr.mxu0 0.0
        %5567 = vmatpush1.msra.mxu0 %v5193
        %5568 = vmatprep.subr.mxu0 0.0
        %5569 = vmatpush1.msra.mxu0 %v5194
        %5570 = vmatprep.subr.mxu0 0.0
        %5571 = vmatpush1.msra.mxu0 %v5195
        %5572 = vmatprep.subr.mxu0 0.0
        %5573 = vmatpush1.msra.mxu0 %v5196
        %5574 = vmatprep.subr.mxu0 0.0
        %5575 = vmatpush1.msra.mxu0 %v5197
        %5576 = vmatprep.subr.mxu0 0.0
        %5577 = vmatpush1.msra.mxu0 %v5198
        %5578 = vmatprep.subr.mxu0 0.0
        %5579 = vmatpush1.msra.mxu0 %v5199
        %5580 = vmatprep.subr.mxu0 0.0
        %5581 = vmatpush1.msra.mxu0 %v5200
        %5582 = vmatprep.subr.mxu0 0.0
        %5583 = vmatpush1.msra.mxu0 %v5201
        %5584 = vmatprep.subr.mxu0 0.0
        %5585 = vmatpush1.msra.mxu0 %v5202
        %5586 = vmatprep.subr.mxu0 0.0
        %5587 = vmatpush1.msra.mxu0 %v5203
        %5588 = vmatprep.subr.mxu0 0.0
        %5589 = vmatpush1.msra.mxu0 %v5204
        %5590 = vmatprep.subr.mxu0 0.0
        %5591 = vmatpush1.msra.mxu0 %v5205
        %5592 = vmatprep.subr.mxu0 0.0
        %5593 = vmatpush1.msra.mxu0 %v5206
        %5594 = vmatprep.subr.mxu0 0.0
        %5595 = vmatpush1.msra.mxu0 %v5207
        %5596 = vmatprep.subr.mxu0 0.0
        %5597 = vmatpush1.msra.mxu0 %v5208
        %5598 = vmatprep.subr.mxu0 0.0
        %5599 = vmatpush1.msra.mxu0 %v5209
        %5600 = vmatprep.subr.mxu0 0.0
        %5601 = vmatpush1.msra.mxu0 %v5210
        %5602 = vmatprep.subr.mxu0 0.0
        %5603 = vmatpush1.msra.mxu0 %v5211
        %5604 = vmatprep.subr.mxu0 0.0
        %5605 = vmatpush1.msra.mxu0 %v5212
        %5606 = vmatprep.subr.mxu0 0.0
        %5607 = vmatpush1.msra.mxu0 %v5213
        %5608 = vmatprep.subr.mxu0 0.0
        %5609 = vmatpush1.msra.mxu0 %v5214
        %5610 = vmatprep.subr.mxu0 0.0
        %5611 = vmatpush1.msra.mxu0 %v5215
        %5612 = vmatprep.subr.mxu0 0.0
        %5613 = vmatpush1.msra.mxu0 %v5216
        %5614 = vmatprep.subr.mxu0 0.0
        %5615 = vmatpush1.msra.mxu0 %v5217
        %5616 = vmatprep.subr.mxu0 0.0
        %5617 = vmatpush1.msra.mxu0 %v5218
        %5618 = vmatprep.subr.mxu0 0.0
        %5619 = vmatpush1.msra.mxu0 %v5219
        %5620 = vmatprep.subr.mxu0 0.0
        %5621 = vmatpush1.msra.mxu0 %v5220
        %5622 = vmatprep.subr.mxu0 0.0
        %5623 = vmatpush1.msra.mxu0 %v5221
        %5624 = vmatprep.subr.mxu0 0.0
        %5625 = vmatpush1.msra.mxu0 %v5222
        %5626 = vmatprep.subr.mxu0 0.0
        %5627 = vmatpush1.msra.mxu0 %v5223
        %5628 = vmatprep.mubr.f32.mxu0 %v5086
        %5629 = vmatmul.mubr.f32.gmra.mrb[0].mxu0 %v5085
        %v5630 = vpop.f32.mrb[0].mxu0
        %v5631 = vadd.f32 %v5561, %v5630
        %v5632 = vpop.f32.mrb[0].mxu0
        %5633 = vdwg.mxu0
        %5634 = vmatprep.subr.mxu0 0.0
        %5635 = vmatpush1.msra.mxu0 %v5224
        %5636 = vmatprep.subr.mxu0 0.0
        %5637 = vmatpush1.msra.mxu0 %v5225
        %5638 = vmatprep.subr.mxu0 0.0
        %5639 = vmatpush1.msra.mxu0 %v5226
        %5640 = vmatprep.subr.mxu0 0.0
        %5641 = vmatpush1.msra.mxu0 %v5227
        %5642 = vmatprep.subr.mxu0 0.0
        %5643 = vmatpush1.msra.mxu0 %v5228
        %5644 = vmatprep.subr.mxu0 0.0
        %5645 = vmatpush1.msra.mxu0 %v5229
        %5646 = vmatprep.subr.mxu0 0.0
        %5647 = vmatpush1.msra.mxu0 %v5230
        %5648 = vmatprep.subr.mxu0 0.0
        %5649 = vmatpush1.msra.mxu0 %v5231
        %5650 = vmatprep.subr.mxu0 0.0
        %5651 = vmatpush1.msra.mxu0 %v5232
        %5652 = vmatprep.subr.mxu0 0.0
        %5653 = vmatpush1.msra.mxu0 %v5233
        %5654 = vmatprep.subr.mxu0 0.0
        %5655 = vmatpush1.msra.mxu0 %v5234
        %5656 = vmatprep.subr.mxu0 0.0
        %5657 = vmatpush1.msra.mxu0 %v5235
        %5658 = vmatprep.subr.mxu0 0.0
        %5659 = vmatpush1.msra.mxu0 %v5236
        %5660 = vmatprep.subr.mxu0 0.0
        %5661 = vmatpush1.msra.mxu0 %v5237
        %5662 = vmatprep.subr.mxu0 0.0
        %5663 = vmatpush1.msra.mxu0 %v5238
        %5664 = vmatprep.subr.mxu0 0.0
        %5665 = vmatpush1.msra.mxu0 %v5239
        %5666 = vmatprep.subr.mxu0 0.0
        %5667 = vmatpush1.msra.mxu0 %v5240
        %5668 = vmatprep.subr.mxu0 0.0
        %5669 = vmatpush1.msra.mxu0 %v5241
        %5670 = vmatprep.subr.mxu0 0.0
        %5671 = vmatpush1.msra.mxu0 %v5242
        %5672 = vmatprep.subr.mxu0 0.0
        %5673 = vmatpush1.msra.mxu0 %v5243
        %5674 = vmatprep.subr.mxu0 0.0
        %5675 = vmatpush1.msra.mxu0 %v5244
        %5676 = vmatprep.subr.mxu0 0.0
        %5677 = vmatpush1.msra.mxu0 %v5245
        %5678 = vmatprep.subr.mxu0 0.0
        %5679 = vmatpush1.msra.mxu0 %v5246
        %5680 = vmatprep.subr.mxu0 0.0
        %5681 = vmatpush1.msra.mxu0 %v5247
        %5682 = vmatprep.subr.mxu0 0.0
        %5683 = vmatpush1.msra.mxu0 %v5248
        %5684 = vmatprep.subr.mxu0 0.0
        %5685 = vmatpush1.msra.mxu0 %v5249
        %5686 = vmatprep.subr.mxu0 0.0
        %5687 = vmatpush1.msra.mxu0 %v5250
        %5688 = vmatprep.subr.mxu0 0.0
        %5689 = vmatpush1.msra.mxu0 %v5251
        %5690 = vmatprep.subr.mxu0 0.0
        %5691 = vmatpush1.msra.mxu0 %v5252
        %5692 = vmatprep.subr.mxu0 0.0
        %5693 = vmatpush1.msra.mxu0 %v5253
        %5694 = vmatprep.subr.mxu0 0.0
        %5695 = vmatpush1.msra.mxu0 %v5254
        %5696 = vmatprep.subr.mxu0 0.0
        %5697 = vmatpush1.msra.mxu0 %v5255
        %5698 = vmatprep.mubr.f32.mxu0 %v5088
        %5699 = vmatmul.mubr.f32.gmra.mrb[0].mxu0 %v5087
        %v5700 = vpop.f32.mrb[0].mxu0
        %v5701 = vadd.f32 %v5631, %v5700
        %v5702 = vpop.f32.mrb[0].mxu0
        %5703 = vdwg.mxu0
        %5704 = vmatprep.subr.mxu0 0.0
        %5705 = vmatpush1.msra.mxu0 %v5256
        %5706 = vmatprep.subr.mxu0 0.0
        %5707 = vmatpush1.msra.mxu0 %v5257
        %5708 = vmatprep.subr.mxu0 0.0
        %5709 = vmatpush1.msra.mxu0 %v5258
        %5710 = vmatprep.subr.mxu0 0.0
        %5711 = vmatpush1.msra.mxu0 %v5259
        %5712 = vmatprep.subr.mxu0 0.0
        %5713 = vmatpush1.msra.mxu0 %v5260
        %5714 = vmatprep.subr.mxu0 0.0
        %5715 = vmatpush1.msra.mxu0 %v5261
        %5716 = vmatprep.subr.mxu0 0.0
        %5717 = vmatpush1.msra.mxu0 %v5262
        %5718 = vmatprep.subr.mxu0 0.0
        %5719 = vmatpush1.msra.mxu0 %v5263
        %5720 = vmatprep.subr.mxu0 0.0
        %5721 = vmatpush1.msra.mxu0 %v5264
        %5722 = vmatprep.subr.mxu0 0.0
        %5723 = vmatpush1.msra.mxu0 %v5265
        %5724 = vmatprep.subr.mxu0 0.0
        %5725 = vmatpush1.msra.mxu0 %v5266
        %5726 = vmatprep.subr.mxu0 0.0
        %5727 = vmatpush1.msra.mxu0 %v5267
        %5728 = vmatprep.subr.mxu0 0.0
        %5729 = vmatpush1.msra.mxu0 %v5268
        %5730 = vmatprep.subr.mxu0 0.0
        %5731 = vmatpush1.msra.mxu0 %v5269
        %5732 = vmatprep.subr.mxu0 0.0
        %5733 = vmatpush1.msra.mxu0 %v5270
        %5734 = vmatprep.subr.mxu0 0.0
        %5735 = vmatpush1.msra.mxu0 %v5271
        %5736 = vmatprep.subr.mxu0 0.0
        %5737 = vmatpush1.msra.mxu0 %v5272
        %5738 = vmatprep.subr.mxu0 0.0
        %5739 = vmatpush1.msra.mxu0 %v5273
        %5740 = vmatprep.subr.mxu0 0.0
        %5741 = vmatpush1.msra.mxu0 %v5274
        %5742 = vmatprep.subr.mxu0 0.0
        %5743 = vmatpush1.msra.mxu0 %v5275
        %5744 = vmatprep.subr.mxu0 0.0
        %5745 = vmatpush1.msra.mxu0 %v5276
        %5746 = vmatprep.subr.mxu0 0.0
        %5747 = vmatpush1.msra.mxu0 %v5277
        %5748 = vmatprep.subr.mxu0 0.0
        %5749 = vmatpush1.msra.mxu0 %v5278
        %5750 = vmatprep.subr.mxu0 0.0
        %5751 = vmatpush1.msra.mxu0 %v5279
        %5752 = vmatprep.subr.mxu0 0.0
        %5753 = vmatpush1.msra.mxu0 %v5280
        %5754 = vmatprep.subr.mxu0 0.0
        %5755 = vmatpush1.msra.mxu0 %v5281
        %5756 = vmatprep.subr.mxu0 0.0
        %5757 = vmatpush1.msra.mxu0 %v5282
        %5758 = vmatprep.subr.mxu0 0.0
        %5759 = vmatpush1.msra.mxu0 %v5283
        %5760 = vmatprep.subr.mxu0 0.0
        %5761 = vmatpush1.msra.mxu0 %v5284
        %5762 = vmatprep.subr.mxu0 0.0
        %5763 = vmatpush1.msra.mxu0 %v5285
        %5764 = vmatprep.subr.mxu0 0.0
        %5765 = vmatpush1.msra.mxu0 %v5286
        %5766 = vmatprep.subr.mxu0 0.0
        %5767 = vmatpush1.msra.mxu0 %v5287
        %5768 = vmatprep.mubr.f32.mxu0 %v5090
        %5769 = vmatmul.mubr.f32.gmra.mrb[0].mxu0 %v5089
        %v5770 = vpop.f32.mrb[0].mxu0
        %v5771 = vadd.f32 %v5701, %v5770
        %v5772 = vpop.f32.mrb[0].mxu0
        %5773 = vdwg.mxu0
        %5774 = vmatprep.subr.mxu0 0.0
        %5775 = vmatpush1.msra.mxu0 %v5288
        %5776 = vmatprep.subr.mxu0 0.0
        %5777 = vmatpush1.msra.mxu0 %v5289
        %5778 = vmatprep.subr.mxu0 0.0
        %5779 = vmatpush1.msra.mxu0 %v5290
        %5780 = vmatprep.subr.mxu0 0.0
        %5781 = vmatpush1.msra.mxu0 %v5291
        %5782 = vmatprep.subr.mxu0 0.0
        %5783 = vmatpush1.msra.mxu0 %v5292
        %5784 = vmatprep.subr.mxu0 0.0
        %5785 = vmatpush1.msra.mxu0 %v5293
        %5786 = vmatprep.subr.mxu0 0.0
        %5787 = vmatpush1.msra.mxu0 %v5294
        %5788 = vmatprep.subr.mxu0 0.0
        %5789 = vmatpush1.msra.mxu0 %v5295
        %5790 = vmatprep.subr.mxu0 0.0
        %5791 = vmatpush1.msra.mxu0 %v5296
        %5792 = vmatprep.subr.mxu0 0.0
        %5793 = vmatpush1.msra.mxu0 %v5297
        %5794 = vmatprep.subr.mxu0 0.0
        %5795 = vmatpush1.msra.mxu0 %v5298
        %5796 = vmatprep.subr.mxu0 0.0
        %5797 = vmatpush1.msra.mxu0 %v5299
        %5798 = vmatprep.subr.mxu0 0.0
        %5799 = vmatpush1.msra.mxu0 %v5300
        %5800 = vmatprep.subr.mxu0 0.0
        %5801 = vmatpush1.msra.mxu0 %v5301
        %5802 = vmatprep.subr.mxu0 0.0
        %5803 = vmatpush1.msra.mxu0 %v5302
        %5804 = vmatprep.subr.mxu0 0.0
        %5805 = vmatpush1.msra.mxu0 %v5303
        %5806 = vmatprep.subr.mxu0 0.0
        %5807 = vmatpush1.msra.mxu0 %v5304
        %5808 = vmatprep.subr.mxu0 0.0
        %5809 = vmatpush1.msra.mxu0 %v5305
        %5810 = vmatprep.subr.mxu0 0.0
        %5811 = vmatpush1.msra.mxu0 %v5306
        %5812 = vmatprep.subr.mxu0 0.0
        %5813 = vmatpush1.msra.mxu0 %v5307
        %5814 = vmatprep.subr.mxu0 0.0
        %5815 = vmatpush1.msra.mxu0 %v5308
        %5816 = vmatprep.subr.mxu0 0.0
        %5817 = vmatpush1.msra.mxu0 %v5309
        %5818 = vmatprep.subr.mxu0 0.0
        %5819 = vmatpush1.msra.mxu0 %v5310
        %5820 = vmatprep.subr.mxu0 0.0
        %5821 = vmatpush1.msra.mxu0 %v5311
        %5822 = vmatprep.subr.mxu0 0.0
        %5823 = vmatpush1.msra.mxu0 %v5312
        %5824 = vmatprep.subr.mxu0 0.0
        %5825 = vmatpush1.msra.mxu0 %v5313
        %5826 = vmatprep.subr.mxu0 0.0
        %5827 = vmatpush1.msra.mxu0 %v5314
        %5828 = vmatprep.subr.mxu0 0.0
        %5829 = vmatpush1.msra.mxu0 %v5315
        %5830 = vmatprep.subr.mxu0 0.0
        %5831 = vmatpush1.msra.mxu0 %v5316
        %5832 = vmatprep.subr.mxu0 0.0
        %5833 = vmatpush1.msra.mxu0 %v5317
        %5834 = vmatprep.subr.mxu0 0.0
        %5835 = vmatpush1.msra.mxu0 %v5318
        %5836 = vmatprep.subr.mxu0 0.0
        %5837 = vmatpush1.msra.mxu0 %v5319
        %5838 = vmatprep.mubr.f32.mxu0 %v5092
        %5839 = vmatmul.mubr.f32.gmra.mrb[0].mxu0 %v5091
        %v5840 = vpop.f32.mrb[0].mxu0
        %v5841 = vadd.f32 %v5771, %v5840
        %v5842 = vpop.f32.mrb[0].mxu0
        %5843 = vdwg.mxu0
        %5844 = vmatprep.subr.mxu0 0.0
        %5845 = vmatpush1.msra.mxu0 %v5320
        %5846 = vmatprep.subr.mxu0 0.0
        %5847 = vmatpush1.msra.mxu0 %v5321
        %5848 = vmatprep.subr.mxu0 0.0
        %5849 = vmatpush1.msra.mxu0 %v5322
        %5850 = vmatprep.subr.mxu0 0.0
        %5851 = vmatpush1.msra.mxu0 %v5323
        %5852 = vmatprep.subr.mxu0 0.0
        %5853 = vmatpush1.msra.mxu0 %v5324
        %5854 = vmatprep.subr.mxu0 0.0
        %5855 = vmatpush1.msra.mxu0 %v5325
        %5856 = vmatprep.subr.mxu0 0.0
        %5857 = vmatpush1.msra.mxu0 %v5326
        %5858 = vmatprep.subr.mxu0 0.0
        %5859 = vmatpush1.msra.mxu0 %v5327
        %5860 = vmatprep.subr.mxu0 0.0
        %5861 = vmatpush1.msra.mxu0 %v5328
        %5862 = vmatprep.subr.mxu0 0.0
        %5863 = vmatpush1.msra.mxu0 %v5329
        %5864 = vmatprep.subr.mxu0 0.0
        %5865 = vmatpush1.msra.mxu0 %v5330
        %5866 = vmatprep.subr.mxu0 0.0
        %5867 = vmatpush1.msra.mxu0 %v5331
        %5868 = vmatprep.subr.mxu0 0.0
        %5869 = vmatpush1.msra.mxu0 %v5332
        %5870 = vmatprep.subr.mxu0 0.0
        %5871 = vmatpush1.msra.mxu0 %v5333
        %5872 = vmatprep.subr.mxu0 0.0
        %5873 = vmatpush1.msra.mxu0 %v5334
        %5874 = vmatprep.subr.mxu0 0.0
        %5875 = vmatpush1.msra.mxu0 %v5335
        %5876 = vmatprep.subr.mxu0 0.0
        %5877 = vmatpush1.msra.mxu0 %v5336
        %5878 = vmatprep.subr.mxu0 0.0
        %5879 = vmatpush1.msra.mxu0 %v5337
        %5880 = vmatprep.subr.mxu0 0.0
        %5881 = vmatpush1.msra.mxu0 %v5338
        %5882 = vmatprep.subr.mxu0 0.0
        %5883 = vmatpush1.msra.mxu0 %v5339
        %5884 = vmatprep.subr.mxu0 0.0
        %5885 = vmatpush1.msra.mxu0 %v5340
        %5886 = vmatprep.subr.mxu0 0.0
        %5887 = vmatpush1.msra.mxu0 %v5341
        %5888 = vmatprep.subr.mxu0 0.0
        %5889 = vmatpush1.msra.mxu0 %v5342
        %5890 = vmatprep.subr.mxu0 0.0
        %5891 = vmatpush1.msra.mxu0 %v5343
        %5892 = vmatprep.subr.mxu0 0.0
        %5893 = vmatpush1.msra.mxu0 %v5344
        %5894 = vmatprep.subr.mxu0 0.0
        %5895 = vmatpush1.msra.mxu0 %v5345
        %5896 = vmatprep.subr.mxu0 0.0
        %5897 = vmatpush1.msra.mxu0 %v5346
        %5898 = vmatprep.subr.mxu0 0.0
        %5899 = vmatpush1.msra.mxu0 %v5347
        %5900 = vmatprep.subr.mxu0 0.0
        %5901 = vmatpush1.msra.mxu0 %v5348
        %5902 = vmatprep.subr.mxu0 0.0
        %5903 = vmatpush1.msra.mxu0 %v5349
        %5904 = vmatprep.subr.mxu0 0.0
        %5905 = vmatpush1.msra.mxu0 %v5350
        %5906 = vmatprep.subr.mxu0 0.0
        %5907 = vmatpush1.msra.mxu0 %v5351
        %5908 = vmatprep.mubr.f32.mxu0 %v5094
        %5909 = vmatmul.mubr.f32.gmra.mrb[0].mxu0 %v5093
        %v5910 = vpop.f32.mrb[0].mxu0
        %v5911 = vadd.f32 %v5841, %v5910
        %v5912 = vpop.f32.mrb[0].mxu0
        %5913 = vdwg.mxu0
        %v5915 = vrot.slane %v5911, 1
        %v5917 = vadd.f32 %v4356, %v5915
        %s5918 = scalar_lea.vmem %s18, 1
        %v5919 = vld [vmem:[%s5918] sm:$0x1]
        %s5920 = scalar_lea.vmem %s19, 1
        %v5921 = vld [vmem:[%s5920] sm:$0x1]
        %v5922 = vsel %vm4329, %v5917, 0.0
        %5923 = vadd.xlane.f32.xlu0 %v5922
        %v5924 = vpop.xlane.xlu0 %5923
        %v5925 = vmul.f32 %v5924, %v1733
        %v5926 = vsub.f32 %v5917, %v5925
        %v5927 = vmul.f32 %v5926, %v5926
        %v5928 = vsel %vm4329, %v5927, 0.0
        %5929 = vadd.xlane.f32.xlu0 %v5928
        %v5930 = vpop.xlane.xlu0 %5929
        %v5931 = vmul.f32 %v5930, %v1733
        %v5932 = vadd.f32 %v5931, 1e-05
        %v5933 = vrsqrt.pop %v5932
        %v5934 = vmul.f32 %v5926, %v5933
        %v5936 = vlaneseq
        %v5937 = vshrl.u32 %v5936, 7
        %v5938 = vsub.s32 0, %v5937
        %v5939 = vrot.slane %v5919, %v5938
        %v5941 = vmul.f32 %v5934, %v5939
        %v5943 = vlaneseq
        %v5944 = vshrl.u32 %v5943, 7
        %v5945 = vsub.s32 0, %v5944
        %v5946 = vrot.slane %v5921, %v5945
        %v5948 = vadd.f32 %v5941, %v5946
        %5949 = vst.msk [vmem:[%s632 - $0x7] sm:$0x80] %vm4329, %v5948
        %s5950 = sand.u32 %s472, 1
        %s5951 = scalar_lea.sflag [#allocation4], %s5950
        %s5952 = sand.u32 %s472, 1
        %s5953 = scalar_lea.vmem [#allocation3], %s5952
        // Predicated region
        $region101: #{inverted_endogenous_encoder_forward.1} parent=99 // pred_check
          %p5954 = pneg %p482
        $region102: #{inverted_endogenous_encoder_forward.1} parent=99 // pred_check_branch
          %5956 = sbr.rel (%p5954) target = $region104
        $region103: #{inverted_endogenous_encoder_forward.1} parent=99 // pred_region
          %s5958 = ssub.s32 16, 16
          %5959 = vsyncadd %s5951, %s5958
          %s5960 = smul.addr %s34, 16
          %s5961 = scalar_lea.hbm %s20, %s5960
          %s5963 = sshll.u32 %s5953, 4
          %s5964 = int_to_ptr.vmem [resolvable:$true] %s5963
          %5966 = dma.vmem_to_hbm [thread:$0]  %s5964, 16, %s5961, %s5951
        $region104: #{inverted_endogenous_encoder_forward.1} parent=99 // pred_fallthru
          _
      $region100: #{inverted_endogenous_encoder_forward.1} parent=5 // pred_fallthru
        _
      %p5967 = scmp.le.s32.totalorder 2, %s29
      // Predicated region
      $region105: #{inverted_endogenous_encoder_forward.1} parent=5 // pred_check
        %p5968 = pneg %p5967
      $region106: #{inverted_endogenous_encoder_forward.1} parent=5 // pred_check_branch
        %5970 = sbr.rel (%p5968) target = $region108
      $region107: #{inverted_endogenous_encoder_forward.1} parent=5 // pred_region
        %s5971 = ssub.s32 %s29, 2
        // Predicated region
        $region109: #{inverted_endogenous_encoder_forward.1} parent=107 // pred_check
          %p5972 = pneg %p488
        $region110: #{inverted_endogenous_encoder_forward.1} parent=107 // pred_check_branch
          %5974 = sbr.rel (%p5972) target = $region112
        $region111: #{inverted_endogenous_encoder_forward.1} parent=107 // pred_region
          %s5975 = sand.u32 %s473, 1
          %s5976 = scalar_lea.sflag [#allocation4], %s5975
          %s5977 = sand.u32 %s473, 1
          %s5978 = scalar_lea.vmem [#allocation3], %s5977
          %5979 = dma.done %s5976, 16
        $region112: #{inverted_endogenous_encoder_forward.1} parent=107 // pred_fallthru
          _
      $region108: #{inverted_endogenous_encoder_forward.1} parent=5 // pred_fallthru
        _
    $region6: #{inverted_endogenous_encoder_forward.1} parent=1 // loop_footer
      %s33 = sadd.s32 1, %s29
    $region7: #{inverted_endogenous_encoder_forward.1} parent=1 // loop_footer_branch
      %28 = sbr.rel target = $region3
    $region8: #{inverted_endogenous_encoder_forward.1} parent=1 // loop_exit
      _
    %5980 = vsyncpa [#allocation4], 1
    %s5981 = scalar_lea.sflag [#allocation4], 1
    %5982 = vsyncpa %s5981, 1

</llo_original>
